<compile_context>
chip_gen: v7x
topology: tpu7x:2x2x1
jax: 0.10.0
libtpu: 0.0.40
codegen_flags: <defaults>
</compile_context>

<pallas_src>
import jax
import jax.numpy as jnp
from jax import lax
from jax.experimental import pallas as pl
from jax.experimental.pallas import tpu as pltpu

BN_EPS = 1e-5
LANE = 128


def _residual_layer_kernel(
    x_ref,                               # (1, H, W, Cp)        f32
    s1_ref, t1_ref, w1_ref, b1_ref,      # BN1 scale/shift (1,Cp), conv1 W (9*Cp,Cp) bf16, bias (1,Cp)
    s2_ref, t2_ref, w2_ref, b2_ref,      # BN2 scale/shift,        conv2 W,               bias
    o_ref,                               # (1, H, W, Cp)        f32
    pad_ref,                             # (1, H+2, W+2, Cp)    bf16 scratch (halo buffer)
    col_ref,                             # (H*W, 9*Cp)          bf16 scratch (im2col matrix)
):
    _, H, W, Cp = x_ref.shape
    HW = H * W
    x = x_ref[...]

    # Zero the halo buffer once per grid step (megacore-safe: every step owns
    # its own zeroing).  The interior is fully overwritten before every read,
    # the 1-pixel border stays zero for both convs.
    pad_ref[...] = jnp.zeros_like(pad_ref)

    taps = [(dy, dx) for dy in range(3) for dx in range(3)]

    def bn_relu_conv(v, s_ref, t_ref, w_ref, b_ref):
        # folded inference BatchNorm + ReLU (f32), then bf16 for the MXU
        a = jnp.maximum(v * s_ref[...] + t_ref[...], 0.0).astype(jnp.bfloat16)
        pad_ref[:, 1:H + 1, 1:W + 1, :] = a
        # im2col: write each shifted tap into its lane-aligned column slot.
        # Tap ordering (dy, dx, cin) matches the HWIO weight reshape.
        for t, (dy, dx) in enumerate(taps):
            col_ref[:, t * Cp:(t + 1) * Cp] = (
                pad_ref[:, dy:dy + H, dx:dx + W, :].reshape(HW, Cp))
        # Single MXU matmul, f32 accumulation.
        out = jnp.dot(col_ref[...], w_ref[...],
                      preferred_element_type=jnp.float32)
        out = out + b_ref[...]                                # (HW,Cp)+(1,Cp)
        return out.reshape(1, H, W, Cp)

    y = bn_relu_conv(x, s1_ref, t1_ref, w1_ref, b1_ref)       # conv1 block
    z = bn_relu_conv(y, s2_ref, t2_ref, w2_ref, b2_ref)       # conv2 block
    o_ref[...] = (z + x).astype(o_ref.dtype)                  # residual add


def _fold_bn(g, b, m, v):
    scale = g * lax.rsqrt(v + BN_EPS)
    shift = b - m * scale
    return scale, shift


def residual_layer_forward(x_nchw, params):
    """NCHW in / NCHW out.  Kernel runs in channel-padded NHWC."""
    # TODO(synk): for production, keep the model NHWC end-to-end and drop these
    # wrapper transposes (each is an extra HBM round trip of a mem-bound block).
    x = jnp.transpose(x_nchw, (0, 2, 3, 1)).astype(jnp.float32)   # NHWC
    N, H, W, C = x.shape
    Cout = params["w1"].shape[-1]
    assert C == Cout, "residual add requires in_channels == out_channels"
    Cp = max(LANE, -(-C // LANE) * LANE)          # pad channels to lane width

    def pad_c(a):                                  # zero-pad last axis C -> Cp
        return jnp.pad(a, [(0, 0)] * (a.ndim - 1) + [(0, Cp - C)])

    xp = pad_c(x)                                                  # (N,H,W,Cp)

    def prep_bn(g, b, m, v):
        s, t = _fold_bn(g, b, m, v)
        return pad_c(s.reshape(1, C)), pad_c(t.reshape(1, C))

    def prep_conv(w, cb):
        wp = jnp.pad(w, ((0, 0), (0, 0), (0, Cp - C), (0, Cp - C)))   # HWIO padded
        wp = wp.reshape(9 * Cp, Cp).astype(jnp.bfloat16)              # im2col weights
        return wp, pad_c(cb.reshape(1, C))

    s1, t1 = prep_bn(params["g1"], params["b1"], params["m1"], params["v1"])
    s2, t2 = prep_bn(params["g2"], params["b2"], params["m2"], params["v2"])
    w1, cb1 = prep_conv(params["w1"], params["cb1"])
    w2, cb2 = prep_conv(params["w2"], params["cb2"])

    img_spec = pl.BlockSpec((1, H, W, Cp), lambda n: (n, 0, 0, 0))
    vec_spec = pl.BlockSpec((1, Cp), lambda n: (0, 0))
    w_spec = pl.BlockSpec((9 * Cp, Cp), lambda n: (0, 0))

    # TODO(synk): for large spatial sizes, additionally tile H (1-row halo,
    # with a 2-row recompute ring for the second conv) so the per-step working
    # set stays within v7x's 64 MiB VMEM.
    out = pl.pallas_call(
        _residual_layer_kernel,
        out_shape=jax.ShapeDtypeStruct((N, H, W, Cp), jnp.float32),
        grid=(N,),
        in_specs=[img_spec,
                  vec_spec, vec_spec, w_spec, vec_spec,
                  vec_spec, vec_spec, w_spec, vec_spec],
        out_specs=img_spec,
        scratch_shapes=[
            pltpu.VMEM((1, H + 2, W + 2, Cp), jnp.bfloat16),   # halo buffer
            pltpu.VMEM((H * W, 9 * Cp), jnp.bfloat16),         # im2col matrix
        ],
        compiler_params=pltpu.CompilerParams(
            dimension_semantics=("parallel",),
            vmem_limit_bytes=32 * 1024 * 1024),
    )(xp, s1, t1, w1, cb1, s2, t2, w2, cb2)

    return jnp.transpose(out[..., :C], (0, 3, 1, 2))               # NCHW


def make_params(key, channels):
    """Deterministic synthetic parameters (no checkpoint loading)."""
    ks = jax.random.split(key, 12)
    c = channels

    def bnp(kg, kb, km, kv):
        g = 1.0 + 0.1 * jax.random.normal(kg, (1, 1, 1, c), jnp.float32)
        b = 0.1 * jax.random.normal(kb, (1, 1, 1, c), jnp.float32)
        m = 0.1 * jax.random.normal(km, (1, 1, 1, c), jnp.float32)
        v = 1.0 + 0.1 * jax.random.uniform(kv, (1, 1, 1, c), jnp.float32)
        return g, b, m, v

    g1, b1, m1, v1 = bnp(ks[0], ks[1], ks[2], ks[3])
    g2, b2, m2, v2 = bnp(ks[4], ks[5], ks[6], ks[7])
    w1 = 0.1 * jax.random.normal(ks[8], (3, 3, c, c), jnp.float32)   # HWIO
    cb1 = 0.05 * jax.random.normal(ks[9], (1, 1, 1, c), jnp.float32)
    w2 = 0.1 * jax.random.normal(ks[10], (3, 3, c, c), jnp.float32)  # HWIO
    cb2 = 0.05 * jax.random.normal(ks[11], (1, 1, 1, c), jnp.float32)
    return dict(g1=g1, b1=b1, m1=m1, v1=v1, w1=w1, cb1=cb1,
                g2=g2, b2=b2, m2=m2, v2=v2, w2=w2, cb2=cb2)


def ref_forward(x_nchw, params, match_kernel_bf16):
    """Pure-JAX reference.  match_kernel_bf16=True mirrors the kernel's
    bf16-input / f32-accumulate matmuls; False is the exact f32 module."""
    x = jnp.transpose(x_nchw, (0, 2, 3, 1)).astype(jnp.float32)

    def bn_relu(v, g, b, m, var):
        s, t = _fold_bn(g, b, m, var)
        return jnp.maximum(v * s + t, 0.0)

    def conv(v, w, cb):
        if match_kernel_bf16:
            v = v.astype(jnp.bfloat16)
            w = w.astype(jnp.bfloat16)
        y = lax.conv_general_dilated(
            v, w, window_strides=(1, 1), padding="SAME",
            dimension_numbers=("NHWC", "HWIO", "NHWC"),
            preferred_element_type=jnp.float32)
        return y + cb

    y = conv(bn_relu(x, params["g1"], params["b1"], params["m1"], params["v1"]),
             params["w1"], params["cb1"])
    z = conv(bn_relu(y, params["g2"], params["b2"], params["m2"], params["v2"]),
             params["w2"], params["cb2"])
    return jnp.transpose(z + x, (0, 3, 1, 2))


if __name__ == "__main__":
    key = jax.random.PRNGKey(0)
    k_x, k_p = jax.random.split(key)

    N, C, H, W = 2, 4, 16, 16          # stride=1 residual block: Cin == Cout
    x = jax.random.normal(k_x, (N, C, H, W), jnp.float32)
    params = make_params(k_p, C)

    out = jax.block_until_ready(residual_layer_forward(x, params))
    assert out.shape == (N, C, H, W)

    # Tight check vs. a reference using the kernel's numerics (bf16 matmul
    # inputs, f32 accumulation).
    ref_bf16 = jax.block_until_ready(ref_forward(x, params, match_kernel_bf16=True))
    err_tight = float(jnp.max(jnp.abs(out - ref_bf16)))
    assert err_tight < 1e-2, f"mismatch vs bf16-matched reference: {err_tight}"

    # Looser check vs. the exact f32 module semantics (difference is only the
    # bf16 rounding of conv inputs/weights).
    ref_f32 = jax.block_until_ready(ref_forward(x, params, match_kernel_bf16=False))
    err_f32 = float(jnp.max(jnp.abs(out - ref_f32)))
    assert err_f32 < 5e-2, f"mismatch vs f32 reference: {err_f32}"

    print("KERNEL_OK")
</pallas_src>

<mosaic_0001>
module attributes {stable_mosaic.version = 11 : i64} {
  func.func @_residual_layer_kernel(%arg0: i32, %arg1: memref<1x16x16x128xf32, #tpu.memory_space<vmem>>, %arg2: memref<1x128xf32, #tpu.memory_space<vmem>>, %arg3: memref<1x128xf32, #tpu.memory_space<vmem>>, %arg4: memref<1152x128xbf16, #tpu.memory_space<vmem>>, %arg5: memref<1x128xf32, #tpu.memory_space<vmem>>, %arg6: memref<1x128xf32, #tpu.memory_space<vmem>>, %arg7: memref<1x128xf32, #tpu.memory_space<vmem>>, %arg8: memref<1152x128xbf16, #tpu.memory_space<vmem>>, %arg9: memref<1x128xf32, #tpu.memory_space<vmem>>, %arg10: memref<1x16x16x128xf32, #tpu.memory_space<vmem>>, %arg11: memref<1x18x18x128xbf16, #tpu.memory_space<vmem>>, %arg12: memref<256x1152xbf16, #tpu.memory_space<vmem>>) attributes {dimension_semantics = [#tpu.dimension_semantics<parallel>], iteration_bounds = array<i64: 2>, scalar_prefetch = 0 : i64, scratch_operands = 2 : i64, tpu.core_type = #tpu.core_type<tc>, window_params = [{transform_indices = @transform_0, window_bounds = array<i64: 1, 16, 16, 128>}, {pipeline_mode = #tpu.pipeline_mode<synchronous>, transform_indices = @transform_1, window_bounds = array<i64: 1, 128>}, {pipeline_mode = #tpu.pipeline_mode<synchronous>, transform_indices = @transform_2, window_bounds = array<i64: 1, 128>}, {pipeline_mode = #tpu.pipeline_mode<synchronous>, transform_indices = @transform_3, window_bounds = array<i64: 1152, 128>}, {pipeline_mode = #tpu.pipeline_mode<synchronous>, transform_indices = @transform_4, window_bounds = array<i64: 1, 128>}, {pipeline_mode = #tpu.pipeline_mode<synchronous>, transform_indices = @transform_5, window_bounds = array<i64: 1, 128>}, {pipeline_mode = #tpu.pipeline_mode<synchronous>, transform_indices = @transform_6, window_bounds = array<i64: 1, 128>}, {pipeline_mode = #tpu.pipeline_mode<synchronous>, transform_indices = @transform_7, window_bounds = array<i64: 1152, 128>}, {pipeline_mode = #tpu.pipeline_mode<synchronous>, transform_indices = @transform_8, window_bounds = array<i64: 1, 128>}, {transform_indices = @transform_9, window_bounds = array<i64: 1, 16, 16, 128>}]} {
    %c0 = arith.constant 0 : index
    %c0_0 = arith.constant 0 : index
    %c0_1 = arith.constant 0 : index
    %c0_2 = arith.constant 0 : index
    %0 = vector.load %arg1[%c0, %c0_0, %c0_1, %c0_2] : memref<1x16x16x128xf32, #tpu.memory_space<vmem>>, vector<1x16x16x128xf32>
    %cst = arith.constant 0.000000e+00 : bf16
    %1 = vector.broadcast %cst : bf16 to vector<1x18x18x128xbf16>
    %c0_3 = arith.constant 0 : index
    %c0_4 = arith.constant 0 : index
    %c0_5 = arith.constant 0 : index
    %c0_6 = arith.constant 0 : index
    %2 = vector.load %arg11[%c0_3, %c0_4, %c0_5, %c0_6] : memref<1x18x18x128xbf16, #tpu.memory_space<vmem>>, vector<1x18x18x128xbf16>
    tpu.vector_store %arg11[%c0_3, %c0_4, %c0_5, %c0_6], %1 {strides = array<i32>} : memref<1x18x18x128xbf16, #tpu.memory_space<vmem>>, vector<1x18x18x128xbf16>,
    %c0_7 = arith.constant 0 : index
    %c0_8 = arith.constant 0 : index
    %3 = vector.load %arg2[%c0_7, %c0_8] : memref<1x128xf32, #tpu.memory_space<vmem>>, vector<1x128xf32>
    %4 = vector.shape_cast %3 : vector<1x128xf32> to vector<1x1x1x128xf32>
    %5 = vector.broadcast %4 : vector<1x1x1x128xf32> to vector<1x16x16x128xf32>
    %6 = arith.mulf %0, %5 : vector<1x16x16x128xf32>
    %c0_9 = arith.constant 0 : index
    %c0_10 = arith.constant 0 : index
    %7 = vector.load %arg3[%c0_9, %c0_10] : memref<1x128xf32, #tpu.memory_space<vmem>>, vector<1x128xf32>
    %8 = vector.shape_cast %7 : vector<1x128xf32> to vector<1x1x1x128xf32>
    %9 = vector.broadcast %8 : vector<1x1x1x128xf32> to vector<1x16x16x128xf32>
    %10 = arith.addf %6, %9 : vector<1x16x16x128xf32>
    %cst_11 = arith.constant 0.000000e+00 : f32
    %11 = vector.broadcast %cst_11 : f32 to vector<1x16x16x128xf32>
    %12 = arith.maximumf %10, %11 : vector<1x16x16x128xf32>
    %13 = arith.truncf %12 : vector<1x16x16x128xf32> to vector<1x16x16x128xbf16>
    %c0_12 = arith.constant 0 : index
    %c1 = arith.constant 1 : index
    %c1_13 = arith.constant 1 : index
    %c0_14 = arith.constant 0 : index
    %14 = vector.load %arg11[%c0_12, %c1, %c1_13, %c0_14] : memref<1x18x18x128xbf16, #tpu.memory_space<vmem>>, vector<1x16x16x128xbf16>
    tpu.vector_store %arg11[%c0_12, %c1, %c1_13, %c0_14], %13 {strides = array<i32>} : memref<1x18x18x128xbf16, #tpu.memory_space<vmem>>, vector<1x16x16x128xbf16>,
    %c0_15 = arith.constant 0 : index
    %c0_16 = arith.constant 0 : index
    %c0_17 = arith.constant 0 : index
    %c0_18 = arith.constant 0 : index
    %15 = vector.load %arg11[%c0_15, %c0_16, %c0_17, %c0_18] : memref<1x18x18x128xbf16, #tpu.memory_space<vmem>>, vector<1x16x16x128xbf16>
    %16 = vector.shape_cast %15 : vector<1x16x16x128xbf16> to vector<256x128xbf16>
    %c0_19 = arith.constant 0 : index
    %c0_20 = arith.constant 0 : index
    %17 = vector.load %arg12[%c0_19, %c0_20] : memref<256x1152xbf16, #tpu.memory_space<vmem>>, vector<256x128xbf16>
    tpu.vector_store %arg12[%c0_19, %c0_20], %16 {strides = array<i32>} : memref<256x1152xbf16, #tpu.memory_space<vmem>>, vector<256x128xbf16>,
    %c0_21 = arith.constant 0 : index
    %c0_22 = arith.constant 0 : index
    %c1_23 = arith.constant 1 : index
    %c0_24 = arith.constant 0 : index
    %18 = vector.load %arg11[%c0_21, %c0_22, %c1_23, %c0_24] : memref<1x18x18x128xbf16, #tpu.memory_space<vmem>>, vector<1x16x16x128xbf16>
    %19 = vector.shape_cast %18 : vector<1x16x16x128xbf16> to vector<256x128xbf16>
    %c0_25 = arith.constant 0 : index
    %c128 = arith.constant 128 : index
    %20 = vector.load %arg12[%c0_25, %c128] : memref<256x1152xbf16, #tpu.memory_space<vmem>>, vector<256x128xbf16>
    tpu.vector_store %arg12[%c0_25, %c128], %19 {strides = array<i32>} : memref<256x1152xbf16, #tpu.memory_space<vmem>>, vector<256x128xbf16>,
    %c0_26 = arith.constant 0 : index
    %c0_27 = arith.constant 0 : index
    %c2 = arith.constant 2 : index
    %c0_28 = arith.constant 0 : index
    %21 = vector.load %arg11[%c0_26, %c0_27, %c2, %c0_28] : memref<1x18x18x128xbf16, #tpu.memory_space<vmem>>, vector<1x16x16x128xbf16>
    %22 = vector.shape_cast %21 : vector<1x16x16x128xbf16> to vector<256x128xbf16>
    %c0_29 = arith.constant 0 : index
    %c256 = arith.constant 256 : index
    %23 = vector.load %arg12[%c0_29, %c256] : memref<256x1152xbf16, #tpu.memory_space<vmem>>, vector<256x128xbf16>
    tpu.vector_store %arg12[%c0_29, %c256], %22 {strides = array<i32>} : memref<256x1152xbf16, #tpu.memory_space<vmem>>, vector<256x128xbf16>,
    %c0_30 = arith.constant 0 : index
    %c1_31 = arith.constant 1 : index
    %c0_32 = arith.constant 0 : index
    %c0_33 = arith.constant 0 : index
    %24 = vector.load %arg11[%c0_30, %c1_31, %c0_32, %c0_33] : memref<1x18x18x128xbf16, #tpu.memory_space<vmem>>, vector<1x16x16x128xbf16>
    %25 = vector.shape_cast %24 : vector<1x16x16x128xbf16> to vector<256x128xbf16>
    %c0_34 = arith.constant 0 : index
    %c384 = arith.constant 384 : index
    %26 = vector.load %arg12[%c0_34, %c384] : memref<256x1152xbf16, #tpu.memory_space<vmem>>, vector<256x128xbf16>
    tpu.vector_store %arg12[%c0_34, %c384], %25 {strides = array<i32>} : memref<256x1152xbf16, #tpu.memory_space<vmem>>, vector<256x128xbf16>,
    %c0_35 = arith.constant 0 : index
    %c1_36 = arith.constant 1 : index
    %c1_37 = arith.constant 1 : index
    %c0_38 = arith.constant 0 : index
    %27 = vector.load %arg11[%c0_35, %c1_36, %c1_37, %c0_38] : memref<1x18x18x128xbf16, #tpu.memory_space<vmem>>, vector<1x16x16x128xbf16>
    %28 = vector.shape_cast %27 : vector<1x16x16x128xbf16> to vector<256x128xbf16>
    %c0_39 = arith.constant 0 : index
    %c512 = arith.constant 512 : index
    %29 = vector.load %arg12[%c0_39, %c512] : memref<256x1152xbf16, #tpu.memory_space<vmem>>, vector<256x128xbf16>
    tpu.vector_store %arg12[%c0_39, %c512], %28 {strides = array<i32>} : memref<256x1152xbf16, #tpu.memory_space<vmem>>, vector<256x128xbf16>,
    %c0_40 = arith.constant 0 : index
    %c1_41 = arith.constant 1 : index
    %c2_42 = arith.constant 2 : index
    %c0_43 = arith.constant 0 : index
    %30 = vector.load %arg11[%c0_40, %c1_41, %c2_42, %c0_43] : memref<1x18x18x128xbf16, #tpu.memory_space<vmem>>, vector<1x16x16x128xbf16>
    %31 = vector.shape_cast %30 : vector<1x16x16x128xbf16> to vector<256x128xbf16>
    %c0_44 = arith.constant 0 : index
    %c640 = arith.constant 640 : index
    %32 = vector.load %arg12[%c0_44, %c640] : memref<256x1152xbf16, #tpu.memory_space<vmem>>, vector<256x128xbf16>
    tpu.vector_store %arg12[%c0_44, %c640], %31 {strides = array<i32>} : memref<256x1152xbf16, #tpu.memory_space<vmem>>, vector<256x128xbf16>,
    %c0_45 = arith.constant 0 : index
    %c2_46 = arith.constant 2 : index
    %c0_47 = arith.constant 0 : index
    %c0_48 = arith.constant 0 : index
    %33 = vector.load %arg11[%c0_45, %c2_46, %c0_47, %c0_48] : memref<1x18x18x128xbf16, #tpu.memory_space<vmem>>, vector<1x16x16x128xbf16>
    %34 = vector.shape_cast %33 : vector<1x16x16x128xbf16> to vector<256x128xbf16>
    %c0_49 = arith.constant 0 : index
    %c768 = arith.constant 768 : index
    %35 = vector.load %arg12[%c0_49, %c768] : memref<256x1152xbf16, #tpu.memory_space<vmem>>, vector<256x128xbf16>
    tpu.vector_store %arg12[%c0_49, %c768], %34 {strides = array<i32>} : memref<256x1152xbf16, #tpu.memory_space<vmem>>, vector<256x128xbf16>,
    %c0_50 = arith.constant 0 : index
    %c2_51 = arith.constant 2 : index
    %c1_52 = arith.constant 1 : index
    %c0_53 = arith.constant 0 : index
    %36 = vector.load %arg11[%c0_50, %c2_51, %c1_52, %c0_53] : memref<1x18x18x128xbf16, #tpu.memory_space<vmem>>, vector<1x16x16x128xbf16>
    %37 = vector.shape_cast %36 : vector<1x16x16x128xbf16> to vector<256x128xbf16>
    %c0_54 = arith.constant 0 : index
    %c896 = arith.constant 896 : index
    %38 = vector.load %arg12[%c0_54, %c896] : memref<256x1152xbf16, #tpu.memory_space<vmem>>, vector<256x128xbf16>
    tpu.vector_store %arg12[%c0_54, %c896], %37 {strides = array<i32>} : memref<256x1152xbf16, #tpu.memory_space<vmem>>, vector<256x128xbf16>,
    %c0_55 = arith.constant 0 : index
    %c2_56 = arith.constant 2 : index
    %c2_57 = arith.constant 2 : index
    %c0_58 = arith.constant 0 : index
    %39 = vector.load %arg11[%c0_55, %c2_56, %c2_57, %c0_58] : memref<1x18x18x128xbf16, #tpu.memory_space<vmem>>, vector<1x16x16x128xbf16>
    %40 = vector.shape_cast %39 : vector<1x16x16x128xbf16> to vector<256x128xbf16>
    %c0_59 = arith.constant 0 : index
    %c1024 = arith.constant 1024 : index
    %41 = vector.load %arg12[%c0_59, %c1024] : memref<256x1152xbf16, #tpu.memory_space<vmem>>, vector<256x128xbf16>
    tpu.vector_store %arg12[%c0_59, %c1024], %40 {strides = array<i32>} : memref<256x1152xbf16, #tpu.memory_space<vmem>>, vector<256x128xbf16>,
    %c0_60 = arith.constant 0 : index
    %c0_61 = arith.constant 0 : index
    %42 = vector.load %arg12[%c0_60, %c0_61] : memref<256x1152xbf16, #tpu.memory_space<vmem>>, vector<256x1152xbf16>
    %c0_62 = arith.constant 0 : index
    %c0_63 = arith.constant 0 : index
    %43 = vector.load %arg4[%c0_62, %c0_63] : memref<1152x128xbf16, #tpu.memory_space<vmem>>, vector<1152x128xbf16>
    %cst_64 = arith.constant dense<0.000000e+00> : vector<256x128xf32>
    %44 = tpu.matmul %42, %43, %cst_64 {dimension_numbers = #tpu.dot_dimension_numbers<[1], [0], [0], [1], [0, 0, 1, 1], [], []>} : vector<256x1152xbf16>, vector<1152x128xbf16>, vector<256x128xf32> -> vector<256x128xf32>
    %c0_65 = arith.constant 0 : index
    %c0_66 = arith.constant 0 : index
    %45 = vector.load %arg5[%c0_65, %c0_66] : memref<1x128xf32, #tpu.memory_space<vmem>>, vector<1x128xf32>
    %46 = vector.broadcast %45 : vector<1x128xf32> to vector<256x128xf32>
    %47 = arith.addf %44, %46 : vector<256x128xf32>
    %48 = vector.shape_cast %47 : vector<256x128xf32> to vector<1x16x16x128xf32>
    %c0_67 = arith.constant 0 : index
    %c0_68 = arith.constant 0 : index
    %49 = vector.load %arg6[%c0_67, %c0_68] : memref<1x128xf32, #tpu.memory_space<vmem>>, vector<1x128xf32>
    %50 = vector.shape_cast %49 : vector<1x128xf32> to vector<1x1x1x128xf32>
    %51 = vector.broadcast %50 : vector<1x1x1x128xf32> to vector<1x16x16x128xf32>
    %52 = arith.mulf %48, %51 : vector<1x16x16x128xf32>
    %c0_69 = arith.constant 0 : index
    %c0_70 = arith.constant 0 : index
    %53 = vector.load %arg7[%c0_69, %c0_70] : memref<1x128xf32, #tpu.memory_space<vmem>>, vector<1x128xf32>
    %54 = vector.shape_cast %53 : vector<1x128xf32> to vector<1x1x1x128xf32>
    %55 = vector.broadcast %54 : vector<1x1x1x128xf32> to vector<1x16x16x128xf32>
    %56 = arith.addf %52, %55 : vector<1x16x16x128xf32>
    %cst_71 = arith.constant 0.000000e+00 : f32
    %57 = vector.broadcast %cst_71 : f32 to vector<1x16x16x128xf32>
    %58 = arith.maximumf %56, %57 : vector<1x16x16x128xf32>
    %59 = arith.truncf %58 : vector<1x16x16x128xf32> to vector<1x16x16x128xbf16>
    %c0_72 = arith.constant 0 : index
    %c1_73 = arith.constant 1 : index
    %c1_74 = arith.constant 1 : index
    %c0_75 = arith.constant 0 : index
    %60 = vector.load %arg11[%c0_72, %c1_73, %c1_74, %c0_75] : memref<1x18x18x128xbf16, #tpu.memory_space<vmem>>, vector<1x16x16x128xbf16>
    tpu.vector_store %arg11[%c0_72, %c1_73, %c1_74, %c0_75], %59 {strides = array<i32>} : memref<1x18x18x128xbf16, #tpu.memory_space<vmem>>, vector<1x16x16x128xbf16>,
    %c0_76 = arith.constant 0 : index
    %c0_77 = arith.constant 0 : index
    %c0_78 = arith.constant 0 : index
    %c0_79 = arith.constant 0 : index
    %61 = vector.load %arg11[%c0_76, %c0_77, %c0_78, %c0_79] : memref<1x18x18x128xbf16, #tpu.memory_space<vmem>>, vector<1x16x16x128xbf16>
    %62 = vector.shape_cast %61 : vector<1x16x16x128xbf16> to vector<256x128xbf16>
    %c0_80 = arith.constant 0 : index
    %c0_81 = arith.constant 0 : index
    %63 = vector.load %arg12[%c0_80, %c0_81] : memref<256x1152xbf16, #tpu.memory_space<vmem>>, vector<256x128xbf16>
    tpu.vector_store %arg12[%c0_80, %c0_81], %62 {strides = array<i32>} : memref<256x1152xbf16, #tpu.memory_space<vmem>>, vector<256x128xbf16>,
    %c0_82 = arith.constant 0 : index
    %c0_83 = arith.constant 0 : index
    %c1_84 = arith.constant 1 : index
    %c0_85 = arith.constant 0 : index
    %64 = vector.load %arg11[%c0_82, %c0_83, %c1_84, %c0_85] : memref<1x18x18x128xbf16, #tpu.memory_space<vmem>>, vector<1x16x16x128xbf16>
    %65 = vector.shape_cast %64 : vector<1x16x16x128xbf16> to vector<256x128xbf16>
    %c0_86 = arith.constant 0 : index
    %c128_87 = arith.constant 128 : index
    %66 = vector.load %arg12[%c0_86, %c128_87] : memref<256x1152xbf16, #tpu.memory_space<vmem>>, vector<256x128xbf16>
    tpu.vector_store %arg12[%c0_86, %c128_87], %65 {strides = array<i32>} : memref<256x1152xbf16, #tpu.memory_space<vmem>>, vector<256x128xbf16>,
    %c0_88 = arith.constant 0 : index
    %c0_89 = arith.constant 0 : index
    %c2_90 = arith.constant 2 : index
    %c0_91 = arith.constant 0 : index
    %67 = vector.load %arg11[%c0_88, %c0_89, %c2_90, %c0_91] : memref<1x18x18x128xbf16, #tpu.memory_space<vmem>>, vector<1x16x16x128xbf16>
    %68 = vector.shape_cast %67 : vector<1x16x16x128xbf16> to vector<256x128xbf16>
    %c0_92 = arith.constant 0 : index
    %c256_93 = arith.constant 256 : index
    %69 = vector.load %arg12[%c0_92, %c256_93] : memref<256x1152xbf16, #tpu.memory_space<vmem>>, vector<256x128xbf16>
    tpu.vector_store %arg12[%c0_92, %c256_93], %68 {strides = array<i32>} : memref<256x1152xbf16, #tpu.memory_space<vmem>>, vector<256x128xbf16>,
    %c0_94 = arith.constant 0 : index
    %c1_95 = arith.constant 1 : index
    %c0_96 = arith.constant 0 : index
    %c0_97 = arith.constant 0 : index
    %70 = vector.load %arg11[%c0_94, %c1_95, %c0_96, %c0_97] : memref<1x18x18x128xbf16, #tpu.memory_space<vmem>>, vector<1x16x16x128xbf16>
    %71 = vector.shape_cast %70 : vector<1x16x16x128xbf16> to vector<256x128xbf16>
    %c0_98 = arith.constant 0 : index
    %c384_99 = arith.constant 384 : index
    %72 = vector.load %arg12[%c0_98, %c384_99] : memref<256x1152xbf16, #tpu.memory_space<vmem>>, vector<256x128xbf16>
    tpu.vector_store %arg12[%c0_98, %c384_99], %71 {strides = array<i32>} : memref<256x1152xbf16, #tpu.memory_space<vmem>>, vector<256x128xbf16>,
    %c0_100 = arith.constant 0 : index
    %c1_101 = arith.constant 1 : index
    %c1_102 = arith.constant 1 : index
    %c0_103 = arith.constant 0 : index
    %73 = vector.load %arg11[%c0_100, %c1_101, %c1_102, %c0_103] : memref<1x18x18x128xbf16, #tpu.memory_space<vmem>>, vector<1x16x16x128xbf16>
    %74 = vector.shape_cast %73 : vector<1x16x16x128xbf16> to vector<256x128xbf16>
    %c0_104 = arith.constant 0 : index
    %c512_105 = arith.constant 512 : index
    %75 = vector.load %arg12[%c0_104, %c512_105] : memref<256x1152xbf16, #tpu.memory_space<vmem>>, vector<256x128xbf16>
    tpu.vector_store %arg12[%c0_104, %c512_105], %74 {strides = array<i32>} : memref<256x1152xbf16, #tpu.memory_space<vmem>>, vector<256x128xbf16>,
    %c0_106 = arith.constant 0 : index
    %c1_107 = arith.constant 1 : index
    %c2_108 = arith.constant 2 : index
    %c0_109 = arith.constant 0 : index
    %76 = vector.load %arg11[%c0_106, %c1_107, %c2_108, %c0_109] : memref<1x18x18x128xbf16, #tpu.memory_space<vmem>>, vector<1x16x16x128xbf16>
    %77 = vector.shape_cast %76 : vector<1x16x16x128xbf16> to vector<256x128xbf16>
    %c0_110 = arith.constant 0 : index
    %c640_111 = arith.constant 640 : index
    %78 = vector.load %arg12[%c0_110, %c640_111] : memref<256x1152xbf16, #tpu.memory_space<vmem>>, vector<256x128xbf16>
    tpu.vector_store %arg12[%c0_110, %c640_111], %77 {strides = array<i32>} : memref<256x1152xbf16, #tpu.memory_space<vmem>>, vector<256x128xbf16>,
    %c0_112 = arith.constant 0 : index
    %c2_113 = arith.constant 2 : index
    %c0_114 = arith.constant 0 : index
    %c0_115 = arith.constant 0 : index
    %79 = vector.load %arg11[%c0_112, %c2_113, %c0_114, %c0_115] : memref<1x18x18x128xbf16, #tpu.memory_space<vmem>>, vector<1x16x16x128xbf16>
    %80 = vector.shape_cast %79 : vector<1x16x16x128xbf16> to vector<256x128xbf16>
    %c0_116 = arith.constant 0 : index
    %c768_117 = arith.constant 768 : index
    %81 = vector.load %arg12[%c0_116, %c768_117] : memref<256x1152xbf16, #tpu.memory_space<vmem>>, vector<256x128xbf16>
    tpu.vector_store %arg12[%c0_116, %c768_117], %80 {strides = array<i32>} : memref<256x1152xbf16, #tpu.memory_space<vmem>>, vector<256x128xbf16>,
    %c0_118 = arith.constant 0 : index
    %c2_119 = arith.constant 2 : index
    %c1_120 = arith.constant 1 : index
    %c0_121 = arith.constant 0 : index
    %82 = vector.load %arg11[%c0_118, %c2_119, %c1_120, %c0_121] : memref<1x18x18x128xbf16, #tpu.memory_space<vmem>>, vector<1x16x16x128xbf16>
    %83 = vector.shape_cast %82 : vector<1x16x16x128xbf16> to vector<256x128xbf16>
    %c0_122 = arith.constant 0 : index
    %c896_123 = arith.constant 896 : index
    %84 = vector.load %arg12[%c0_122, %c896_123] : memref<256x1152xbf16, #tpu.memory_space<vmem>>, vector<256x128xbf16>
    tpu.vector_store %arg12[%c0_122, %c896_123], %83 {strides = array<i32>} : memref<256x1152xbf16, #tpu.memory_space<vmem>>, vector<256x128xbf16>,
    %c0_124 = arith.constant 0 : index
    %c2_125 = arith.constant 2 : index
    %c2_126 = arith.constant 2 : index
    %c0_127 = arith.constant 0 : index
    %85 = vector.load %arg11[%c0_124, %c2_125, %c2_126, %c0_127] : memref<1x18x18x128xbf16, #tpu.memory_space<vmem>>, vector<1x16x16x128xbf16>
    %86 = vector.shape_cast %85 : vector<1x16x16x128xbf16> to vector<256x128xbf16>
    %c0_128 = arith.constant 0 : index
    %c1024_129 = arith.constant 1024 : index
    %87 = vector.load %arg12[%c0_128, %c1024_129] : memref<256x1152xbf16, #tpu.memory_space<vmem>>, vector<256x128xbf16>
    tpu.vector_store %arg12[%c0_128, %c1024_129], %86 {strides = array<i32>} : memref<256x1152xbf16, #tpu.memory_space<vmem>>, vector<256x128xbf16>,
    %c0_130 = arith.constant 0 : index
    %c0_131 = arith.constant 0 : index
    %88 = vector.load %arg12[%c0_130, %c0_131] : memref<256x1152xbf16, #tpu.memory_space<vmem>>, vector<256x1152xbf16>
    %c0_132 = arith.constant 0 : index
    %c0_133 = arith.constant 0 : index
    %89 = vector.load %arg8[%c0_132, %c0_133] : memref<1152x128xbf16, #tpu.memory_space<vmem>>, vector<1152x128xbf16>
    %cst_134 = arith.constant dense<0.000000e+00> : vector<256x128xf32>
    %90 = tpu.matmul %88, %89, %cst_134 {dimension_numbers = #tpu.dot_dimension_numbers<[1], [0], [0], [1], [0, 0, 1, 1], [], []>} : vector<256x1152xbf16>, vector<1152x128xbf16>, vector<256x128xf32> -> vector<256x128xf32>
    %c0_135 = arith.constant 0 : index
    %c0_136 = arith.constant 0 : index
    %91 = vector.load %arg9[%c0_135, %c0_136] : memref<1x128xf32, #tpu.memory_space<vmem>>, vector<1x128xf32>
    %92 = vector.broadcast %91 : vector<1x128xf32> to vector<256x128xf32>
    %93 = arith.addf %90, %92 : vector<256x128xf32>
    %94 = vector.shape_cast %93 : vector<256x128xf32> to vector<1x16x16x128xf32>
    %95 = arith.addf %94, %0 : vector<1x16x16x128xf32>
    %c0_137 = arith.constant 0 : index
    %c0_138 = arith.constant 0 : index
    %c0_139 = arith.constant 0 : index
    %c0_140 = arith.constant 0 : index
    %96 = vector.load %arg10[%c0_137, %c0_138, %c0_139, %c0_140] : memref<1x16x16x128xf32, #tpu.memory_space<vmem>>, vector<1x16x16x128xf32>
    tpu.vector_store %arg10[%c0_137, %c0_138, %c0_139, %c0_140], %95 {strides = array<i32>} : memref<1x16x16x128xf32, #tpu.memory_space<vmem>>, vector<1x16x16x128xf32>,
    return
  }
  func.func @transform_0(%arg0: i32) -> (i32, i32, i32, i32) {
    %c0_i32 = arith.constant 0 : i32
    %c0_i32_0 = arith.constant 0 : i32
    %c0_i32_1 = arith.constant 0 : i32
    %c0_i32_2 = arith.constant 0 : i32
    return %arg0, %c0_i32, %c0_i32_0, %c0_i32_1 : i32, i32, i32, i32
  }
  func.func @transform_1(%arg0: i32) -> (i32, i32) {
    %c0_i32 = arith.constant 0 : i32
    %c0_i32_0 = arith.constant 0 : i32
    %c0_i32_1 = arith.constant 0 : i32
    return %c0_i32, %c0_i32_0 : i32, i32
  }
  func.func @transform_2(%arg0: i32) -> (i32, i32) {
    %c0_i32 = arith.constant 0 : i32
    %c0_i32_0 = arith.constant 0 : i32
    %c0_i32_1 = arith.constant 0 : i32
    return %c0_i32, %c0_i32_0 : i32, i32
  }
  func.func @transform_3(%arg0: i32) -> (i32, i32) {
    %c0_i32 = arith.constant 0 : i32
    %c0_i32_0 = arith.constant 0 : i32
    %c0_i32_1 = arith.constant 0 : i32
    return %c0_i32, %c0_i32_0 : i32, i32
  }
  func.func @transform_4(%arg0: i32) -> (i32, i32) {
    %c0_i32 = arith.constant 0 : i32
    %c0_i32_0 = arith.constant 0 : i32
    %c0_i32_1 = arith.constant 0 : i32
    return %c0_i32, %c0_i32_0 : i32, i32
  }
  func.func @transform_5(%arg0: i32) -> (i32, i32) {
    %c0_i32 = arith.constant 0 : i32
    %c0_i32_0 = arith.constant 0 : i32
    %c0_i32_1 = arith.constant 0 : i32
    return %c0_i32, %c0_i32_0 : i32, i32
  }
  func.func @transform_6(%arg0: i32) -> (i32, i32) {
    %c0_i32 = arith.constant 0 : i32
    %c0_i32_0 = arith.constant 0 : i32
    %c0_i32_1 = arith.constant 0 : i32
    return %c0_i32, %c0_i32_0 : i32, i32
  }
  func.func @transform_7(%arg0: i32) -> (i32, i32) {
    %c0_i32 = arith.constant 0 : i32
    %c0_i32_0 = arith.constant 0 : i32
    %c0_i32_1 = arith.constant 0 : i32
    return %c0_i32, %c0_i32_0 : i32, i32
  }
  func.func @transform_8(%arg0: i32) -> (i32, i32) {
    %c0_i32 = arith.constant 0 : i32
    %c0_i32_0 = arith.constant 0 : i32
    %c0_i32_1 = arith.constant 0 : i32
    return %c0_i32, %c0_i32_0 : i32, i32
  }
  func.func @transform_9(%arg0: i32) -> (i32, i32, i32, i32) {
    %c0_i32 = arith.constant 0 : i32
    %c0_i32_0 = arith.constant 0 : i32
    %c0_i32_1 = arith.constant 0 : i32
    %c0_i32_2 = arith.constant 0 : i32
    return %arg0, %c0_i32, %c0_i32_0, %c0_i32_1 : i32, i32, i32, i32
  }
}

</mosaic_0001>

<llo_original>
// kernel: tpu_custom_call.1
$region0: #{tpu_custom_call.1}
  #allocation0 [shape = 'u32[]', space=smem, size = 0x4, offset = 0x4, fixed_abs, tag = 'smem constant byte address 0x4 - core index']
  #allocation1 [shape = 'u32[144,128]{1,0:T(1,128)}', space=vmem, size = 0x12000, scoped, tag = 'internal scratch']
  #allocation2 [shape = 'bf16[1,18,18,128]{3,2,1,0:T(8,128)(2,1)}', space=vmem, size = 0x1b000, scoped, tag = 'scratch operand']
  #allocation3 [shape = 'bf16[256,1152]{1,0:T(16,128)(2,1)}', space=vmem, size = 0x90000, scoped, tag = 'scratch operand']
  %s0 = inlined_call_operand.hbm [shape: f32[2,16,16,128], index: 0, kind: input, shape index: {}]
  %s1 = inlined_call_operand.vmem [shape: f32[1,128], index: 1, kind: input, shape index: {}]
  %s2 = inlined_call_operand.vmem [shape: f32[1,128], index: 2, kind: input, shape index: {}]
  %s3 = inlined_call_operand.hbm [shape: bf16[1152,128], index: 3, kind: input, shape index: {}]
  %s4 = inlined_call_operand.vmem [shape: f32[1,128], index: 4, kind: input, shape index: {}]
  %s5 = inlined_call_operand.vmem [shape: f32[1,128], index: 5, kind: input, shape index: {}]
  %s6 = inlined_call_operand.vmem [shape: f32[1,128], index: 6, kind: input, shape index: {}]
  %s7 = inlined_call_operand.hbm [shape: bf16[1152,128], index: 7, kind: input, shape index: {}]
  %s8 = inlined_call_operand.vmem [shape: f32[1,128], index: 8, kind: input, shape index: {}]
  %s9 = inlined_call_operand.hbm [shape: f32[2,16,16,128], index: 9, kind: output, shape index: {}]
  %s10 = sld [smem:[#allocation0]]
  $region81: #{tpu_custom_call.1} parent=0
    _
  %s12 = ssub.s32 1, %s10
  %s13 = scalar_select 0, %s12, %s10
  $region1: #{tpu_custom_call.1} parent=0
    #allocation4 [shape = 'u8[262144]{0}', space=vmem, size = 0x40000, scoped, tag = 'input window, operand 0']
    #allocation5 [shape = 's32[2]{0}', space=sflag, size = 0x8, scoped, tag = 'scoped memory for tpu_custom_call.1']
    #allocation6 [shape = 's32[2]{0}', space=sflag, size = 0x8, scoped, tag = 'scoped memory for tpu_custom_call.1']
    #allocation7 [shape = 'u8[294912]{0}', space=vmem, size = 0x48000, scoped, tag = 'input window, operand 3, single buffered']
    #allocation8 [shape = 's32[1]{0}', space=sflag, size = 0x4, scoped, tag = 'scoped memory for tpu_custom_call.1']
    #allocation9 [shape = 'u8[294912]{0}', space=vmem, size = 0x48000, scoped, tag = 'input window, operand 7, single buffered']
    #allocation10 [shape = 'u8[262144]{0}', space=vmem, size = 0x40000, scoped, tag = 'output window, operand 0']
    %14 = vsyncpa [#allocation5], 0
    %s15 = scalar_lea.sflag [#allocation5], 1
    %16 = vsyncpa %s15, 0
    %17 = vsyncpa [#allocation8], 0
    %18 = vsyncpa [#allocation6], 0
    %s19 = scalar_lea.sflag [#allocation6], 1
    %20 = vsyncpa %s19, 0
    loop: start=0, step=1, limit=4
    $region2: #{tpu_custom_call.1} parent=1 // loop_pre_header
      _
    $region3: #{tpu_custom_call.1} parent=1 // loop_header
      %s22 = sphi 0, %s26
      %p23 = scmp.ge.s32.totalorder %s22, 4
      %s32 = sphi 0, %s34
      %s35 = sphi 0, %s32
      %s36 = sphi 0, %s35
      %s52 = sphi 0, %s36
      %s56 = sphi 0, %s56
      %s58 = sphi 0, %s56
      %s59 = sphi 0, %s58
      %s73 = sphi 0, %s59
      %s77 = sphi 0, %s77
      %s79 = sphi 0, %s77
      %s80 = sphi 0, %s79
      %s94 = sphi 0, %s80
      %s98 = sphi 0, %s98
      %s100 = sphi 0, %s98
      %s101 = sphi 0, %s100
      %s115 = sphi 0, %s101
      %s119 = sphi 0, %s119
      %s121 = sphi 0, %s119
      %s122 = sphi 0, %s121
      %s136 = sphi 0, %s122
      %s140 = sphi 0, %s140
      %s142 = sphi 0, %s140
      %s143 = sphi 0, %s142
      %s157 = sphi 0, %s143
      %s161 = sphi 0, %s161
      %s163 = sphi 0, %s161
      %s164 = sphi 0, %s163
      %s178 = sphi 0, %s164
      %s182 = sphi 0, %s182
      %s184 = sphi 0, %s182
      %s185 = sphi 0, %s184
      %s199 = sphi 0, %s185
      %s203 = sphi 0, %s203
      %s205 = sphi 0, %s203
      %s206 = sphi 0, %s205
      %s220 = sphi 0, %s206
      %s226 = sphi 0, %s228
      %s229 = sphi 0, %s226
      %s230 = sphi 0, %s229
      %s246 = sphi 0, %s230
    $region4: #{tpu_custom_call.1} parent=1 // loop_header_branch
      %25 = sbr.rel (%p23) target = $region8
    $region5: #{tpu_custom_call.1} parent=1 // loop_body
      %s27 = ssub.s32 %s22, 1
      %s28 = ssub.s32 %s22, 2
      %s29 = sadd.s32 %s22, 1
      %s30 = ssub.s32 %s22, %s29
      %p31 = scmp.eq.s32.totalorder %s30, 0
      %s33 = sadd.s32 %s32, 1
      %s34 = scalar_select %p31, %s32, %s33
      %p37 = pneg %p31
      %p38 = scmp.eq.s32.totalorder %s22, 1
      %p39 = por %p37, %p38
      %p40 = scmp.ne.s32.totalorder %s32, %s35
      %p41 = scmp.eq.s32.totalorder %s22, 0
      %p42 = por %p40, %p41
      %p43 = scmp.ne.s32.totalorder %s32, %s35
      %p44 = scmp.eq.s32.totalorder %s27, 1
      %p45 = por %p43, %p44
      %p46 = scmp.ne.s32.totalorder %s35, %s36
      %p47 = scmp.eq.s32.totalorder %s27, 0
      %p48 = por %p46, %p47
      %p49 = scmp.ne.s32.totalorder %s35, %s36
      %p50 = scmp.eq.s32.totalorder %s28, 1
      %p51 = por %p49, %p50
      %p53 = scmp.ne.s32.totalorder %s36, %s52
      %p54 = scmp.eq.s32.totalorder %s28, 0
      %p55 = por %p53, %p54
      %s57 = sadd.s32 %s56, 1
      %p60 = scmp.eq.s32.totalorder %s22, 1
      %p61 = scmp.ne.s32.totalorder %s56, %s58
      %p62 = scmp.eq.s32.totalorder %s22, 0
      %p63 = por %p61, %p62
      %p64 = scmp.ne.s32.totalorder %s56, %s58
      %p65 = scmp.eq.s32.totalorder %s27, 1
      %p66 = por %p64, %p65
      %p67 = scmp.ne.s32.totalorder %s58, %s59
      %p68 = scmp.eq.s32.totalorder %s27, 0
      %p69 = por %p67, %p68
      %p70 = scmp.ne.s32.totalorder %s58, %s59
      %p71 = scmp.eq.s32.totalorder %s28, 1
      %p72 = por %p70, %p71
      %p74 = scmp.ne.s32.totalorder %s59, %s73
      %p75 = scmp.eq.s32.totalorder %s28, 0
      %p76 = por %p74, %p75
      %s78 = sadd.s32 %s77, 1
      %p81 = scmp.eq.s32.totalorder %s22, 1
      %p82 = scmp.ne.s32.totalorder %s77, %s79
      %p83 = scmp.eq.s32.totalorder %s22, 0
      %p84 = por %p82, %p83
      %p85 = scmp.ne.s32.totalorder %s77, %s79
      %p86 = scmp.eq.s32.totalorder %s27, 1
      %p87 = por %p85, %p86
      %p88 = scmp.ne.s32.totalorder %s79, %s80
      %p89 = scmp.eq.s32.totalorder %s27, 0
      %p90 = por %p88, %p89
      %p91 = scmp.ne.s32.totalorder %s79, %s80
      %p92 = scmp.eq.s32.totalorder %s28, 1
      %p93 = por %p91, %p92
      %p95 = scmp.ne.s32.totalorder %s80, %s94
      %p96 = scmp.eq.s32.totalorder %s28, 0
      %p97 = por %p95, %p96
      %s99 = sadd.s32 %s98, 1
      %p102 = scmp.eq.s32.totalorder %s22, 1
      %p103 = scmp.ne.s32.totalorder %s98, %s100
      %p104 = scmp.eq.s32.totalorder %s22, 0
      %p105 = por %p103, %p104
      %p106 = scmp.ne.s32.totalorder %s98, %s100
      %p107 = scmp.eq.s32.totalorder %s27, 1
      %p108 = por %p106, %p107
      %p109 = scmp.ne.s32.totalorder %s100, %s101
      %p110 = scmp.eq.s32.totalorder %s27, 0
      %p111 = por %p109, %p110
      %p112 = scmp.ne.s32.totalorder %s100, %s101
      %p113 = scmp.eq.s32.totalorder %s28, 1
      %p114 = por %p112, %p113
      %p116 = scmp.ne.s32.totalorder %s101, %s115
      %p117 = scmp.eq.s32.totalorder %s28, 0
      %p118 = por %p116, %p117
      %s120 = sadd.s32 %s119, 1
      %p123 = scmp.eq.s32.totalorder %s22, 1
      %p124 = scmp.ne.s32.totalorder %s119, %s121
      %p125 = scmp.eq.s32.totalorder %s22, 0
      %p126 = por %p124, %p125
      %p127 = scmp.ne.s32.totalorder %s119, %s121
      %p128 = scmp.eq.s32.totalorder %s27, 1
      %p129 = por %p127, %p128
      %p130 = scmp.ne.s32.totalorder %s121, %s122
      %p131 = scmp.eq.s32.totalorder %s27, 0
      %p132 = por %p130, %p131
      %p133 = scmp.ne.s32.totalorder %s121, %s122
      %p134 = scmp.eq.s32.totalorder %s28, 1
      %p135 = por %p133, %p134
      %p137 = scmp.ne.s32.totalorder %s122, %s136
      %p138 = scmp.eq.s32.totalorder %s28, 0
      %p139 = por %p137, %p138
      %s141 = sadd.s32 %s140, 1
      %p144 = scmp.eq.s32.totalorder %s22, 1
      %p145 = scmp.ne.s32.totalorder %s140, %s142
      %p146 = scmp.eq.s32.totalorder %s22, 0
      %p147 = por %p145, %p146
      %p148 = scmp.ne.s32.totalorder %s140, %s142
      %p149 = scmp.eq.s32.totalorder %s27, 1
      %p150 = por %p148, %p149
      %p151 = scmp.ne.s32.totalorder %s142, %s143
      %p152 = scmp.eq.s32.totalorder %s27, 0
      %p153 = por %p151, %p152
      %p154 = scmp.ne.s32.totalorder %s142, %s143
      %p155 = scmp.eq.s32.totalorder %s28, 1
      %p156 = por %p154, %p155
      %p158 = scmp.ne.s32.totalorder %s143, %s157
      %p159 = scmp.eq.s32.totalorder %s28, 0
      %p160 = por %p158, %p159
      %s162 = sadd.s32 %s161, 1
      %p165 = scmp.eq.s32.totalorder %s22, 1
      %p166 = scmp.ne.s32.totalorder %s161, %s163
      %p167 = scmp.eq.s32.totalorder %s22, 0
      %p168 = por %p166, %p167
      %p169 = scmp.ne.s32.totalorder %s161, %s163
      %p170 = scmp.eq.s32.totalorder %s27, 1
      %p171 = por %p169, %p170
      %p172 = scmp.ne.s32.totalorder %s163, %s164
      %p173 = scmp.eq.s32.totalorder %s27, 0
      %p174 = por %p172, %p173
      %p175 = scmp.ne.s32.totalorder %s163, %s164
      %p176 = scmp.eq.s32.totalorder %s28, 1
      %p177 = por %p175, %p176
      %p179 = scmp.ne.s32.totalorder %s164, %s178
      %p180 = scmp.eq.s32.totalorder %s28, 0
      %p181 = por %p179, %p180
      %s183 = sadd.s32 %s182, 1
      %p186 = scmp.eq.s32.totalorder %s22, 1
      %p187 = scmp.ne.s32.totalorder %s182, %s184
      %p188 = scmp.eq.s32.totalorder %s22, 0
      %p189 = por %p187, %p188
      %p190 = scmp.ne.s32.totalorder %s182, %s184
      %p191 = scmp.eq.s32.totalorder %s27, 1
      %p192 = por %p190, %p191
      %p193 = scmp.ne.s32.totalorder %s184, %s185
      %p194 = scmp.eq.s32.totalorder %s27, 0
      %p195 = por %p193, %p194
      %p196 = scmp.ne.s32.totalorder %s184, %s185
      %p197 = scmp.eq.s32.totalorder %s28, 1
      %p198 = por %p196, %p197
      %p200 = scmp.ne.s32.totalorder %s185, %s199
      %p201 = scmp.eq.s32.totalorder %s28, 0
      %p202 = por %p200, %p201
      %s204 = sadd.s32 %s203, 1
      %p207 = scmp.eq.s32.totalorder %s22, 1
      %p208 = scmp.ne.s32.totalorder %s203, %s205
      %p209 = scmp.eq.s32.totalorder %s22, 0
      %p210 = por %p208, %p209
      %p211 = scmp.ne.s32.totalorder %s203, %s205
      %p212 = scmp.eq.s32.totalorder %s27, 1
      %p213 = por %p211, %p212
      %p214 = scmp.ne.s32.totalorder %s205, %s206
      %p215 = scmp.eq.s32.totalorder %s27, 0
      %p216 = por %p214, %p215
      %p217 = scmp.ne.s32.totalorder %s205, %s206
      %p218 = scmp.eq.s32.totalorder %s28, 1
      %p219 = por %p217, %p218
      %p221 = scmp.ne.s32.totalorder %s206, %s220
      %p222 = scmp.eq.s32.totalorder %s28, 0
      %p223 = por %p221, %p222
      %s224 = ssub.s32 %s22, %s29
      %p225 = scmp.eq.s32.totalorder %s224, 0
      %s227 = sadd.s32 %s226, 1
      %s228 = scalar_select %p225, %s226, %s227
      %p231 = pneg %p225
      %p232 = scmp.eq.s32.totalorder %s22, 1
      %p233 = por %p231, %p232
      %p234 = scmp.ne.s32.totalorder %s226, %s229
      %p235 = scmp.eq.s32.totalorder %s22, 0
      %p236 = por %p234, %p235
      %p237 = scmp.ne.s32.totalorder %s226, %s229
      %p238 = scmp.eq.s32.totalorder %s27, 1
      %p239 = por %p237, %p238
      %p240 = scmp.ne.s32.totalorder %s229, %s230
      %p241 = scmp.eq.s32.totalorder %s27, 0
      %p242 = por %p240, %p241
      %p243 = scmp.ne.s32.totalorder %s229, %s230
      %p244 = scmp.eq.s32.totalorder %s28, 1
      %p245 = por %p243, %p244
      %p247 = scmp.ne.s32.totalorder %s230, %s246
      %p248 = scmp.eq.s32.totalorder %s28, 0
      %p249 = por %p247, %p248
      %p250 = scmp.le.s32.totalorder 1, %s22
      %p251 = scmp.lt.s32.totalorder %s22, 3
      %p252 = pnand %p250, %p251
      %p253 = pneg %p252
      // Predicated region
      $region9: #{tpu_custom_call.1} parent=5 // pred_check
        _
      $region10: #{tpu_custom_call.1} parent=5 // pred_check_branch
        %255 = sbr.rel (%p252) target = $region12
      $region11: #{tpu_custom_call.1} parent=5 // pred_region
        %s256 = ssub.s32 %s22, 1
        // Predicated region
        $region13: #{tpu_custom_call.1} parent=11 // pred_check
          %p257 = pneg %p69
        $region14: #{tpu_custom_call.1} parent=11 // pred_check_branch
          %259 = sbr.rel (%p257) target = $region16
        $region15: #{tpu_custom_call.1} parent=11 // pred_region
          _
        $region16: #{tpu_custom_call.1} parent=11 // pred_fallthru
          _
        // Predicated region
        $region17: #{tpu_custom_call.1} parent=11 // pred_check
          %p260 = pneg %p90
        $region18: #{tpu_custom_call.1} parent=11 // pred_check_branch
          %262 = sbr.rel (%p260) target = $region20
        $region19: #{tpu_custom_call.1} parent=11 // pred_region
          _
        $region20: #{tpu_custom_call.1} parent=11 // pred_fallthru
          _
        // Predicated region
        $region21: #{tpu_custom_call.1} parent=11 // pred_check
          %p263 = pneg %p111
        $region22: #{tpu_custom_call.1} parent=11 // pred_check_branch
          %265 = sbr.rel (%p263) target = $region24
        $region23: #{tpu_custom_call.1} parent=11 // pred_region
          %s267 = ssub.s32 9216, 9216
          %268 = vsyncadd [#allocation8], %s267
          %s269 = sshll.u32 [#allocation7], 4
          %s270 = int_to_ptr.vmem [resolvable:$true] %s269
          %275 = dma.hbm_to_vmem [thread:$0]  %s3, 9216, %s270, [#allocation8], 64, 64, 4
        $region24: #{tpu_custom_call.1} parent=11 // pred_fallthru
          _
        // Predicated region
        $region25: #{tpu_custom_call.1} parent=11 // pred_check
          %p276 = pneg %p132
        $region26: #{tpu_custom_call.1} parent=11 // pred_check_branch
          %278 = sbr.rel (%p276) target = $region28
        $region27: #{tpu_custom_call.1} parent=11 // pred_region
          _
        $region28: #{tpu_custom_call.1} parent=11 // pred_fallthru
          _
        // Predicated region
        $region29: #{tpu_custom_call.1} parent=11 // pred_check
          %p279 = pneg %p153
        $region30: #{tpu_custom_call.1} parent=11 // pred_check_branch
          %281 = sbr.rel (%p279) target = $region32
        $region31: #{tpu_custom_call.1} parent=11 // pred_region
          _
        $region32: #{tpu_custom_call.1} parent=11 // pred_fallthru
          _
        // Predicated region
        $region33: #{tpu_custom_call.1} parent=11 // pred_check
          %p282 = pneg %p174
        $region34: #{tpu_custom_call.1} parent=11 // pred_check_branch
          %284 = sbr.rel (%p282) target = $region36
        $region35: #{tpu_custom_call.1} parent=11 // pred_region
          _
        $region36: #{tpu_custom_call.1} parent=11 // pred_fallthru
          _
        // Predicated region
        $region37: #{tpu_custom_call.1} parent=11 // pred_check
          %p285 = pneg %p195
        $region38: #{tpu_custom_call.1} parent=11 // pred_check_branch
          %287 = sbr.rel (%p285) target = $region40
        $region39: #{tpu_custom_call.1} parent=11 // pred_region
          %s289 = ssub.s32 9216, 9216
          %290 = vsyncadd [#allocation8], %s289
          %s291 = sshll.u32 [#allocation9], 4
          %s292 = int_to_ptr.vmem [resolvable:$true] %s291
          %297 = dma.hbm_to_vmem [thread:$0]  %s7, 9216, %s292, [#allocation8], 64, 64, 4
        $region40: #{tpu_custom_call.1} parent=11 // pred_fallthru
          _
        // Predicated region
        $region41: #{tpu_custom_call.1} parent=11 // pred_check
          %p298 = pneg %p216
        $region42: #{tpu_custom_call.1} parent=11 // pred_check_branch
          %300 = sbr.rel (%p298) target = $region44
        $region43: #{tpu_custom_call.1} parent=11 // pred_region
          _
        $region44: #{tpu_custom_call.1} parent=11 // pred_fallthru
          _
      $region12: #{tpu_custom_call.1} parent=5 // pred_fallthru
        _
      %p301 = scmp.lt.s32.totalorder %s22, 2
      // Predicated region
      $region45: #{tpu_custom_call.1} parent=5 // pred_check
        %p302 = pneg %p301
      $region46: #{tpu_custom_call.1} parent=5 // pred_check_branch
        %304 = sbr.rel (%p302) target = $region48
      $region47: #{tpu_custom_call.1} parent=5 // pred_region
        // Predicated region
        $region49: #{tpu_custom_call.1} parent=47 // pred_check
          %p305 = pneg %p42
        $region50: #{tpu_custom_call.1} parent=47 // pred_check_branch
          %307 = sbr.rel (%p305) target = $region52
        $region51: #{tpu_custom_call.1} parent=47 // pred_region
          %s308 = sand.u32 %s32, 1
          %s309 = scalar_lea.sflag [#allocation5], %s308
          %s310 = sand.u32 %s32, 1
          %s311 = smul.addr %s310, 256
          %s312 = scalar_lea.vmem [#allocation4], %s311
          %s314 = ssub.s32 4096, 4096
          %315 = vsyncadd %s309, %s314
          %s316 = smul.addr %s22, 32
          %s317 = smul.addr %s316, 128
          %s318 = scalar_lea.hbm %s0, %s317
          %s319 = sshll.u32 %s312, 4
          %s320 = int_to_ptr.vmem [resolvable:$true] %s319
          %325 = dma.hbm_to_vmem [thread:$0]  %s318, 4096, %s320, %s309, 128, 128, 8
        $region52: #{tpu_custom_call.1} parent=47 // pred_fallthru
          _
      $region48: #{tpu_custom_call.1} parent=5 // pred_fallthru
        _
      %p326 = scmp.le.s32.totalorder 1, %s22
      %p327 = scmp.lt.s32.totalorder %s22, 3
      %p328 = pnand %p326, %p327
      %p329 = pneg %p328
      // Predicated region
      $region53: #{tpu_custom_call.1} parent=5 // pred_check
        _
      $region54: #{tpu_custom_call.1} parent=5 // pred_check_branch
        %331 = sbr.rel (%p328) target = $region56
      $region55: #{tpu_custom_call.1} parent=5 // pred_region
        %s332 = ssub.s32 %s22, 1
        %s333 = sand.u32 %s35, 1
        %s334 = scalar_lea.sflag [#allocation5], %s333
        %s335 = sand.u32 %s35, 1
        %s336 = smul.addr %s335, 256
        %s337 = scalar_lea.vmem [#allocation4], %s336
        // Predicated region
        $region57: #{tpu_custom_call.1} parent=55 // pred_check
          %p338 = pneg %p48
        $region58: #{tpu_custom_call.1} parent=55 // pred_check_branch
          %340 = sbr.rel (%p338) target = $region60
        $region59: #{tpu_custom_call.1} parent=55 // pred_region
          %341 = dma.done %s334, 4096
        $region60: #{tpu_custom_call.1} parent=55 // pred_fallthru
          _
        // Predicated region
        $region61: #{tpu_custom_call.1} parent=55 // pred_check
          %p342 = pneg %p111
        $region62: #{tpu_custom_call.1} parent=55 // pred_check_branch
          %344 = sbr.rel (%p342) target = $region64
        $region63: #{tpu_custom_call.1} parent=55 // pred_region
          %345 = dma.done [#allocation8], 9216
        $region64: #{tpu_custom_call.1} parent=55 // pred_fallthru
          _
        // Predicated region
        $region65: #{tpu_custom_call.1} parent=55 // pred_check
          %p346 = pneg %p195
        $region66: #{tpu_custom_call.1} parent=55 // pred_check_branch
          %348 = sbr.rel (%p346) target = $region68
        $region67: #{tpu_custom_call.1} parent=55 // pred_region
          %349 = dma.done [#allocation8], 9216
        $region68: #{tpu_custom_call.1} parent=55 // pred_fallthru
          _
        %s350 = sand.u32 %s35, 1
        %s351 = scalar_lea.sflag [#allocation5], %s350
        %s352 = sand.u32 %s35, 1
        %s353 = smul.addr %s352, 256
        %s354 = scalar_lea.vmem [#allocation4], %s353
        %p355 = pneg %p48
        %p356 = pneg %p45
        %p357 = pneg %p69
        %p358 = pneg %p66
        %p359 = pneg %p90
        %p360 = pneg %p87
        %p361 = pneg %p111
        %p362 = pneg %p108
        %p363 = pneg %p132
        %p364 = pneg %p129
        %p365 = pneg %p153
        %p366 = pneg %p150
        %p367 = pneg %p174
        %p368 = pneg %p171
        %p369 = pneg %p195
        %p370 = pneg %p192
        %p371 = pneg %p216
        %p372 = pneg %p213
        %p373 = pneg %p242
        %p374 = pneg %p239
        %s375 = sand.u32 %s229, 1
        %s376 = scalar_lea.sflag [#allocation6], %s375
        %s377 = sand.u32 %s229, 1
        %s378 = smul.addr %s377, 256
        %s379 = scalar_lea.vmem [#allocation10], %s378
        %v381 = vld [vmem:[%s337] sm:$0xff]
        %v382 = vld [vmem:[%s337 + $0x8] sm:$0xff]
        %v383 = vld [vmem:[%s337 + $0x10] sm:$0xff]
        %v384 = vld [vmem:[%s337 + $0x18] sm:$0xff]
        %v385 = vld [vmem:[%s337 + $0x20] sm:$0xff]
        %v386 = vld [vmem:[%s337 + $0x28] sm:$0xff]
        %v387 = vld [vmem:[%s337 + $0x30] sm:$0xff]
        %v388 = vld [vmem:[%s337 + $0x38] sm:$0xff]
        %v389 = vld [vmem:[%s337 + $0x40] sm:$0xff]
        %v390 = vld [vmem:[%s337 + $0x48] sm:$0xff]
        %v391 = vld [vmem:[%s337 + $0x50] sm:$0xff]
        %v392 = vld [vmem:[%s337 + $0x58] sm:$0xff]
        %v393 = vld [vmem:[%s337 + $0x60] sm:$0xff]
        %v394 = vld [vmem:[%s337 + $0x68] sm:$0xff]
        %v395 = vld [vmem:[%s337 + $0x70] sm:$0xff]
        %v396 = vld [vmem:[%s337 + $0x78] sm:$0xff]
        %v397 = vld [vmem:[%s337 + $0x80] sm:$0xff]
        %v398 = vld [vmem:[%s337 + $0x88] sm:$0xff]
        %v399 = vld [vmem:[%s337 + $0x90] sm:$0xff]
        %v400 = vld [vmem:[%s337 + $0x98] sm:$0xff]
        %v401 = vld [vmem:[%s337 + $0xa0] sm:$0xff]
        %v402 = vld [vmem:[%s337 + $0xa8] sm:$0xff]
        %v403 = vld [vmem:[%s337 + $0xb0] sm:$0xff]
        %v404 = vld [vmem:[%s337 + $0xb8] sm:$0xff]
        %v405 = vld [vmem:[%s337 + $0xc0] sm:$0xff]
        %v406 = vld [vmem:[%s337 + $0xc8] sm:$0xff]
        %v407 = vld [vmem:[%s337 + $0xd0] sm:$0xff]
        %v408 = vld [vmem:[%s337 + $0xd8] sm:$0xff]
        %v409 = vld [vmem:[%s337 + $0xe0] sm:$0xff]
        %v410 = vld [vmem:[%s337 + $0xe8] sm:$0xff]
        %v411 = vld [vmem:[%s337 + $0xf0] sm:$0xff]
        %v412 = vld [vmem:[%s337 + $0xf8] sm:$0xff]
        %413 = vst [vmem:[#allocation2] sm:$0xf] 0
        %414 = vst [vmem:[#allocation2 + $0x4] sm:$0xf] 0
        %415 = vst [vmem:[#allocation2 + $0x8] sm:$0x1] 0
        %416 = vst [vmem:[#allocation2 + $0xc] sm:$0xf] 0
        %417 = vst [vmem:[#allocation2 + $0x10] sm:$0xf] 0
        %418 = vst [vmem:[#allocation2 + $0x14] sm:$0x1] 0
        %419 = vst [vmem:[#allocation2 + $0x18] sm:$0xf] 0
        %420 = vst [vmem:[#allocation2 + $0x1c] sm:$0xf] 0
        %421 = vst [vmem:[#allocation2 + $0x20] sm:$0x1] 0
        %422 = vst [vmem:[#allocation2 + $0x24] sm:$0xf] 0
        %423 = vst [vmem:[#allocation2 + $0x28] sm:$0xf] 0
        %424 = vst [vmem:[#allocation2 + $0x2c] sm:$0x1] 0
        %425 = vst [vmem:[#allocation2 + $0x30] sm:$0xf] 0
        %426 = vst [vmem:[#allocation2 + $0x34] sm:$0xf] 0
        %427 = vst [vmem:[#allocation2 + $0x38] sm:$0x1] 0
        %428 = vst [vmem:[#allocation2 + $0x3c] sm:$0xf] 0
        %429 = vst [vmem:[#allocation2 + $0x40] sm:$0xf] 0
        %430 = vst [vmem:[#allocation2 + $0x44] sm:$0x1] 0
        %431 = vst [vmem:[#allocation2 + $0x48] sm:$0xf] 0
        %432 = vst [vmem:[#allocation2 + $0x4c] sm:$0xf] 0
        %433 = vst [vmem:[#allocation2 + $0x50] sm:$0x1] 0
        %434 = vst [vmem:[#allocation2 + $0x54] sm:$0xf] 0
        %435 = vst [vmem:[#allocation2 + $0x58] sm:$0xf] 0
        %436 = vst [vmem:[#allocation2 + $0x5c] sm:$0x1] 0
        %437 = vst [vmem:[#allocation2 + $0x60] sm:$0xf] 0
        %438 = vst [vmem:[#allocation2 + $0x64] sm:$0xf] 0
        %439 = vst [vmem:[#allocation2 + $0x68] sm:$0x1] 0
        %440 = vst [vmem:[#allocation2 + $0x6c] sm:$0xf] 0
        %441 = vst [vmem:[#allocation2 + $0x70] sm:$0xf] 0
        %442 = vst [vmem:[#allocation2 + $0x74] sm:$0x1] 0
        %443 = vst [vmem:[#allocation2 + $0x78] sm:$0xf] 0
        %444 = vst [vmem:[#allocation2 + $0x7c] sm:$0xf] 0
        %445 = vst [vmem:[#allocation2 + $0x80] sm:$0x1] 0
        %446 = vst [vmem:[#allocation2 + $0x84] sm:$0xf] 0
        %447 = vst [vmem:[#allocation2 + $0x88] sm:$0xf] 0
        %448 = vst [vmem:[#allocation2 + $0x8c] sm:$0x1] 0
        %449 = vst [vmem:[#allocation2 + $0x90] sm:$0xf] 0
        %450 = vst [vmem:[#allocation2 + $0x94] sm:$0xf] 0
        %451 = vst [vmem:[#allocation2 + $0x98] sm:$0x1] 0
        %452 = vst [vmem:[#allocation2 + $0x9c] sm:$0xf] 0
        %453 = vst [vmem:[#allocation2 + $0xa0] sm:$0xf] 0
        %454 = vst [vmem:[#allocation2 + $0xa4] sm:$0x1] 0
        %455 = vst [vmem:[#allocation2 + $0xa8] sm:$0xf] 0
        %456 = vst [vmem:[#allocation2 + $0xac] sm:$0xf] 0
        %457 = vst [vmem:[#allocation2 + $0xb0] sm:$0x1] 0
        %458 = vst [vmem:[#allocation2 + $0xb4] sm:$0xf] 0
        %459 = vst [vmem:[#allocation2 + $0xb8] sm:$0xf] 0
        %460 = vst [vmem:[#allocation2 + $0xbc] sm:$0x1] 0
        %461 = vst [vmem:[#allocation2 + $0xc0] sm:$0xf] 0
        %462 = vst [vmem:[#allocation2 + $0xc4] sm:$0xf] 0
        %463 = vst [vmem:[#allocation2 + $0xc8] sm:$0x1] 0
        %464 = vst [vmem:[#allocation2 + $0xcc] sm:$0xf] 0
        %465 = vst [vmem:[#allocation2 + $0xd0] sm:$0xf] 0
        %466 = vst [vmem:[#allocation2 + $0xd4] sm:$0x1] 0
        %v467 = vld [vmem:[%s1] sm:$0x1]
        %v469 = vlaneseq
        %v470 = vshrl.u32 %v469, 7
        %v471 = vsub.s32 0, %v470
        %v472 = vrot.slane %v467, %v471
        %v474 = vmul.f32 %v381, %v472
        %v475 = vmul.f32 %v382, %v472
        %v476 = vmul.f32 %v383, %v472
        %v477 = vmul.f32 %v384, %v472
        %v478 = vmul.f32 %v385, %v472
        %v479 = vmul.f32 %v386, %v472
        %v480 = vmul.f32 %v387, %v472
        %v481 = vmul.f32 %v388, %v472
        %v482 = vmul.f32 %v389, %v472
        %v483 = vmul.f32 %v390, %v472
        %v484 = vmul.f32 %v391, %v472
        %v485 = vmul.f32 %v392, %v472
        %v486 = vmul.f32 %v393, %v472
        %v487 = vmul.f32 %v394, %v472
        %v488 = vmul.f32 %v395, %v472
        %v489 = vmul.f32 %v396, %v472
        %v490 = vmul.f32 %v397, %v472
        %v491 = vmul.f32 %v398, %v472
        %v492 = vmul.f32 %v399, %v472
        %v493 = vmul.f32 %v400, %v472
        %v494 = vmul.f32 %v401, %v472
        %v495 = vmul.f32 %v402, %v472
        %v496 = vmul.f32 %v403, %v472
        %v497 = vmul.f32 %v404, %v472
        %v498 = vmul.f32 %v405, %v472
        %v499 = vmul.f32 %v406, %v472
        %v500 = vmul.f32 %v407, %v472
        %v501 = vmul.f32 %v408, %v472
        %v502 = vmul.f32 %v409, %v472
        %v503 = vmul.f32 %v410, %v472
        %v504 = vmul.f32 %v411, %v472
        %v505 = vmul.f32 %v412, %v472
        %v506 = vld [vmem:[%s2] sm:$0x1]
        %v508 = vlaneseq
        %v509 = vshrl.u32 %v508, 7
        %v510 = vsub.s32 0, %v509
        %v511 = vrot.slane %v506, %v510
        %v513 = vadd.f32 %v474, %v511
        %v514 = vadd.f32 %v475, %v511
        %v515 = vadd.f32 %v476, %v511
        %v516 = vadd.f32 %v477, %v511
        %v517 = vadd.f32 %v478, %v511
        %v518 = vadd.f32 %v479, %v511
        %v519 = vadd.f32 %v480, %v511
        %v520 = vadd.f32 %v481, %v511
        %v521 = vadd.f32 %v482, %v511
        %v522 = vadd.f32 %v483, %v511
        %v523 = vadd.f32 %v484, %v511
        %v524 = vadd.f32 %v485, %v511
        %v525 = vadd.f32 %v486, %v511
        %v526 = vadd.f32 %v487, %v511
        %v527 = vadd.f32 %v488, %v511
        %v528 = vadd.f32 %v489, %v511
        %v529 = vadd.f32 %v490, %v511
        %v530 = vadd.f32 %v491, %v511
        %v531 = vadd.f32 %v492, %v511
        %v532 = vadd.f32 %v493, %v511
        %v533 = vadd.f32 %v494, %v511
        %v534 = vadd.f32 %v495, %v511
        %v535 = vadd.f32 %v496, %v511
        %v536 = vadd.f32 %v497, %v511
        %v537 = vadd.f32 %v498, %v511
        %v538 = vadd.f32 %v499, %v511
        %v539 = vadd.f32 %v500, %v511
        %v540 = vadd.f32 %v501, %v511
        %v541 = vadd.f32 %v502, %v511
        %v542 = vadd.f32 %v503, %v511
        %v543 = vadd.f32 %v504, %v511
        %v544 = vadd.f32 %v505, %v511
        %v545 = vmax.f32 %v513, 0.0
        %v546 = vmax.f32 %v514, 0.0
        %v547 = vmax.f32 %v515, 0.0
        %v548 = vmax.f32 %v516, 0.0
        %v549 = vmax.f32 %v517, 0.0
        %v550 = vmax.f32 %v518, 0.0
        %v551 = vmax.f32 %v519, 0.0
        %v552 = vmax.f32 %v520, 0.0
        %v553 = vmax.f32 %v521, 0.0
        %v554 = vmax.f32 %v522, 0.0
        %v555 = vmax.f32 %v523, 0.0
        %v556 = vmax.f32 %v524, 0.0
        %v557 = vmax.f32 %v525, 0.0
        %v558 = vmax.f32 %v526, 0.0
        %v559 = vmax.f32 %v527, 0.0
        %v560 = vmax.f32 %v528, 0.0
        %v561 = vmax.f32 %v529, 0.0
        %v562 = vmax.f32 %v530, 0.0
        %v563 = vmax.f32 %v531, 0.0
        %v564 = vmax.f32 %v532, 0.0
        %v565 = vmax.f32 %v533, 0.0
        %v566 = vmax.f32 %v534, 0.0
        %v567 = vmax.f32 %v535, 0.0
        %v568 = vmax.f32 %v536, 0.0
        %v569 = vmax.f32 %v537, 0.0
        %v570 = vmax.f32 %v538, 0.0
        %v571 = vmax.f32 %v539, 0.0
        %v572 = vmax.f32 %v540, 0.0
        %v573 = vmax.f32 %v541, 0.0
        %v574 = vmax.f32 %v542, 0.0
        %v575 = vmax.f32 %v543, 0.0
        %v576 = vmax.f32 %v544, 0.0
        %v577 = vpack.c.bf16 %v546, %v545
        %v578 = vpack.c.bf16 %v548, %v547
        %v579 = vpack.c.bf16 %v550, %v549
        %v580 = vpack.c.bf16 %v552, %v551
        %v581 = vpack.c.bf16 %v554, %v553
        %v582 = vpack.c.bf16 %v556, %v555
        %v583 = vpack.c.bf16 %v558, %v557
        %v584 = vpack.c.bf16 %v560, %v559
        %v585 = vpack.c.bf16 %v562, %v561
        %v586 = vpack.c.bf16 %v564, %v563
        %v587 = vpack.c.bf16 %v566, %v565
        %v588 = vpack.c.bf16 %v568, %v567
        %v589 = vpack.c.bf16 %v570, %v569
        %v590 = vpack.c.bf16 %v572, %v571
        %v591 = vpack.c.bf16 %v574, %v573
        %v592 = vpack.c.bf16 %v576, %v575
        %v609 = vunpack.c.l.b16 %v577
        %v610 = vunpack.c.h.b16 %v577
        %v611 = vunpack.c.l.b16 %v578
        %v612 = vunpack.c.h.b16 %v578
        %v613 = vunpack.c.l.b16 %v579
        %v614 = vunpack.c.h.b16 %v579
        %v615 = vunpack.c.l.b16 %v580
        %v616 = vunpack.c.h.b16 %v580
        %v617 = vunpack.c.l.b16 %v581
        %v618 = vunpack.c.h.b16 %v581
        %v619 = vunpack.c.l.b16 %v582
        %v620 = vunpack.c.h.b16 %v582
        %v621 = vunpack.c.l.b16 %v583
        %v622 = vunpack.c.h.b16 %v583
        %v623 = vunpack.c.l.b16 %v584
        %v624 = vunpack.c.h.b16 %v584
        %v625 = vunpack.c.l.b16 %v585
        %v626 = vunpack.c.h.b16 %v585
        %v627 = vunpack.c.l.b16 %v586
        %v628 = vunpack.c.h.b16 %v586
        %v629 = vunpack.c.l.b16 %v587
        %v630 = vunpack.c.h.b16 %v587
        %v631 = vunpack.c.l.b16 %v588
        %v632 = vunpack.c.h.b16 %v588
        %v633 = vunpack.c.l.b16 %v589
        %v634 = vunpack.c.h.b16 %v589
        %v635 = vunpack.c.l.b16 %v590
        %v636 = vunpack.c.h.b16 %v590
        %v637 = vunpack.c.l.b16 %v591
        %v638 = vunpack.c.h.b16 %v591
        %v639 = vunpack.c.l.b16 %v592
        %v640 = vunpack.c.h.b16 %v592
        %v641 = vpack.c.b16 %v609, %v609
        %v642 = vpack.c.b16 %v610, %v610
        %v643 = vpack.c.b16 %v611, %v611
        %v644 = vpack.c.b16 %v612, %v612
        %v645 = vpack.c.b16 %v613, %v613
        %v646 = vpack.c.b16 %v614, %v614
        %v647 = vpack.c.b16 %v615, %v615
        %v648 = vpack.c.b16 %v616, %v616
        %v649 = vpack.c.b16 %v617, %v617
        %v650 = vpack.c.b16 %v618, %v618
        %v651 = vpack.c.b16 %v619, %v619
        %v652 = vpack.c.b16 %v620, %v620
        %v653 = vpack.c.b16 %v621, %v621
        %v654 = vpack.c.b16 %v622, %v622
        %v655 = vpack.c.b16 %v623, %v623
        %v656 = vpack.c.b16 %v624, %v624
        %v657 = vpack.c.b16 %v625, %v625
        %v658 = vpack.c.b16 %v626, %v626
        %v659 = vpack.c.b16 %v627, %v627
        %v660 = vpack.c.b16 %v628, %v628
        %v661 = vpack.c.b16 %v629, %v629
        %v662 = vpack.c.b16 %v630, %v630
        %v663 = vpack.c.b16 %v631, %v631
        %v664 = vpack.c.b16 %v632, %v632
        %v665 = vpack.c.b16 %v633, %v633
        %v666 = vpack.c.b16 %v634, %v634
        %v667 = vpack.c.b16 %v635, %v635
        %v668 = vpack.c.b16 %v636, %v636
        %v669 = vpack.c.b16 %v637, %v637
        %v670 = vpack.c.b16 %v638, %v638
        %v671 = vpack.c.b16 %v639, %v639
        %v672 = vpack.c.b16 %v640, %v640
        %vm673 = vsmask.f32 256
        %vm674 = vsmask.f32 4368
        %vm675 = vmor %vm673, %vm674
        %v677 = vshrl.u32 %v641, 16
        %v679 = vrot.slane %v677, 7
        %v680 = vshll.u32 %v641, 16
        %v682 = vor.u32 %v679, %v680
        %v683 = vrot.slane %v679, 4
        %v685 = vshrl.u32 %v642, 16
        %v687 = vrot.slane %v685, 7
        %v688 = vshll.u32 %v642, 16
        %v690 = vor.u32 %v687, %v688
        %v691 = vsel %vm675, %v683, %v690
        %v692 = vrot.slane %v687, 4
        %v694 = vshrl.u32 %v643, 16
        %v696 = vrot.slane %v694, 7
        %v697 = vshll.u32 %v643, 16
        %v699 = vor.u32 %v696, %v697
        %v700 = vrot.slane %v696, 4
        %v702 = vshrl.u32 %v644, 16
        %v704 = vrot.slane %v702, 7
        %v705 = vshll.u32 %v644, 16
        %v707 = vor.u32 %v704, %v705
        %v708 = vsel %vm675, %v700, %v707
        %v709 = vrot.slane %v704, 4
        %v711 = vshrl.u32 %v645, 16
        %v713 = vrot.slane %v711, 7
        %v714 = vshll.u32 %v645, 16
        %v716 = vor.u32 %v713, %v714
        %v717 = vrot.slane %v713, 4
        %v719 = vshrl.u32 %v646, 16
        %v721 = vrot.slane %v719, 7
        %v722 = vshll.u32 %v646, 16
        %v724 = vor.u32 %v721, %v722
        %v725 = vsel %vm675, %v717, %v724
        %v726 = vrot.slane %v721, 4
        %v728 = vshrl.u32 %v647, 16
        %v730 = vrot.slane %v728, 7
        %v731 = vshll.u32 %v647, 16
        %v733 = vor.u32 %v730, %v731
        %v734 = vrot.slane %v730, 4
        %v736 = vshrl.u32 %v648, 16
        %v738 = vrot.slane %v736, 7
        %v739 = vshll.u32 %v648, 16
        %v741 = vor.u32 %v738, %v739
        %v742 = vsel %vm675, %v734, %v741
        %v743 = vrot.slane %v738, 4
        %v745 = vshrl.u32 %v649, 16
        %v747 = vrot.slane %v745, 7
        %v748 = vshll.u32 %v649, 16
        %v750 = vor.u32 %v747, %v748
        %v751 = vrot.slane %v747, 4
        %v753 = vshrl.u32 %v650, 16
        %v755 = vrot.slane %v753, 7
        %v756 = vshll.u32 %v650, 16
        %v758 = vor.u32 %v755, %v756
        %v759 = vsel %vm675, %v751, %v758
        %v760 = vrot.slane %v755, 4
        %v762 = vshrl.u32 %v651, 16
        %v764 = vrot.slane %v762, 7
        %v765 = vshll.u32 %v651, 16
        %v767 = vor.u32 %v764, %v765
        %v768 = vrot.slane %v764, 4
        %v770 = vshrl.u32 %v652, 16
        %v772 = vrot.slane %v770, 7
        %v773 = vshll.u32 %v652, 16
        %v775 = vor.u32 %v772, %v773
        %v776 = vsel %vm675, %v768, %v775
        %v777 = vrot.slane %v772, 4
        %v779 = vshrl.u32 %v653, 16
        %v781 = vrot.slane %v779, 7
        %v782 = vshll.u32 %v653, 16
        %v784 = vor.u32 %v781, %v782
        %v785 = vrot.slane %v781, 4
        %v787 = vshrl.u32 %v654, 16
        %v789 = vrot.slane %v787, 7
        %v790 = vshll.u32 %v654, 16
        %v792 = vor.u32 %v789, %v790
        %v793 = vsel %vm675, %v785, %v792
        %v794 = vrot.slane %v789, 4
        %v796 = vshrl.u32 %v655, 16
        %v798 = vrot.slane %v796, 7
        %v799 = vshll.u32 %v655, 16
        %v801 = vor.u32 %v798, %v799
        %v802 = vrot.slane %v798, 4
        %v804 = vshrl.u32 %v656, 16
        %v806 = vrot.slane %v804, 7
        %v807 = vshll.u32 %v656, 16
        %v809 = vor.u32 %v806, %v807
        %v810 = vsel %vm675, %v802, %v809
        %v811 = vrot.slane %v806, 4
        %v813 = vshrl.u32 %v657, 16
        %v815 = vrot.slane %v813, 7
        %v816 = vshll.u32 %v657, 16
        %v818 = vor.u32 %v815, %v816
        %v819 = vrot.slane %v815, 4
        %v821 = vshrl.u32 %v658, 16
        %v823 = vrot.slane %v821, 7
        %v824 = vshll.u32 %v658, 16
        %v826 = vor.u32 %v823, %v824
        %v827 = vsel %vm675, %v819, %v826
        %v828 = vrot.slane %v823, 4
        %v830 = vshrl.u32 %v659, 16
        %v832 = vrot.slane %v830, 7
        %v833 = vshll.u32 %v659, 16
        %v835 = vor.u32 %v832, %v833
        %v836 = vrot.slane %v832, 4
        %v838 = vshrl.u32 %v660, 16
        %v840 = vrot.slane %v838, 7
        %v841 = vshll.u32 %v660, 16
        %v843 = vor.u32 %v840, %v841
        %v844 = vsel %vm675, %v836, %v843
        %v845 = vrot.slane %v840, 4
        %v847 = vshrl.u32 %v661, 16
        %v849 = vrot.slane %v847, 7
        %v850 = vshll.u32 %v661, 16
        %v852 = vor.u32 %v849, %v850
        %v853 = vrot.slane %v849, 4
        %v855 = vshrl.u32 %v662, 16
        %v857 = vrot.slane %v855, 7
        %v858 = vshll.u32 %v662, 16
        %v860 = vor.u32 %v857, %v858
        %v861 = vsel %vm675, %v853, %v860
        %v862 = vrot.slane %v857, 4
        %v864 = vshrl.u32 %v663, 16
        %v866 = vrot.slane %v864, 7
        %v867 = vshll.u32 %v663, 16
        %v869 = vor.u32 %v866, %v867
        %v870 = vrot.slane %v866, 4
        %v872 = vshrl.u32 %v664, 16
        %v874 = vrot.slane %v872, 7
        %v875 = vshll.u32 %v664, 16
        %v877 = vor.u32 %v874, %v875
        %v878 = vsel %vm675, %v870, %v877
        %v879 = vrot.slane %v874, 4
        %v881 = vshrl.u32 %v665, 16
        %v883 = vrot.slane %v881, 7
        %v884 = vshll.u32 %v665, 16
        %v886 = vor.u32 %v883, %v884
        %v887 = vrot.slane %v883, 4
        %v889 = vshrl.u32 %v666, 16
        %v891 = vrot.slane %v889, 7
        %v892 = vshll.u32 %v666, 16
        %v894 = vor.u32 %v891, %v892
        %v895 = vsel %vm675, %v887, %v894
        %v896 = vrot.slane %v891, 4
        %v898 = vshrl.u32 %v667, 16
        %v900 = vrot.slane %v898, 7
        %v901 = vshll.u32 %v667, 16
        %v903 = vor.u32 %v900, %v901
        %v904 = vrot.slane %v900, 4
        %v906 = vshrl.u32 %v668, 16
        %v908 = vrot.slane %v906, 7
        %v909 = vshll.u32 %v668, 16
        %v911 = vor.u32 %v908, %v909
        %v912 = vsel %vm675, %v904, %v911
        %v913 = vrot.slane %v908, 4
        %v915 = vshrl.u32 %v669, 16
        %v917 = vrot.slane %v915, 7
        %v918 = vshll.u32 %v669, 16
        %v920 = vor.u32 %v917, %v918
        %v921 = vrot.slane %v917, 4
        %v923 = vshrl.u32 %v670, 16
        %v925 = vrot.slane %v923, 7
        %v926 = vshll.u32 %v670, 16
        %v928 = vor.u32 %v925, %v926
        %v929 = vsel %vm675, %v921, %v928
        %v930 = vrot.slane %v925, 4
        %v932 = vshrl.u32 %v671, 16
        %v934 = vrot.slane %v932, 7
        %v935 = vshll.u32 %v671, 16
        %v937 = vor.u32 %v934, %v935
        %v938 = vrot.slane %v934, 4
        %v940 = vshrl.u32 %v672, 16
        %v942 = vrot.slane %v940, 7
        %v943 = vshll.u32 %v672, 16
        %v945 = vor.u32 %v942, %v943
        %v946 = vsel %vm675, %v938, %v945
        %v947 = vrot.slane %v942, 4
        %s996 = scalar_lea.vmem [#allocation2], 12
        %vm997 = vcmask 1043456
        %vm998 = vsmask.f32 7938
        %vm999 = vmand %vm997, %vm998
        %v1000 = vld [vmem:[%s996] sm:$0xf]
        %v1001 = vsel %vm999, %v682, %v1000
        %1002 = vst [vmem:[%s996] sm:$0xf] %v1001
        %1003 = vst [vmem:[%s996 + $0x4] sm:$0xf] %v691
        %vm1004 = vcmask 1040384
        %vm1005 = vmand %vm1004, %vm673
        %v1006 = vld [vmem:[%s996 + $0x8] sm:$0x1]
        %v1007 = vsel %vm1005, %v692, %v1006
        %1008 = vst [vmem:[%s996 + $0x8] sm:$0x1] %v1007
        %v1009 = vld [vmem:[%s996 + $0xc] sm:$0xf]
        %v1010 = vsel %vm999, %v699, %v1009
        %1011 = vst [vmem:[%s996 + $0xc] sm:$0xf] %v1010
        %1012 = vst [vmem:[%s996 + $0x10] sm:$0xf] %v708
        %v1013 = vld [vmem:[%s996 + $0x14] sm:$0x1]
        %v1014 = vsel %vm1005, %v709, %v1013
        %1015 = vst [vmem:[%s996 + $0x14] sm:$0x1] %v1014
        %v1016 = vld [vmem:[%s996 + $0x18] sm:$0xf]
        %v1017 = vsel %vm999, %v716, %v1016
        %1018 = vst [vmem:[%s996 + $0x18] sm:$0xf] %v1017
        %1019 = vst [vmem:[%s996 + $0x1c] sm:$0xf] %v725
        %v1020 = vld [vmem:[%s996 + $0x20] sm:$0x1]
        %v1021 = vsel %vm1005, %v726, %v1020
        %1022 = vst [vmem:[%s996 + $0x20] sm:$0x1] %v1021
        %v1023 = vld [vmem:[%s996 + $0x24] sm:$0xf]
        %v1024 = vsel %vm999, %v733, %v1023
        %1025 = vst [vmem:[%s996 + $0x24] sm:$0xf] %v1024
        %1026 = vst [vmem:[%s996 + $0x28] sm:$0xf] %v742
        %v1027 = vld [vmem:[%s996 + $0x2c] sm:$0x1]
        %v1028 = vsel %vm1005, %v743, %v1027
        %1029 = vst [vmem:[%s996 + $0x2c] sm:$0x1] %v1028
        %v1030 = vld [vmem:[%s996 + $0x30] sm:$0xf]
        %v1031 = vsel %vm999, %v750, %v1030
        %1032 = vst [vmem:[%s996 + $0x30] sm:$0xf] %v1031
        %1033 = vst [vmem:[%s996 + $0x34] sm:$0xf] %v759
        %v1034 = vld [vmem:[%s996 + $0x38] sm:$0x1]
        %v1035 = vsel %vm1005, %v760, %v1034
        %1036 = vst [vmem:[%s996 + $0x38] sm:$0x1] %v1035
        %v1037 = vld [vmem:[%s996 + $0x3c] sm:$0xf]
        %v1038 = vsel %vm999, %v767, %v1037
        %1039 = vst [vmem:[%s996 + $0x3c] sm:$0xf] %v1038
        %1040 = vst [vmem:[%s996 + $0x40] sm:$0xf] %v776
        %v1041 = vld [vmem:[%s996 + $0x44] sm:$0x1]
        %v1042 = vsel %vm1005, %v777, %v1041
        %1043 = vst [vmem:[%s996 + $0x44] sm:$0x1] %v1042
        %v1044 = vld [vmem:[%s996 + $0x48] sm:$0xf]
        %v1045 = vsel %vm999, %v784, %v1044
        %1046 = vst [vmem:[%s996 + $0x48] sm:$0xf] %v1045
        %1047 = vst [vmem:[%s996 + $0x4c] sm:$0xf] %v793
        %v1048 = vld [vmem:[%s996 + $0x50] sm:$0x1]
        %v1049 = vsel %vm1005, %v794, %v1048
        %1050 = vst [vmem:[%s996 + $0x50] sm:$0x1] %v1049
        %v1051 = vld [vmem:[%s996 + $0x54] sm:$0xf]
        %v1052 = vsel %vm999, %v801, %v1051
        %1053 = vst [vmem:[%s996 + $0x54] sm:$0xf] %v1052
        %1054 = vst [vmem:[%s996 + $0x58] sm:$0xf] %v810
        %v1055 = vld [vmem:[%s996 + $0x5c] sm:$0x1]
        %v1056 = vsel %vm1005, %v811, %v1055
        %1057 = vst [vmem:[%s996 + $0x5c] sm:$0x1] %v1056
        %v1058 = vld [vmem:[%s996 + $0x60] sm:$0xf]
        %v1059 = vsel %vm999, %v818, %v1058
        %1060 = vst [vmem:[%s996 + $0x60] sm:$0xf] %v1059
        %1061 = vst [vmem:[%s996 + $0x64] sm:$0xf] %v827
        %v1062 = vld [vmem:[%s996 + $0x68] sm:$0x1]
        %v1063 = vsel %vm1005, %v828, %v1062
        %1064 = vst [vmem:[%s996 + $0x68] sm:$0x1] %v1063
        %v1065 = vld [vmem:[%s996 + $0x6c] sm:$0xf]
        %v1066 = vsel %vm999, %v835, %v1065
        %1067 = vst [vmem:[%s996 + $0x6c] sm:$0xf] %v1066
        %1068 = vst [vmem:[%s996 + $0x70] sm:$0xf] %v844
        %v1069 = vld [vmem:[%s996 + $0x74] sm:$0x1]
        %v1070 = vsel %vm1005, %v845, %v1069
        %1071 = vst [vmem:[%s996 + $0x74] sm:$0x1] %v1070
        %v1072 = vld [vmem:[%s996 + $0x78] sm:$0xf]
        %v1073 = vsel %vm999, %v852, %v1072
        %1074 = vst [vmem:[%s996 + $0x78] sm:$0xf] %v1073
        %1075 = vst [vmem:[%s996 + $0x7c] sm:$0xf] %v861
        %v1076 = vld [vmem:[%s996 + $0x80] sm:$0x1]
        %v1077 = vsel %vm1005, %v862, %v1076
        %1078 = vst [vmem:[%s996 + $0x80] sm:$0x1] %v1077
        %v1079 = vld [vmem:[%s996 + $0x84] sm:$0xf]
        %v1080 = vsel %vm999, %v869, %v1079
        %1081 = vst [vmem:[%s996 + $0x84] sm:$0xf] %v1080
        %1082 = vst [vmem:[%s996 + $0x88] sm:$0xf] %v878
        %v1083 = vld [vmem:[%s996 + $0x8c] sm:$0x1]
        %v1084 = vsel %vm1005, %v879, %v1083
        %1085 = vst [vmem:[%s996 + $0x8c] sm:$0x1] %v1084
        %v1086 = vld [vmem:[%s996 + $0x90] sm:$0xf]
        %v1087 = vsel %vm999, %v886, %v1086
        %1088 = vst [vmem:[%s996 + $0x90] sm:$0xf] %v1087
        %1089 = vst [vmem:[%s996 + $0x94] sm:$0xf] %v895
        %v1090 = vld [vmem:[%s996 + $0x98] sm:$0x1]
        %v1091 = vsel %vm1005, %v896, %v1090
        %1092 = vst [vmem:[%s996 + $0x98] sm:$0x1] %v1091
        %v1093 = vld [vmem:[%s996 + $0x9c] sm:$0xf]
        %v1094 = vsel %vm999, %v903, %v1093
        %1095 = vst [vmem:[%s996 + $0x9c] sm:$0xf] %v1094
        %1096 = vst [vmem:[%s996 + $0xa0] sm:$0xf] %v912
        %v1097 = vld [vmem:[%s996 + $0xa4] sm:$0x1]
        %v1098 = vsel %vm1005, %v913, %v1097
        %1099 = vst [vmem:[%s996 + $0xa4] sm:$0x1] %v1098
        %v1100 = vld [vmem:[%s996 + $0xa8] sm:$0xf]
        %v1101 = vsel %vm999, %v920, %v1100
        %1102 = vst [vmem:[%s996 + $0xa8] sm:$0xf] %v1101
        %1103 = vst [vmem:[%s996 + $0xac] sm:$0xf] %v929
        %v1104 = vld [vmem:[%s996 + $0xb0] sm:$0x1]
        %v1105 = vsel %vm1005, %v930, %v1104
        %1106 = vst [vmem:[%s996 + $0xb0] sm:$0x1] %v1105
        %v1107 = vld [vmem:[%s996 + $0xb4] sm:$0xf]
        %v1108 = vsel %vm999, %v937, %v1107
        %1109 = vst [vmem:[%s996 + $0xb4] sm:$0xf] %v1108
        %1110 = vst [vmem:[%s996 + $0xb8] sm:$0xf] %v946
        %v1111 = vld [vmem:[%s996 + $0xbc] sm:$0x1]
        %v1112 = vsel %vm1005, %v947, %v1111
        %1113 = vst [vmem:[%s996 + $0xbc] sm:$0x1] %v1112
        %v1114 = vld [vmem:[#allocation2] sm:$0xf]
        %v1115 = vld [vmem:[#allocation2 + $0x4] sm:$0xf]
        %v1116 = vld [vmem:[#allocation2 + $0xc] sm:$0xf]
        %v1117 = vld [vmem:[#allocation2 + $0x10] sm:$0xf]
        %v1118 = vld [vmem:[#allocation2 + $0x18] sm:$0xf]
        %v1119 = vld [vmem:[#allocation2 + $0x1c] sm:$0xf]
        %v1120 = vld [vmem:[#allocation2 + $0x24] sm:$0xf]
        %v1121 = vld [vmem:[#allocation2 + $0x28] sm:$0xf]
        %v1122 = vld [vmem:[#allocation2 + $0x30] sm:$0xf]
        %v1123 = vld [vmem:[#allocation2 + $0x34] sm:$0xf]
        %v1124 = vld [vmem:[#allocation2 + $0x3c] sm:$0xf]
        %v1125 = vld [vmem:[#allocation2 + $0x40] sm:$0xf]
        %v1126 = vld [vmem:[#allocation2 + $0x48] sm:$0xf]
        %v1127 = vld [vmem:[#allocation2 + $0x4c] sm:$0xf]
        %v1128 = vld [vmem:[#allocation2 + $0x54] sm:$0xf]
        %v1129 = vld [vmem:[#allocation2 + $0x58] sm:$0xf]
        %v1130 = vld [vmem:[#allocation2 + $0x60] sm:$0xf]
        %v1131 = vld [vmem:[#allocation2 + $0x64] sm:$0xf]
        %v1132 = vld [vmem:[#allocation2 + $0x6c] sm:$0xf]
        %v1133 = vld [vmem:[#allocation2 + $0x70] sm:$0xf]
        %v1134 = vld [vmem:[#allocation2 + $0x78] sm:$0xf]
        %v1135 = vld [vmem:[#allocation2 + $0x7c] sm:$0xf]
        %v1136 = vld [vmem:[#allocation2 + $0x84] sm:$0xf]
        %v1137 = vld [vmem:[#allocation2 + $0x88] sm:$0xf]
        %v1138 = vld [vmem:[#allocation2 + $0x90] sm:$0xf]
        %v1139 = vld [vmem:[#allocation2 + $0x94] sm:$0xf]
        %v1140 = vld [vmem:[#allocation2 + $0x9c] sm:$0xf]
        %v1141 = vld [vmem:[#allocation2 + $0xa0] sm:$0xf]
        %v1142 = vld [vmem:[#allocation2 + $0xa8] sm:$0xf]
        %v1143 = vld [vmem:[#allocation2 + $0xac] sm:$0xf]
        %v1144 = vld [vmem:[#allocation2 + $0xb4] sm:$0xf]
        %v1145 = vld [vmem:[#allocation2 + $0xb8] sm:$0xf]
        %v1178 = vunpack.c.l.b16 %v1114
        %v1179 = vunpack.c.l.b16 %v1115
        %v1180 = vunpack.c.l.b16 %v1116
        %v1181 = vunpack.c.l.b16 %v1117
        %v1182 = vunpack.c.l.b16 %v1118
        %v1183 = vunpack.c.l.b16 %v1119
        %v1184 = vunpack.c.l.b16 %v1120
        %v1185 = vunpack.c.l.b16 %v1121
        %v1186 = vunpack.c.l.b16 %v1122
        %v1187 = vunpack.c.l.b16 %v1123
        %v1188 = vunpack.c.l.b16 %v1124
        %v1189 = vunpack.c.l.b16 %v1125
        %v1190 = vunpack.c.l.b16 %v1126
        %v1191 = vunpack.c.l.b16 %v1127
        %v1192 = vunpack.c.l.b16 %v1128
        %v1193 = vunpack.c.l.b16 %v1129
        %v1194 = vunpack.c.l.b16 %v1130
        %v1195 = vunpack.c.l.b16 %v1131
        %v1196 = vunpack.c.l.b16 %v1132
        %v1197 = vunpack.c.l.b16 %v1133
        %v1198 = vunpack.c.l.b16 %v1134
        %v1199 = vunpack.c.l.b16 %v1135
        %v1200 = vunpack.c.l.b16 %v1136
        %v1201 = vunpack.c.l.b16 %v1137
        %v1202 = vunpack.c.l.b16 %v1138
        %v1203 = vunpack.c.l.b16 %v1139
        %v1204 = vunpack.c.l.b16 %v1140
        %v1205 = vunpack.c.l.b16 %v1141
        %v1206 = vunpack.c.l.b16 %v1142
        %v1207 = vunpack.c.l.b16 %v1143
        %v1208 = vunpack.c.l.b16 %v1144
        %v1209 = vunpack.c.l.b16 %v1145
        %v1210 = vpack.c.b16 %v1179, %v1178
        %v1211 = vpack.c.b16 %v1181, %v1180
        %v1212 = vpack.c.b16 %v1183, %v1182
        %v1213 = vpack.c.b16 %v1185, %v1184
        %v1214 = vpack.c.b16 %v1187, %v1186
        %v1215 = vpack.c.b16 %v1189, %v1188
        %v1216 = vpack.c.b16 %v1191, %v1190
        %v1217 = vpack.c.b16 %v1193, %v1192
        %v1218 = vpack.c.b16 %v1195, %v1194
        %v1219 = vpack.c.b16 %v1197, %v1196
        %v1220 = vpack.c.b16 %v1199, %v1198
        %v1221 = vpack.c.b16 %v1201, %v1200
        %v1222 = vpack.c.b16 %v1203, %v1202
        %v1223 = vpack.c.b16 %v1205, %v1204
        %v1224 = vpack.c.b16 %v1207, %v1206
        %v1225 = vpack.c.b16 %v1209, %v1208
        %1242 = vst [vmem:[#allocation3] sm:$0xff] %v1210
        %1243 = vst [vmem:[#allocation3 + $0x48] sm:$0xff] %v1211
        %1244 = vst [vmem:[#allocation3 + $0x90] sm:$0xff] %v1212
        %1245 = vst [vmem:[#allocation3 + $0xd8] sm:$0xff] %v1213
        %1246 = vst [vmem:[#allocation3 + $0x120] sm:$0xff] %v1214
        %1247 = vst [vmem:[#allocation3 + $0x168] sm:$0xff] %v1215
        %1248 = vst [vmem:[#allocation3 + $0x1b0] sm:$0xff] %v1216
        %1249 = vst [vmem:[#allocation3 + $0x1f8] sm:$0xff] %v1217
        %1250 = vst [vmem:[#allocation3 + $0x240] sm:$0xff] %v1218
        %1251 = vst [vmem:[#allocation3 + $0x288] sm:$0xff] %v1219
        %1252 = vst [vmem:[#allocation3 + $0x2d0] sm:$0xff] %v1220
        %1253 = vst [vmem:[#allocation3 + $0x318] sm:$0xff] %v1221
        %1254 = vst [vmem:[#allocation3 + $0x360] sm:$0xff] %v1222
        %1255 = vst [vmem:[#allocation3 + $0x3a8] sm:$0xff] %v1223
        %1256 = vst [vmem:[#allocation3 + $0x3f0] sm:$0xff] %v1224
        %1257 = vst [vmem:[#allocation3 + $0x438] sm:$0xff] %v1225
        %v1258 = vld [vmem:[#allocation2] sm:$0xf]
        %v1259 = vld [vmem:[#allocation2 + $0x4] sm:$0xf]
        %v1260 = vld [vmem:[#allocation2 + $0x8] sm:$0x1]
        %v1261 = vld [vmem:[#allocation2 + $0xc] sm:$0xf]
        %v1262 = vld [vmem:[#allocation2 + $0x10] sm:$0xf]
        %v1263 = vld [vmem:[#allocation2 + $0x14] sm:$0x1]
        %v1264 = vld [vmem:[#allocation2 + $0x18] sm:$0xf]
        %v1265 = vld [vmem:[#allocation2 + $0x1c] sm:$0xf]
        %v1266 = vld [vmem:[#allocation2 + $0x20] sm:$0x1]
        %v1267 = vld [vmem:[#allocation2 + $0x24] sm:$0xf]
        %v1268 = vld [vmem:[#allocation2 + $0x28] sm:$0xf]
        %v1269 = vld [vmem:[#allocation2 + $0x2c] sm:$0x1]
        %v1270 = vld [vmem:[#allocation2 + $0x30] sm:$0xf]
        %v1271 = vld [vmem:[#allocation2 + $0x34] sm:$0xf]
        %v1272 = vld [vmem:[#allocation2 + $0x38] sm:$0x1]
        %v1273 = vld [vmem:[#allocation2 + $0x3c] sm:$0xf]
        %v1274 = vld [vmem:[#allocation2 + $0x40] sm:$0xf]
        %v1275 = vld [vmem:[#allocation2 + $0x44] sm:$0x1]
        %v1276 = vld [vmem:[#allocation2 + $0x48] sm:$0xf]
        %v1277 = vld [vmem:[#allocation2 + $0x4c] sm:$0xf]
        %v1278 = vld [vmem:[#allocation2 + $0x50] sm:$0x1]
        %v1279 = vld [vmem:[#allocation2 + $0x54] sm:$0xf]
        %v1280 = vld [vmem:[#allocation2 + $0x58] sm:$0xf]
        %v1281 = vld [vmem:[#allocation2 + $0x5c] sm:$0x1]
        %v1282 = vld [vmem:[#allocation2 + $0x60] sm:$0xf]
        %v1283 = vld [vmem:[#allocation2 + $0x64] sm:$0xf]
        %v1284 = vld [vmem:[#allocation2 + $0x68] sm:$0x1]
        %v1285 = vld [vmem:[#allocation2 + $0x6c] sm:$0xf]
        %v1286 = vld [vmem:[#allocation2 + $0x70] sm:$0xf]
        %v1287 = vld [vmem:[#allocation2 + $0x74] sm:$0x1]
        %v1288 = vld [vmem:[#allocation2 + $0x78] sm:$0xf]
        %v1289 = vld [vmem:[#allocation2 + $0x7c] sm:$0xf]
        %v1290 = vld [vmem:[#allocation2 + $0x80] sm:$0x1]
        %v1291 = vld [vmem:[#allocation2 + $0x84] sm:$0xf]
        %v1292 = vld [vmem:[#allocation2 + $0x88] sm:$0xf]
        %v1293 = vld [vmem:[#allocation2 + $0x8c] sm:$0x1]
        %v1294 = vld [vmem:[#allocation2 + $0x90] sm:$0xf]
        %v1295 = vld [vmem:[#allocation2 + $0x94] sm:$0xf]
        %v1296 = vld [vmem:[#allocation2 + $0x98] sm:$0x1]
        %v1297 = vld [vmem:[#allocation2 + $0x9c] sm:$0xf]
        %v1298 = vld [vmem:[#allocation2 + $0xa0] sm:$0xf]
        %v1299 = vld [vmem:[#allocation2 + $0xa4] sm:$0x1]
        %v1300 = vld [vmem:[#allocation2 + $0xa8] sm:$0xf]
        %v1301 = vld [vmem:[#allocation2 + $0xac] sm:$0xf]
        %v1302 = vld [vmem:[#allocation2 + $0xb0] sm:$0x1]
        %v1303 = vld [vmem:[#allocation2 + $0xb4] sm:$0xf]
        %v1304 = vld [vmem:[#allocation2 + $0xb8] sm:$0xf]
        %v1305 = vld [vmem:[#allocation2 + $0xbc] sm:$0x1]
        %vm1306 = vsmask.f32 3328
        %vm1307 = vsmask.f32 7440
        %vm1308 = vmor %vm1306, %vm1307
        %v1310 = vshrl.u32 %v1258, 16
        %v1312 = vrot.slane %v1310, 4
        %v1313 = vshll.u32 %v1258, 16
        %v1315 = vrot.slane %v1313, 5
        %v1316 = vor.u32 %v1312, %v1315
        %v1317 = vrot.slane %v1316, 4
        %v1319 = vshll.u32 %v1259, 16
        %v1321 = vrot.slane %v1319, 5
        %v1322 = vsel %vm1308, %v1317, %v1321
        %v1323 = vshrl.u32 %v1259, 16
        %v1325 = vrot.slane %v1323, 4
        %v1326 = vor.u32 %v1325, %v1321
        %v1327 = vrot.slane %v1326, 4
        %v1329 = vshll.u32 %v1260, 16
        %v1331 = vrot.slane %v1329, 5
        %v1332 = vsel %vm1308, %v1327, %v1331
        %v1334 = vshrl.u32 %v1261, 16
        %v1336 = vrot.slane %v1334, 4
        %v1337 = vshll.u32 %v1261, 16
        %v1339 = vrot.slane %v1337, 5
        %v1340 = vor.u32 %v1336, %v1339
        %v1341 = vrot.slane %v1340, 4
        %v1343 = vshll.u32 %v1262, 16
        %v1345 = vrot.slane %v1343, 5
        %v1346 = vsel %vm1308, %v1341, %v1345
        %v1347 = vshrl.u32 %v1262, 16
        %v1349 = vrot.slane %v1347, 4
        %v1350 = vor.u32 %v1349, %v1345
        %v1351 = vrot.slane %v1350, 4
        %v1353 = vshll.u32 %v1263, 16
        %v1355 = vrot.slane %v1353, 5
        %v1356 = vsel %vm1308, %v1351, %v1355
        %v1358 = vshrl.u32 %v1264, 16
        %v1360 = vrot.slane %v1358, 4
        %v1361 = vshll.u32 %v1264, 16
        %v1363 = vrot.slane %v1361, 5
        %v1364 = vor.u32 %v1360, %v1363
        %v1365 = vrot.slane %v1364, 4
        %v1367 = vshll.u32 %v1265, 16
        %v1369 = vrot.slane %v1367, 5
        %v1370 = vsel %vm1308, %v1365, %v1369
        %v1371 = vshrl.u32 %v1265, 16
        %v1373 = vrot.slane %v1371, 4
        %v1374 = vor.u32 %v1373, %v1369
        %v1375 = vrot.slane %v1374, 4
        %v1377 = vshll.u32 %v1266, 16
        %v1379 = vrot.slane %v1377, 5
        %v1380 = vsel %vm1308, %v1375, %v1379
        %v1382 = vshrl.u32 %v1267, 16
        %v1384 = vrot.slane %v1382, 4
        %v1385 = vshll.u32 %v1267, 16
        %v1387 = vrot.slane %v1385, 5
        %v1388 = vor.u32 %v1384, %v1387
        %v1389 = vrot.slane %v1388, 4
        %v1391 = vshll.u32 %v1268, 16
        %v1393 = vrot.slane %v1391, 5
        %v1394 = vsel %vm1308, %v1389, %v1393
        %v1395 = vshrl.u32 %v1268, 16
        %v1397 = vrot.slane %v1395, 4
        %v1398 = vor.u32 %v1397, %v1393
        %v1399 = vrot.slane %v1398, 4
        %v1401 = vshll.u32 %v1269, 16
        %v1403 = vrot.slane %v1401, 5
        %v1404 = vsel %vm1308, %v1399, %v1403
        %v1406 = vshrl.u32 %v1270, 16
        %v1408 = vrot.slane %v1406, 4
        %v1409 = vshll.u32 %v1270, 16
        %v1411 = vrot.slane %v1409, 5
        %v1412 = vor.u32 %v1408, %v1411
        %v1413 = vrot.slane %v1412, 4
        %v1415 = vshll.u32 %v1271, 16
        %v1417 = vrot.slane %v1415, 5
        %v1418 = vsel %vm1308, %v1413, %v1417
        %v1419 = vshrl.u32 %v1271, 16
        %v1421 = vrot.slane %v1419, 4
        %v1422 = vor.u32 %v1421, %v1417
        %v1423 = vrot.slane %v1422, 4
        %v1425 = vshll.u32 %v1272, 16
        %v1427 = vrot.slane %v1425, 5
        %v1428 = vsel %vm1308, %v1423, %v1427
        %v1430 = vshrl.u32 %v1273, 16
        %v1432 = vrot.slane %v1430, 4
        %v1433 = vshll.u32 %v1273, 16
        %v1435 = vrot.slane %v1433, 5
        %v1436 = vor.u32 %v1432, %v1435
        %v1437 = vrot.slane %v1436, 4
        %v1439 = vshll.u32 %v1274, 16
        %v1441 = vrot.slane %v1439, 5
        %v1442 = vsel %vm1308, %v1437, %v1441
        %v1443 = vshrl.u32 %v1274, 16
        %v1445 = vrot.slane %v1443, 4
        %v1446 = vor.u32 %v1445, %v1441
        %v1447 = vrot.slane %v1446, 4
        %v1449 = vshll.u32 %v1275, 16
        %v1451 = vrot.slane %v1449, 5
        %v1452 = vsel %vm1308, %v1447, %v1451
        %v1454 = vshrl.u32 %v1276, 16
        %v1456 = vrot.slane %v1454, 4
        %v1457 = vshll.u32 %v1276, 16
        %v1459 = vrot.slane %v1457, 5
        %v1460 = vor.u32 %v1456, %v1459
        %v1461 = vrot.slane %v1460, 4
        %v1463 = vshll.u32 %v1277, 16
        %v1465 = vrot.slane %v1463, 5
        %v1466 = vsel %vm1308, %v1461, %v1465
        %v1467 = vshrl.u32 %v1277, 16
        %v1469 = vrot.slane %v1467, 4
        %v1470 = vor.u32 %v1469, %v1465
        %v1471 = vrot.slane %v1470, 4
        %v1473 = vshll.u32 %v1278, 16
        %v1475 = vrot.slane %v1473, 5
        %v1476 = vsel %vm1308, %v1471, %v1475
        %v1478 = vshrl.u32 %v1279, 16
        %v1480 = vrot.slane %v1478, 4
        %v1481 = vshll.u32 %v1279, 16
        %v1483 = vrot.slane %v1481, 5
        %v1484 = vor.u32 %v1480, %v1483
        %v1485 = vrot.slane %v1484, 4
        %v1487 = vshll.u32 %v1280, 16
        %v1489 = vrot.slane %v1487, 5
        %v1490 = vsel %vm1308, %v1485, %v1489
        %v1491 = vshrl.u32 %v1280, 16
        %v1493 = vrot.slane %v1491, 4
        %v1494 = vor.u32 %v1493, %v1489
        %v1495 = vrot.slane %v1494, 4
        %v1497 = vshll.u32 %v1281, 16
        %v1499 = vrot.slane %v1497, 5
        %v1500 = vsel %vm1308, %v1495, %v1499
        %v1502 = vshrl.u32 %v1282, 16
        %v1504 = vrot.slane %v1502, 4
        %v1505 = vshll.u32 %v1282, 16
        %v1507 = vrot.slane %v1505, 5
        %v1508 = vor.u32 %v1504, %v1507
        %v1509 = vrot.slane %v1508, 4
        %v1511 = vshll.u32 %v1283, 16
        %v1513 = vrot.slane %v1511, 5
        %v1514 = vsel %vm1308, %v1509, %v1513
        %v1515 = vshrl.u32 %v1283, 16
        %v1517 = vrot.slane %v1515, 4
        %v1518 = vor.u32 %v1517, %v1513
        %v1519 = vrot.slane %v1518, 4
        %v1521 = vshll.u32 %v1284, 16
        %v1523 = vrot.slane %v1521, 5
        %v1524 = vsel %vm1308, %v1519, %v1523
        %v1526 = vshrl.u32 %v1285, 16
        %v1528 = vrot.slane %v1526, 4
        %v1529 = vshll.u32 %v1285, 16
        %v1531 = vrot.slane %v1529, 5
        %v1532 = vor.u32 %v1528, %v1531
        %v1533 = vrot.slane %v1532, 4
        %v1535 = vshll.u32 %v1286, 16
        %v1537 = vrot.slane %v1535, 5
        %v1538 = vsel %vm1308, %v1533, %v1537
        %v1539 = vshrl.u32 %v1286, 16
        %v1541 = vrot.slane %v1539, 4
        %v1542 = vor.u32 %v1541, %v1537
        %v1543 = vrot.slane %v1542, 4
        %v1545 = vshll.u32 %v1287, 16
        %v1547 = vrot.slane %v1545, 5
        %v1548 = vsel %vm1308, %v1543, %v1547
        %v1550 = vshrl.u32 %v1288, 16
        %v1552 = vrot.slane %v1550, 4
        %v1553 = vshll.u32 %v1288, 16
        %v1555 = vrot.slane %v1553, 5
        %v1556 = vor.u32 %v1552, %v1555
        %v1557 = vrot.slane %v1556, 4
        %v1559 = vshll.u32 %v1289, 16
        %v1561 = vrot.slane %v1559, 5
        %v1562 = vsel %vm1308, %v1557, %v1561
        %v1563 = vshrl.u32 %v1289, 16
        %v1565 = vrot.slane %v1563, 4
        %v1566 = vor.u32 %v1565, %v1561
        %v1567 = vrot.slane %v1566, 4
        %v1569 = vshll.u32 %v1290, 16
        %v1571 = vrot.slane %v1569, 5
        %v1572 = vsel %vm1308, %v1567, %v1571
        %v1574 = vshrl.u32 %v1291, 16
        %v1576 = vrot.slane %v1574, 4
        %v1577 = vshll.u32 %v1291, 16
        %v1579 = vrot.slane %v1577, 5
        %v1580 = vor.u32 %v1576, %v1579
        %v1581 = vrot.slane %v1580, 4
        %v1583 = vshll.u32 %v1292, 16
        %v1585 = vrot.slane %v1583, 5
        %v1586 = vsel %vm1308, %v1581, %v1585
        %v1587 = vshrl.u32 %v1292, 16
        %v1589 = vrot.slane %v1587, 4
        %v1590 = vor.u32 %v1589, %v1585
        %v1591 = vrot.slane %v1590, 4
        %v1593 = vshll.u32 %v1293, 16
        %v1595 = vrot.slane %v1593, 5
        %v1596 = vsel %vm1308, %v1591, %v1595
        %v1598 = vshrl.u32 %v1294, 16
        %v1600 = vrot.slane %v1598, 4
        %v1601 = vshll.u32 %v1294, 16
        %v1603 = vrot.slane %v1601, 5
        %v1604 = vor.u32 %v1600, %v1603
        %v1605 = vrot.slane %v1604, 4
        %v1607 = vshll.u32 %v1295, 16
        %v1609 = vrot.slane %v1607, 5
        %v1610 = vsel %vm1308, %v1605, %v1609
        %v1611 = vshrl.u32 %v1295, 16
        %v1613 = vrot.slane %v1611, 4
        %v1614 = vor.u32 %v1613, %v1609
        %v1615 = vrot.slane %v1614, 4
        %v1617 = vshll.u32 %v1296, 16
        %v1619 = vrot.slane %v1617, 5
        %v1620 = vsel %vm1308, %v1615, %v1619
        %v1622 = vshrl.u32 %v1297, 16
        %v1624 = vrot.slane %v1622, 4
        %v1625 = vshll.u32 %v1297, 16
        %v1627 = vrot.slane %v1625, 5
        %v1628 = vor.u32 %v1624, %v1627
        %v1629 = vrot.slane %v1628, 4
        %v1631 = vshll.u32 %v1298, 16
        %v1633 = vrot.slane %v1631, 5
        %v1634 = vsel %vm1308, %v1629, %v1633
        %v1635 = vshrl.u32 %v1298, 16
        %v1637 = vrot.slane %v1635, 4
        %v1638 = vor.u32 %v1637, %v1633
        %v1639 = vrot.slane %v1638, 4
        %v1641 = vshll.u32 %v1299, 16
        %v1643 = vrot.slane %v1641, 5
        %v1644 = vsel %vm1308, %v1639, %v1643
        %v1646 = vshrl.u32 %v1300, 16
        %v1648 = vrot.slane %v1646, 4
        %v1649 = vshll.u32 %v1300, 16
        %v1651 = vrot.slane %v1649, 5
        %v1652 = vor.u32 %v1648, %v1651
        %v1653 = vrot.slane %v1652, 4
        %v1655 = vshll.u32 %v1301, 16
        %v1657 = vrot.slane %v1655, 5
        %v1658 = vsel %vm1308, %v1653, %v1657
        %v1659 = vshrl.u32 %v1301, 16
        %v1661 = vrot.slane %v1659, 4
        %v1662 = vor.u32 %v1661, %v1657
        %v1663 = vrot.slane %v1662, 4
        %v1665 = vshll.u32 %v1302, 16
        %v1667 = vrot.slane %v1665, 5
        %v1668 = vsel %vm1308, %v1663, %v1667
        %v1670 = vshrl.u32 %v1303, 16
        %v1672 = vrot.slane %v1670, 4
        %v1673 = vshll.u32 %v1303, 16
        %v1675 = vrot.slane %v1673, 5
        %v1676 = vor.u32 %v1672, %v1675
        %v1677 = vrot.slane %v1676, 4
        %v1679 = vshll.u32 %v1304, 16
        %v1681 = vrot.slane %v1679, 5
        %v1682 = vsel %vm1308, %v1677, %v1681
        %v1683 = vshrl.u32 %v1304, 16
        %v1685 = vrot.slane %v1683, 4
        %v1686 = vor.u32 %v1685, %v1681
        %v1687 = vrot.slane %v1686, 4
        %v1689 = vshll.u32 %v1305, 16
        %v1691 = vrot.slane %v1689, 5
        %v1692 = vsel %vm1308, %v1687, %v1691
        %v1693 = vunpack.c.l.b16 %v1322
        %v1694 = vunpack.c.l.b16 %v1332
        %v1695 = vunpack.c.l.b16 %v1346
        %v1696 = vunpack.c.l.b16 %v1356
        %v1697 = vunpack.c.l.b16 %v1370
        %v1698 = vunpack.c.l.b16 %v1380
        %v1699 = vunpack.c.l.b16 %v1394
        %v1700 = vunpack.c.l.b16 %v1404
        %v1701 = vunpack.c.l.b16 %v1418
        %v1702 = vunpack.c.l.b16 %v1428
        %v1703 = vunpack.c.l.b16 %v1442
        %v1704 = vunpack.c.l.b16 %v1452
        %v1705 = vunpack.c.l.b16 %v1466
        %v1706 = vunpack.c.l.b16 %v1476
        %v1707 = vunpack.c.l.b16 %v1490
        %v1708 = vunpack.c.l.b16 %v1500
        %v1709 = vunpack.c.l.b16 %v1514
        %v1710 = vunpack.c.l.b16 %v1524
        %v1711 = vunpack.c.l.b16 %v1538
        %v1712 = vunpack.c.l.b16 %v1548
        %v1713 = vunpack.c.l.b16 %v1562
        %v1714 = vunpack.c.l.b16 %v1572
        %v1715 = vunpack.c.l.b16 %v1586
        %v1716 = vunpack.c.l.b16 %v1596
        %v1717 = vunpack.c.l.b16 %v1610
        %v1718 = vunpack.c.l.b16 %v1620
        %v1719 = vunpack.c.l.b16 %v1634
        %v1720 = vunpack.c.l.b16 %v1644
        %v1721 = vunpack.c.l.b16 %v1658
        %v1722 = vunpack.c.l.b16 %v1668
        %v1723 = vunpack.c.l.b16 %v1682
        %v1724 = vunpack.c.l.b16 %v1692
        %v1725 = vpack.c.b16 %v1694, %v1693
        %v1726 = vpack.c.b16 %v1696, %v1695
        %v1727 = vpack.c.b16 %v1698, %v1697
        %v1728 = vpack.c.b16 %v1700, %v1699
        %v1729 = vpack.c.b16 %v1702, %v1701
        %v1730 = vpack.c.b16 %v1704, %v1703
        %v1731 = vpack.c.b16 %v1706, %v1705
        %v1732 = vpack.c.b16 %v1708, %v1707
        %v1733 = vpack.c.b16 %v1710, %v1709
        %v1734 = vpack.c.b16 %v1712, %v1711
        %v1735 = vpack.c.b16 %v1714, %v1713
        %v1736 = vpack.c.b16 %v1716, %v1715
        %v1737 = vpack.c.b16 %v1718, %v1717
        %v1738 = vpack.c.b16 %v1720, %v1719
        %v1739 = vpack.c.b16 %v1722, %v1721
        %v1740 = vpack.c.b16 %v1724, %v1723
        %1757 = vst [vmem:[#allocation3 + $0x8] sm:$0xff] %v1725
        %1758 = vst [vmem:[#allocation3 + $0x50] sm:$0xff] %v1726
        %1759 = vst [vmem:[#allocation3 + $0x98] sm:$0xff] %v1727
        %1760 = vst [vmem:[#allocation3 + $0xe0] sm:$0xff] %v1728
        %1761 = vst [vmem:[#allocation3 + $0x128] sm:$0xff] %v1729
        %1762 = vst [vmem:[#allocation3 + $0x170] sm:$0xff] %v1730
        %1763 = vst [vmem:[#allocation3 + $0x1b8] sm:$0xff] %v1731
        %1764 = vst [vmem:[#allocation3 + $0x200] sm:$0xff] %v1732
        %1765 = vst [vmem:[#allocation3 + $0x248] sm:$0xff] %v1733
        %1766 = vst [vmem:[#allocation3 + $0x290] sm:$0xff] %v1734
        %1767 = vst [vmem:[#allocation3 + $0x2d8] sm:$0xff] %v1735
        %1768 = vst [vmem:[#allocation3 + $0x320] sm:$0xff] %v1736
        %1769 = vst [vmem:[#allocation3 + $0x368] sm:$0xff] %v1737
        %1770 = vst [vmem:[#allocation3 + $0x3b0] sm:$0xff] %v1738
        %1771 = vst [vmem:[#allocation3 + $0x3f8] sm:$0xff] %v1739
        %1772 = vst [vmem:[#allocation3 + $0x440] sm:$0xff] %v1740
        %v1773 = vld [vmem:[#allocation2] sm:$0xe]
        %v1774 = vld [vmem:[#allocation2 + $0x4] sm:$0xf]
        %v1775 = vld [vmem:[#allocation2 + $0x8] sm:$0x1]
        %v1776 = vld [vmem:[#allocation2 + $0xc] sm:$0xe]
        %v1777 = vld [vmem:[#allocation2 + $0x10] sm:$0xf]
        %v1778 = vld [vmem:[#allocation2 + $0x14] sm:$0x1]
        %v1779 = vld [vmem:[#allocation2 + $0x18] sm:$0xe]
        %v1780 = vld [vmem:[#allocation2 + $0x1c] sm:$0xf]
        %v1781 = vld [vmem:[#allocation2 + $0x20] sm:$0x1]
        %v1782 = vld [vmem:[#allocation2 + $0x24] sm:$0xe]
        %v1783 = vld [vmem:[#allocation2 + $0x28] sm:$0xf]
        %v1784 = vld [vmem:[#allocation2 + $0x2c] sm:$0x1]
        %v1785 = vld [vmem:[#allocation2 + $0x30] sm:$0xe]
        %v1786 = vld [vmem:[#allocation2 + $0x34] sm:$0xf]
        %v1787 = vld [vmem:[#allocation2 + $0x38] sm:$0x1]
        %v1788 = vld [vmem:[#allocation2 + $0x3c] sm:$0xe]
        %v1789 = vld [vmem:[#allocation2 + $0x40] sm:$0xf]
        %v1790 = vld [vmem:[#allocation2 + $0x44] sm:$0x1]
        %v1791 = vld [vmem:[#allocation2 + $0x48] sm:$0xe]
        %v1792 = vld [vmem:[#allocation2 + $0x4c] sm:$0xf]
        %v1793 = vld [vmem:[#allocation2 + $0x50] sm:$0x1]
        %v1794 = vld [vmem:[#allocation2 + $0x54] sm:$0xe]
        %v1795 = vld [vmem:[#allocation2 + $0x58] sm:$0xf]
        %v1796 = vld [vmem:[#allocation2 + $0x5c] sm:$0x1]
        %v1797 = vld [vmem:[#allocation2 + $0x60] sm:$0xe]
        %v1798 = vld [vmem:[#allocation2 + $0x64] sm:$0xf]
        %v1799 = vld [vmem:[#allocation2 + $0x68] sm:$0x1]
        %v1800 = vld [vmem:[#allocation2 + $0x6c] sm:$0xe]
        %v1801 = vld [vmem:[#allocation2 + $0x70] sm:$0xf]
        %v1802 = vld [vmem:[#allocation2 + $0x74] sm:$0x1]
        %v1803 = vld [vmem:[#allocation2 + $0x78] sm:$0xe]
        %v1804 = vld [vmem:[#allocation2 + $0x7c] sm:$0xf]
        %v1805 = vld [vmem:[#allocation2 + $0x80] sm:$0x1]
        %v1806 = vld [vmem:[#allocation2 + $0x84] sm:$0xe]
        %v1807 = vld [vmem:[#allocation2 + $0x88] sm:$0xf]
        %v1808 = vld [vmem:[#allocation2 + $0x8c] sm:$0x1]
        %v1809 = vld [vmem:[#allocation2 + $0x90] sm:$0xe]
        %v1810 = vld [vmem:[#allocation2 + $0x94] sm:$0xf]
        %v1811 = vld [vmem:[#allocation2 + $0x98] sm:$0x1]
        %v1812 = vld [vmem:[#allocation2 + $0x9c] sm:$0xe]
        %v1813 = vld [vmem:[#allocation2 + $0xa0] sm:$0xf]
        %v1814 = vld [vmem:[#allocation2 + $0xa4] sm:$0x1]
        %v1815 = vld [vmem:[#allocation2 + $0xa8] sm:$0xe]
        %v1816 = vld [vmem:[#allocation2 + $0xac] sm:$0xf]
        %v1817 = vld [vmem:[#allocation2 + $0xb0] sm:$0x1]
        %v1818 = vld [vmem:[#allocation2 + $0xb4] sm:$0xe]
        %v1819 = vld [vmem:[#allocation2 + $0xb8] sm:$0xf]
        %v1820 = vld [vmem:[#allocation2 + $0xbc] sm:$0x1]
        %vm1869 = vcmask 1042432
        %vm1870 = vcmask 1046532
        %vm1871 = vmor %vm1869, %vm1870
        %v1872 = vrot.slane %v1773, 5
        %v1873 = vrot.slane %v1872, 4
        %v1874 = vrot.slane %v1774, 5
        %v1875 = vsel %vm1871, %v1873, %v1874
        %v1876 = vrot.slane %v1874, 4
        %v1877 = vrot.slane %v1775, 5
        %v1878 = vsel %vm1871, %v1876, %v1877
        %v1879 = vrot.slane %v1776, 5
        %v1880 = vrot.slane %v1879, 4
        %v1881 = vrot.slane %v1777, 5
        %v1882 = vsel %vm1871, %v1880, %v1881
        %v1883 = vrot.slane %v1881, 4
        %v1884 = vrot.slane %v1778, 5
        %v1885 = vsel %vm1871, %v1883, %v1884
        %v1886 = vrot.slane %v1779, 5
        %v1887 = vrot.slane %v1886, 4
        %v1888 = vrot.slane %v1780, 5
        %v1889 = vsel %vm1871, %v1887, %v1888
        %v1890 = vrot.slane %v1888, 4
        %v1891 = vrot.slane %v1781, 5
        %v1892 = vsel %vm1871, %v1890, %v1891
        %v1893 = vrot.slane %v1782, 5
        %v1894 = vrot.slane %v1893, 4
        %v1895 = vrot.slane %v1783, 5
        %v1896 = vsel %vm1871, %v1894, %v1895
        %v1897 = vrot.slane %v1895, 4
        %v1898 = vrot.slane %v1784, 5
        %v1899 = vsel %vm1871, %v1897, %v1898
        %v1900 = vrot.slane %v1785, 5
        %v1901 = vrot.slane %v1900, 4
        %v1902 = vrot.slane %v1786, 5
        %v1903 = vsel %vm1871, %v1901, %v1902
        %v1904 = vrot.slane %v1902, 4
        %v1905 = vrot.slane %v1787, 5
        %v1906 = vsel %vm1871, %v1904, %v1905
        %v1907 = vrot.slane %v1788, 5
        %v1908 = vrot.slane %v1907, 4
        %v1909 = vrot.slane %v1789, 5
        %v1910 = vsel %vm1871, %v1908, %v1909
        %v1911 = vrot.slane %v1909, 4
        %v1912 = vrot.slane %v1790, 5
        %v1913 = vsel %vm1871, %v1911, %v1912
        %v1914 = vrot.slane %v1791, 5
        %v1915 = vrot.slane %v1914, 4
        %v1916 = vrot.slane %v1792, 5
        %v1917 = vsel %vm1871, %v1915, %v1916
        %v1918 = vrot.slane %v1916, 4
        %v1919 = vrot.slane %v1793, 5
        %v1920 = vsel %vm1871, %v1918, %v1919
        %v1921 = vrot.slane %v1794, 5
        %v1922 = vrot.slane %v1921, 4
        %v1923 = vrot.slane %v1795, 5
        %v1924 = vsel %vm1871, %v1922, %v1923
        %v1925 = vrot.slane %v1923, 4
        %v1926 = vrot.slane %v1796, 5
        %v1927 = vsel %vm1871, %v1925, %v1926
        %v1928 = vrot.slane %v1797, 5
        %v1929 = vrot.slane %v1928, 4
        %v1930 = vrot.slane %v1798, 5
        %v1931 = vsel %vm1871, %v1929, %v1930
        %v1932 = vrot.slane %v1930, 4
        %v1933 = vrot.slane %v1799, 5
        %v1934 = vsel %vm1871, %v1932, %v1933
        %v1935 = vrot.slane %v1800, 5
        %v1936 = vrot.slane %v1935, 4
        %v1937 = vrot.slane %v1801, 5
        %v1938 = vsel %vm1871, %v1936, %v1937
        %v1939 = vrot.slane %v1937, 4
        %v1940 = vrot.slane %v1802, 5
        %v1941 = vsel %vm1871, %v1939, %v1940
        %v1942 = vrot.slane %v1803, 5
        %v1943 = vrot.slane %v1942, 4
        %v1944 = vrot.slane %v1804, 5
        %v1945 = vsel %vm1871, %v1943, %v1944
        %v1946 = vrot.slane %v1944, 4
        %v1947 = vrot.slane %v1805, 5
        %v1948 = vsel %vm1871, %v1946, %v1947
        %v1949 = vrot.slane %v1806, 5
        %v1950 = vrot.slane %v1949, 4
        %v1951 = vrot.slane %v1807, 5
        %v1952 = vsel %vm1871, %v1950, %v1951
        %v1953 = vrot.slane %v1951, 4
        %v1954 = vrot.slane %v1808, 5
        %v1955 = vsel %vm1871, %v1953, %v1954
        %v1956 = vrot.slane %v1809, 5
        %v1957 = vrot.slane %v1956, 4
        %v1958 = vrot.slane %v1810, 5
        %v1959 = vsel %vm1871, %v1957, %v1958
        %v1960 = vrot.slane %v1958, 4
        %v1961 = vrot.slane %v1811, 5
        %v1962 = vsel %vm1871, %v1960, %v1961
        %v1963 = vrot.slane %v1812, 5
        %v1964 = vrot.slane %v1963, 4
        %v1965 = vrot.slane %v1813, 5
        %v1966 = vsel %vm1871, %v1964, %v1965
        %v1967 = vrot.slane %v1965, 4
        %v1968 = vrot.slane %v1814, 5
        %v1969 = vsel %vm1871, %v1967, %v1968
        %v1970 = vrot.slane %v1815, 5
        %v1971 = vrot.slane %v1970, 4
        %v1972 = vrot.slane %v1816, 5
        %v1973 = vsel %vm1871, %v1971, %v1972
        %v1974 = vrot.slane %v1972, 4
        %v1975 = vrot.slane %v1817, 5
        %v1976 = vsel %vm1871, %v1974, %v1975
        %v1977 = vrot.slane %v1818, 5
        %v1978 = vrot.slane %v1977, 4
        %v1979 = vrot.slane %v1819, 5
        %v1980 = vsel %vm1871, %v1978, %v1979
        %v1981 = vrot.slane %v1979, 4
        %v1982 = vrot.slane %v1820, 5
        %v1983 = vsel %vm1871, %v1981, %v1982
        %v1984 = vunpack.c.l.b16 %v1875
        %v1985 = vunpack.c.l.b16 %v1878
        %v1986 = vunpack.c.l.b16 %v1882
        %v1987 = vunpack.c.l.b16 %v1885
        %v1988 = vunpack.c.l.b16 %v1889
        %v1989 = vunpack.c.l.b16 %v1892
        %v1990 = vunpack.c.l.b16 %v1896
        %v1991 = vunpack.c.l.b16 %v1899
        %v1992 = vunpack.c.l.b16 %v1903
        %v1993 = vunpack.c.l.b16 %v1906
        %v1994 = vunpack.c.l.b16 %v1910
        %v1995 = vunpack.c.l.b16 %v1913
        %v1996 = vunpack.c.l.b16 %v1917
        %v1997 = vunpack.c.l.b16 %v1920
        %v1998 = vunpack.c.l.b16 %v1924
        %v1999 = vunpack.c.l.b16 %v1927
        %v2000 = vunpack.c.l.b16 %v1931
        %v2001 = vunpack.c.l.b16 %v1934
        %v2002 = vunpack.c.l.b16 %v1938
        %v2003 = vunpack.c.l.b16 %v1941
        %v2004 = vunpack.c.l.b16 %v1945
        %v2005 = vunpack.c.l.b16 %v1948
        %v2006 = vunpack.c.l.b16 %v1952
        %v2007 = vunpack.c.l.b16 %v1955
        %v2008 = vunpack.c.l.b16 %v1959
        %v2009 = vunpack.c.l.b16 %v1962
        %v2010 = vunpack.c.l.b16 %v1966
        %v2011 = vunpack.c.l.b16 %v1969
        %v2012 = vunpack.c.l.b16 %v1973
        %v2013 = vunpack.c.l.b16 %v1976
        %v2014 = vunpack.c.l.b16 %v1980
        %v2015 = vunpack.c.l.b16 %v1983
        %v2016 = vpack.c.b16 %v1985, %v1984
        %v2017 = vpack.c.b16 %v1987, %v1986
        %v2018 = vpack.c.b16 %v1989, %v1988
        %v2019 = vpack.c.b16 %v1991, %v1990
        %v2020 = vpack.c.b16 %v1993, %v1992
        %v2021 = vpack.c.b16 %v1995, %v1994
        %v2022 = vpack.c.b16 %v1997, %v1996
        %v2023 = vpack.c.b16 %v1999, %v1998
        %v2024 = vpack.c.b16 %v2001, %v2000
        %v2025 = vpack.c.b16 %v2003, %v2002
        %v2026 = vpack.c.b16 %v2005, %v2004
        %v2027 = vpack.c.b16 %v2007, %v2006
        %v2028 = vpack.c.b16 %v2009, %v2008
        %v2029 = vpack.c.b16 %v2011, %v2010
        %v2030 = vpack.c.b16 %v2013, %v2012
        %v2031 = vpack.c.b16 %v2015, %v2014
        %2048 = vst [vmem:[#allocation3 + $0x10] sm:$0xff] %v2016
        %2049 = vst [vmem:[#allocation3 + $0x58] sm:$0xff] %v2017
        %2050 = vst [vmem:[#allocation3 + $0xa0] sm:$0xff] %v2018
        %2051 = vst [vmem:[#allocation3 + $0xe8] sm:$0xff] %v2019
        %2052 = vst [vmem:[#allocation3 + $0x130] sm:$0xff] %v2020
        %2053 = vst [vmem:[#allocation3 + $0x178] sm:$0xff] %v2021
        %2054 = vst [vmem:[#allocation3 + $0x1c0] sm:$0xff] %v2022
        %2055 = vst [vmem:[#allocation3 + $0x208] sm:$0xff] %v2023
        %2056 = vst [vmem:[#allocation3 + $0x250] sm:$0xff] %v2024
        %2057 = vst [vmem:[#allocation3 + $0x298] sm:$0xff] %v2025
        %2058 = vst [vmem:[#allocation3 + $0x2e0] sm:$0xff] %v2026
        %2059 = vst [vmem:[#allocation3 + $0x328] sm:$0xff] %v2027
        %2060 = vst [vmem:[#allocation3 + $0x370] sm:$0xff] %v2028
        %2061 = vst [vmem:[#allocation3 + $0x3b8] sm:$0xff] %v2029
        %2062 = vst [vmem:[#allocation3 + $0x400] sm:$0xff] %v2030
        %2063 = vst [vmem:[#allocation3 + $0x448] sm:$0xff] %v2031
        %v2064 = vld [vmem:[%s996] sm:$0xf]
        %v2065 = vld [vmem:[%s996 + $0x4] sm:$0xf]
        %v2066 = vld [vmem:[%s996 + $0xc] sm:$0xf]
        %v2067 = vld [vmem:[%s996 + $0x10] sm:$0xf]
        %v2068 = vld [vmem:[%s996 + $0x18] sm:$0xf]
        %v2069 = vld [vmem:[%s996 + $0x1c] sm:$0xf]
        %v2070 = vld [vmem:[%s996 + $0x24] sm:$0xf]
        %v2071 = vld [vmem:[%s996 + $0x28] sm:$0xf]
        %v2072 = vld [vmem:[%s996 + $0x30] sm:$0xf]
        %v2073 = vld [vmem:[%s996 + $0x34] sm:$0xf]
        %v2074 = vld [vmem:[%s996 + $0x3c] sm:$0xf]
        %v2075 = vld [vmem:[%s996 + $0x40] sm:$0xf]
        %v2076 = vld [vmem:[%s996 + $0x48] sm:$0xf]
        %v2077 = vld [vmem:[%s996 + $0x4c] sm:$0xf]
        %v2078 = vld [vmem:[%s996 + $0x54] sm:$0xf]
        %v2079 = vld [vmem:[%s996 + $0x58] sm:$0xf]
        %v2080 = vld [vmem:[%s996 + $0x60] sm:$0xf]
        %v2081 = vld [vmem:[%s996 + $0x64] sm:$0xf]
        %v2082 = vld [vmem:[%s996 + $0x6c] sm:$0xf]
        %v2083 = vld [vmem:[%s996 + $0x70] sm:$0xf]
        %v2084 = vld [vmem:[%s996 + $0x78] sm:$0xf]
        %v2085 = vld [vmem:[%s996 + $0x7c] sm:$0xf]
        %v2086 = vld [vmem:[%s996 + $0x84] sm:$0xf]
        %v2087 = vld [vmem:[%s996 + $0x88] sm:$0xf]
        %v2088 = vld [vmem:[%s996 + $0x90] sm:$0xf]
        %v2089 = vld [vmem:[%s996 + $0x94] sm:$0xf]
        %v2090 = vld [vmem:[%s996 + $0x9c] sm:$0xf]
        %v2091 = vld [vmem:[%s996 + $0xa0] sm:$0xf]
        %v2092 = vld [vmem:[%s996 + $0xa8] sm:$0xf]
        %v2093 = vld [vmem:[%s996 + $0xac] sm:$0xf]
        %v2094 = vld [vmem:[%s996 + $0xb4] sm:$0xf]
        %v2095 = vld [vmem:[%s996 + $0xb8] sm:$0xf]
        %v2128 = vunpack.c.l.b16 %v2064
        %v2129 = vunpack.c.l.b16 %v2065
        %v2130 = vunpack.c.l.b16 %v2066
        %v2131 = vunpack.c.l.b16 %v2067
        %v2132 = vunpack.c.l.b16 %v2068
        %v2133 = vunpack.c.l.b16 %v2069
        %v2134 = vunpack.c.l.b16 %v2070
        %v2135 = vunpack.c.l.b16 %v2071
        %v2136 = vunpack.c.l.b16 %v2072
        %v2137 = vunpack.c.l.b16 %v2073
        %v2138 = vunpack.c.l.b16 %v2074
        %v2139 = vunpack.c.l.b16 %v2075
        %v2140 = vunpack.c.l.b16 %v2076
        %v2141 = vunpack.c.l.b16 %v2077
        %v2142 = vunpack.c.l.b16 %v2078
        %v2143 = vunpack.c.l.b16 %v2079
        %v2144 = vunpack.c.l.b16 %v2080
        %v2145 = vunpack.c.l.b16 %v2081
        %v2146 = vunpack.c.l.b16 %v2082
        %v2147 = vunpack.c.l.b16 %v2083
        %v2148 = vunpack.c.l.b16 %v2084
        %v2149 = vunpack.c.l.b16 %v2085
        %v2150 = vunpack.c.l.b16 %v2086
        %v2151 = vunpack.c.l.b16 %v2087
        %v2152 = vunpack.c.l.b16 %v2088
        %v2153 = vunpack.c.l.b16 %v2089
        %v2154 = vunpack.c.l.b16 %v2090
        %v2155 = vunpack.c.l.b16 %v2091
        %v2156 = vunpack.c.l.b16 %v2092
        %v2157 = vunpack.c.l.b16 %v2093
        %v2158 = vunpack.c.l.b16 %v2094
        %v2159 = vunpack.c.l.b16 %v2095
        %v2160 = vpack.c.b16 %v2129, %v2128
        %v2161 = vpack.c.b16 %v2131, %v2130
        %v2162 = vpack.c.b16 %v2133, %v2132
        %v2163 = vpack.c.b16 %v2135, %v2134
        %v2164 = vpack.c.b16 %v2137, %v2136
        %v2165 = vpack.c.b16 %v2139, %v2138
        %v2166 = vpack.c.b16 %v2141, %v2140
        %v2167 = vpack.c.b16 %v2143, %v2142
        %v2168 = vpack.c.b16 %v2145, %v2144
        %v2169 = vpack.c.b16 %v2147, %v2146
        %v2170 = vpack.c.b16 %v2149, %v2148
        %v2171 = vpack.c.b16 %v2151, %v2150
        %v2172 = vpack.c.b16 %v2153, %v2152
        %v2173 = vpack.c.b16 %v2155, %v2154
        %v2174 = vpack.c.b16 %v2157, %v2156
        %v2175 = vpack.c.b16 %v2159, %v2158
        %2192 = vst [vmem:[#allocation3 + $0x18] sm:$0xff] %v2160
        %2193 = vst [vmem:[#allocation3 + $0x60] sm:$0xff] %v2161
        %2194 = vst [vmem:[#allocation3 + $0xa8] sm:$0xff] %v2162
        %2195 = vst [vmem:[#allocation3 + $0xf0] sm:$0xff] %v2163
        %2196 = vst [vmem:[#allocation3 + $0x138] sm:$0xff] %v2164
        %2197 = vst [vmem:[#allocation3 + $0x180] sm:$0xff] %v2165
        %2198 = vst [vmem:[#allocation3 + $0x1c8] sm:$0xff] %v2166
        %2199 = vst [vmem:[#allocation3 + $0x210] sm:$0xff] %v2167
        %2200 = vst [vmem:[#allocation3 + $0x258] sm:$0xff] %v2168
        %2201 = vst [vmem:[#allocation3 + $0x2a0] sm:$0xff] %v2169
        %2202 = vst [vmem:[#allocation3 + $0x2e8] sm:$0xff] %v2170
        %2203 = vst [vmem:[#allocation3 + $0x330] sm:$0xff] %v2171
        %2204 = vst [vmem:[#allocation3 + $0x378] sm:$0xff] %v2172
        %2205 = vst [vmem:[#allocation3 + $0x3c0] sm:$0xff] %v2173
        %2206 = vst [vmem:[#allocation3 + $0x408] sm:$0xff] %v2174
        %2207 = vst [vmem:[#allocation3 + $0x450] sm:$0xff] %v2175
        %v2208 = vld [vmem:[%s996] sm:$0xf]
        %v2209 = vld [vmem:[%s996 + $0x4] sm:$0xf]
        %v2210 = vld [vmem:[%s996 + $0x8] sm:$0x1]
        %v2211 = vld [vmem:[%s996 + $0xc] sm:$0xf]
        %v2212 = vld [vmem:[%s996 + $0x10] sm:$0xf]
        %v2213 = vld [vmem:[%s996 + $0x14] sm:$0x1]
        %v2214 = vld [vmem:[%s996 + $0x18] sm:$0xf]
        %v2215 = vld [vmem:[%s996 + $0x1c] sm:$0xf]
        %v2216 = vld [vmem:[%s996 + $0x20] sm:$0x1]
        %v2217 = vld [vmem:[%s996 + $0x24] sm:$0xf]
        %v2218 = vld [vmem:[%s996 + $0x28] sm:$0xf]
        %v2219 = vld [vmem:[%s996 + $0x2c] sm:$0x1]
        %v2220 = vld [vmem:[%s996 + $0x30] sm:$0xf]
        %v2221 = vld [vmem:[%s996 + $0x34] sm:$0xf]
        %v2222 = vld [vmem:[%s996 + $0x38] sm:$0x1]
        %v2223 = vld [vmem:[%s996 + $0x3c] sm:$0xf]
        %v2224 = vld [vmem:[%s996 + $0x40] sm:$0xf]
        %v2225 = vld [vmem:[%s996 + $0x44] sm:$0x1]
        %v2226 = vld [vmem:[%s996 + $0x48] sm:$0xf]
        %v2227 = vld [vmem:[%s996 + $0x4c] sm:$0xf]
        %v2228 = vld [vmem:[%s996 + $0x50] sm:$0x1]
        %v2229 = vld [vmem:[%s996 + $0x54] sm:$0xf]
        %v2230 = vld [vmem:[%s996 + $0x58] sm:$0xf]
        %v2231 = vld [vmem:[%s996 + $0x5c] sm:$0x1]
        %v2232 = vld [vmem:[%s996 + $0x60] sm:$0xf]
        %v2233 = vld [vmem:[%s996 + $0x64] sm:$0xf]
        %v2234 = vld [vmem:[%s996 + $0x68] sm:$0x1]
        %v2235 = vld [vmem:[%s996 + $0x6c] sm:$0xf]
        %v2236 = vld [vmem:[%s996 + $0x70] sm:$0xf]
        %v2237 = vld [vmem:[%s996 + $0x74] sm:$0x1]
        %v2238 = vld [vmem:[%s996 + $0x78] sm:$0xf]
        %v2239 = vld [vmem:[%s996 + $0x7c] sm:$0xf]
        %v2240 = vld [vmem:[%s996 + $0x80] sm:$0x1]
        %v2241 = vld [vmem:[%s996 + $0x84] sm:$0xf]
        %v2242 = vld [vmem:[%s996 + $0x88] sm:$0xf]
        %v2243 = vld [vmem:[%s996 + $0x8c] sm:$0x1]
        %v2244 = vld [vmem:[%s996 + $0x90] sm:$0xf]
        %v2245 = vld [vmem:[%s996 + $0x94] sm:$0xf]
        %v2246 = vld [vmem:[%s996 + $0x98] sm:$0x1]
        %v2247 = vld [vmem:[%s996 + $0x9c] sm:$0xf]
        %v2248 = vld [vmem:[%s996 + $0xa0] sm:$0xf]
        %v2249 = vld [vmem:[%s996 + $0xa4] sm:$0x1]
        %v2250 = vld [vmem:[%s996 + $0xa8] sm:$0xf]
        %v2251 = vld [vmem:[%s996 + $0xac] sm:$0xf]
        %v2252 = vld [vmem:[%s996 + $0xb0] sm:$0x1]
        %v2253 = vld [vmem:[%s996 + $0xb4] sm:$0xf]
        %v2254 = vld [vmem:[%s996 + $0xb8] sm:$0xf]
        %v2255 = vld [vmem:[%s996 + $0xbc] sm:$0x1]
        %v2257 = vshrl.u32 %v2208, 16
        %v2259 = vrot.slane %v2257, 4
        %v2260 = vshll.u32 %v2208, 16
        %v2262 = vrot.slane %v2260, 5
        %v2263 = vor.u32 %v2259, %v2262
        %v2264 = vrot.slane %v2263, 4
        %v2266 = vshll.u32 %v2209, 16
        %v2268 = vrot.slane %v2266, 5
        %v2269 = vsel %vm1308, %v2264, %v2268
        %v2270 = vshrl.u32 %v2209, 16
        %v2272 = vrot.slane %v2270, 4
        %v2273 = vor.u32 %v2272, %v2268
        %v2274 = vrot.slane %v2273, 4
        %v2276 = vshll.u32 %v2210, 16
        %v2278 = vrot.slane %v2276, 5
        %v2279 = vsel %vm1308, %v2274, %v2278
        %v2281 = vshrl.u32 %v2211, 16
        %v2283 = vrot.slane %v2281, 4
        %v2284 = vshll.u32 %v2211, 16
        %v2286 = vrot.slane %v2284, 5
        %v2287 = vor.u32 %v2283, %v2286
        %v2288 = vrot.slane %v2287, 4
        %v2290 = vshll.u32 %v2212, 16
        %v2292 = vrot.slane %v2290, 5
        %v2293 = vsel %vm1308, %v2288, %v2292
        %v2294 = vshrl.u32 %v2212, 16
        %v2296 = vrot.slane %v2294, 4
        %v2297 = vor.u32 %v2296, %v2292
        %v2298 = vrot.slane %v2297, 4
        %v2300 = vshll.u32 %v2213, 16
        %v2302 = vrot.slane %v2300, 5
        %v2303 = vsel %vm1308, %v2298, %v2302
        %v2305 = vshrl.u32 %v2214, 16
        %v2307 = vrot.slane %v2305, 4
        %v2308 = vshll.u32 %v2214, 16
        %v2310 = vrot.slane %v2308, 5
        %v2311 = vor.u32 %v2307, %v2310
        %v2312 = vrot.slane %v2311, 4
        %v2314 = vshll.u32 %v2215, 16
        %v2316 = vrot.slane %v2314, 5
        %v2317 = vsel %vm1308, %v2312, %v2316
        %v2318 = vshrl.u32 %v2215, 16
        %v2320 = vrot.slane %v2318, 4
        %v2321 = vor.u32 %v2320, %v2316
        %v2322 = vrot.slane %v2321, 4
        %v2324 = vshll.u32 %v2216, 16
        %v2326 = vrot.slane %v2324, 5
        %v2327 = vsel %vm1308, %v2322, %v2326
        %v2329 = vshrl.u32 %v2217, 16
        %v2331 = vrot.slane %v2329, 4
        %v2332 = vshll.u32 %v2217, 16
        %v2334 = vrot.slane %v2332, 5
        %v2335 = vor.u32 %v2331, %v2334
        %v2336 = vrot.slane %v2335, 4
        %v2338 = vshll.u32 %v2218, 16
        %v2340 = vrot.slane %v2338, 5
        %v2341 = vsel %vm1308, %v2336, %v2340
        %v2342 = vshrl.u32 %v2218, 16
        %v2344 = vrot.slane %v2342, 4
        %v2345 = vor.u32 %v2344, %v2340
        %v2346 = vrot.slane %v2345, 4
        %v2348 = vshll.u32 %v2219, 16
        %v2350 = vrot.slane %v2348, 5
        %v2351 = vsel %vm1308, %v2346, %v2350
        %v2353 = vshrl.u32 %v2220, 16
        %v2355 = vrot.slane %v2353, 4
        %v2356 = vshll.u32 %v2220, 16
        %v2358 = vrot.slane %v2356, 5
        %v2359 = vor.u32 %v2355, %v2358
        %v2360 = vrot.slane %v2359, 4
        %v2362 = vshll.u32 %v2221, 16
        %v2364 = vrot.slane %v2362, 5
        %v2365 = vsel %vm1308, %v2360, %v2364
        %v2366 = vshrl.u32 %v2221, 16
        %v2368 = vrot.slane %v2366, 4
        %v2369 = vor.u32 %v2368, %v2364
        %v2370 = vrot.slane %v2369, 4
        %v2372 = vshll.u32 %v2222, 16
        %v2374 = vrot.slane %v2372, 5
        %v2375 = vsel %vm1308, %v2370, %v2374
        %v2377 = vshrl.u32 %v2223, 16
        %v2379 = vrot.slane %v2377, 4
        %v2380 = vshll.u32 %v2223, 16
        %v2382 = vrot.slane %v2380, 5
        %v2383 = vor.u32 %v2379, %v2382
        %v2384 = vrot.slane %v2383, 4
        %v2386 = vshll.u32 %v2224, 16
        %v2388 = vrot.slane %v2386, 5
        %v2389 = vsel %vm1308, %v2384, %v2388
        %v2390 = vshrl.u32 %v2224, 16
        %v2392 = vrot.slane %v2390, 4
        %v2393 = vor.u32 %v2392, %v2388
        %v2394 = vrot.slane %v2393, 4
        %v2396 = vshll.u32 %v2225, 16
        %v2398 = vrot.slane %v2396, 5
        %v2399 = vsel %vm1308, %v2394, %v2398
        %v2401 = vshrl.u32 %v2226, 16
        %v2403 = vrot.slane %v2401, 4
        %v2404 = vshll.u32 %v2226, 16
        %v2406 = vrot.slane %v2404, 5
        %v2407 = vor.u32 %v2403, %v2406
        %v2408 = vrot.slane %v2407, 4
        %v2410 = vshll.u32 %v2227, 16
        %v2412 = vrot.slane %v2410, 5
        %v2413 = vsel %vm1308, %v2408, %v2412
        %v2414 = vshrl.u32 %v2227, 16
        %v2416 = vrot.slane %v2414, 4
        %v2417 = vor.u32 %v2416, %v2412
        %v2418 = vrot.slane %v2417, 4
        %v2420 = vshll.u32 %v2228, 16
        %v2422 = vrot.slane %v2420, 5
        %v2423 = vsel %vm1308, %v2418, %v2422
        %v2425 = vshrl.u32 %v2229, 16
        %v2427 = vrot.slane %v2425, 4
        %v2428 = vshll.u32 %v2229, 16
        %v2430 = vrot.slane %v2428, 5
        %v2431 = vor.u32 %v2427, %v2430
        %v2432 = vrot.slane %v2431, 4
        %v2434 = vshll.u32 %v2230, 16
        %v2436 = vrot.slane %v2434, 5
        %v2437 = vsel %vm1308, %v2432, %v2436
        %v2438 = vshrl.u32 %v2230, 16
        %v2440 = vrot.slane %v2438, 4
        %v2441 = vor.u32 %v2440, %v2436
        %v2442 = vrot.slane %v2441, 4
        %v2444 = vshll.u32 %v2231, 16
        %v2446 = vrot.slane %v2444, 5
        %v2447 = vsel %vm1308, %v2442, %v2446
        %v2449 = vshrl.u32 %v2232, 16
        %v2451 = vrot.slane %v2449, 4
        %v2452 = vshll.u32 %v2232, 16
        %v2454 = vrot.slane %v2452, 5
        %v2455 = vor.u32 %v2451, %v2454
        %v2456 = vrot.slane %v2455, 4
        %v2458 = vshll.u32 %v2233, 16
        %v2460 = vrot.slane %v2458, 5
        %v2461 = vsel %vm1308, %v2456, %v2460
        %v2462 = vshrl.u32 %v2233, 16
        %v2464 = vrot.slane %v2462, 4
        %v2465 = vor.u32 %v2464, %v2460
        %v2466 = vrot.slane %v2465, 4
        %v2468 = vshll.u32 %v2234, 16
        %v2470 = vrot.slane %v2468, 5
        %v2471 = vsel %vm1308, %v2466, %v2470
        %v2473 = vshrl.u32 %v2235, 16
        %v2475 = vrot.slane %v2473, 4
        %v2476 = vshll.u32 %v2235, 16
        %v2478 = vrot.slane %v2476, 5
        %v2479 = vor.u32 %v2475, %v2478
        %v2480 = vrot.slane %v2479, 4
        %v2482 = vshll.u32 %v2236, 16
        %v2484 = vrot.slane %v2482, 5
        %v2485 = vsel %vm1308, %v2480, %v2484
        %v2486 = vshrl.u32 %v2236, 16
        %v2488 = vrot.slane %v2486, 4
        %v2489 = vor.u32 %v2488, %v2484
        %v2490 = vrot.slane %v2489, 4
        %v2492 = vshll.u32 %v2237, 16
        %v2494 = vrot.slane %v2492, 5
        %v2495 = vsel %vm1308, %v2490, %v2494
        %v2497 = vshrl.u32 %v2238, 16
        %v2499 = vrot.slane %v2497, 4
        %v2500 = vshll.u32 %v2238, 16
        %v2502 = vrot.slane %v2500, 5
        %v2503 = vor.u32 %v2499, %v2502
        %v2504 = vrot.slane %v2503, 4
        %v2506 = vshll.u32 %v2239, 16
        %v2508 = vrot.slane %v2506, 5
        %v2509 = vsel %vm1308, %v2504, %v2508
        %v2510 = vshrl.u32 %v2239, 16
        %v2512 = vrot.slane %v2510, 4
        %v2513 = vor.u32 %v2512, %v2508
        %v2514 = vrot.slane %v2513, 4
        %v2516 = vshll.u32 %v2240, 16
        %v2518 = vrot.slane %v2516, 5
        %v2519 = vsel %vm1308, %v2514, %v2518
        %v2521 = vshrl.u32 %v2241, 16
        %v2523 = vrot.slane %v2521, 4
        %v2524 = vshll.u32 %v2241, 16
        %v2526 = vrot.slane %v2524, 5
        %v2527 = vor.u32 %v2523, %v2526
        %v2528 = vrot.slane %v2527, 4
        %v2530 = vshll.u32 %v2242, 16
        %v2532 = vrot.slane %v2530, 5
        %v2533 = vsel %vm1308, %v2528, %v2532
        %v2534 = vshrl.u32 %v2242, 16
        %v2536 = vrot.slane %v2534, 4
        %v2537 = vor.u32 %v2536, %v2532
        %v2538 = vrot.slane %v2537, 4
        %v2540 = vshll.u32 %v2243, 16
        %v2542 = vrot.slane %v2540, 5
        %v2543 = vsel %vm1308, %v2538, %v2542
        %v2545 = vshrl.u32 %v2244, 16
        %v2547 = vrot.slane %v2545, 4
        %v2548 = vshll.u32 %v2244, 16
        %v2550 = vrot.slane %v2548, 5
        %v2551 = vor.u32 %v2547, %v2550
        %v2552 = vrot.slane %v2551, 4
        %v2554 = vshll.u32 %v2245, 16
        %v2556 = vrot.slane %v2554, 5
        %v2557 = vsel %vm1308, %v2552, %v2556
        %v2558 = vshrl.u32 %v2245, 16
        %v2560 = vrot.slane %v2558, 4
        %v2561 = vor.u32 %v2560, %v2556
        %v2562 = vrot.slane %v2561, 4
        %v2564 = vshll.u32 %v2246, 16
        %v2566 = vrot.slane %v2564, 5
        %v2567 = vsel %vm1308, %v2562, %v2566
        %v2569 = vshrl.u32 %v2247, 16
        %v2571 = vrot.slane %v2569, 4
        %v2572 = vshll.u32 %v2247, 16
        %v2574 = vrot.slane %v2572, 5
        %v2575 = vor.u32 %v2571, %v2574
        %v2576 = vrot.slane %v2575, 4
        %v2578 = vshll.u32 %v2248, 16
        %v2580 = vrot.slane %v2578, 5
        %v2581 = vsel %vm1308, %v2576, %v2580
        %v2582 = vshrl.u32 %v2248, 16
        %v2584 = vrot.slane %v2582, 4
        %v2585 = vor.u32 %v2584, %v2580
        %v2586 = vrot.slane %v2585, 4
        %v2588 = vshll.u32 %v2249, 16
        %v2590 = vrot.slane %v2588, 5
        %v2591 = vsel %vm1308, %v2586, %v2590
        %v2593 = vshrl.u32 %v2250, 16
        %v2595 = vrot.slane %v2593, 4
        %v2596 = vshll.u32 %v2250, 16
        %v2598 = vrot.slane %v2596, 5
        %v2599 = vor.u32 %v2595, %v2598
        %v2600 = vrot.slane %v2599, 4
        %v2602 = vshll.u32 %v2251, 16
        %v2604 = vrot.slane %v2602, 5
        %v2605 = vsel %vm1308, %v2600, %v2604
        %v2606 = vshrl.u32 %v2251, 16
        %v2608 = vrot.slane %v2606, 4
        %v2609 = vor.u32 %v2608, %v2604
        %v2610 = vrot.slane %v2609, 4
        %v2612 = vshll.u32 %v2252, 16
        %v2614 = vrot.slane %v2612, 5
        %v2615 = vsel %vm1308, %v2610, %v2614
        %v2617 = vshrl.u32 %v2253, 16
        %v2619 = vrot.slane %v2617, 4
        %v2620 = vshll.u32 %v2253, 16
        %v2622 = vrot.slane %v2620, 5
        %v2623 = vor.u32 %v2619, %v2622
        %v2624 = vrot.slane %v2623, 4
        %v2626 = vshll.u32 %v2254, 16
        %v2628 = vrot.slane %v2626, 5
        %v2629 = vsel %vm1308, %v2624, %v2628
        %v2630 = vshrl.u32 %v2254, 16
        %v2632 = vrot.slane %v2630, 4
        %v2633 = vor.u32 %v2632, %v2628
        %v2634 = vrot.slane %v2633, 4
        %v2636 = vshll.u32 %v2255, 16
        %v2638 = vrot.slane %v2636, 5
        %v2639 = vsel %vm1308, %v2634, %v2638
        %v2640 = vunpack.c.l.b16 %v2269
        %v2641 = vunpack.c.l.b16 %v2279
        %v2642 = vunpack.c.l.b16 %v2293
        %v2643 = vunpack.c.l.b16 %v2303
        %v2644 = vunpack.c.l.b16 %v2317
        %v2645 = vunpack.c.l.b16 %v2327
        %v2646 = vunpack.c.l.b16 %v2341
        %v2647 = vunpack.c.l.b16 %v2351
        %v2648 = vunpack.c.l.b16 %v2365
        %v2649 = vunpack.c.l.b16 %v2375
        %v2650 = vunpack.c.l.b16 %v2389
        %v2651 = vunpack.c.l.b16 %v2399
        %v2652 = vunpack.c.l.b16 %v2413
        %v2653 = vunpack.c.l.b16 %v2423
        %v2654 = vunpack.c.l.b16 %v2437
        %v2655 = vunpack.c.l.b16 %v2447
        %v2656 = vunpack.c.l.b16 %v2461
        %v2657 = vunpack.c.l.b16 %v2471
        %v2658 = vunpack.c.l.b16 %v2485
        %v2659 = vunpack.c.l.b16 %v2495
        %v2660 = vunpack.c.l.b16 %v2509
        %v2661 = vunpack.c.l.b16 %v2519
        %v2662 = vunpack.c.l.b16 %v2533
        %v2663 = vunpack.c.l.b16 %v2543
        %v2664 = vunpack.c.l.b16 %v2557
        %v2665 = vunpack.c.l.b16 %v2567
        %v2666 = vunpack.c.l.b16 %v2581
        %v2667 = vunpack.c.l.b16 %v2591
        %v2668 = vunpack.c.l.b16 %v2605
        %v2669 = vunpack.c.l.b16 %v2615
        %v2670 = vunpack.c.l.b16 %v2629
        %v2671 = vunpack.c.l.b16 %v2639
        %v2672 = vpack.c.b16 %v2641, %v2640
        %v2673 = vpack.c.b16 %v2643, %v2642
        %v2674 = vpack.c.b16 %v2645, %v2644
        %v2675 = vpack.c.b16 %v2647, %v2646
        %v2676 = vpack.c.b16 %v2649, %v2648
        %v2677 = vpack.c.b16 %v2651, %v2650
        %v2678 = vpack.c.b16 %v2653, %v2652
        %v2679 = vpack.c.b16 %v2655, %v2654
        %v2680 = vpack.c.b16 %v2657, %v2656
        %v2681 = vpack.c.b16 %v2659, %v2658
        %v2682 = vpack.c.b16 %v2661, %v2660
        %v2683 = vpack.c.b16 %v2663, %v2662
        %v2684 = vpack.c.b16 %v2665, %v2664
        %v2685 = vpack.c.b16 %v2667, %v2666
        %v2686 = vpack.c.b16 %v2669, %v2668
        %v2687 = vpack.c.b16 %v2671, %v2670
        %2704 = vst [vmem:[#allocation3 + $0x20] sm:$0xff] %v2672
        %2705 = vst [vmem:[#allocation3 + $0x68] sm:$0xff] %v2673
        %2706 = vst [vmem:[#allocation3 + $0xb0] sm:$0xff] %v2674
        %2707 = vst [vmem:[#allocation3 + $0xf8] sm:$0xff] %v2675
        %2708 = vst [vmem:[#allocation3 + $0x140] sm:$0xff] %v2676
        %2709 = vst [vmem:[#allocation3 + $0x188] sm:$0xff] %v2677
        %2710 = vst [vmem:[#allocation3 + $0x1d0] sm:$0xff] %v2678
        %2711 = vst [vmem:[#allocation3 + $0x218] sm:$0xff] %v2679
        %2712 = vst [vmem:[#allocation3 + $0x260] sm:$0xff] %v2680
        %2713 = vst [vmem:[#allocation3 + $0x2a8] sm:$0xff] %v2681
        %2714 = vst [vmem:[#allocation3 + $0x2f0] sm:$0xff] %v2682
        %2715 = vst [vmem:[#allocation3 + $0x338] sm:$0xff] %v2683
        %2716 = vst [vmem:[#allocation3 + $0x380] sm:$0xff] %v2684
        %2717 = vst [vmem:[#allocation3 + $0x3c8] sm:$0xff] %v2685
        %2718 = vst [vmem:[#allocation3 + $0x410] sm:$0xff] %v2686
        %2719 = vst [vmem:[#allocation3 + $0x458] sm:$0xff] %v2687
        %v2720 = vld [vmem:[%s996] sm:$0xe]
        %v2721 = vld [vmem:[%s996 + $0x4] sm:$0xf]
        %v2722 = vld [vmem:[%s996 + $0x8] sm:$0x1]
        %v2723 = vld [vmem:[%s996 + $0xc] sm:$0xe]
        %v2724 = vld [vmem:[%s996 + $0x10] sm:$0xf]
        %v2725 = vld [vmem:[%s996 + $0x14] sm:$0x1]
        %v2726 = vld [vmem:[%s996 + $0x18] sm:$0xe]
        %v2727 = vld [vmem:[%s996 + $0x1c] sm:$0xf]
        %v2728 = vld [vmem:[%s996 + $0x20] sm:$0x1]
        %v2729 = vld [vmem:[%s996 + $0x24] sm:$0xe]
        %v2730 = vld [vmem:[%s996 + $0x28] sm:$0xf]
        %v2731 = vld [vmem:[%s996 + $0x2c] sm:$0x1]
        %v2732 = vld [vmem:[%s996 + $0x30] sm:$0xe]
        %v2733 = vld [vmem:[%s996 + $0x34] sm:$0xf]
        %v2734 = vld [vmem:[%s996 + $0x38] sm:$0x1]
        %v2735 = vld [vmem:[%s996 + $0x3c] sm:$0xe]
        %v2736 = vld [vmem:[%s996 + $0x40] sm:$0xf]
        %v2737 = vld [vmem:[%s996 + $0x44] sm:$0x1]
        %v2738 = vld [vmem:[%s996 + $0x48] sm:$0xe]
        %v2739 = vld [vmem:[%s996 + $0x4c] sm:$0xf]
        %v2740 = vld [vmem:[%s996 + $0x50] sm:$0x1]
        %v2741 = vld [vmem:[%s996 + $0x54] sm:$0xe]
        %v2742 = vld [vmem:[%s996 + $0x58] sm:$0xf]
        %v2743 = vld [vmem:[%s996 + $0x5c] sm:$0x1]
        %v2744 = vld [vmem:[%s996 + $0x60] sm:$0xe]
        %v2745 = vld [vmem:[%s996 + $0x64] sm:$0xf]
        %v2746 = vld [vmem:[%s996 + $0x68] sm:$0x1]
        %v2747 = vld [vmem:[%s996 + $0x6c] sm:$0xe]
        %v2748 = vld [vmem:[%s996 + $0x70] sm:$0xf]
        %v2749 = vld [vmem:[%s996 + $0x74] sm:$0x1]
        %v2750 = vld [vmem:[%s996 + $0x78] sm:$0xe]
        %v2751 = vld [vmem:[%s996 + $0x7c] sm:$0xf]
        %v2752 = vld [vmem:[%s996 + $0x80] sm:$0x1]
        %v2753 = vld [vmem:[%s996 + $0x84] sm:$0xe]
        %v2754 = vld [vmem:[%s996 + $0x88] sm:$0xf]
        %v2755 = vld [vmem:[%s996 + $0x8c] sm:$0x1]
        %v2756 = vld [vmem:[%s996 + $0x90] sm:$0xe]
        %v2757 = vld [vmem:[%s996 + $0x94] sm:$0xf]
        %v2758 = vld [vmem:[%s996 + $0x98] sm:$0x1]
        %v2759 = vld [vmem:[%s996 + $0x9c] sm:$0xe]
        %v2760 = vld [vmem:[%s996 + $0xa0] sm:$0xf]
        %v2761 = vld [vmem:[%s996 + $0xa4] sm:$0x1]
        %v2762 = vld [vmem:[%s996 + $0xa8] sm:$0xe]
        %v2763 = vld [vmem:[%s996 + $0xac] sm:$0xf]
        %v2764 = vld [vmem:[%s996 + $0xb0] sm:$0x1]
        %v2765 = vld [vmem:[%s996 + $0xb4] sm:$0xe]
        %v2766 = vld [vmem:[%s996 + $0xb8] sm:$0xf]
        %v2767 = vld [vmem:[%s996 + $0xbc] sm:$0x1]
        %v2816 = vrot.slane %v2720, 5
        %v2817 = vrot.slane %v2816, 4
        %v2818 = vrot.slane %v2721, 5
        %v2819 = vsel %vm1871, %v2817, %v2818
        %v2820 = vrot.slane %v2818, 4
        %v2821 = vrot.slane %v2722, 5
        %v2822 = vsel %vm1871, %v2820, %v2821
        %v2823 = vrot.slane %v2723, 5
        %v2824 = vrot.slane %v2823, 4
        %v2825 = vrot.slane %v2724, 5
        %v2826 = vsel %vm1871, %v2824, %v2825
        %v2827 = vrot.slane %v2825, 4
        %v2828 = vrot.slane %v2725, 5
        %v2829 = vsel %vm1871, %v2827, %v2828
        %v2830 = vrot.slane %v2726, 5
        %v2831 = vrot.slane %v2830, 4
        %v2832 = vrot.slane %v2727, 5
        %v2833 = vsel %vm1871, %v2831, %v2832
        %v2834 = vrot.slane %v2832, 4
        %v2835 = vrot.slane %v2728, 5
        %v2836 = vsel %vm1871, %v2834, %v2835
        %v2837 = vrot.slane %v2729, 5
        %v2838 = vrot.slane %v2837, 4
        %v2839 = vrot.slane %v2730, 5
        %v2840 = vsel %vm1871, %v2838, %v2839
        %v2841 = vrot.slane %v2839, 4
        %v2842 = vrot.slane %v2731, 5
        %v2843 = vsel %vm1871, %v2841, %v2842
        %v2844 = vrot.slane %v2732, 5
        %v2845 = vrot.slane %v2844, 4
        %v2846 = vrot.slane %v2733, 5
        %v2847 = vsel %vm1871, %v2845, %v2846
        %v2848 = vrot.slane %v2846, 4
        %v2849 = vrot.slane %v2734, 5
        %v2850 = vsel %vm1871, %v2848, %v2849
        %v2851 = vrot.slane %v2735, 5
        %v2852 = vrot.slane %v2851, 4
        %v2853 = vrot.slane %v2736, 5
        %v2854 = vsel %vm1871, %v2852, %v2853
        %v2855 = vrot.slane %v2853, 4
        %v2856 = vrot.slane %v2737, 5
        %v2857 = vsel %vm1871, %v2855, %v2856
        %v2858 = vrot.slane %v2738, 5
        %v2859 = vrot.slane %v2858, 4
        %v2860 = vrot.slane %v2739, 5
        %v2861 = vsel %vm1871, %v2859, %v2860
        %v2862 = vrot.slane %v2860, 4
        %v2863 = vrot.slane %v2740, 5
        %v2864 = vsel %vm1871, %v2862, %v2863
        %v2865 = vrot.slane %v2741, 5
        %v2866 = vrot.slane %v2865, 4
        %v2867 = vrot.slane %v2742, 5
        %v2868 = vsel %vm1871, %v2866, %v2867
        %v2869 = vrot.slane %v2867, 4
        %v2870 = vrot.slane %v2743, 5
        %v2871 = vsel %vm1871, %v2869, %v2870
        %v2872 = vrot.slane %v2744, 5
        %v2873 = vrot.slane %v2872, 4
        %v2874 = vrot.slane %v2745, 5
        %v2875 = vsel %vm1871, %v2873, %v2874
        %v2876 = vrot.slane %v2874, 4
        %v2877 = vrot.slane %v2746, 5
        %v2878 = vsel %vm1871, %v2876, %v2877
        %v2879 = vrot.slane %v2747, 5
        %v2880 = vrot.slane %v2879, 4
        %v2881 = vrot.slane %v2748, 5
        %v2882 = vsel %vm1871, %v2880, %v2881
        %v2883 = vrot.slane %v2881, 4
        %v2884 = vrot.slane %v2749, 5
        %v2885 = vsel %vm1871, %v2883, %v2884
        %v2886 = vrot.slane %v2750, 5
        %v2887 = vrot.slane %v2886, 4
        %v2888 = vrot.slane %v2751, 5
        %v2889 = vsel %vm1871, %v2887, %v2888
        %v2890 = vrot.slane %v2888, 4
        %v2891 = vrot.slane %v2752, 5
        %v2892 = vsel %vm1871, %v2890, %v2891
        %v2893 = vrot.slane %v2753, 5
        %v2894 = vrot.slane %v2893, 4
        %v2895 = vrot.slane %v2754, 5
        %v2896 = vsel %vm1871, %v2894, %v2895
        %v2897 = vrot.slane %v2895, 4
        %v2898 = vrot.slane %v2755, 5
        %v2899 = vsel %vm1871, %v2897, %v2898
        %v2900 = vrot.slane %v2756, 5
        %v2901 = vrot.slane %v2900, 4
        %v2902 = vrot.slane %v2757, 5
        %v2903 = vsel %vm1871, %v2901, %v2902
        %v2904 = vrot.slane %v2902, 4
        %v2905 = vrot.slane %v2758, 5
        %v2906 = vsel %vm1871, %v2904, %v2905
        %v2907 = vrot.slane %v2759, 5
        %v2908 = vrot.slane %v2907, 4
        %v2909 = vrot.slane %v2760, 5
        %v2910 = vsel %vm1871, %v2908, %v2909
        %v2911 = vrot.slane %v2909, 4
        %v2912 = vrot.slane %v2761, 5
        %v2913 = vsel %vm1871, %v2911, %v2912
        %v2914 = vrot.slane %v2762, 5
        %v2915 = vrot.slane %v2914, 4
        %v2916 = vrot.slane %v2763, 5
        %v2917 = vsel %vm1871, %v2915, %v2916
        %v2918 = vrot.slane %v2916, 4
        %v2919 = vrot.slane %v2764, 5
        %v2920 = vsel %vm1871, %v2918, %v2919
        %v2921 = vrot.slane %v2765, 5
        %v2922 = vrot.slane %v2921, 4
        %v2923 = vrot.slane %v2766, 5
        %v2924 = vsel %vm1871, %v2922, %v2923
        %v2925 = vrot.slane %v2923, 4
        %v2926 = vrot.slane %v2767, 5
        %v2927 = vsel %vm1871, %v2925, %v2926
        %v2928 = vunpack.c.l.b16 %v2819
        %v2929 = vunpack.c.l.b16 %v2822
        %v2930 = vunpack.c.l.b16 %v2826
        %v2931 = vunpack.c.l.b16 %v2829
        %v2932 = vunpack.c.l.b16 %v2833
        %v2933 = vunpack.c.l.b16 %v2836
        %v2934 = vunpack.c.l.b16 %v2840
        %v2935 = vunpack.c.l.b16 %v2843
        %v2936 = vunpack.c.l.b16 %v2847
        %v2937 = vunpack.c.l.b16 %v2850
        %v2938 = vunpack.c.l.b16 %v2854
        %v2939 = vunpack.c.l.b16 %v2857
        %v2940 = vunpack.c.l.b16 %v2861
        %v2941 = vunpack.c.l.b16 %v2864
        %v2942 = vunpack.c.l.b16 %v2868
        %v2943 = vunpack.c.l.b16 %v2871
        %v2944 = vunpack.c.l.b16 %v2875
        %v2945 = vunpack.c.l.b16 %v2878
        %v2946 = vunpack.c.l.b16 %v2882
        %v2947 = vunpack.c.l.b16 %v2885
        %v2948 = vunpack.c.l.b16 %v2889
        %v2949 = vunpack.c.l.b16 %v2892
        %v2950 = vunpack.c.l.b16 %v2896
        %v2951 = vunpack.c.l.b16 %v2899
        %v2952 = vunpack.c.l.b16 %v2903
        %v2953 = vunpack.c.l.b16 %v2906
        %v2954 = vunpack.c.l.b16 %v2910
        %v2955 = vunpack.c.l.b16 %v2913
        %v2956 = vunpack.c.l.b16 %v2917
        %v2957 = vunpack.c.l.b16 %v2920
        %v2958 = vunpack.c.l.b16 %v2924
        %v2959 = vunpack.c.l.b16 %v2927
        %v2960 = vpack.c.b16 %v2929, %v2928
        %v2961 = vpack.c.b16 %v2931, %v2930
        %v2962 = vpack.c.b16 %v2933, %v2932
        %v2963 = vpack.c.b16 %v2935, %v2934
        %v2964 = vpack.c.b16 %v2937, %v2936
        %v2965 = vpack.c.b16 %v2939, %v2938
        %v2966 = vpack.c.b16 %v2941, %v2940
        %v2967 = vpack.c.b16 %v2943, %v2942
        %v2968 = vpack.c.b16 %v2945, %v2944
        %v2969 = vpack.c.b16 %v2947, %v2946
        %v2970 = vpack.c.b16 %v2949, %v2948
        %v2971 = vpack.c.b16 %v2951, %v2950
        %v2972 = vpack.c.b16 %v2953, %v2952
        %v2973 = vpack.c.b16 %v2955, %v2954
        %v2974 = vpack.c.b16 %v2957, %v2956
        %v2975 = vpack.c.b16 %v2959, %v2958
        %2992 = vst [vmem:[#allocation3 + $0x28] sm:$0xff] %v2960
        %2993 = vst [vmem:[#allocation3 + $0x70] sm:$0xff] %v2961
        %2994 = vst [vmem:[#allocation3 + $0xb8] sm:$0xff] %v2962
        %2995 = vst [vmem:[#allocation3 + $0x100] sm:$0xff] %v2963
        %2996 = vst [vmem:[#allocation3 + $0x148] sm:$0xff] %v2964
        %2997 = vst [vmem:[#allocation3 + $0x190] sm:$0xff] %v2965
        %2998 = vst [vmem:[#allocation3 + $0x1d8] sm:$0xff] %v2966
        %2999 = vst [vmem:[#allocation3 + $0x220] sm:$0xff] %v2967
        %3000 = vst [vmem:[#allocation3 + $0x268] sm:$0xff] %v2968
        %3001 = vst [vmem:[#allocation3 + $0x2b0] sm:$0xff] %v2969
        %3002 = vst [vmem:[#allocation3 + $0x2f8] sm:$0xff] %v2970
        %3003 = vst [vmem:[#allocation3 + $0x340] sm:$0xff] %v2971
        %3004 = vst [vmem:[#allocation3 + $0x388] sm:$0xff] %v2972
        %3005 = vst [vmem:[#allocation3 + $0x3d0] sm:$0xff] %v2973
        %3006 = vst [vmem:[#allocation3 + $0x418] sm:$0xff] %v2974
        %3007 = vst [vmem:[#allocation3 + $0x460] sm:$0xff] %v2975
        %s3008 = scalar_lea.vmem [#allocation2], 24
        %v3009 = vld [vmem:[%s3008] sm:$0xf]
        %v3010 = vld [vmem:[%s3008 + $0x4] sm:$0xf]
        %v3011 = vld [vmem:[%s3008 + $0xc] sm:$0xf]
        %v3012 = vld [vmem:[%s3008 + $0x10] sm:$0xf]
        %v3013 = vld [vmem:[%s3008 + $0x18] sm:$0xf]
        %v3014 = vld [vmem:[%s3008 + $0x1c] sm:$0xf]
        %v3015 = vld [vmem:[%s3008 + $0x24] sm:$0xf]
        %v3016 = vld [vmem:[%s3008 + $0x28] sm:$0xf]
        %v3017 = vld [vmem:[%s3008 + $0x30] sm:$0xf]
        %v3018 = vld [vmem:[%s3008 + $0x34] sm:$0xf]
        %v3019 = vld [vmem:[%s3008 + $0x3c] sm:$0xf]
        %v3020 = vld [vmem:[%s3008 + $0x40] sm:$0xf]
        %v3021 = vld [vmem:[%s3008 + $0x48] sm:$0xf]
        %v3022 = vld [vmem:[%s3008 + $0x4c] sm:$0xf]
        %v3023 = vld [vmem:[%s3008 + $0x54] sm:$0xf]
        %v3024 = vld [vmem:[%s3008 + $0x58] sm:$0xf]
        %v3025 = vld [vmem:[%s3008 + $0x60] sm:$0xf]
        %v3026 = vld [vmem:[%s3008 + $0x64] sm:$0xf]
        %v3027 = vld [vmem:[%s3008 + $0x6c] sm:$0xf]
        %v3028 = vld [vmem:[%s3008 + $0x70] sm:$0xf]
        %v3029 = vld [vmem:[%s3008 + $0x78] sm:$0xf]
        %v3030 = vld [vmem:[%s3008 + $0x7c] sm:$0xf]
        %v3031 = vld [vmem:[%s3008 + $0x84] sm:$0xf]
        %v3032 = vld [vmem:[%s3008 + $0x88] sm:$0xf]
        %v3033 = vld [vmem:[%s3008 + $0x90] sm:$0xf]
        %v3034 = vld [vmem:[%s3008 + $0x94] sm:$0xf]
        %v3035 = vld [vmem:[%s3008 + $0x9c] sm:$0xf]
        %v3036 = vld [vmem:[%s3008 + $0xa0] sm:$0xf]
        %v3037 = vld [vmem:[%s3008 + $0xa8] sm:$0xf]
        %v3038 = vld [vmem:[%s3008 + $0xac] sm:$0xf]
        %v3039 = vld [vmem:[%s3008 + $0xb4] sm:$0xf]
        %v3040 = vld [vmem:[%s3008 + $0xb8] sm:$0xf]
        %v3073 = vunpack.c.l.b16 %v3009
        %v3074 = vunpack.c.l.b16 %v3010
        %v3075 = vunpack.c.l.b16 %v3011
        %v3076 = vunpack.c.l.b16 %v3012
        %v3077 = vunpack.c.l.b16 %v3013
        %v3078 = vunpack.c.l.b16 %v3014
        %v3079 = vunpack.c.l.b16 %v3015
        %v3080 = vunpack.c.l.b16 %v3016
        %v3081 = vunpack.c.l.b16 %v3017
        %v3082 = vunpack.c.l.b16 %v3018
        %v3083 = vunpack.c.l.b16 %v3019
        %v3084 = vunpack.c.l.b16 %v3020
        %v3085 = vunpack.c.l.b16 %v3021
        %v3086 = vunpack.c.l.b16 %v3022
        %v3087 = vunpack.c.l.b16 %v3023
        %v3088 = vunpack.c.l.b16 %v3024
        %v3089 = vunpack.c.l.b16 %v3025
        %v3090 = vunpack.c.l.b16 %v3026
        %v3091 = vunpack.c.l.b16 %v3027
        %v3092 = vunpack.c.l.b16 %v3028
        %v3093 = vunpack.c.l.b16 %v3029
        %v3094 = vunpack.c.l.b16 %v3030
        %v3095 = vunpack.c.l.b16 %v3031
        %v3096 = vunpack.c.l.b16 %v3032
        %v3097 = vunpack.c.l.b16 %v3033
        %v3098 = vunpack.c.l.b16 %v3034
        %v3099 = vunpack.c.l.b16 %v3035
        %v3100 = vunpack.c.l.b16 %v3036
        %v3101 = vunpack.c.l.b16 %v3037
        %v3102 = vunpack.c.l.b16 %v3038
        %v3103 = vunpack.c.l.b16 %v3039
        %v3104 = vunpack.c.l.b16 %v3040
        %v3105 = vpack.c.b16 %v3074, %v3073
        %v3106 = vpack.c.b16 %v3076, %v3075
        %v3107 = vpack.c.b16 %v3078, %v3077
        %v3108 = vpack.c.b16 %v3080, %v3079
        %v3109 = vpack.c.b16 %v3082, %v3081
        %v3110 = vpack.c.b16 %v3084, %v3083
        %v3111 = vpack.c.b16 %v3086, %v3085
        %v3112 = vpack.c.b16 %v3088, %v3087
        %v3113 = vpack.c.b16 %v3090, %v3089
        %v3114 = vpack.c.b16 %v3092, %v3091
        %v3115 = vpack.c.b16 %v3094, %v3093
        %v3116 = vpack.c.b16 %v3096, %v3095
        %v3117 = vpack.c.b16 %v3098, %v3097
        %v3118 = vpack.c.b16 %v3100, %v3099
        %v3119 = vpack.c.b16 %v3102, %v3101
        %v3120 = vpack.c.b16 %v3104, %v3103
        %3137 = vst [vmem:[#allocation3 + $0x30] sm:$0xff] %v3105
        %3138 = vst [vmem:[#allocation3 + $0x78] sm:$0xff] %v3106
        %3139 = vst [vmem:[#allocation3 + $0xc0] sm:$0xff] %v3107
        %3140 = vst [vmem:[#allocation3 + $0x108] sm:$0xff] %v3108
        %3141 = vst [vmem:[#allocation3 + $0x150] sm:$0xff] %v3109
        %3142 = vst [vmem:[#allocation3 + $0x198] sm:$0xff] %v3110
        %3143 = vst [vmem:[#allocation3 + $0x1e0] sm:$0xff] %v3111
        %3144 = vst [vmem:[#allocation3 + $0x228] sm:$0xff] %v3112
        %3145 = vst [vmem:[#allocation3 + $0x270] sm:$0xff] %v3113
        %3146 = vst [vmem:[#allocation3 + $0x2b8] sm:$0xff] %v3114
        %3147 = vst [vmem:[#allocation3 + $0x300] sm:$0xff] %v3115
        %3148 = vst [vmem:[#allocation3 + $0x348] sm:$0xff] %v3116
        %3149 = vst [vmem:[#allocation3 + $0x390] sm:$0xff] %v3117
        %3150 = vst [vmem:[#allocation3 + $0x3d8] sm:$0xff] %v3118
        %3151 = vst [vmem:[#allocation3 + $0x420] sm:$0xff] %v3119
        %3152 = vst [vmem:[#allocation3 + $0x468] sm:$0xff] %v3120
        %v3153 = vld [vmem:[%s3008] sm:$0xf]
        %v3154 = vld [vmem:[%s3008 + $0x4] sm:$0xf]
        %v3155 = vld [vmem:[%s3008 + $0x8] sm:$0x1]
        %v3156 = vld [vmem:[%s3008 + $0xc] sm:$0xf]
        %v3157 = vld [vmem:[%s3008 + $0x10] sm:$0xf]
        %v3158 = vld [vmem:[%s3008 + $0x14] sm:$0x1]
        %v3159 = vld [vmem:[%s3008 + $0x18] sm:$0xf]
        %v3160 = vld [vmem:[%s3008 + $0x1c] sm:$0xf]
        %v3161 = vld [vmem:[%s3008 + $0x20] sm:$0x1]
        %v3162 = vld [vmem:[%s3008 + $0x24] sm:$0xf]
        %v3163 = vld [vmem:[%s3008 + $0x28] sm:$0xf]
        %v3164 = vld [vmem:[%s3008 + $0x2c] sm:$0x1]
        %v3165 = vld [vmem:[%s3008 + $0x30] sm:$0xf]
        %v3166 = vld [vmem:[%s3008 + $0x34] sm:$0xf]
        %v3167 = vld [vmem:[%s3008 + $0x38] sm:$0x1]
        %v3168 = vld [vmem:[%s3008 + $0x3c] sm:$0xf]
        %v3169 = vld [vmem:[%s3008 + $0x40] sm:$0xf]
        %v3170 = vld [vmem:[%s3008 + $0x44] sm:$0x1]
        %v3171 = vld [vmem:[%s3008 + $0x48] sm:$0xf]
        %v3172 = vld [vmem:[%s3008 + $0x4c] sm:$0xf]
        %v3173 = vld [vmem:[%s3008 + $0x50] sm:$0x1]
        %v3174 = vld [vmem:[%s3008 + $0x54] sm:$0xf]
        %v3175 = vld [vmem:[%s3008 + $0x58] sm:$0xf]
        %v3176 = vld [vmem:[%s3008 + $0x5c] sm:$0x1]
        %v3177 = vld [vmem:[%s3008 + $0x60] sm:$0xf]
        %v3178 = vld [vmem:[%s3008 + $0x64] sm:$0xf]
        %v3179 = vld [vmem:[%s3008 + $0x68] sm:$0x1]
        %v3180 = vld [vmem:[%s3008 + $0x6c] sm:$0xf]
        %v3181 = vld [vmem:[%s3008 + $0x70] sm:$0xf]
        %v3182 = vld [vmem:[%s3008 + $0x74] sm:$0x1]
        %v3183 = vld [vmem:[%s3008 + $0x78] sm:$0xf]
        %v3184 = vld [vmem:[%s3008 + $0x7c] sm:$0xf]
        %v3185 = vld [vmem:[%s3008 + $0x80] sm:$0x1]
        %v3186 = vld [vmem:[%s3008 + $0x84] sm:$0xf]
        %v3187 = vld [vmem:[%s3008 + $0x88] sm:$0xf]
        %v3188 = vld [vmem:[%s3008 + $0x8c] sm:$0x1]
        %v3189 = vld [vmem:[%s3008 + $0x90] sm:$0xf]
        %v3190 = vld [vmem:[%s3008 + $0x94] sm:$0xf]
        %v3191 = vld [vmem:[%s3008 + $0x98] sm:$0x1]
        %v3192 = vld [vmem:[%s3008 + $0x9c] sm:$0xf]
        %v3193 = vld [vmem:[%s3008 + $0xa0] sm:$0xf]
        %v3194 = vld [vmem:[%s3008 + $0xa4] sm:$0x1]
        %v3195 = vld [vmem:[%s3008 + $0xa8] sm:$0xf]
        %v3196 = vld [vmem:[%s3008 + $0xac] sm:$0xf]
        %v3197 = vld [vmem:[%s3008 + $0xb0] sm:$0x1]
        %v3198 = vld [vmem:[%s3008 + $0xb4] sm:$0xf]
        %v3199 = vld [vmem:[%s3008 + $0xb8] sm:$0xf]
        %v3200 = vld [vmem:[%s3008 + $0xbc] sm:$0x1]
        %v3202 = vshrl.u32 %v3153, 16
        %v3204 = vrot.slane %v3202, 4
        %v3205 = vshll.u32 %v3153, 16
        %v3207 = vrot.slane %v3205, 5
        %v3208 = vor.u32 %v3204, %v3207
        %v3209 = vrot.slane %v3208, 4
        %v3211 = vshll.u32 %v3154, 16
        %v3213 = vrot.slane %v3211, 5
        %v3214 = vsel %vm1308, %v3209, %v3213
        %v3215 = vshrl.u32 %v3154, 16
        %v3217 = vrot.slane %v3215, 4
        %v3218 = vor.u32 %v3217, %v3213
        %v3219 = vrot.slane %v3218, 4
        %v3221 = vshll.u32 %v3155, 16
        %v3223 = vrot.slane %v3221, 5
        %v3224 = vsel %vm1308, %v3219, %v3223
        %v3226 = vshrl.u32 %v3156, 16
        %v3228 = vrot.slane %v3226, 4
        %v3229 = vshll.u32 %v3156, 16
        %v3231 = vrot.slane %v3229, 5
        %v3232 = vor.u32 %v3228, %v3231
        %v3233 = vrot.slane %v3232, 4
        %v3235 = vshll.u32 %v3157, 16
        %v3237 = vrot.slane %v3235, 5
        %v3238 = vsel %vm1308, %v3233, %v3237
        %v3239 = vshrl.u32 %v3157, 16
        %v3241 = vrot.slane %v3239, 4
        %v3242 = vor.u32 %v3241, %v3237
        %v3243 = vrot.slane %v3242, 4
        %v3245 = vshll.u32 %v3158, 16
        %v3247 = vrot.slane %v3245, 5
        %v3248 = vsel %vm1308, %v3243, %v3247
        %v3250 = vshrl.u32 %v3159, 16
        %v3252 = vrot.slane %v3250, 4
        %v3253 = vshll.u32 %v3159, 16
        %v3255 = vrot.slane %v3253, 5
        %v3256 = vor.u32 %v3252, %v3255
        %v3257 = vrot.slane %v3256, 4
        %v3259 = vshll.u32 %v3160, 16
        %v3261 = vrot.slane %v3259, 5
        %v3262 = vsel %vm1308, %v3257, %v3261
        %v3263 = vshrl.u32 %v3160, 16
        %v3265 = vrot.slane %v3263, 4
        %v3266 = vor.u32 %v3265, %v3261
        %v3267 = vrot.slane %v3266, 4
        %v3269 = vshll.u32 %v3161, 16
        %v3271 = vrot.slane %v3269, 5
        %v3272 = vsel %vm1308, %v3267, %v3271
        %v3274 = vshrl.u32 %v3162, 16
        %v3276 = vrot.slane %v3274, 4
        %v3277 = vshll.u32 %v3162, 16
        %v3279 = vrot.slane %v3277, 5
        %v3280 = vor.u32 %v3276, %v3279
        %v3281 = vrot.slane %v3280, 4
        %v3283 = vshll.u32 %v3163, 16
        %v3285 = vrot.slane %v3283, 5
        %v3286 = vsel %vm1308, %v3281, %v3285
        %v3287 = vshrl.u32 %v3163, 16
        %v3289 = vrot.slane %v3287, 4
        %v3290 = vor.u32 %v3289, %v3285
        %v3291 = vrot.slane %v3290, 4
        %v3293 = vshll.u32 %v3164, 16
        %v3295 = vrot.slane %v3293, 5
        %v3296 = vsel %vm1308, %v3291, %v3295
        %v3298 = vshrl.u32 %v3165, 16
        %v3300 = vrot.slane %v3298, 4
        %v3301 = vshll.u32 %v3165, 16
        %v3303 = vrot.slane %v3301, 5
        %v3304 = vor.u32 %v3300, %v3303
        %v3305 = vrot.slane %v3304, 4
        %v3307 = vshll.u32 %v3166, 16
        %v3309 = vrot.slane %v3307, 5
        %v3310 = vsel %vm1308, %v3305, %v3309
        %v3311 = vshrl.u32 %v3166, 16
        %v3313 = vrot.slane %v3311, 4
        %v3314 = vor.u32 %v3313, %v3309
        %v3315 = vrot.slane %v3314, 4
        %v3317 = vshll.u32 %v3167, 16
        %v3319 = vrot.slane %v3317, 5
        %v3320 = vsel %vm1308, %v3315, %v3319
        %v3322 = vshrl.u32 %v3168, 16
        %v3324 = vrot.slane %v3322, 4
        %v3325 = vshll.u32 %v3168, 16
        %v3327 = vrot.slane %v3325, 5
        %v3328 = vor.u32 %v3324, %v3327
        %v3329 = vrot.slane %v3328, 4
        %v3331 = vshll.u32 %v3169, 16
        %v3333 = vrot.slane %v3331, 5
        %v3334 = vsel %vm1308, %v3329, %v3333
        %v3335 = vshrl.u32 %v3169, 16
        %v3337 = vrot.slane %v3335, 4
        %v3338 = vor.u32 %v3337, %v3333
        %v3339 = vrot.slane %v3338, 4
        %v3341 = vshll.u32 %v3170, 16
        %v3343 = vrot.slane %v3341, 5
        %v3344 = vsel %vm1308, %v3339, %v3343
        %v3346 = vshrl.u32 %v3171, 16
        %v3348 = vrot.slane %v3346, 4
        %v3349 = vshll.u32 %v3171, 16
        %v3351 = vrot.slane %v3349, 5
        %v3352 = vor.u32 %v3348, %v3351
        %v3353 = vrot.slane %v3352, 4
        %v3355 = vshll.u32 %v3172, 16
        %v3357 = vrot.slane %v3355, 5
        %v3358 = vsel %vm1308, %v3353, %v3357
        %v3359 = vshrl.u32 %v3172, 16
        %v3361 = vrot.slane %v3359, 4
        %v3362 = vor.u32 %v3361, %v3357
        %v3363 = vrot.slane %v3362, 4
        %v3365 = vshll.u32 %v3173, 16
        %v3367 = vrot.slane %v3365, 5
        %v3368 = vsel %vm1308, %v3363, %v3367
        %v3370 = vshrl.u32 %v3174, 16
        %v3372 = vrot.slane %v3370, 4
        %v3373 = vshll.u32 %v3174, 16
        %v3375 = vrot.slane %v3373, 5
        %v3376 = vor.u32 %v3372, %v3375
        %v3377 = vrot.slane %v3376, 4
        %v3379 = vshll.u32 %v3175, 16
        %v3381 = vrot.slane %v3379, 5
        %v3382 = vsel %vm1308, %v3377, %v3381
        %v3383 = vshrl.u32 %v3175, 16
        %v3385 = vrot.slane %v3383, 4
        %v3386 = vor.u32 %v3385, %v3381
        %v3387 = vrot.slane %v3386, 4
        %v3389 = vshll.u32 %v3176, 16
        %v3391 = vrot.slane %v3389, 5
        %v3392 = vsel %vm1308, %v3387, %v3391
        %v3394 = vshrl.u32 %v3177, 16
        %v3396 = vrot.slane %v3394, 4
        %v3397 = vshll.u32 %v3177, 16
        %v3399 = vrot.slane %v3397, 5
        %v3400 = vor.u32 %v3396, %v3399
        %v3401 = vrot.slane %v3400, 4
        %v3403 = vshll.u32 %v3178, 16
        %v3405 = vrot.slane %v3403, 5
        %v3406 = vsel %vm1308, %v3401, %v3405
        %v3407 = vshrl.u32 %v3178, 16
        %v3409 = vrot.slane %v3407, 4
        %v3410 = vor.u32 %v3409, %v3405
        %v3411 = vrot.slane %v3410, 4
        %v3413 = vshll.u32 %v3179, 16
        %v3415 = vrot.slane %v3413, 5
        %v3416 = vsel %vm1308, %v3411, %v3415
        %v3418 = vshrl.u32 %v3180, 16
        %v3420 = vrot.slane %v3418, 4
        %v3421 = vshll.u32 %v3180, 16
        %v3423 = vrot.slane %v3421, 5
        %v3424 = vor.u32 %v3420, %v3423
        %v3425 = vrot.slane %v3424, 4
        %v3427 = vshll.u32 %v3181, 16
        %v3429 = vrot.slane %v3427, 5
        %v3430 = vsel %vm1308, %v3425, %v3429
        %v3431 = vshrl.u32 %v3181, 16
        %v3433 = vrot.slane %v3431, 4
        %v3434 = vor.u32 %v3433, %v3429
        %v3435 = vrot.slane %v3434, 4
        %v3437 = vshll.u32 %v3182, 16
        %v3439 = vrot.slane %v3437, 5
        %v3440 = vsel %vm1308, %v3435, %v3439
        %v3442 = vshrl.u32 %v3183, 16
        %v3444 = vrot.slane %v3442, 4
        %v3445 = vshll.u32 %v3183, 16
        %v3447 = vrot.slane %v3445, 5
        %v3448 = vor.u32 %v3444, %v3447
        %v3449 = vrot.slane %v3448, 4
        %v3451 = vshll.u32 %v3184, 16
        %v3453 = vrot.slane %v3451, 5
        %v3454 = vsel %vm1308, %v3449, %v3453
        %v3455 = vshrl.u32 %v3184, 16
        %v3457 = vrot.slane %v3455, 4
        %v3458 = vor.u32 %v3457, %v3453
        %v3459 = vrot.slane %v3458, 4
        %v3461 = vshll.u32 %v3185, 16
        %v3463 = vrot.slane %v3461, 5
        %v3464 = vsel %vm1308, %v3459, %v3463
        %v3466 = vshrl.u32 %v3186, 16
        %v3468 = vrot.slane %v3466, 4
        %v3469 = vshll.u32 %v3186, 16
        %v3471 = vrot.slane %v3469, 5
        %v3472 = vor.u32 %v3468, %v3471
        %v3473 = vrot.slane %v3472, 4
        %v3475 = vshll.u32 %v3187, 16
        %v3477 = vrot.slane %v3475, 5
        %v3478 = vsel %vm1308, %v3473, %v3477
        %v3479 = vshrl.u32 %v3187, 16
        %v3481 = vrot.slane %v3479, 4
        %v3482 = vor.u32 %v3481, %v3477
        %v3483 = vrot.slane %v3482, 4
        %v3485 = vshll.u32 %v3188, 16
        %v3487 = vrot.slane %v3485, 5
        %v3488 = vsel %vm1308, %v3483, %v3487
        %v3490 = vshrl.u32 %v3189, 16
        %v3492 = vrot.slane %v3490, 4
        %v3493 = vshll.u32 %v3189, 16
        %v3495 = vrot.slane %v3493, 5
        %v3496 = vor.u32 %v3492, %v3495
        %v3497 = vrot.slane %v3496, 4
        %v3499 = vshll.u32 %v3190, 16
        %v3501 = vrot.slane %v3499, 5
        %v3502 = vsel %vm1308, %v3497, %v3501
        %v3503 = vshrl.u32 %v3190, 16
        %v3505 = vrot.slane %v3503, 4
        %v3506 = vor.u32 %v3505, %v3501
        %v3507 = vrot.slane %v3506, 4
        %v3509 = vshll.u32 %v3191, 16
        %v3511 = vrot.slane %v3509, 5
        %v3512 = vsel %vm1308, %v3507, %v3511
        %v3514 = vshrl.u32 %v3192, 16
        %v3516 = vrot.slane %v3514, 4
        %v3517 = vshll.u32 %v3192, 16
        %v3519 = vrot.slane %v3517, 5
        %v3520 = vor.u32 %v3516, %v3519
        %v3521 = vrot.slane %v3520, 4
        %v3523 = vshll.u32 %v3193, 16
        %v3525 = vrot.slane %v3523, 5
        %v3526 = vsel %vm1308, %v3521, %v3525
        %v3527 = vshrl.u32 %v3193, 16
        %v3529 = vrot.slane %v3527, 4
        %v3530 = vor.u32 %v3529, %v3525
        %v3531 = vrot.slane %v3530, 4
        %v3533 = vshll.u32 %v3194, 16
        %v3535 = vrot.slane %v3533, 5
        %v3536 = vsel %vm1308, %v3531, %v3535
        %v3538 = vshrl.u32 %v3195, 16
        %v3540 = vrot.slane %v3538, 4
        %v3541 = vshll.u32 %v3195, 16
        %v3543 = vrot.slane %v3541, 5
        %v3544 = vor.u32 %v3540, %v3543
        %v3545 = vrot.slane %v3544, 4
        %v3547 = vshll.u32 %v3196, 16
        %v3549 = vrot.slane %v3547, 5
        %v3550 = vsel %vm1308, %v3545, %v3549
        %v3551 = vshrl.u32 %v3196, 16
        %v3553 = vrot.slane %v3551, 4
        %v3554 = vor.u32 %v3553, %v3549
        %v3555 = vrot.slane %v3554, 4
        %v3557 = vshll.u32 %v3197, 16
        %v3559 = vrot.slane %v3557, 5
        %v3560 = vsel %vm1308, %v3555, %v3559
        %v3562 = vshrl.u32 %v3198, 16
        %v3564 = vrot.slane %v3562, 4
        %v3565 = vshll.u32 %v3198, 16
        %v3567 = vrot.slane %v3565, 5
        %v3568 = vor.u32 %v3564, %v3567
        %v3569 = vrot.slane %v3568, 4
        %v3571 = vshll.u32 %v3199, 16
        %v3573 = vrot.slane %v3571, 5
        %v3574 = vsel %vm1308, %v3569, %v3573
        %v3575 = vshrl.u32 %v3199, 16
        %v3577 = vrot.slane %v3575, 4
        %v3578 = vor.u32 %v3577, %v3573
        %v3579 = vrot.slane %v3578, 4
        %v3581 = vshll.u32 %v3200, 16
        %v3583 = vrot.slane %v3581, 5
        %v3584 = vsel %vm1308, %v3579, %v3583
        %v3585 = vunpack.c.l.b16 %v3214
        %v3586 = vunpack.c.l.b16 %v3224
        %v3587 = vunpack.c.l.b16 %v3238
        %v3588 = vunpack.c.l.b16 %v3248
        %v3589 = vunpack.c.l.b16 %v3262
        %v3590 = vunpack.c.l.b16 %v3272
        %v3591 = vunpack.c.l.b16 %v3286
        %v3592 = vunpack.c.l.b16 %v3296
        %v3593 = vunpack.c.l.b16 %v3310
        %v3594 = vunpack.c.l.b16 %v3320
        %v3595 = vunpack.c.l.b16 %v3334
        %v3596 = vunpack.c.l.b16 %v3344
        %v3597 = vunpack.c.l.b16 %v3358
        %v3598 = vunpack.c.l.b16 %v3368
        %v3599 = vunpack.c.l.b16 %v3382
        %v3600 = vunpack.c.l.b16 %v3392
        %v3601 = vunpack.c.l.b16 %v3406
        %v3602 = vunpack.c.l.b16 %v3416
        %v3603 = vunpack.c.l.b16 %v3430
        %v3604 = vunpack.c.l.b16 %v3440
        %v3605 = vunpack.c.l.b16 %v3454
        %v3606 = vunpack.c.l.b16 %v3464
        %v3607 = vunpack.c.l.b16 %v3478
        %v3608 = vunpack.c.l.b16 %v3488
        %v3609 = vunpack.c.l.b16 %v3502
        %v3610 = vunpack.c.l.b16 %v3512
        %v3611 = vunpack.c.l.b16 %v3526
        %v3612 = vunpack.c.l.b16 %v3536
        %v3613 = vunpack.c.l.b16 %v3550
        %v3614 = vunpack.c.l.b16 %v3560
        %v3615 = vunpack.c.l.b16 %v3574
        %v3616 = vunpack.c.l.b16 %v3584
        %v3617 = vpack.c.b16 %v3586, %v3585
        %v3618 = vpack.c.b16 %v3588, %v3587
        %v3619 = vpack.c.b16 %v3590, %v3589
        %v3620 = vpack.c.b16 %v3592, %v3591
        %v3621 = vpack.c.b16 %v3594, %v3593
        %v3622 = vpack.c.b16 %v3596, %v3595
        %v3623 = vpack.c.b16 %v3598, %v3597
        %v3624 = vpack.c.b16 %v3600, %v3599
        %v3625 = vpack.c.b16 %v3602, %v3601
        %v3626 = vpack.c.b16 %v3604, %v3603
        %v3627 = vpack.c.b16 %v3606, %v3605
        %v3628 = vpack.c.b16 %v3608, %v3607
        %v3629 = vpack.c.b16 %v3610, %v3609
        %v3630 = vpack.c.b16 %v3612, %v3611
        %v3631 = vpack.c.b16 %v3614, %v3613
        %v3632 = vpack.c.b16 %v3616, %v3615
        %3649 = vst [vmem:[#allocation3 + $0x38] sm:$0xff] %v3617
        %3650 = vst [vmem:[#allocation3 + $0x80] sm:$0xff] %v3618
        %3651 = vst [vmem:[#allocation3 + $0xc8] sm:$0xff] %v3619
        %3652 = vst [vmem:[#allocation3 + $0x110] sm:$0xff] %v3620
        %3653 = vst [vmem:[#allocation3 + $0x158] sm:$0xff] %v3621
        %3654 = vst [vmem:[#allocation3 + $0x1a0] sm:$0xff] %v3622
        %3655 = vst [vmem:[#allocation3 + $0x1e8] sm:$0xff] %v3623
        %3656 = vst [vmem:[#allocation3 + $0x230] sm:$0xff] %v3624
        %3657 = vst [vmem:[#allocation3 + $0x278] sm:$0xff] %v3625
        %3658 = vst [vmem:[#allocation3 + $0x2c0] sm:$0xff] %v3626
        %3659 = vst [vmem:[#allocation3 + $0x308] sm:$0xff] %v3627
        %3660 = vst [vmem:[#allocation3 + $0x350] sm:$0xff] %v3628
        %3661 = vst [vmem:[#allocation3 + $0x398] sm:$0xff] %v3629
        %3662 = vst [vmem:[#allocation3 + $0x3e0] sm:$0xff] %v3630
        %3663 = vst [vmem:[#allocation3 + $0x428] sm:$0xff] %v3631
        %3664 = vst [vmem:[#allocation3 + $0x470] sm:$0xff] %v3632
        %v3665 = vld [vmem:[%s3008] sm:$0xe]
        %v3666 = vld [vmem:[%s3008 + $0x4] sm:$0xf]
        %v3667 = vld [vmem:[%s3008 + $0x8] sm:$0x1]
        %v3668 = vld [vmem:[%s3008 + $0xc] sm:$0xe]
        %v3669 = vld [vmem:[%s3008 + $0x10] sm:$0xf]
        %v3670 = vld [vmem:[%s3008 + $0x14] sm:$0x1]
        %v3671 = vld [vmem:[%s3008 + $0x18] sm:$0xe]
        %v3672 = vld [vmem:[%s3008 + $0x1c] sm:$0xf]
        %v3673 = vld [vmem:[%s3008 + $0x20] sm:$0x1]
        %v3674 = vld [vmem:[%s3008 + $0x24] sm:$0xe]
        %v3675 = vld [vmem:[%s3008 + $0x28] sm:$0xf]
        %v3676 = vld [vmem:[%s3008 + $0x2c] sm:$0x1]
        %v3677 = vld [vmem:[%s3008 + $0x30] sm:$0xe]
        %v3678 = vld [vmem:[%s3008 + $0x34] sm:$0xf]
        %v3679 = vld [vmem:[%s3008 + $0x38] sm:$0x1]
        %v3680 = vld [vmem:[%s3008 + $0x3c] sm:$0xe]
        %v3681 = vld [vmem:[%s3008 + $0x40] sm:$0xf]
        %v3682 = vld [vmem:[%s3008 + $0x44] sm:$0x1]
        %v3683 = vld [vmem:[%s3008 + $0x48] sm:$0xe]
        %v3684 = vld [vmem:[%s3008 + $0x4c] sm:$0xf]
        %v3685 = vld [vmem:[%s3008 + $0x50] sm:$0x1]
        %v3686 = vld [vmem:[%s3008 + $0x54] sm:$0xe]
        %v3687 = vld [vmem:[%s3008 + $0x58] sm:$0xf]
        %v3688 = vld [vmem:[%s3008 + $0x5c] sm:$0x1]
        %v3689 = vld [vmem:[%s3008 + $0x60] sm:$0xe]
        %v3690 = vld [vmem:[%s3008 + $0x64] sm:$0xf]
        %v3691 = vld [vmem:[%s3008 + $0x68] sm:$0x1]
        %v3692 = vld [vmem:[%s3008 + $0x6c] sm:$0xe]
        %v3693 = vld [vmem:[%s3008 + $0x70] sm:$0xf]
        %v3694 = vld [vmem:[%s3008 + $0x74] sm:$0x1]
        %v3695 = vld [vmem:[%s3008 + $0x78] sm:$0xe]
        %v3696 = vld [vmem:[%s3008 + $0x7c] sm:$0xf]
        %v3697 = vld [vmem:[%s3008 + $0x80] sm:$0x1]
        %v3698 = vld [vmem:[%s3008 + $0x84] sm:$0xe]
        %v3699 = vld [vmem:[%s3008 + $0x88] sm:$0xf]
        %v3700 = vld [vmem:[%s3008 + $0x8c] sm:$0x1]
        %v3701 = vld [vmem:[%s3008 + $0x90] sm:$0xe]
        %v3702 = vld [vmem:[%s3008 + $0x94] sm:$0xf]
        %v3703 = vld [vmem:[%s3008 + $0x98] sm:$0x1]
        %v3704 = vld [vmem:[%s3008 + $0x9c] sm:$0xe]
        %v3705 = vld [vmem:[%s3008 + $0xa0] sm:$0xf]
        %v3706 = vld [vmem:[%s3008 + $0xa4] sm:$0x1]
        %v3707 = vld [vmem:[%s3008 + $0xa8] sm:$0xe]
        %v3708 = vld [vmem:[%s3008 + $0xac] sm:$0xf]
        %v3709 = vld [vmem:[%s3008 + $0xb0] sm:$0x1]
        %v3710 = vld [vmem:[%s3008 + $0xb4] sm:$0xe]
        %v3711 = vld [vmem:[%s3008 + $0xb8] sm:$0xf]
        %v3712 = vld [vmem:[%s3008 + $0xbc] sm:$0x1]
        %v3761 = vrot.slane %v3665, 5
        %v3762 = vrot.slane %v3761, 4
        %v3763 = vrot.slane %v3666, 5
        %v3764 = vsel %vm1871, %v3762, %v3763
        %v3765 = vrot.slane %v3763, 4
        %v3766 = vrot.slane %v3667, 5
        %v3767 = vsel %vm1871, %v3765, %v3766
        %v3768 = vrot.slane %v3668, 5
        %v3769 = vrot.slane %v3768, 4
        %v3770 = vrot.slane %v3669, 5
        %v3771 = vsel %vm1871, %v3769, %v3770
        %v3772 = vrot.slane %v3770, 4
        %v3773 = vrot.slane %v3670, 5
        %v3774 = vsel %vm1871, %v3772, %v3773
        %v3775 = vrot.slane %v3671, 5
        %v3776 = vrot.slane %v3775, 4
        %v3777 = vrot.slane %v3672, 5
        %v3778 = vsel %vm1871, %v3776, %v3777
        %v3779 = vrot.slane %v3777, 4
        %v3780 = vrot.slane %v3673, 5
        %v3781 = vsel %vm1871, %v3779, %v3780
        %v3782 = vrot.slane %v3674, 5
        %v3783 = vrot.slane %v3782, 4
        %v3784 = vrot.slane %v3675, 5
        %v3785 = vsel %vm1871, %v3783, %v3784
        %v3786 = vrot.slane %v3784, 4
        %v3787 = vrot.slane %v3676, 5
        %v3788 = vsel %vm1871, %v3786, %v3787
        %v3789 = vrot.slane %v3677, 5
        %v3790 = vrot.slane %v3789, 4
        %v3791 = vrot.slane %v3678, 5
        %v3792 = vsel %vm1871, %v3790, %v3791
        %v3793 = vrot.slane %v3791, 4
        %v3794 = vrot.slane %v3679, 5
        %v3795 = vsel %vm1871, %v3793, %v3794
        %v3796 = vrot.slane %v3680, 5
        %v3797 = vrot.slane %v3796, 4
        %v3798 = vrot.slane %v3681, 5
        %v3799 = vsel %vm1871, %v3797, %v3798
        %v3800 = vrot.slane %v3798, 4
        %v3801 = vrot.slane %v3682, 5
        %v3802 = vsel %vm1871, %v3800, %v3801
        %v3803 = vrot.slane %v3683, 5
        %v3804 = vrot.slane %v3803, 4
        %v3805 = vrot.slane %v3684, 5
        %v3806 = vsel %vm1871, %v3804, %v3805
        %v3807 = vrot.slane %v3805, 4
        %v3808 = vrot.slane %v3685, 5
        %v3809 = vsel %vm1871, %v3807, %v3808
        %v3810 = vrot.slane %v3686, 5
        %v3811 = vrot.slane %v3810, 4
        %v3812 = vrot.slane %v3687, 5
        %v3813 = vsel %vm1871, %v3811, %v3812
        %v3814 = vrot.slane %v3812, 4
        %v3815 = vrot.slane %v3688, 5
        %v3816 = vsel %vm1871, %v3814, %v3815
        %v3817 = vrot.slane %v3689, 5
        %v3818 = vrot.slane %v3817, 4
        %v3819 = vrot.slane %v3690, 5
        %v3820 = vsel %vm1871, %v3818, %v3819
        %v3821 = vrot.slane %v3819, 4
        %v3822 = vrot.slane %v3691, 5
        %v3823 = vsel %vm1871, %v3821, %v3822
        %v3824 = vrot.slane %v3692, 5
        %v3825 = vrot.slane %v3824, 4
        %v3826 = vrot.slane %v3693, 5
        %v3827 = vsel %vm1871, %v3825, %v3826
        %v3828 = vrot.slane %v3826, 4
        %v3829 = vrot.slane %v3694, 5
        %v3830 = vsel %vm1871, %v3828, %v3829
        %v3831 = vrot.slane %v3695, 5
        %v3832 = vrot.slane %v3831, 4
        %v3833 = vrot.slane %v3696, 5
        %v3834 = vsel %vm1871, %v3832, %v3833
        %v3835 = vrot.slane %v3833, 4
        %v3836 = vrot.slane %v3697, 5
        %v3837 = vsel %vm1871, %v3835, %v3836
        %v3838 = vrot.slane %v3698, 5
        %v3839 = vrot.slane %v3838, 4
        %v3840 = vrot.slane %v3699, 5
        %v3841 = vsel %vm1871, %v3839, %v3840
        %v3842 = vrot.slane %v3840, 4
        %v3843 = vrot.slane %v3700, 5
        %v3844 = vsel %vm1871, %v3842, %v3843
        %v3845 = vrot.slane %v3701, 5
        %v3846 = vrot.slane %v3845, 4
        %v3847 = vrot.slane %v3702, 5
        %v3848 = vsel %vm1871, %v3846, %v3847
        %v3849 = vrot.slane %v3847, 4
        %v3850 = vrot.slane %v3703, 5
        %v3851 = vsel %vm1871, %v3849, %v3850
        %v3852 = vrot.slane %v3704, 5
        %v3853 = vrot.slane %v3852, 4
        %v3854 = vrot.slane %v3705, 5
        %v3855 = vsel %vm1871, %v3853, %v3854
        %v3856 = vrot.slane %v3854, 4
        %v3857 = vrot.slane %v3706, 5
        %v3858 = vsel %vm1871, %v3856, %v3857
        %v3859 = vrot.slane %v3707, 5
        %v3860 = vrot.slane %v3859, 4
        %v3861 = vrot.slane %v3708, 5
        %v3862 = vsel %vm1871, %v3860, %v3861
        %v3863 = vrot.slane %v3861, 4
        %v3864 = vrot.slane %v3709, 5
        %v3865 = vsel %vm1871, %v3863, %v3864
        %v3866 = vrot.slane %v3710, 5
        %v3867 = vrot.slane %v3866, 4
        %v3868 = vrot.slane %v3711, 5
        %v3869 = vsel %vm1871, %v3867, %v3868
        %v3870 = vrot.slane %v3868, 4
        %v3871 = vrot.slane %v3712, 5
        %v3872 = vsel %vm1871, %v3870, %v3871
        %v3873 = vunpack.c.l.b16 %v3764
        %v3874 = vunpack.c.l.b16 %v3767
        %v3875 = vunpack.c.l.b16 %v3771
        %v3876 = vunpack.c.l.b16 %v3774
        %v3877 = vunpack.c.l.b16 %v3778
        %v3878 = vunpack.c.l.b16 %v3781
        %v3879 = vunpack.c.l.b16 %v3785
        %v3880 = vunpack.c.l.b16 %v3788
        %v3881 = vunpack.c.l.b16 %v3792
        %v3882 = vunpack.c.l.b16 %v3795
        %v3883 = vunpack.c.l.b16 %v3799
        %v3884 = vunpack.c.l.b16 %v3802
        %v3885 = vunpack.c.l.b16 %v3806
        %v3886 = vunpack.c.l.b16 %v3809
        %v3887 = vunpack.c.l.b16 %v3813
        %v3888 = vunpack.c.l.b16 %v3816
        %v3889 = vunpack.c.l.b16 %v3820
        %v3890 = vunpack.c.l.b16 %v3823
        %v3891 = vunpack.c.l.b16 %v3827
        %v3892 = vunpack.c.l.b16 %v3830
        %v3893 = vunpack.c.l.b16 %v3834
        %v3894 = vunpack.c.l.b16 %v3837
        %v3895 = vunpack.c.l.b16 %v3841
        %v3896 = vunpack.c.l.b16 %v3844
        %v3897 = vunpack.c.l.b16 %v3848
        %v3898 = vunpack.c.l.b16 %v3851
        %v3899 = vunpack.c.l.b16 %v3855
        %v3900 = vunpack.c.l.b16 %v3858
        %v3901 = vunpack.c.l.b16 %v3862
        %v3902 = vunpack.c.l.b16 %v3865
        %v3903 = vunpack.c.l.b16 %v3869
        %v3904 = vunpack.c.l.b16 %v3872
        %v3905 = vpack.c.b16 %v3874, %v3873
        %v3906 = vpack.c.b16 %v3876, %v3875
        %v3907 = vpack.c.b16 %v3878, %v3877
        %v3908 = vpack.c.b16 %v3880, %v3879
        %v3909 = vpack.c.b16 %v3882, %v3881
        %v3910 = vpack.c.b16 %v3884, %v3883
        %v3911 = vpack.c.b16 %v3886, %v3885
        %v3912 = vpack.c.b16 %v3888, %v3887
        %v3913 = vpack.c.b16 %v3890, %v3889
        %v3914 = vpack.c.b16 %v3892, %v3891
        %v3915 = vpack.c.b16 %v3894, %v3893
        %v3916 = vpack.c.b16 %v3896, %v3895
        %v3917 = vpack.c.b16 %v3898, %v3897
        %v3918 = vpack.c.b16 %v3900, %v3899
        %v3919 = vpack.c.b16 %v3902, %v3901
        %v3920 = vpack.c.b16 %v3904, %v3903
        %3937 = vst [vmem:[#allocation3 + $0x40] sm:$0xff] %v3905
        %3938 = vst [vmem:[#allocation3 + $0x88] sm:$0xff] %v3906
        %3939 = vst [vmem:[#allocation3 + $0xd0] sm:$0xff] %v3907
        %3940 = vst [vmem:[#allocation3 + $0x118] sm:$0xff] %v3908
        %3941 = vst [vmem:[#allocation3 + $0x160] sm:$0xff] %v3909
        %3942 = vst [vmem:[#allocation3 + $0x1a8] sm:$0xff] %v3910
        %3943 = vst [vmem:[#allocation3 + $0x1f0] sm:$0xff] %v3911
        %3944 = vst [vmem:[#allocation3 + $0x238] sm:$0xff] %v3912
        %3945 = vst [vmem:[#allocation3 + $0x280] sm:$0xff] %v3913
        %3946 = vst [vmem:[#allocation3 + $0x2c8] sm:$0xff] %v3914
        %3947 = vst [vmem:[#allocation3 + $0x310] sm:$0xff] %v3915
        %3948 = vst [vmem:[#allocation3 + $0x358] sm:$0xff] %v3916
        %3949 = vst [vmem:[#allocation3 + $0x3a0] sm:$0xff] %v3917
        %3950 = vst [vmem:[#allocation3 + $0x3e8] sm:$0xff] %v3918
        %3951 = vst [vmem:[#allocation3 + $0x430] sm:$0xff] %v3919
        %3952 = vst [vmem:[#allocation3 + $0x478] sm:$0xff] %v3920
        %v3953 = vld [vmem:[#allocation3] sm:$0xff]
        %v3954 = vld [vmem:[#allocation3 + $0x8] sm:$0xff]
        %v3955 = vld [vmem:[#allocation3 + $0x10] sm:$0xff]
        %v3956 = vld [vmem:[#allocation3 + $0x18] sm:$0xff]
        %v3957 = vld [vmem:[#allocation3 + $0x20] sm:$0xff]
        %v3958 = vld [vmem:[#allocation3 + $0x28] sm:$0xff]
        %v3959 = vld [vmem:[#allocation3 + $0x30] sm:$0xff]
        %v3960 = vld [vmem:[#allocation3 + $0x38] sm:$0xff]
        %v3961 = vld [vmem:[#allocation3 + $0x40] sm:$0xff]
        %v3962 = vld [vmem:[#allocation3 + $0x48] sm:$0xff]
        %v3963 = vld [vmem:[#allocation3 + $0x50] sm:$0xff]
        %v3964 = vld [vmem:[#allocation3 + $0x58] sm:$0xff]
        %v3965 = vld [vmem:[#allocation3 + $0x60] sm:$0xff]
        %v3966 = vld [vmem:[#allocation3 + $0x68] sm:$0xff]
        %v3967 = vld [vmem:[#allocation3 + $0x70] sm:$0xff]
        %v3968 = vld [vmem:[#allocation3 + $0x78] sm:$0xff]
        %v3969 = vld [vmem:[#allocation3 + $0x80] sm:$0xff]
        %v3970 = vld [vmem:[#allocation3 + $0x88] sm:$0xff]
        %v3971 = vld [vmem:[#allocation3 + $0x90] sm:$0xff]
        %v3972 = vld [vmem:[#allocation3 + $0x98] sm:$0xff]
        %v3973 = vld [vmem:[#allocation3 + $0xa0] sm:$0xff]
        %v3974 = vld [vmem:[#allocation3 + $0xa8] sm:$0xff]
        %v3975 = vld [vmem:[#allocation3 + $0xb0] sm:$0xff]
        %v3976 = vld [vmem:[#allocation3 + $0xb8] sm:$0xff]
        %v3977 = vld [vmem:[#allocation3 + $0xc0] sm:$0xff]
        %v3978 = vld [vmem:[#allocation3 + $0xc8] sm:$0xff]
        %v3979 = vld [vmem:[#allocation3 + $0xd0] sm:$0xff]
        %v3980 = vld [vmem:[#allocation3 + $0xd8] sm:$0xff]
        %v3981 = vld [vmem:[#allocation3 + $0xe0] sm:$0xff]
        %v3982 = vld [vmem:[#allocation3 + $0xe8] sm:$0xff]
        %v3983 = vld [vmem:[#allocation3 + $0xf0] sm:$0xff]
        %v3984 = vld [vmem:[#allocation3 + $0xf8] sm:$0xff]
        %v3985 = vld [vmem:[#allocation3 + $0x100] sm:$0xff]
        %v3986 = vld [vmem:[#allocation3 + $0x108] sm:$0xff]
        %v3987 = vld [vmem:[#allocation3 + $0x110] sm:$0xff]
        %v3988 = vld [vmem:[#allocation3 + $0x118] sm:$0xff]
        %v3989 = vld [vmem:[#allocation3 + $0x120] sm:$0xff]
        %v3990 = vld [vmem:[#allocation3 + $0x128] sm:$0xff]
        %v3991 = vld [vmem:[#allocation3 + $0x130] sm:$0xff]
        %v3992 = vld [vmem:[#allocation3 + $0x138] sm:$0xff]
        %v3993 = vld [vmem:[#allocation3 + $0x140] sm:$0xff]
        %v3994 = vld [vmem:[#allocation3 + $0x148] sm:$0xff]
        %v3995 = vld [vmem:[#allocation3 + $0x150] sm:$0xff]
        %v3996 = vld [vmem:[#allocation3 + $0x158] sm:$0xff]
        %v3997 = vld [vmem:[#allocation3 + $0x160] sm:$0xff]
        %v3998 = vld [vmem:[#allocation3 + $0x168] sm:$0xff]
        %v3999 = vld [vmem:[#allocation3 + $0x170] sm:$0xff]
        %v4000 = vld [vmem:[#allocation3 + $0x178] sm:$0xff]
        %v4001 = vld [vmem:[#allocation3 + $0x180] sm:$0xff]
        %v4002 = vld [vmem:[#allocation3 + $0x188] sm:$0xff]
        %v4003 = vld [vmem:[#allocation3 + $0x190] sm:$0xff]
        %v4004 = vld [vmem:[#allocation3 + $0x198] sm:$0xff]
        %v4005 = vld [vmem:[#allocation3 + $0x1a0] sm:$0xff]
        %v4006 = vld [vmem:[#allocation3 + $0x1a8] sm:$0xff]
        %v4007 = vld [vmem:[#allocation3 + $0x1b0] sm:$0xff]
        %v4008 = vld [vmem:[#allocation3 + $0x1b8] sm:$0xff]
        %v4009 = vld [vmem:[#allocation3 + $0x1c0] sm:$0xff]
        %v4010 = vld [vmem:[#allocation3 + $0x1c8] sm:$0xff]
        %v4011 = vld [vmem:[#allocation3 + $0x1d0] sm:$0xff]
        %v4012 = vld [vmem:[#allocation3 + $0x1d8] sm:$0xff]
        %v4013 = vld [vmem:[#allocation3 + $0x1e0] sm:$0xff]
        %v4014 = vld [vmem:[#allocation3 + $0x1e8] sm:$0xff]
        %v4015 = vld [vmem:[#allocation3 + $0x1f0] sm:$0xff]
        %v4016 = vld [vmem:[#allocation3 + $0x1f8] sm:$0xff]
        %v4017 = vld [vmem:[#allocation3 + $0x200] sm:$0xff]
        %v4018 = vld [vmem:[#allocation3 + $0x208] sm:$0xff]
        %v4019 = vld [vmem:[#allocation3 + $0x210] sm:$0xff]
        %v4020 = vld [vmem:[#allocation3 + $0x218] sm:$0xff]
        %v4021 = vld [vmem:[#allocation3 + $0x220] sm:$0xff]
        %v4022 = vld [vmem:[#allocation3 + $0x228] sm:$0xff]
        %v4023 = vld [vmem:[#allocation3 + $0x230] sm:$0xff]
        %v4024 = vld [vmem:[#allocation3 + $0x238] sm:$0xff]
        %v4025 = vld [vmem:[#allocation3 + $0x240] sm:$0xff]
        %v4026 = vld [vmem:[#allocation3 + $0x248] sm:$0xff]
        %v4027 = vld [vmem:[#allocation3 + $0x250] sm:$0xff]
        %v4028 = vld [vmem:[#allocation3 + $0x258] sm:$0xff]
        %v4029 = vld [vmem:[#allocation3 + $0x260] sm:$0xff]
        %v4030 = vld [vmem:[#allocation3 + $0x268] sm:$0xff]
        %v4031 = vld [vmem:[#allocation3 + $0x270] sm:$0xff]
        %v4032 = vld [vmem:[#allocation3 + $0x278] sm:$0xff]
        %v4033 = vld [vmem:[#allocation3 + $0x280] sm:$0xff]
        %v4034 = vld [vmem:[#allocation3 + $0x288] sm:$0xff]
        %v4035 = vld [vmem:[#allocation3 + $0x290] sm:$0xff]
        %v4036 = vld [vmem:[#allocation3 + $0x298] sm:$0xff]
        %v4037 = vld [vmem:[#allocation3 + $0x2a0] sm:$0xff]
        %v4038 = vld [vmem:[#allocation3 + $0x2a8] sm:$0xff]
        %v4039 = vld [vmem:[#allocation3 + $0x2b0] sm:$0xff]
        %v4040 = vld [vmem:[#allocation3 + $0x2b8] sm:$0xff]
        %v4041 = vld [vmem:[#allocation3 + $0x2c0] sm:$0xff]
        %v4042 = vld [vmem:[#allocation3 + $0x2c8] sm:$0xff]
        %v4043 = vld [vmem:[#allocation3 + $0x2d0] sm:$0xff]
        %v4044 = vld [vmem:[#allocation3 + $0x2d8] sm:$0xff]
        %v4045 = vld [vmem:[#allocation3 + $0x2e0] sm:$0xff]
        %v4046 = vld [vmem:[#allocation3 + $0x2e8] sm:$0xff]
        %v4047 = vld [vmem:[#allocation3 + $0x2f0] sm:$0xff]
        %v4048 = vld [vmem:[#allocation3 + $0x2f8] sm:$0xff]
        %v4049 = vld [vmem:[#allocation3 + $0x300] sm:$0xff]
        %v4050 = vld [vmem:[#allocation3 + $0x308] sm:$0xff]
        %v4051 = vld [vmem:[#allocation3 + $0x310] sm:$0xff]
        %v4052 = vld [vmem:[#allocation3 + $0x318] sm:$0xff]
        %v4053 = vld [vmem:[#allocation3 + $0x320] sm:$0xff]
        %v4054 = vld [vmem:[#allocation3 + $0x328] sm:$0xff]
        %v4055 = vld [vmem:[#allocation3 + $0x330] sm:$0xff]
        %v4056 = vld [vmem:[#allocation3 + $0x338] sm:$0xff]
        %v4057 = vld [vmem:[#allocation3 + $0x340] sm:$0xff]
        %v4058 = vld [vmem:[#allocation3 + $0x348] sm:$0xff]
        %v4059 = vld [vmem:[#allocation3 + $0x350] sm:$0xff]
        %v4060 = vld [vmem:[#allocation3 + $0x358] sm:$0xff]
        %v4061 = vld [vmem:[#allocation3 + $0x360] sm:$0xff]
        %v4062 = vld [vmem:[#allocation3 + $0x368] sm:$0xff]
        %v4063 = vld [vmem:[#allocation3 + $0x370] sm:$0xff]
        %v4064 = vld [vmem:[#allocation3 + $0x378] sm:$0xff]
        %v4065 = vld [vmem:[#allocation3 + $0x380] sm:$0xff]
        %v4066 = vld [vmem:[#allocation3 + $0x388] sm:$0xff]
        %v4067 = vld [vmem:[#allocation3 + $0x390] sm:$0xff]
        %v4068 = vld [vmem:[#allocation3 + $0x398] sm:$0xff]
        %v4069 = vld [vmem:[#allocation3 + $0x3a0] sm:$0xff]
        %v4070 = vld [vmem:[#allocation3 + $0x3a8] sm:$0xff]
        %v4071 = vld [vmem:[#allocation3 + $0x3b0] sm:$0xff]
        %v4072 = vld [vmem:[#allocation3 + $0x3b8] sm:$0xff]
        %v4073 = vld [vmem:[#allocation3 + $0x3c0] sm:$0xff]
        %v4074 = vld [vmem:[#allocation3 + $0x3c8] sm:$0xff]
        %v4075 = vld [vmem:[#allocation3 + $0x3d0] sm:$0xff]
        %v4076 = vld [vmem:[#allocation3 + $0x3d8] sm:$0xff]
        %v4077 = vld [vmem:[#allocation3 + $0x3e0] sm:$0xff]
        %v4078 = vld [vmem:[#allocation3 + $0x3e8] sm:$0xff]
        %v4079 = vld [vmem:[#allocation3 + $0x3f0] sm:$0xff]
        %v4080 = vld [vmem:[#allocation3 + $0x3f8] sm:$0xff]
        %v4081 = vld [vmem:[#allocation3 + $0x400] sm:$0xff]
        %v4082 = vld [vmem:[#allocation3 + $0x408] sm:$0xff]
        %v4083 = vld [vmem:[#allocation3 + $0x410] sm:$0xff]
        %v4084 = vld [vmem:[#allocation3 + $0x418] sm:$0xff]
        %v4085 = vld [vmem:[#allocation3 + $0x420] sm:$0xff]
        %v4086 = vld [vmem:[#allocation3 + $0x428] sm:$0xff]
        %v4087 = vld [vmem:[#allocation3 + $0x430] sm:$0xff]
        %v4088 = vld [vmem:[#allocation3 + $0x438] sm:$0xff]
        %v4089 = vld [vmem:[#allocation3 + $0x440] sm:$0xff]
        %v4090 = vld [vmem:[#allocation3 + $0x448] sm:$0xff]
        %v4091 = vld [vmem:[#allocation3 + $0x450] sm:$0xff]
        %v4092 = vld [vmem:[#allocation3 + $0x458] sm:$0xff]
        %v4093 = vld [vmem:[#allocation3 + $0x460] sm:$0xff]
        %v4094 = vld [vmem:[#allocation3 + $0x468] sm:$0xff]
        %v4095 = vld [vmem:[#allocation3 + $0x470] sm:$0xff]
        %v4096 = vld [vmem:[#allocation3 + $0x478] sm:$0xff]
        %v4097 = vld [vmem:[#allocation7] sm:$0xf]
        %v4098 = vld [vmem:[#allocation7 + $0x4] sm:$0xf]
        %v4099 = vld [vmem:[#allocation7 + $0x8] sm:$0xf]
        %v4100 = vld [vmem:[#allocation7 + $0xc] sm:$0xf]
        %v4101 = vld [vmem:[#allocation7 + $0x10] sm:$0xf]
        %v4102 = vld [vmem:[#allocation7 + $0x14] sm:$0xf]
        %v4103 = vld [vmem:[#allocation7 + $0x18] sm:$0xf]
        %v4104 = vld [vmem:[#allocation7 + $0x1c] sm:$0xf]
        %v4105 = vld [vmem:[#allocation7 + $0x20] sm:$0xf]
        %v4106 = vld [vmem:[#allocation7 + $0x24] sm:$0xf]
        %v4107 = vld [vmem:[#allocation7 + $0x28] sm:$0xf]
        %v4108 = vld [vmem:[#allocation7 + $0x2c] sm:$0xf]
        %v4109 = vld [vmem:[#allocation7 + $0x30] sm:$0xf]
        %v4110 = vld [vmem:[#allocation7 + $0x34] sm:$0xf]
        %v4111 = vld [vmem:[#allocation7 + $0x38] sm:$0xf]
        %v4112 = vld [vmem:[#allocation7 + $0x3c] sm:$0xf]
        %v4113 = vld [vmem:[#allocation7 + $0x40] sm:$0xf]
        %v4114 = vld [vmem:[#allocation7 + $0x44] sm:$0xf]
        %v4115 = vld [vmem:[#allocation7 + $0x48] sm:$0xf]
        %v4116 = vld [vmem:[#allocation7 + $0x4c] sm:$0xf]
        %v4117 = vld [vmem:[#allocation7 + $0x50] sm:$0xf]
        %v4118 = vld [vmem:[#allocation7 + $0x54] sm:$0xf]
        %v4119 = vld [vmem:[#allocation7 + $0x58] sm:$0xf]
        %v4120 = vld [vmem:[#allocation7 + $0x5c] sm:$0xf]
        %v4121 = vld [vmem:[#allocation7 + $0x60] sm:$0xf]
        %v4122 = vld [vmem:[#allocation7 + $0x64] sm:$0xf]
        %v4123 = vld [vmem:[#allocation7 + $0x68] sm:$0xf]
        %v4124 = vld [vmem:[#allocation7 + $0x6c] sm:$0xf]
        %v4125 = vld [vmem:[#allocation7 + $0x70] sm:$0xf]
        %v4126 = vld [vmem:[#allocation7 + $0x74] sm:$0xf]
        %v4127 = vld [vmem:[#allocation7 + $0x78] sm:$0xf]
        %v4128 = vld [vmem:[#allocation7 + $0x7c] sm:$0xf]
        %v4129 = vld [vmem:[#allocation7 + $0x80] sm:$0xf]
        %v4130 = vld [vmem:[#allocation7 + $0x84] sm:$0xf]
        %v4131 = vld [vmem:[#allocation7 + $0x88] sm:$0xf]
        %v4132 = vld [vmem:[#allocation7 + $0x8c] sm:$0xf]
        %v4133 = vld [vmem:[#allocation7 + $0x90] sm:$0xf]
        %v4134 = vld [vmem:[#allocation7 + $0x94] sm:$0xf]
        %v4135 = vld [vmem:[#allocation7 + $0x98] sm:$0xf]
        %v4136 = vld [vmem:[#allocation7 + $0x9c] sm:$0xf]
        %v4137 = vld [vmem:[#allocation7 + $0xa0] sm:$0xf]
        %v4138 = vld [vmem:[#allocation7 + $0xa4] sm:$0xf]
        %v4139 = vld [vmem:[#allocation7 + $0xa8] sm:$0xf]
        %v4140 = vld [vmem:[#allocation7 + $0xac] sm:$0xf]
        %v4141 = vld [vmem:[#allocation7 + $0xb0] sm:$0xf]
        %v4142 = vld [vmem:[#allocation7 + $0xb4] sm:$0xf]
        %v4143 = vld [vmem:[#allocation7 + $0xb8] sm:$0xf]
        %v4144 = vld [vmem:[#allocation7 + $0xbc] sm:$0xf]
        %v4145 = vld [vmem:[#allocation7 + $0xc0] sm:$0xf]
        %v4146 = vld [vmem:[#allocation7 + $0xc4] sm:$0xf]
        %v4147 = vld [vmem:[#allocation7 + $0xc8] sm:$0xf]
        %v4148 = vld [vmem:[#allocation7 + $0xcc] sm:$0xf]
        %v4149 = vld [vmem:[#allocation7 + $0xd0] sm:$0xf]
        %v4150 = vld [vmem:[#allocation7 + $0xd4] sm:$0xf]
        %v4151 = vld [vmem:[#allocation7 + $0xd8] sm:$0xf]
        %v4152 = vld [vmem:[#allocation7 + $0xdc] sm:$0xf]
        %v4153 = vld [vmem:[#allocation7 + $0xe0] sm:$0xf]
        %v4154 = vld [vmem:[#allocation7 + $0xe4] sm:$0xf]
        %v4155 = vld [vmem:[#allocation7 + $0xe8] sm:$0xf]
        %v4156 = vld [vmem:[#allocation7 + $0xec] sm:$0xf]
        %v4157 = vld [vmem:[#allocation7 + $0xf0] sm:$0xf]
        %v4158 = vld [vmem:[#allocation7 + $0xf4] sm:$0xf]
        %v4159 = vld [vmem:[#allocation7 + $0xf8] sm:$0xf]
        %v4160 = vld [vmem:[#allocation7 + $0xfc] sm:$0xf]
        %v4161 = vld [vmem:[#allocation7 + $0x100] sm:$0xf]
        %v4162 = vld [vmem:[#allocation7 + $0x104] sm:$0xf]
        %v4163 = vld [vmem:[#allocation7 + $0x108] sm:$0xf]
        %v4164 = vld [vmem:[#allocation7 + $0x10c] sm:$0xf]
        %v4165 = vld [vmem:[#allocation7 + $0x110] sm:$0xf]
        %v4166 = vld [vmem:[#allocation7 + $0x114] sm:$0xf]
        %v4167 = vld [vmem:[#allocation7 + $0x118] sm:$0xf]
        %v4168 = vld [vmem:[#allocation7 + $0x11c] sm:$0xf]
        %v4169 = vld [vmem:[#allocation7 + $0x120] sm:$0xf]
        %v4170 = vld [vmem:[#allocation7 + $0x124] sm:$0xf]
        %v4171 = vld [vmem:[#allocation7 + $0x128] sm:$0xf]
        %v4172 = vld [vmem:[#allocation7 + $0x12c] sm:$0xf]
        %v4173 = vld [vmem:[#allocation7 + $0x130] sm:$0xf]
        %v4174 = vld [vmem:[#allocation7 + $0x134] sm:$0xf]
        %v4175 = vld [vmem:[#allocation7 + $0x138] sm:$0xf]
        %v4176 = vld [vmem:[#allocation7 + $0x13c] sm:$0xf]
        %v4177 = vld [vmem:[#allocation7 + $0x140] sm:$0xf]
        %v4178 = vld [vmem:[#allocation7 + $0x144] sm:$0xf]
        %v4179 = vld [vmem:[#allocation7 + $0x148] sm:$0xf]
        %v4180 = vld [vmem:[#allocation7 + $0x14c] sm:$0xf]
        %v4181 = vld [vmem:[#allocation7 + $0x150] sm:$0xf]
        %v4182 = vld [vmem:[#allocation7 + $0x154] sm:$0xf]
        %v4183 = vld [vmem:[#allocation7 + $0x158] sm:$0xf]
        %v4184 = vld [vmem:[#allocation7 + $0x15c] sm:$0xf]
        %v4185 = vld [vmem:[#allocation7 + $0x160] sm:$0xf]
        %v4186 = vld [vmem:[#allocation7 + $0x164] sm:$0xf]
        %v4187 = vld [vmem:[#allocation7 + $0x168] sm:$0xf]
        %v4188 = vld [vmem:[#allocation7 + $0x16c] sm:$0xf]
        %v4189 = vld [vmem:[#allocation7 + $0x170] sm:$0xf]
        %v4190 = vld [vmem:[#allocation7 + $0x174] sm:$0xf]
        %v4191 = vld [vmem:[#allocation7 + $0x178] sm:$0xf]
        %v4192 = vld [vmem:[#allocation7 + $0x17c] sm:$0xf]
        %v4193 = vld [vmem:[#allocation7 + $0x180] sm:$0xf]
        %v4194 = vld [vmem:[#allocation7 + $0x184] sm:$0xf]
        %v4195 = vld [vmem:[#allocation7 + $0x188] sm:$0xf]
        %v4196 = vld [vmem:[#allocation7 + $0x18c] sm:$0xf]
        %v4197 = vld [vmem:[#allocation7 + $0x190] sm:$0xf]
        %v4198 = vld [vmem:[#allocation7 + $0x194] sm:$0xf]
        %v4199 = vld [vmem:[#allocation7 + $0x198] sm:$0xf]
        %v4200 = vld [vmem:[#allocation7 + $0x19c] sm:$0xf]
        %v4201 = vld [vmem:[#allocation7 + $0x1a0] sm:$0xf]
        %v4202 = vld [vmem:[#allocation7 + $0x1a4] sm:$0xf]
        %v4203 = vld [vmem:[#allocation7 + $0x1a8] sm:$0xf]
        %v4204 = vld [vmem:[#allocation7 + $0x1ac] sm:$0xf]
        %v4205 = vld [vmem:[#allocation7 + $0x1b0] sm:$0xf]
        %v4206 = vld [vmem:[#allocation7 + $0x1b4] sm:$0xf]
        %v4207 = vld [vmem:[#allocation7 + $0x1b8] sm:$0xf]
        %v4208 = vld [vmem:[#allocation7 + $0x1bc] sm:$0xf]
        %v4209 = vld [vmem:[#allocation7 + $0x1c0] sm:$0xf]
        %v4210 = vld [vmem:[#allocation7 + $0x1c4] sm:$0xf]
        %v4211 = vld [vmem:[#allocation7 + $0x1c8] sm:$0xf]
        %v4212 = vld [vmem:[#allocation7 + $0x1cc] sm:$0xf]
        %v4213 = vld [vmem:[#allocation7 + $0x1d0] sm:$0xf]
        %v4214 = vld [vmem:[#allocation7 + $0x1d4] sm:$0xf]
        %v4215 = vld [vmem:[#allocation7 + $0x1d8] sm:$0xf]
        %v4216 = vld [vmem:[#allocation7 + $0x1dc] sm:$0xf]
        %v4217 = vld [vmem:[#allocation7 + $0x1e0] sm:$0xf]
        %v4218 = vld [vmem:[#allocation7 + $0x1e4] sm:$0xf]
        %v4219 = vld [vmem:[#allocation7 + $0x1e8] sm:$0xf]
        %v4220 = vld [vmem:[#allocation7 + $0x1ec] sm:$0xf]
        %v4221 = vld [vmem:[#allocation7 + $0x1f0] sm:$0xf]
        %v4222 = vld [vmem:[#allocation7 + $0x1f4] sm:$0xf]
        %v4223 = vld [vmem:[#allocation7 + $0x1f8] sm:$0xf]
        %v4224 = vld [vmem:[#allocation7 + $0x1fc] sm:$0xf]
        %v4225 = vld [vmem:[#allocation7 + $0x200] sm:$0xf]
        %v4226 = vld [vmem:[#allocation7 + $0x204] sm:$0xf]
        %v4227 = vld [vmem:[#allocation7 + $0x208] sm:$0xf]
        %v4228 = vld [vmem:[#allocation7 + $0x20c] sm:$0xf]
        %v4229 = vld [vmem:[#allocation7 + $0x210] sm:$0xf]
        %v4230 = vld [vmem:[#allocation7 + $0x214] sm:$0xf]
        %v4231 = vld [vmem:[#allocation7 + $0x218] sm:$0xf]
        %v4232 = vld [vmem:[#allocation7 + $0x21c] sm:$0xf]
        %v4233 = vld [vmem:[#allocation7 + $0x220] sm:$0xf]
        %v4234 = vld [vmem:[#allocation7 + $0x224] sm:$0xf]
        %v4235 = vld [vmem:[#allocation7 + $0x228] sm:$0xf]
        %v4236 = vld [vmem:[#allocation7 + $0x22c] sm:$0xf]
        %v4237 = vld [vmem:[#allocation7 + $0x230] sm:$0xf]
        %v4238 = vld [vmem:[#allocation7 + $0x234] sm:$0xf]
        %v4239 = vld [vmem:[#allocation7 + $0x238] sm:$0xf]
        %v4240 = vld [vmem:[#allocation7 + $0x23c] sm:$0xf]
        %v4241 = vld [vmem:[%s4] sm:$0x1]
        %v4243 = vlaneseq
        %v4244 = vshrl.u32 %v4243, 7
        %v4245 = vsub.s32 0, %v4244
        %v4246 = vrot.slane %v4241, %v4245
        %v4392 = vunpack.c.l.b16 %v4097
        %v4393 = vunpack.c.l.b16 %v4098
        %v4394 = vunpack.c.l.b16 %v4099
        %v4395 = vunpack.c.l.b16 %v4100
        %v4396 = vunpack.c.l.b16 %v4101
        %v4397 = vunpack.c.l.b16 %v4102
        %v4398 = vunpack.c.l.b16 %v4103
        %v4399 = vunpack.c.l.b16 %v4104
        %v4400 = vunpack.c.l.b16 %v4105
        %v4401 = vunpack.c.l.b16 %v4106
        %v4402 = vunpack.c.l.b16 %v4107
        %v4403 = vunpack.c.l.b16 %v4108
        %v4404 = vunpack.c.l.b16 %v4109
        %v4405 = vunpack.c.l.b16 %v4110
        %v4406 = vunpack.c.l.b16 %v4111
        %v4407 = vunpack.c.l.b16 %v4112
        %v4408 = vunpack.c.l.b16 %v4113
        %v4409 = vunpack.c.l.b16 %v4114
        %v4410 = vunpack.c.l.b16 %v4115
        %v4411 = vunpack.c.l.b16 %v4116
        %v4412 = vunpack.c.l.b16 %v4117
        %v4413 = vunpack.c.l.b16 %v4118
        %v4414 = vunpack.c.l.b16 %v4119
        %v4415 = vunpack.c.l.b16 %v4120
        %v4416 = vunpack.c.l.b16 %v4121
        %v4417 = vunpack.c.l.b16 %v4122
        %v4418 = vunpack.c.l.b16 %v4123
        %v4419 = vunpack.c.l.b16 %v4124
        %v4420 = vunpack.c.l.b16 %v4125
        %v4421 = vunpack.c.l.b16 %v4126
        %v4422 = vunpack.c.l.b16 %v4127
        %v4423 = vunpack.c.l.b16 %v4128
        %v4424 = vunpack.c.l.b16 %v4129
        %v4425 = vunpack.c.l.b16 %v4130
        %v4426 = vunpack.c.l.b16 %v4131
        %v4427 = vunpack.c.l.b16 %v4132
        %v4428 = vunpack.c.l.b16 %v4133
        %v4429 = vunpack.c.l.b16 %v4134
        %v4430 = vunpack.c.l.b16 %v4135
        %v4431 = vunpack.c.l.b16 %v4136
        %v4432 = vunpack.c.l.b16 %v4137
        %v4433 = vunpack.c.l.b16 %v4138
        %v4434 = vunpack.c.l.b16 %v4139
        %v4435 = vunpack.c.l.b16 %v4140
        %v4436 = vunpack.c.l.b16 %v4141
        %v4437 = vunpack.c.l.b16 %v4142
        %v4438 = vunpack.c.l.b16 %v4143
        %v4439 = vunpack.c.l.b16 %v4144
        %v4440 = vunpack.c.l.b16 %v4145
        %v4441 = vunpack.c.l.b16 %v4146
        %v4442 = vunpack.c.l.b16 %v4147
        %v4443 = vunpack.c.l.b16 %v4148
        %v4444 = vunpack.c.l.b16 %v4149
        %v4445 = vunpack.c.l.b16 %v4150
        %v4446 = vunpack.c.l.b16 %v4151
        %v4447 = vunpack.c.l.b16 %v4152
        %v4448 = vunpack.c.l.b16 %v4153
        %v4449 = vunpack.c.l.b16 %v4154
        %v4450 = vunpack.c.l.b16 %v4155
        %v4451 = vunpack.c.l.b16 %v4156
        %v4452 = vunpack.c.l.b16 %v4157
        %v4453 = vunpack.c.l.b16 %v4158
        %v4454 = vunpack.c.l.b16 %v4159
        %v4455 = vunpack.c.l.b16 %v4160
        %v4456 = vunpack.c.l.b16 %v4161
        %v4457 = vunpack.c.l.b16 %v4162
        %v4458 = vunpack.c.l.b16 %v4163
        %v4459 = vunpack.c.l.b16 %v4164
        %v4460 = vunpack.c.l.b16 %v4165
        %v4461 = vunpack.c.l.b16 %v4166
        %v4462 = vunpack.c.l.b16 %v4167
        %v4463 = vunpack.c.l.b16 %v4168
        %v4464 = vunpack.c.l.b16 %v4169
        %v4465 = vunpack.c.l.b16 %v4170
        %v4466 = vunpack.c.l.b16 %v4171
        %v4467 = vunpack.c.l.b16 %v4172
        %v4468 = vunpack.c.l.b16 %v4173
        %v4469 = vunpack.c.l.b16 %v4174
        %v4470 = vunpack.c.l.b16 %v4175
        %v4471 = vunpack.c.l.b16 %v4176
        %v4472 = vunpack.c.l.b16 %v4177
        %v4473 = vunpack.c.l.b16 %v4178
        %v4474 = vunpack.c.l.b16 %v4179
        %v4475 = vunpack.c.l.b16 %v4180
        %v4476 = vunpack.c.l.b16 %v4181
        %v4477 = vunpack.c.l.b16 %v4182
        %v4478 = vunpack.c.l.b16 %v4183
        %v4479 = vunpack.c.l.b16 %v4184
        %v4480 = vunpack.c.l.b16 %v4185
        %v4481 = vunpack.c.l.b16 %v4186
        %v4482 = vunpack.c.l.b16 %v4187
        %v4483 = vunpack.c.l.b16 %v4188
        %v4484 = vunpack.c.l.b16 %v4189
        %v4485 = vunpack.c.l.b16 %v4190
        %v4486 = vunpack.c.l.b16 %v4191
        %v4487 = vunpack.c.l.b16 %v4192
        %v4488 = vunpack.c.l.b16 %v4193
        %v4489 = vunpack.c.l.b16 %v4194
        %v4490 = vunpack.c.l.b16 %v4195
        %v4491 = vunpack.c.l.b16 %v4196
        %v4492 = vunpack.c.l.b16 %v4197
        %v4493 = vunpack.c.l.b16 %v4198
        %v4494 = vunpack.c.l.b16 %v4199
        %v4495 = vunpack.c.l.b16 %v4200
        %v4496 = vunpack.c.l.b16 %v4201
        %v4497 = vunpack.c.l.b16 %v4202
        %v4498 = vunpack.c.l.b16 %v4203
        %v4499 = vunpack.c.l.b16 %v4204
        %v4500 = vunpack.c.l.b16 %v4205
        %v4501 = vunpack.c.l.b16 %v4206
        %v4502 = vunpack.c.l.b16 %v4207
        %v4503 = vunpack.c.l.b16 %v4208
        %v4504 = vunpack.c.l.b16 %v4209
        %v4505 = vunpack.c.l.b16 %v4210
        %v4506 = vunpack.c.l.b16 %v4211
        %v4507 = vunpack.c.l.b16 %v4212
        %v4508 = vunpack.c.l.b16 %v4213
        %v4509 = vunpack.c.l.b16 %v4214
        %v4510 = vunpack.c.l.b16 %v4215
        %v4511 = vunpack.c.l.b16 %v4216
        %v4512 = vunpack.c.l.b16 %v4217
        %v4513 = vunpack.c.l.b16 %v4218
        %v4514 = vunpack.c.l.b16 %v4219
        %v4515 = vunpack.c.l.b16 %v4220
        %v4516 = vunpack.c.l.b16 %v4221
        %v4517 = vunpack.c.l.b16 %v4222
        %v4518 = vunpack.c.l.b16 %v4223
        %v4519 = vunpack.c.l.b16 %v4224
        %v4520 = vunpack.c.l.b16 %v4225
        %v4521 = vunpack.c.l.b16 %v4226
        %v4522 = vunpack.c.l.b16 %v4227
        %v4523 = vunpack.c.l.b16 %v4228
        %v4524 = vunpack.c.l.b16 %v4229
        %v4525 = vunpack.c.l.b16 %v4230
        %v4526 = vunpack.c.l.b16 %v4231
        %v4527 = vunpack.c.l.b16 %v4232
        %v4528 = vunpack.c.l.b16 %v4233
        %v4529 = vunpack.c.l.b16 %v4234
        %v4530 = vunpack.c.l.b16 %v4235
        %v4531 = vunpack.c.l.b16 %v4236
        %v4532 = vunpack.c.l.b16 %v4237
        %v4533 = vunpack.c.l.b16 %v4238
        %v4534 = vunpack.c.l.b16 %v4239
        %v4535 = vunpack.c.l.b16 %v4240
        %v4536 = vpack.c.b16 %v4393, %v4392
        %v4537 = vpack.c.b16 %v4395, %v4394
        %v4538 = vpack.c.b16 %v4397, %v4396
        %v4539 = vpack.c.b16 %v4399, %v4398
        %v4540 = vpack.c.b16 %v4401, %v4400
        %v4541 = vpack.c.b16 %v4403, %v4402
        %v4542 = vpack.c.b16 %v4405, %v4404
        %v4543 = vpack.c.b16 %v4407, %v4406
        %v4544 = vpack.c.b16 %v4409, %v4408
        %v4545 = vpack.c.b16 %v4411, %v4410
        %v4546 = vpack.c.b16 %v4413, %v4412
        %v4547 = vpack.c.b16 %v4415, %v4414
        %v4548 = vpack.c.b16 %v4417, %v4416
        %v4549 = vpack.c.b16 %v4419, %v4418
        %v4550 = vpack.c.b16 %v4421, %v4420
        %v4551 = vpack.c.b16 %v4423, %v4422
        %v4552 = vpack.c.b16 %v4425, %v4424
        %v4553 = vpack.c.b16 %v4427, %v4426
        %v4554 = vpack.c.b16 %v4429, %v4428
        %v4555 = vpack.c.b16 %v4431, %v4430
        %v4556 = vpack.c.b16 %v4433, %v4432
        %v4557 = vpack.c.b16 %v4435, %v4434
        %v4558 = vpack.c.b16 %v4437, %v4436
        %v4559 = vpack.c.b16 %v4439, %v4438
        %v4560 = vpack.c.b16 %v4441, %v4440
        %v4561 = vpack.c.b16 %v4443, %v4442
        %v4562 = vpack.c.b16 %v4445, %v4444
        %v4563 = vpack.c.b16 %v4447, %v4446
        %v4564 = vpack.c.b16 %v4449, %v4448
        %v4565 = vpack.c.b16 %v4451, %v4450
        %v4566 = vpack.c.b16 %v4453, %v4452
        %v4567 = vpack.c.b16 %v4455, %v4454
        %v4568 = vpack.c.b16 %v4457, %v4456
        %v4569 = vpack.c.b16 %v4459, %v4458
        %v4570 = vpack.c.b16 %v4461, %v4460
        %v4571 = vpack.c.b16 %v4463, %v4462
        %v4572 = vpack.c.b16 %v4465, %v4464
        %v4573 = vpack.c.b16 %v4467, %v4466
        %v4574 = vpack.c.b16 %v4469, %v4468
        %v4575 = vpack.c.b16 %v4471, %v4470
        %v4576 = vpack.c.b16 %v4473, %v4472
        %v4577 = vpack.c.b16 %v4475, %v4474
        %v4578 = vpack.c.b16 %v4477, %v4476
        %v4579 = vpack.c.b16 %v4479, %v4478
        %v4580 = vpack.c.b16 %v4481, %v4480
        %v4581 = vpack.c.b16 %v4483, %v4482
        %v4582 = vpack.c.b16 %v4485, %v4484
        %v4583 = vpack.c.b16 %v4487, %v4486
        %v4584 = vpack.c.b16 %v4489, %v4488
        %v4585 = vpack.c.b16 %v4491, %v4490
        %v4586 = vpack.c.b16 %v4493, %v4492
        %v4587 = vpack.c.b16 %v4495, %v4494
        %v4588 = vpack.c.b16 %v4497, %v4496
        %v4589 = vpack.c.b16 %v4499, %v4498
        %v4590 = vpack.c.b16 %v4501, %v4500
        %v4591 = vpack.c.b16 %v4503, %v4502
        %v4592 = vpack.c.b16 %v4505, %v4504
        %v4593 = vpack.c.b16 %v4507, %v4506
        %v4594 = vpack.c.b16 %v4509, %v4508
        %v4595 = vpack.c.b16 %v4511, %v4510
        %v4596 = vpack.c.b16 %v4513, %v4512
        %v4597 = vpack.c.b16 %v4515, %v4514
        %v4598 = vpack.c.b16 %v4517, %v4516
        %v4599 = vpack.c.b16 %v4519, %v4518
        %v4600 = vpack.c.b16 %v4521, %v4520
        %v4601 = vpack.c.b16 %v4523, %v4522
        %v4602 = vpack.c.b16 %v4525, %v4524
        %v4603 = vpack.c.b16 %v4527, %v4526
        %v4604 = vpack.c.b16 %v4529, %v4528
        %v4605 = vpack.c.b16 %v4531, %v4530
        %v4606 = vpack.c.b16 %v4533, %v4532
        %v4607 = vpack.c.b16 %v4535, %v4534
        %4680 = vmatprep.subr.bf16.mxu0 0
        %4681 = vmatpush1.bf16.msra.mxu0 %v4536
        %4682 = vmatprep.subr.bf16.mxu0 0
        %4683 = vmatpush1.bf16.msra.mxu0 %v4537
        %4684 = vmatprep.subr.bf16.mxu0 0
        %4685 = vmatpush1.bf16.msra.mxu0 %v4538
        %4686 = vmatprep.subr.bf16.mxu0 0
        %4687 = vmatpush1.bf16.msra.mxu0 %v4539
        %4688 = vmatprep.subr.bf16.mxu0 0
        %4689 = vmatpush1.bf16.msra.mxu0 %v4540
        %4690 = vmatprep.subr.bf16.mxu0 0
        %4691 = vmatpush1.bf16.msra.mxu0 %v4541
        %4692 = vmatprep.subr.bf16.mxu0 0
        %4693 = vmatpush1.bf16.msra.mxu0 %v4542
        %4694 = vmatprep.subr.bf16.mxu0 0
        %4695 = vmatpush1.bf16.msra.mxu0 %v4543
        %4696 = vmatprep.subr.bf16.mxu0 0
        %4697 = vmatpush1.bf16.msra.mxu0 %v4544
        %4698 = vmatprep.subr.bf16.mxu0 0
        %4699 = vmatpush1.bf16.msra.mxu0 %v4545
        %4700 = vmatprep.subr.bf16.mxu0 0
        %4701 = vmatpush1.bf16.msra.mxu0 %v4546
        %4702 = vmatprep.subr.bf16.mxu0 0
        %4703 = vmatpush1.bf16.msra.mxu0 %v4547
        %4704 = vmatprep.subr.bf16.mxu0 0
        %4705 = vmatpush1.bf16.msra.mxu0 %v4548
        %4706 = vmatprep.subr.bf16.mxu0 0
        %4707 = vmatpush1.bf16.msra.mxu0 %v4549
        %4708 = vmatprep.subr.bf16.mxu0 0
        %4709 = vmatpush1.bf16.msra.mxu0 %v4550
        %4710 = vmatprep.subr.bf16.mxu0 0
        %4711 = vmatpush1.bf16.msra.mxu0 %v4551
        %4712 = vmatprep.mubr.bf16.mxu0 %v3954
        %4713 = vmatmul.mubr.bf16.gmra.mrb[0].mxu0 %v3953
        %v4714 = vpop.f32.mrb[0].mxu0
        %v4715 = vadd.f32 %v4246, %v4714
        %v4716 = vpop.f32.mrb[0].mxu0
        %v4717 = vpop.f32.mrb[0].mxu0
        %v4718 = vadd.f32 %v4246, %v4717
        %v4719 = vpop.f32.mrb[0].mxu0
        %4720 = vmatprep.mubr.bf16.mxu0 %v3963
        %4721 = vmatmul.mubr.bf16.gmra.mrb[0].mxu0 %v3962
        %v4722 = vpop.f32.mrb[0].mxu0
        %v4723 = vadd.f32 %v4246, %v4722
        %v4724 = vpop.f32.mrb[0].mxu0
        %v4725 = vpop.f32.mrb[0].mxu0
        %v4726 = vadd.f32 %v4246, %v4725
        %v4727 = vpop.f32.mrb[0].mxu0
        %4728 = vmatprep.mubr.bf16.mxu0 %v3972
        %4729 = vmatmul.mubr.bf16.gmra.mrb[0].mxu0 %v3971
        %v4730 = vpop.f32.mrb[0].mxu0
        %v4731 = vadd.f32 %v4246, %v4730
        %v4732 = vpop.f32.mrb[0].mxu0
        %v4733 = vpop.f32.mrb[0].mxu0
        %v4734 = vadd.f32 %v4246, %v4733
        %v4735 = vpop.f32.mrb[0].mxu0
        %4736 = vmatprep.mubr.bf16.mxu0 %v3981
        %4737 = vmatmul.mubr.bf16.gmra.mrb[0].mxu0 %v3980
        %v4738 = vpop.f32.mrb[0].mxu0
        %v4739 = vadd.f32 %v4246, %v4738
        %v4740 = vpop.f32.mrb[0].mxu0
        %v4741 = vpop.f32.mrb[0].mxu0
        %v4742 = vadd.f32 %v4246, %v4741
        %v4743 = vpop.f32.mrb[0].mxu0
        %4744 = vmatprep.mubr.bf16.mxu0 %v3990
        %4745 = vmatmul.mubr.bf16.gmra.mrb[0].mxu0 %v3989
        %v4746 = vpop.f32.mrb[0].mxu0
        %v4747 = vadd.f32 %v4246, %v4746
        %v4748 = vpop.f32.mrb[0].mxu0
        %v4749 = vpop.f32.mrb[0].mxu0
        %v4750 = vadd.f32 %v4246, %v4749
        %v4751 = vpop.f32.mrb[0].mxu0
        %4752 = vmatprep.mubr.bf16.mxu0 %v3999
        %4753 = vmatmul.mubr.bf16.gmra.mrb[0].mxu0 %v3998
        %v4754 = vpop.f32.mrb[0].mxu0
        %v4755 = vadd.f32 %v4246, %v4754
        %v4756 = vpop.f32.mrb[0].mxu0
        %v4757 = vpop.f32.mrb[0].mxu0
        %v4758 = vadd.f32 %v4246, %v4757
        %v4759 = vpop.f32.mrb[0].mxu0
        %4760 = vmatprep.mubr.bf16.mxu0 %v4008
        %4761 = vmatmul.mubr.bf16.gmra.mrb[0].mxu0 %v4007
        %v4762 = vpop.f32.mrb[0].mxu0
        %v4763 = vadd.f32 %v4246, %v4762
        %v4764 = vpop.f32.mrb[0].mxu0
        %v4765 = vpop.f32.mrb[0].mxu0
        %v4766 = vadd.f32 %v4246, %v4765
        %v4767 = vpop.f32.mrb[0].mxu0
        %4768 = vmatprep.mubr.bf16.mxu0 %v4017
        %4769 = vmatmul.mubr.bf16.gmra.mrb[0].mxu0 %v4016
        %v4770 = vpop.f32.mrb[0].mxu0
        %v4771 = vadd.f32 %v4246, %v4770
        %v4772 = vpop.f32.mrb[0].mxu0
        %v4773 = vpop.f32.mrb[0].mxu0
        %v4774 = vadd.f32 %v4246, %v4773
        %v4775 = vpop.f32.mrb[0].mxu0
        %4776 = vmatprep.mubr.bf16.mxu0 %v4026
        %4777 = vmatmul.mubr.bf16.gmra.mrb[0].mxu0 %v4025
        %v4778 = vpop.f32.mrb[0].mxu0
        %v4779 = vadd.f32 %v4246, %v4778
        %v4780 = vpop.f32.mrb[0].mxu0
        %v4781 = vpop.f32.mrb[0].mxu0
        %v4782 = vadd.f32 %v4246, %v4781
        %v4783 = vpop.f32.mrb[0].mxu0
        %4784 = vmatprep.mubr.bf16.mxu0 %v4035
        %4785 = vmatmul.mubr.bf16.gmra.mrb[0].mxu0 %v4034
        %v4786 = vpop.f32.mrb[0].mxu0
        %v4787 = vadd.f32 %v4246, %v4786
        %v4788 = vpop.f32.mrb[0].mxu0
        %v4789 = vpop.f32.mrb[0].mxu0
        %v4790 = vadd.f32 %v4246, %v4789
        %v4791 = vpop.f32.mrb[0].mxu0
        %4792 = vmatprep.mubr.bf16.mxu0 %v4044
        %4793 = vmatmul.mubr.bf16.gmra.mrb[0].mxu0 %v4043
        %v4794 = vpop.f32.mrb[0].mxu0
        %v4795 = vadd.f32 %v4246, %v4794
        %v4796 = vpop.f32.mrb[0].mxu0
        %v4797 = vpop.f32.mrb[0].mxu0
        %v4798 = vadd.f32 %v4246, %v4797
        %v4799 = vpop.f32.mrb[0].mxu0
        %4800 = vmatprep.mubr.bf16.mxu0 %v4053
        %4801 = vmatmul.mubr.bf16.gmra.mrb[0].mxu0 %v4052
        %v4802 = vpop.f32.mrb[0].mxu0
        %v4803 = vadd.f32 %v4246, %v4802
        %v4804 = vpop.f32.mrb[0].mxu0
        %v4805 = vpop.f32.mrb[0].mxu0
        %v4806 = vadd.f32 %v4246, %v4805
        %v4807 = vpop.f32.mrb[0].mxu0
        %4808 = vmatprep.mubr.bf16.mxu0 %v4062
        %4809 = vmatmul.mubr.bf16.gmra.mrb[0].mxu0 %v4061
        %v4810 = vpop.f32.mrb[0].mxu0
        %v4811 = vadd.f32 %v4246, %v4810
        %v4812 = vpop.f32.mrb[0].mxu0
        %v4813 = vpop.f32.mrb[0].mxu0
        %v4814 = vadd.f32 %v4246, %v4813
        %v4815 = vpop.f32.mrb[0].mxu0
        %4816 = vmatprep.mubr.bf16.mxu0 %v4071
        %4817 = vmatmul.mubr.bf16.gmra.mrb[0].mxu0 %v4070
        %v4818 = vpop.f32.mrb[0].mxu0
        %v4819 = vadd.f32 %v4246, %v4818
        %v4820 = vpop.f32.mrb[0].mxu0
        %v4821 = vpop.f32.mrb[0].mxu0
        %v4822 = vadd.f32 %v4246, %v4821
        %v4823 = vpop.f32.mrb[0].mxu0
        %4824 = vmatprep.mubr.bf16.mxu0 %v4080
        %4825 = vmatmul.mubr.bf16.gmra.mrb[0].mxu0 %v4079
        %v4826 = vpop.f32.mrb[0].mxu0
        %v4827 = vadd.f32 %v4246, %v4826
        %v4828 = vpop.f32.mrb[0].mxu0
        %v4829 = vpop.f32.mrb[0].mxu0
        %v4830 = vadd.f32 %v4246, %v4829
        %v4831 = vpop.f32.mrb[0].mxu0
        %4832 = vmatprep.mubr.bf16.mxu0 %v4089
        %4833 = vmatmul.mubr.bf16.gmra.mrb[0].mxu0 %v4088
        %v4834 = vpop.f32.mrb[0].mxu0
        %v4835 = vadd.f32 %v4246, %v4834
        %v4836 = vpop.f32.mrb[0].mxu0
        %v4837 = vpop.f32.mrb[0].mxu0
        %v4838 = vadd.f32 %v4246, %v4837
        %v4839 = vpop.f32.mrb[0].mxu0
        %4840 = vdwg.mxu0
        %4841 = vmatprep.subr.bf16.mxu0 0
        %4842 = vmatpush1.bf16.msra.mxu0 %v4552
        %4843 = vmatprep.subr.bf16.mxu0 0
        %4844 = vmatpush1.bf16.msra.mxu0 %v4553
        %4845 = vmatprep.subr.bf16.mxu0 0
        %4846 = vmatpush1.bf16.msra.mxu0 %v4554
        %4847 = vmatprep.subr.bf16.mxu0 0
        %4848 = vmatpush1.bf16.msra.mxu0 %v4555
        %4849 = vmatprep.subr.bf16.mxu0 0
        %4850 = vmatpush1.bf16.msra.mxu0 %v4556
        %4851 = vmatprep.subr.bf16.mxu0 0
        %4852 = vmatpush1.bf16.msra.mxu0 %v4557
        %4853 = vmatprep.subr.bf16.mxu0 0
        %4854 = vmatpush1.bf16.msra.mxu0 %v4558
        %4855 = vmatprep.subr.bf16.mxu0 0
        %4856 = vmatpush1.bf16.msra.mxu0 %v4559
        %4857 = vmatprep.subr.bf16.mxu0 0
        %4858 = vmatpush1.bf16.msra.mxu0 %v4560
        %4859 = vmatprep.subr.bf16.mxu0 0
        %4860 = vmatpush1.bf16.msra.mxu0 %v4561
        %4861 = vmatprep.subr.bf16.mxu0 0
        %4862 = vmatpush1.bf16.msra.mxu0 %v4562
        %4863 = vmatprep.subr.bf16.mxu0 0
        %4864 = vmatpush1.bf16.msra.mxu0 %v4563
        %4865 = vmatprep.subr.bf16.mxu0 0
        %4866 = vmatpush1.bf16.msra.mxu0 %v4564
        %4867 = vmatprep.subr.bf16.mxu0 0
        %4868 = vmatpush1.bf16.msra.mxu0 %v4565
        %4869 = vmatprep.subr.bf16.mxu0 0
        %4870 = vmatpush1.bf16.msra.mxu0 %v4566
        %4871 = vmatprep.subr.bf16.mxu0 0
        %4872 = vmatpush1.bf16.msra.mxu0 %v4567
        %4873 = vmatprep.mubr.bf16.mxu0 %v3956
        %4874 = vmatmul.mubr.bf16.gmra.mrb[0].mxu0 %v3955
        %v4875 = vpop.f32.mrb[0].mxu0
        %v4876 = vadd.f32 %v4715, %v4875
        %v4877 = vpop.f32.mrb[0].mxu0
        %v4878 = vpop.f32.mrb[0].mxu0
        %v4879 = vadd.f32 %v4718, %v4878
        %v4880 = vpop.f32.mrb[0].mxu0
        %4881 = vmatprep.mubr.bf16.mxu0 %v3965
        %4882 = vmatmul.mubr.bf16.gmra.mrb[0].mxu0 %v3964
        %v4883 = vpop.f32.mrb[0].mxu0
        %v4884 = vadd.f32 %v4723, %v4883
        %v4885 = vpop.f32.mrb[0].mxu0
        %v4886 = vpop.f32.mrb[0].mxu0
        %v4887 = vadd.f32 %v4726, %v4886
        %v4888 = vpop.f32.mrb[0].mxu0
        %4889 = vmatprep.mubr.bf16.mxu0 %v3974
        %4890 = vmatmul.mubr.bf16.gmra.mrb[0].mxu0 %v3973
        %v4891 = vpop.f32.mrb[0].mxu0
        %v4892 = vadd.f32 %v4731, %v4891
        %v4893 = vpop.f32.mrb[0].mxu0
        %v4894 = vpop.f32.mrb[0].mxu0
        %v4895 = vadd.f32 %v4734, %v4894
        %v4896 = vpop.f32.mrb[0].mxu0
        %4897 = vmatprep.mubr.bf16.mxu0 %v3983
        %4898 = vmatmul.mubr.bf16.gmra.mrb[0].mxu0 %v3982
        %v4899 = vpop.f32.mrb[0].mxu0
        %v4900 = vadd.f32 %v4739, %v4899
        %v4901 = vpop.f32.mrb[0].mxu0
        %v4902 = vpop.f32.mrb[0].mxu0
        %v4903 = vadd.f32 %v4742, %v4902
        %v4904 = vpop.f32.mrb[0].mxu0
        %4905 = vmatprep.mubr.bf16.mxu0 %v3992
        %4906 = vmatmul.mubr.bf16.gmra.mrb[0].mxu0 %v3991
        %v4907 = vpop.f32.mrb[0].mxu0
        %v4908 = vadd.f32 %v4747, %v4907
        %v4909 = vpop.f32.mrb[0].mxu0
        %v4910 = vpop.f32.mrb[0].mxu0
        %v4911 = vadd.f32 %v4750, %v4910
        %v4912 = vpop.f32.mrb[0].mxu0
        %4913 = vmatprep.mubr.bf16.mxu0 %v4001
        %4914 = vmatmul.mubr.bf16.gmra.mrb[0].mxu0 %v4000
        %v4915 = vpop.f32.mrb[0].mxu0
        %v4916 = vadd.f32 %v4755, %v4915
        %v4917 = vpop.f32.mrb[0].mxu0
        %v4918 = vpop.f32.mrb[0].mxu0
        %v4919 = vadd.f32 %v4758, %v4918
        %v4920 = vpop.f32.mrb[0].mxu0
        %4921 = vmatprep.mubr.bf16.mxu0 %v4010
        %4922 = vmatmul.mubr.bf16.gmra.mrb[0].mxu0 %v4009
        %v4923 = vpop.f32.mrb[0].mxu0
        %v4924 = vadd.f32 %v4763, %v4923
        %v4925 = vpop.f32.mrb[0].mxu0
        %v4926 = vpop.f32.mrb[0].mxu0
        %v4927 = vadd.f32 %v4766, %v4926
        %v4928 = vpop.f32.mrb[0].mxu0
        %4929 = vmatprep.mubr.bf16.mxu0 %v4019
        %4930 = vmatmul.mubr.bf16.gmra.mrb[0].mxu0 %v4018
        %v4931 = vpop.f32.mrb[0].mxu0
        %v4932 = vadd.f32 %v4771, %v4931
        %v4933 = vpop.f32.mrb[0].mxu0
        %v4934 = vpop.f32.mrb[0].mxu0
        %v4935 = vadd.f32 %v4774, %v4934
        %v4936 = vpop.f32.mrb[0].mxu0
        %4937 = vmatprep.mubr.bf16.mxu0 %v4028
        %4938 = vmatmul.mubr.bf16.gmra.mrb[0].mxu0 %v4027
        %v4939 = vpop.f32.mrb[0].mxu0
        %v4940 = vadd.f32 %v4779, %v4939
        %v4941 = vpop.f32.mrb[0].mxu0
        %v4942 = vpop.f32.mrb[0].mxu0
        %v4943 = vadd.f32 %v4782, %v4942
        %v4944 = vpop.f32.mrb[0].mxu0
        %4945 = vmatprep.mubr.bf16.mxu0 %v4037
        %4946 = vmatmul.mubr.bf16.gmra.mrb[0].mxu0 %v4036
        %v4947 = vpop.f32.mrb[0].mxu0
        %v4948 = vadd.f32 %v4787, %v4947
        %v4949 = vpop.f32.mrb[0].mxu0
        %v4950 = vpop.f32.mrb[0].mxu0
        %v4951 = vadd.f32 %v4790, %v4950
        %v4952 = vpop.f32.mrb[0].mxu0
        %4953 = vmatprep.mubr.bf16.mxu0 %v4046
        %4954 = vmatmul.mubr.bf16.gmra.mrb[0].mxu0 %v4045
        %v4955 = vpop.f32.mrb[0].mxu0
        %v4956 = vadd.f32 %v4795, %v4955
        %v4957 = vpop.f32.mrb[0].mxu0
        %v4958 = vpop.f32.mrb[0].mxu0
        %v4959 = vadd.f32 %v4798, %v4958
        %v4960 = vpop.f32.mrb[0].mxu0
        %4961 = vmatprep.mubr.bf16.mxu0 %v4055
        %4962 = vmatmul.mubr.bf16.gmra.mrb[0].mxu0 %v4054
        %v4963 = vpop.f32.mrb[0].mxu0
        %v4964 = vadd.f32 %v4803, %v4963
        %v4965 = vpop.f32.mrb[0].mxu0
        %v4966 = vpop.f32.mrb[0].mxu0
        %v4967 = vadd.f32 %v4806, %v4966
        %v4968 = vpop.f32.mrb[0].mxu0
        %4969 = vmatprep.mubr.bf16.mxu0 %v4064
        %4970 = vmatmul.mubr.bf16.gmra.mrb[0].mxu0 %v4063
        %v4971 = vpop.f32.mrb[0].mxu0
        %v4972 = vadd.f32 %v4811, %v4971
        %v4973 = vpop.f32.mrb[0].mxu0
        %v4974 = vpop.f32.mrb[0].mxu0
        %v4975 = vadd.f32 %v4814, %v4974
        %v4976 = vpop.f32.mrb[0].mxu0
        %4977 = vmatprep.mubr.bf16.mxu0 %v4073
        %4978 = vmatmul.mubr.bf16.gmra.mrb[0].mxu0 %v4072
        %v4979 = vpop.f32.mrb[0].mxu0
        %v4980 = vadd.f32 %v4819, %v4979
        %v4981 = vpop.f32.mrb[0].mxu0
        %v4982 = vpop.f32.mrb[0].mxu0
        %v4983 = vadd.f32 %v4822, %v4982
        %v4984 = vpop.f32.mrb[0].mxu0
        %4985 = vmatprep.mubr.bf16.mxu0 %v4082
        %4986 = vmatmul.mubr.bf16.gmra.mrb[0].mxu0 %v4081
        %v4987 = vpop.f32.mrb[0].mxu0
        %v4988 = vadd.f32 %v4827, %v4987
        %v4989 = vpop.f32.mrb[0].mxu0
        %v4990 = vpop.f32.mrb[0].mxu0
        %v4991 = vadd.f32 %v4830, %v4990
        %v4992 = vpop.f32.mrb[0].mxu0
        %4993 = vmatprep.mubr.bf16.mxu0 %v4091
        %4994 = vmatmul.mubr.bf16.gmra.mrb[0].mxu0 %v4090
        %v4995 = vpop.f32.mrb[0].mxu0
        %v4996 = vadd.f32 %v4835, %v4995
        %v4997 = vpop.f32.mrb[0].mxu0
        %v4998 = vpop.f32.mrb[0].mxu0
        %v4999 = vadd.f32 %v4838, %v4998
        %v5000 = vpop.f32.mrb[0].mxu0
        %5001 = vdwg.mxu0
        %5002 = vmatprep.subr.bf16.mxu0 0
        %5003 = vmatpush1.bf16.msra.mxu0 %v4568
        %5004 = vmatprep.subr.bf16.mxu0 0
        %5005 = vmatpush1.bf16.msra.mxu0 %v4569
        %5006 = vmatprep.subr.bf16.mxu0 0
        %5007 = vmatpush1.bf16.msra.mxu0 %v4570
        %5008 = vmatprep.subr.bf16.mxu0 0
        %5009 = vmatpush1.bf16.msra.mxu0 %v4571
        %5010 = vmatprep.subr.bf16.mxu0 0
        %5011 = vmatpush1.bf16.msra.mxu0 %v4572
        %5012 = vmatprep.subr.bf16.mxu0 0
        %5013 = vmatpush1.bf16.msra.mxu0 %v4573
        %5014 = vmatprep.subr.bf16.mxu0 0
        %5015 = vmatpush1.bf16.msra.mxu0 %v4574
        %5016 = vmatprep.subr.bf16.mxu0 0
        %5017 = vmatpush1.bf16.msra.mxu0 %v4575
        %5018 = vmatprep.subr.bf16.mxu0 0
        %5019 = vmatpush1.bf16.msra.mxu0 %v4576
        %5020 = vmatprep.subr.bf16.mxu0 0
        %5021 = vmatpush1.bf16.msra.mxu0 %v4577
        %5022 = vmatprep.subr.bf16.mxu0 0
        %5023 = vmatpush1.bf16.msra.mxu0 %v4578
        %5024 = vmatprep.subr.bf16.mxu0 0
        %5025 = vmatpush1.bf16.msra.mxu0 %v4579
        %5026 = vmatprep.subr.bf16.mxu0 0
        %5027 = vmatpush1.bf16.msra.mxu0 %v4580
        %5028 = vmatprep.subr.bf16.mxu0 0
        %5029 = vmatpush1.bf16.msra.mxu0 %v4581
        %5030 = vmatprep.subr.bf16.mxu0 0
        %5031 = vmatpush1.bf16.msra.mxu0 %v4582
        %5032 = vmatprep.subr.bf16.mxu0 0
        %5033 = vmatpush1.bf16.msra.mxu0 %v4583
        %5034 = vmatprep.mubr.bf16.mxu0 %v3958
        %5035 = vmatmul.mubr.bf16.gmra.mrb[0].mxu0 %v3957
        %v5036 = vpop.f32.mrb[0].mxu0
        %v5037 = vadd.f32 %v4876, %v5036
        %v5038 = vpop.f32.mrb[0].mxu0
        %v5039 = vpop.f32.mrb[0].mxu0
        %v5040 = vadd.f32 %v4879, %v5039
        %v5041 = vpop.f32.mrb[0].mxu0
        %5042 = vmatprep.mubr.bf16.mxu0 %v3967
        %5043 = vmatmul.mubr.bf16.gmra.mrb[0].mxu0 %v3966
        %v5044 = vpop.f32.mrb[0].mxu0
        %v5045 = vadd.f32 %v4884, %v5044
        %v5046 = vpop.f32.mrb[0].mxu0
        %v5047 = vpop.f32.mrb[0].mxu0
        %v5048 = vadd.f32 %v4887, %v5047
        %v5049 = vpop.f32.mrb[0].mxu0
        %5050 = vmatprep.mubr.bf16.mxu0 %v3976
        %5051 = vmatmul.mubr.bf16.gmra.mrb[0].mxu0 %v3975
        %v5052 = vpop.f32.mrb[0].mxu0
        %v5053 = vadd.f32 %v4892, %v5052
        %v5054 = vpop.f32.mrb[0].mxu0
        %v5055 = vpop.f32.mrb[0].mxu0
        %v5056 = vadd.f32 %v4895, %v5055
        %v5057 = vpop.f32.mrb[0].mxu0
        %5058 = vmatprep.mubr.bf16.mxu0 %v3985
        %5059 = vmatmul.mubr.bf16.gmra.mrb[0].mxu0 %v3984
        %v5060 = vpop.f32.mrb[0].mxu0
        %v5061 = vadd.f32 %v4900, %v5060
        %v5062 = vpop.f32.mrb[0].mxu0
        %v5063 = vpop.f32.mrb[0].mxu0
        %v5064 = vadd.f32 %v4903, %v5063
        %v5065 = vpop.f32.mrb[0].mxu0
        %5066 = vmatprep.mubr.bf16.mxu0 %v3994
        %5067 = vmatmul.mubr.bf16.gmra.mrb[0].mxu0 %v3993
        %v5068 = vpop.f32.mrb[0].mxu0
        %v5069 = vadd.f32 %v4908, %v5068
        %v5070 = vpop.f32.mrb[0].mxu0
        %v5071 = vpop.f32.mrb[0].mxu0
        %v5072 = vadd.f32 %v4911, %v5071
        %v5073 = vpop.f32.mrb[0].mxu0
        %5074 = vmatprep.mubr.bf16.mxu0 %v4003
        %5075 = vmatmul.mubr.bf16.gmra.mrb[0].mxu0 %v4002
        %v5076 = vpop.f32.mrb[0].mxu0
        %v5077 = vadd.f32 %v4916, %v5076
        %v5078 = vpop.f32.mrb[0].mxu0
        %v5079 = vpop.f32.mrb[0].mxu0
        %v5080 = vadd.f32 %v4919, %v5079
        %v5081 = vpop.f32.mrb[0].mxu0
        %5082 = vmatprep.mubr.bf16.mxu0 %v4012
        %5083 = vmatmul.mubr.bf16.gmra.mrb[0].mxu0 %v4011
        %v5084 = vpop.f32.mrb[0].mxu0
        %v5085 = vadd.f32 %v4924, %v5084
        %v5086 = vpop.f32.mrb[0].mxu0
        %v5087 = vpop.f32.mrb[0].mxu0
        %v5088 = vadd.f32 %v4927, %v5087
        %v5089 = vpop.f32.mrb[0].mxu0
        %5090 = vmatprep.mubr.bf16.mxu0 %v4021
        %5091 = vmatmul.mubr.bf16.gmra.mrb[0].mxu0 %v4020
        %v5092 = vpop.f32.mrb[0].mxu0
        %v5093 = vadd.f32 %v4932, %v5092
        %v5094 = vpop.f32.mrb[0].mxu0
        %v5095 = vpop.f32.mrb[0].mxu0
        %v5096 = vadd.f32 %v4935, %v5095
        %v5097 = vpop.f32.mrb[0].mxu0
        %5098 = vmatprep.mubr.bf16.mxu0 %v4030
        %5099 = vmatmul.mubr.bf16.gmra.mrb[0].mxu0 %v4029
        %v5100 = vpop.f32.mrb[0].mxu0
        %v5101 = vadd.f32 %v4940, %v5100
        %v5102 = vpop.f32.mrb[0].mxu0
        %v5103 = vpop.f32.mrb[0].mxu0
        %v5104 = vadd.f32 %v4943, %v5103
        %v5105 = vpop.f32.mrb[0].mxu0
        %5106 = vmatprep.mubr.bf16.mxu0 %v4039
        %5107 = vmatmul.mubr.bf16.gmra.mrb[0].mxu0 %v4038
        %v5108 = vpop.f32.mrb[0].mxu0
        %v5109 = vadd.f32 %v4948, %v5108
        %v5110 = vpop.f32.mrb[0].mxu0
        %v5111 = vpop.f32.mrb[0].mxu0
        %v5112 = vadd.f32 %v4951, %v5111
        %v5113 = vpop.f32.mrb[0].mxu0
        %5114 = vmatprep.mubr.bf16.mxu0 %v4048
        %5115 = vmatmul.mubr.bf16.gmra.mrb[0].mxu0 %v4047
        %v5116 = vpop.f32.mrb[0].mxu0
        %v5117 = vadd.f32 %v4956, %v5116
        %v5118 = vpop.f32.mrb[0].mxu0
        %v5119 = vpop.f32.mrb[0].mxu0
        %v5120 = vadd.f32 %v4959, %v5119
        %v5121 = vpop.f32.mrb[0].mxu0
        %5122 = vmatprep.mubr.bf16.mxu0 %v4057
        %5123 = vmatmul.mubr.bf16.gmra.mrb[0].mxu0 %v4056
        %v5124 = vpop.f32.mrb[0].mxu0
        %v5125 = vadd.f32 %v4964, %v5124
        %v5126 = vpop.f32.mrb[0].mxu0
        %v5127 = vpop.f32.mrb[0].mxu0
        %v5128 = vadd.f32 %v4967, %v5127
        %v5129 = vpop.f32.mrb[0].mxu0
        %5130 = vmatprep.mubr.bf16.mxu0 %v4066
        %5131 = vmatmul.mubr.bf16.gmra.mrb[0].mxu0 %v4065
        %v5132 = vpop.f32.mrb[0].mxu0
        %v5133 = vadd.f32 %v4972, %v5132
        %v5134 = vpop.f32.mrb[0].mxu0
        %v5135 = vpop.f32.mrb[0].mxu0
        %v5136 = vadd.f32 %v4975, %v5135
        %v5137 = vpop.f32.mrb[0].mxu0
        %5138 = vmatprep.mubr.bf16.mxu0 %v4075
        %5139 = vmatmul.mubr.bf16.gmra.mrb[0].mxu0 %v4074
        %v5140 = vpop.f32.mrb[0].mxu0
        %v5141 = vadd.f32 %v4980, %v5140
        %v5142 = vpop.f32.mrb[0].mxu0
        %v5143 = vpop.f32.mrb[0].mxu0
        %v5144 = vadd.f32 %v4983, %v5143
        %v5145 = vpop.f32.mrb[0].mxu0
        %5146 = vmatprep.mubr.bf16.mxu0 %v4084
        %5147 = vmatmul.mubr.bf16.gmra.mrb[0].mxu0 %v4083
        %v5148 = vpop.f32.mrb[0].mxu0
        %v5149 = vadd.f32 %v4988, %v5148
        %v5150 = vpop.f32.mrb[0].mxu0
        %v5151 = vpop.f32.mrb[0].mxu0
        %v5152 = vadd.f32 %v4991, %v5151
        %v5153 = vpop.f32.mrb[0].mxu0
        %5154 = vmatprep.mubr.bf16.mxu0 %v4093
        %5155 = vmatmul.mubr.bf16.gmra.mrb[0].mxu0 %v4092
        %v5156 = vpop.f32.mrb[0].mxu0
        %v5157 = vadd.f32 %v4996, %v5156
        %v5158 = vpop.f32.mrb[0].mxu0
        %v5159 = vpop.f32.mrb[0].mxu0
        %v5160 = vadd.f32 %v4999, %v5159
        %v5161 = vpop.f32.mrb[0].mxu0
        %5162 = vdwg.mxu0
        %5163 = vmatprep.subr.bf16.mxu0 0
        %5164 = vmatpush1.bf16.msra.mxu0 %v4584
        %5165 = vmatprep.subr.bf16.mxu0 0
        %5166 = vmatpush1.bf16.msra.mxu0 %v4585
        %5167 = vmatprep.subr.bf16.mxu0 0
        %5168 = vmatpush1.bf16.msra.mxu0 %v4586
        %5169 = vmatprep.subr.bf16.mxu0 0
        %5170 = vmatpush1.bf16.msra.mxu0 %v4587
        %5171 = vmatprep.subr.bf16.mxu0 0
        %5172 = vmatpush1.bf16.msra.mxu0 %v4588
        %5173 = vmatprep.subr.bf16.mxu0 0
        %5174 = vmatpush1.bf16.msra.mxu0 %v4589
        %5175 = vmatprep.subr.bf16.mxu0 0
        %5176 = vmatpush1.bf16.msra.mxu0 %v4590
        %5177 = vmatprep.subr.bf16.mxu0 0
        %5178 = vmatpush1.bf16.msra.mxu0 %v4591
        %5179 = vmatprep.subr.bf16.mxu0 0
        %5180 = vmatpush1.bf16.msra.mxu0 %v4592
        %5181 = vmatprep.subr.bf16.mxu0 0
        %5182 = vmatpush1.bf16.msra.mxu0 %v4593
        %5183 = vmatprep.subr.bf16.mxu0 0
        %5184 = vmatpush1.bf16.msra.mxu0 %v4594
        %5185 = vmatprep.subr.bf16.mxu0 0
        %5186 = vmatpush1.bf16.msra.mxu0 %v4595
        %5187 = vmatprep.subr.bf16.mxu0 0
        %5188 = vmatpush1.bf16.msra.mxu0 %v4596
        %5189 = vmatprep.subr.bf16.mxu0 0
        %5190 = vmatpush1.bf16.msra.mxu0 %v4597
        %5191 = vmatprep.subr.bf16.mxu0 0
        %5192 = vmatpush1.bf16.msra.mxu0 %v4598
        %5193 = vmatprep.subr.bf16.mxu0 0
        %5194 = vmatpush1.bf16.msra.mxu0 %v4599
        %5195 = vmatprep.mubr.bf16.mxu0 %v3960
        %5196 = vmatmul.mubr.bf16.gmra.mrb[0].mxu0 %v3959
        %v5197 = vpop.f32.mrb[0].mxu0
        %v5198 = vadd.f32 %v5037, %v5197
        %v5199 = vpop.f32.mrb[0].mxu0
        %v5200 = vpop.f32.mrb[0].mxu0
        %v5201 = vadd.f32 %v5040, %v5200
        %v5202 = vpop.f32.mrb[0].mxu0
        %5203 = vmatprep.mubr.bf16.mxu0 %v3969
        %5204 = vmatmul.mubr.bf16.gmra.mrb[0].mxu0 %v3968
        %v5205 = vpop.f32.mrb[0].mxu0
        %v5206 = vadd.f32 %v5045, %v5205
        %v5207 = vpop.f32.mrb[0].mxu0
        %v5208 = vpop.f32.mrb[0].mxu0
        %v5209 = vadd.f32 %v5048, %v5208
        %v5210 = vpop.f32.mrb[0].mxu0
        %5211 = vmatprep.mubr.bf16.mxu0 %v3978
        %5212 = vmatmul.mubr.bf16.gmra.mrb[0].mxu0 %v3977
        %v5213 = vpop.f32.mrb[0].mxu0
        %v5214 = vadd.f32 %v5053, %v5213
        %v5215 = vpop.f32.mrb[0].mxu0
        %v5216 = vpop.f32.mrb[0].mxu0
        %v5217 = vadd.f32 %v5056, %v5216
        %v5218 = vpop.f32.mrb[0].mxu0
        %5219 = vmatprep.mubr.bf16.mxu0 %v3987
        %5220 = vmatmul.mubr.bf16.gmra.mrb[0].mxu0 %v3986
        %v5221 = vpop.f32.mrb[0].mxu0
        %v5222 = vadd.f32 %v5061, %v5221
        %v5223 = vpop.f32.mrb[0].mxu0
        %v5224 = vpop.f32.mrb[0].mxu0
        %v5225 = vadd.f32 %v5064, %v5224
        %v5226 = vpop.f32.mrb[0].mxu0
        %5227 = vmatprep.mubr.bf16.mxu0 %v3996
        %5228 = vmatmul.mubr.bf16.gmra.mrb[0].mxu0 %v3995
        %v5229 = vpop.f32.mrb[0].mxu0
        %v5230 = vadd.f32 %v5069, %v5229
        %v5231 = vpop.f32.mrb[0].mxu0
        %v5232 = vpop.f32.mrb[0].mxu0
        %v5233 = vadd.f32 %v5072, %v5232
        %v5234 = vpop.f32.mrb[0].mxu0
        %5235 = vmatprep.mubr.bf16.mxu0 %v4005
        %5236 = vmatmul.mubr.bf16.gmra.mrb[0].mxu0 %v4004
        %v5237 = vpop.f32.mrb[0].mxu0
        %v5238 = vadd.f32 %v5077, %v5237
        %v5239 = vpop.f32.mrb[0].mxu0
        %v5240 = vpop.f32.mrb[0].mxu0
        %v5241 = vadd.f32 %v5080, %v5240
        %v5242 = vpop.f32.mrb[0].mxu0
        %5243 = vmatprep.mubr.bf16.mxu0 %v4014
        %5244 = vmatmul.mubr.bf16.gmra.mrb[0].mxu0 %v4013
        %v5245 = vpop.f32.mrb[0].mxu0
        %v5246 = vadd.f32 %v5085, %v5245
        %v5247 = vpop.f32.mrb[0].mxu0
        %v5248 = vpop.f32.mrb[0].mxu0
        %v5249 = vadd.f32 %v5088, %v5248
        %v5250 = vpop.f32.mrb[0].mxu0
        %5251 = vmatprep.mubr.bf16.mxu0 %v4023
        %5252 = vmatmul.mubr.bf16.gmra.mrb[0].mxu0 %v4022
        %v5253 = vpop.f32.mrb[0].mxu0
        %v5254 = vadd.f32 %v5093, %v5253
        %v5255 = vpop.f32.mrb[0].mxu0
        %v5256 = vpop.f32.mrb[0].mxu0
        %v5257 = vadd.f32 %v5096, %v5256
        %v5258 = vpop.f32.mrb[0].mxu0
        %5259 = vmatprep.mubr.bf16.mxu0 %v4032
        %5260 = vmatmul.mubr.bf16.gmra.mrb[0].mxu0 %v4031
        %v5261 = vpop.f32.mrb[0].mxu0
        %v5262 = vadd.f32 %v5101, %v5261
        %v5263 = vpop.f32.mrb[0].mxu0
        %v5264 = vpop.f32.mrb[0].mxu0
        %v5265 = vadd.f32 %v5104, %v5264
        %v5266 = vpop.f32.mrb[0].mxu0
        %5267 = vmatprep.mubr.bf16.mxu0 %v4041
        %5268 = vmatmul.mubr.bf16.gmra.mrb[0].mxu0 %v4040
        %v5269 = vpop.f32.mrb[0].mxu0
        %v5270 = vadd.f32 %v5109, %v5269
        %v5271 = vpop.f32.mrb[0].mxu0
        %v5272 = vpop.f32.mrb[0].mxu0
        %v5273 = vadd.f32 %v5112, %v5272
        %v5274 = vpop.f32.mrb[0].mxu0
        %5275 = vmatprep.mubr.bf16.mxu0 %v4050
        %5276 = vmatmul.mubr.bf16.gmra.mrb[0].mxu0 %v4049
        %v5277 = vpop.f32.mrb[0].mxu0
        %v5278 = vadd.f32 %v5117, %v5277
        %v5279 = vpop.f32.mrb[0].mxu0
        %v5280 = vpop.f32.mrb[0].mxu0
        %v5281 = vadd.f32 %v5120, %v5280
        %v5282 = vpop.f32.mrb[0].mxu0
        %5283 = vmatprep.mubr.bf16.mxu0 %v4059
        %5284 = vmatmul.mubr.bf16.gmra.mrb[0].mxu0 %v4058
        %v5285 = vpop.f32.mrb[0].mxu0
        %v5286 = vadd.f32 %v5125, %v5285
        %v5287 = vpop.f32.mrb[0].mxu0
        %v5288 = vpop.f32.mrb[0].mxu0
        %v5289 = vadd.f32 %v5128, %v5288
        %v5290 = vpop.f32.mrb[0].mxu0
        %5291 = vmatprep.mubr.bf16.mxu0 %v4068
        %5292 = vmatmul.mubr.bf16.gmra.mrb[0].mxu0 %v4067
        %v5293 = vpop.f32.mrb[0].mxu0
        %v5294 = vadd.f32 %v5133, %v5293
        %v5295 = vpop.f32.mrb[0].mxu0
        %v5296 = vpop.f32.mrb[0].mxu0
        %v5297 = vadd.f32 %v5136, %v5296
        %v5298 = vpop.f32.mrb[0].mxu0
        %5299 = vmatprep.mubr.bf16.mxu0 %v4077
        %5300 = vmatmul.mubr.bf16.gmra.mrb[0].mxu0 %v4076
        %v5301 = vpop.f32.mrb[0].mxu0
        %v5302 = vadd.f32 %v5141, %v5301
        %v5303 = vpop.f32.mrb[0].mxu0
        %v5304 = vpop.f32.mrb[0].mxu0
        %v5305 = vadd.f32 %v5144, %v5304
        %v5306 = vpop.f32.mrb[0].mxu0
        %5307 = vmatprep.mubr.bf16.mxu0 %v4086
        %5308 = vmatmul.mubr.bf16.gmra.mrb[0].mxu0 %v4085
        %v5309 = vpop.f32.mrb[0].mxu0
        %v5310 = vadd.f32 %v5149, %v5309
        %v5311 = vpop.f32.mrb[0].mxu0
        %v5312 = vpop.f32.mrb[0].mxu0
        %v5313 = vadd.f32 %v5152, %v5312
        %v5314 = vpop.f32.mrb[0].mxu0
        %5315 = vmatprep.mubr.bf16.mxu0 %v4095
        %5316 = vmatmul.mubr.bf16.gmra.mrb[0].mxu0 %v4094
        %v5317 = vpop.f32.mrb[0].mxu0
        %v5318 = vadd.f32 %v5157, %v5317
        %v5319 = vpop.f32.mrb[0].mxu0
        %v5320 = vpop.f32.mrb[0].mxu0
        %v5321 = vadd.f32 %v5160, %v5320
        %v5322 = vpop.f32.mrb[0].mxu0
        %5323 = vdwg.mxu0
        %5324 = vmatprep.subr.bf16.mxu0 0
        %5325 = vmatpush1.bf16.msra.mxu0 %v4600
        %5326 = vmatprep.subr.bf16.mxu0 0
        %5327 = vmatpush1.bf16.msra.mxu0 %v4601
        %5328 = vmatprep.subr.bf16.mxu0 0
        %5329 = vmatpush1.bf16.msra.mxu0 %v4602
        %5330 = vmatprep.subr.bf16.mxu0 0
        %5331 = vmatpush1.bf16.msra.mxu0 %v4603
        %5332 = vmatprep.subr.bf16.mxu0 0
        %5333 = vmatpush1.bf16.msra.mxu0 %v4604
        %5334 = vmatprep.subr.bf16.mxu0 0
        %5335 = vmatpush1.bf16.msra.mxu0 %v4605
        %5336 = vmatprep.subr.bf16.mxu0 0
        %5337 = vmatpush1.bf16.msra.mxu0 %v4606
        %5338 = vmatprep.subr.bf16.mxu0 0
        %5339 = vmatpush1.bf16.msra.mxu0 %v4607
        %5340 = vmatprep.subr.bf16.mxu0 0
        %5341 = vmatpush1.bf16.msra.mxu0 0
        %5342 = vmatprep.subr.bf16.mxu0 0
        %5343 = vmatpush1.bf16.msra.mxu0 0
        %5344 = vmatprep.subr.bf16.mxu0 0
        %5345 = vmatpush1.bf16.msra.mxu0 0
        %5346 = vmatprep.subr.bf16.mxu0 0
        %5347 = vmatpush1.bf16.msra.mxu0 0
        %5348 = vmatprep.subr.bf16.mxu0 0
        %5349 = vmatpush1.bf16.msra.mxu0 0
        %5350 = vmatprep.subr.bf16.mxu0 0
        %5351 = vmatpush1.bf16.msra.mxu0 0
        %5352 = vmatprep.subr.bf16.mxu0 0
        %5353 = vmatpush1.bf16.msra.mxu0 0
        %5354 = vmatprep.subr.bf16.mxu0 0
        %5355 = vmatpush1.bf16.msra.mxu0 0
        %5356 = vmatprep.mubr.bf16.mxu0 0
        %5357 = vmatmul.mubr.bf16.gmra.mrb[0].mxu0 %v3961
        %v5358 = vpop.f32.mrb[0].mxu0
        %v5359 = vadd.f32 %v5198, %v5358
        %v5360 = vpop.f32.mrb[0].mxu0
        %v5361 = vpop.f32.mrb[0].mxu0
        %v5362 = vadd.f32 %v5201, %v5361
        %v5363 = vpop.f32.mrb[0].mxu0
        %5364 = vmatprep.mubr.bf16.mxu0 0
        %5365 = vmatmul.mubr.bf16.gmra.mrb[0].mxu0 %v3970
        %v5366 = vpop.f32.mrb[0].mxu0
        %v5367 = vadd.f32 %v5206, %v5366
        %v5368 = vpop.f32.mrb[0].mxu0
        %v5369 = vpop.f32.mrb[0].mxu0
        %v5370 = vadd.f32 %v5209, %v5369
        %v5371 = vpop.f32.mrb[0].mxu0
        %5372 = vmatprep.mubr.bf16.mxu0 0
        %5373 = vmatmul.mubr.bf16.gmra.mrb[0].mxu0 %v3979
        %v5374 = vpop.f32.mrb[0].mxu0
        %v5375 = vadd.f32 %v5214, %v5374
        %v5376 = vpop.f32.mrb[0].mxu0
        %v5377 = vpop.f32.mrb[0].mxu0
        %v5378 = vadd.f32 %v5217, %v5377
        %v5379 = vpop.f32.mrb[0].mxu0
        %5380 = vmatprep.mubr.bf16.mxu0 0
        %5381 = vmatmul.mubr.bf16.gmra.mrb[0].mxu0 %v3988
        %v5382 = vpop.f32.mrb[0].mxu0
        %v5383 = vadd.f32 %v5222, %v5382
        %v5384 = vpop.f32.mrb[0].mxu0
        %v5385 = vpop.f32.mrb[0].mxu0
        %v5386 = vadd.f32 %v5225, %v5385
        %v5387 = vpop.f32.mrb[0].mxu0
        %5388 = vmatprep.mubr.bf16.mxu0 0
        %5389 = vmatmul.mubr.bf16.gmra.mrb[0].mxu0 %v3997
        %v5390 = vpop.f32.mrb[0].mxu0
        %v5391 = vadd.f32 %v5230, %v5390
        %v5392 = vpop.f32.mrb[0].mxu0
        %v5393 = vpop.f32.mrb[0].mxu0
        %v5394 = vadd.f32 %v5233, %v5393
        %v5395 = vpop.f32.mrb[0].mxu0
        %5396 = vmatprep.mubr.bf16.mxu0 0
        %5397 = vmatmul.mubr.bf16.gmra.mrb[0].mxu0 %v4006
        %v5398 = vpop.f32.mrb[0].mxu0
        %v5399 = vadd.f32 %v5238, %v5398
        %v5400 = vpop.f32.mrb[0].mxu0
        %v5401 = vpop.f32.mrb[0].mxu0
        %v5402 = vadd.f32 %v5241, %v5401
        %v5403 = vpop.f32.mrb[0].mxu0
        %5404 = vmatprep.mubr.bf16.mxu0 0
        %5405 = vmatmul.mubr.bf16.gmra.mrb[0].mxu0 %v4015
        %v5406 = vpop.f32.mrb[0].mxu0
        %v5407 = vadd.f32 %v5246, %v5406
        %v5408 = vpop.f32.mrb[0].mxu0
        %v5409 = vpop.f32.mrb[0].mxu0
        %v5410 = vadd.f32 %v5249, %v5409
        %v5411 = vpop.f32.mrb[0].mxu0
        %5412 = vmatprep.mubr.bf16.mxu0 0
        %5413 = vmatmul.mubr.bf16.gmra.mrb[0].mxu0 %v4024
        %v5414 = vpop.f32.mrb[0].mxu0
        %v5415 = vadd.f32 %v5254, %v5414
        %v5416 = vpop.f32.mrb[0].mxu0
        %v5417 = vpop.f32.mrb[0].mxu0
        %v5418 = vadd.f32 %v5257, %v5417
        %v5419 = vpop.f32.mrb[0].mxu0
        %5420 = vmatprep.mubr.bf16.mxu0 0
        %5421 = vmatmul.mubr.bf16.gmra.mrb[0].mxu0 %v4033
        %v5422 = vpop.f32.mrb[0].mxu0
        %v5423 = vadd.f32 %v5262, %v5422
        %v5424 = vpop.f32.mrb[0].mxu0
        %v5425 = vpop.f32.mrb[0].mxu0
        %v5426 = vadd.f32 %v5265, %v5425
        %v5427 = vpop.f32.mrb[0].mxu0
        %5428 = vmatprep.mubr.bf16.mxu0 0
        %5429 = vmatmul.mubr.bf16.gmra.mrb[0].mxu0 %v4042
        %v5430 = vpop.f32.mrb[0].mxu0
        %v5431 = vadd.f32 %v5270, %v5430
        %v5432 = vpop.f32.mrb[0].mxu0
        %v5433 = vpop.f32.mrb[0].mxu0
        %v5434 = vadd.f32 %v5273, %v5433
        %v5435 = vpop.f32.mrb[0].mxu0
        %5436 = vmatprep.mubr.bf16.mxu0 0
        %5437 = vmatmul.mubr.bf16.gmra.mrb[0].mxu0 %v4051
        %v5438 = vpop.f32.mrb[0].mxu0
        %v5439 = vadd.f32 %v5278, %v5438
        %v5440 = vpop.f32.mrb[0].mxu0
        %v5441 = vpop.f32.mrb[0].mxu0
        %v5442 = vadd.f32 %v5281, %v5441
        %v5443 = vpop.f32.mrb[0].mxu0
        %5444 = vmatprep.mubr.bf16.mxu0 0
        %5445 = vmatmul.mubr.bf16.gmra.mrb[0].mxu0 %v4060
        %v5446 = vpop.f32.mrb[0].mxu0
        %v5447 = vadd.f32 %v5286, %v5446
        %v5448 = vpop.f32.mrb[0].mxu0
        %v5449 = vpop.f32.mrb[0].mxu0
        %v5450 = vadd.f32 %v5289, %v5449
        %v5451 = vpop.f32.mrb[0].mxu0
        %5452 = vmatprep.mubr.bf16.mxu0 0
        %5453 = vmatmul.mubr.bf16.gmra.mrb[0].mxu0 %v4069
        %v5454 = vpop.f32.mrb[0].mxu0
        %v5455 = vadd.f32 %v5294, %v5454
        %v5456 = vpop.f32.mrb[0].mxu0
        %v5457 = vpop.f32.mrb[0].mxu0
        %v5458 = vadd.f32 %v5297, %v5457
        %v5459 = vpop.f32.mrb[0].mxu0
        %5460 = vmatprep.mubr.bf16.mxu0 0
        %5461 = vmatmul.mubr.bf16.gmra.mrb[0].mxu0 %v4078
        %v5462 = vpop.f32.mrb[0].mxu0
        %v5463 = vadd.f32 %v5302, %v5462
        %v5464 = vpop.f32.mrb[0].mxu0
        %v5465 = vpop.f32.mrb[0].mxu0
        %v5466 = vadd.f32 %v5305, %v5465
        %v5467 = vpop.f32.mrb[0].mxu0
        %5468 = vmatprep.mubr.bf16.mxu0 0
        %5469 = vmatmul.mubr.bf16.gmra.mrb[0].mxu0 %v4087
        %v5470 = vpop.f32.mrb[0].mxu0
        %v5471 = vadd.f32 %v5310, %v5470
        %v5472 = vpop.f32.mrb[0].mxu0
        %v5473 = vpop.f32.mrb[0].mxu0
        %v5474 = vadd.f32 %v5313, %v5473
        %v5475 = vpop.f32.mrb[0].mxu0
        %5476 = vmatprep.mubr.bf16.mxu0 0
        %5477 = vmatmul.mubr.bf16.gmra.mrb[0].mxu0 %v4096
        %v5478 = vpop.f32.mrb[0].mxu0
        %v5479 = vadd.f32 %v5318, %v5478
        %v5480 = vpop.f32.mrb[0].mxu0
        %v5481 = vpop.f32.mrb[0].mxu0
        %v5482 = vadd.f32 %v5321, %v5481
        %v5483 = vpop.f32.mrb[0].mxu0
        %5484 = vdwg.mxu0
        %v5485 = vld [vmem:[%s5] sm:$0x1]
        %v5487 = vlaneseq
        %v5488 = vshrl.u32 %v5487, 7
        %v5489 = vsub.s32 0, %v5488
        %v5490 = vrot.slane %v5485, %v5489
        %v5492 = vmul.f32 %v5359, %v5490
        %v5493 = vmul.f32 %v5362, %v5490
        %v5494 = vmul.f32 %v5367, %v5490
        %v5495 = vmul.f32 %v5370, %v5490
        %v5496 = vmul.f32 %v5375, %v5490
        %v5497 = vmul.f32 %v5378, %v5490
        %v5498 = vmul.f32 %v5383, %v5490
        %v5499 = vmul.f32 %v5386, %v5490
        %v5500 = vmul.f32 %v5391, %v5490
        %v5501 = vmul.f32 %v5394, %v5490
        %v5502 = vmul.f32 %v5399, %v5490
        %v5503 = vmul.f32 %v5402, %v5490
        %v5504 = vmul.f32 %v5407, %v5490
        %v5505 = vmul.f32 %v5410, %v5490
        %v5506 = vmul.f32 %v5415, %v5490
        %v5507 = vmul.f32 %v5418, %v5490
        %v5508 = vmul.f32 %v5423, %v5490
        %v5509 = vmul.f32 %v5426, %v5490
        %v5510 = vmul.f32 %v5431, %v5490
        %v5511 = vmul.f32 %v5434, %v5490
        %v5512 = vmul.f32 %v5439, %v5490
        %v5513 = vmul.f32 %v5442, %v5490
        %v5514 = vmul.f32 %v5447, %v5490
        %v5515 = vmul.f32 %v5450, %v5490
        %v5516 = vmul.f32 %v5455, %v5490
        %v5517 = vmul.f32 %v5458, %v5490
        %v5518 = vmul.f32 %v5463, %v5490
        %v5519 = vmul.f32 %v5466, %v5490
        %v5520 = vmul.f32 %v5471, %v5490
        %v5521 = vmul.f32 %v5474, %v5490
        %v5522 = vmul.f32 %v5479, %v5490
        %v5523 = vmul.f32 %v5482, %v5490
        %v5524 = vld [vmem:[%s6] sm:$0x1]
        %v5526 = vlaneseq
        %v5527 = vshrl.u32 %v5526, 7
        %v5528 = vsub.s32 0, %v5527
        %v5529 = vrot.slane %v5524, %v5528
        %v5531 = vadd.f32 %v5492, %v5529
        %v5532 = vadd.f32 %v5493, %v5529
        %v5533 = vadd.f32 %v5494, %v5529
        %v5534 = vadd.f32 %v5495, %v5529
        %v5535 = vadd.f32 %v5496, %v5529
        %v5536 = vadd.f32 %v5497, %v5529
        %v5537 = vadd.f32 %v5498, %v5529
        %v5538 = vadd.f32 %v5499, %v5529
        %v5539 = vadd.f32 %v5500, %v5529
        %v5540 = vadd.f32 %v5501, %v5529
        %v5541 = vadd.f32 %v5502, %v5529
        %v5542 = vadd.f32 %v5503, %v5529
        %v5543 = vadd.f32 %v5504, %v5529
        %v5544 = vadd.f32 %v5505, %v5529
        %v5545 = vadd.f32 %v5506, %v5529
        %v5546 = vadd.f32 %v5507, %v5529
        %v5547 = vadd.f32 %v5508, %v5529
        %v5548 = vadd.f32 %v5509, %v5529
        %v5549 = vadd.f32 %v5510, %v5529
        %v5550 = vadd.f32 %v5511, %v5529
        %v5551 = vadd.f32 %v5512, %v5529
        %v5552 = vadd.f32 %v5513, %v5529
        %v5553 = vadd.f32 %v5514, %v5529
        %v5554 = vadd.f32 %v5515, %v5529
        %v5555 = vadd.f32 %v5516, %v5529
        %v5556 = vadd.f32 %v5517, %v5529
        %v5557 = vadd.f32 %v5518, %v5529
        %v5558 = vadd.f32 %v5519, %v5529
        %v5559 = vadd.f32 %v5520, %v5529
        %v5560 = vadd.f32 %v5521, %v5529
        %v5561 = vadd.f32 %v5522, %v5529
        %v5562 = vadd.f32 %v5523, %v5529
        %v5563 = vmax.f32 %v5531, 0.0
        %v5564 = vmax.f32 %v5532, 0.0
        %v5565 = vmax.f32 %v5533, 0.0
        %v5566 = vmax.f32 %v5534, 0.0
        %v5567 = vmax.f32 %v5535, 0.0
        %v5568 = vmax.f32 %v5536, 0.0
        %v5569 = vmax.f32 %v5537, 0.0
        %v5570 = vmax.f32 %v5538, 0.0
        %v5571 = vmax.f32 %v5539, 0.0
        %v5572 = vmax.f32 %v5540, 0.0
        %v5573 = vmax.f32 %v5541, 0.0
        %v5574 = vmax.f32 %v5542, 0.0
        %v5575 = vmax.f32 %v5543, 0.0
        %v5576 = vmax.f32 %v5544, 0.0
        %v5577 = vmax.f32 %v5545, 0.0
        %v5578 = vmax.f32 %v5546, 0.0
        %v5579 = vmax.f32 %v5547, 0.0
        %v5580 = vmax.f32 %v5548, 0.0
        %v5581 = vmax.f32 %v5549, 0.0
        %v5582 = vmax.f32 %v5550, 0.0
        %v5583 = vmax.f32 %v5551, 0.0
        %v5584 = vmax.f32 %v5552, 0.0
        %v5585 = vmax.f32 %v5553, 0.0
        %v5586 = vmax.f32 %v5554, 0.0
        %v5587 = vmax.f32 %v5555, 0.0
        %v5588 = vmax.f32 %v5556, 0.0
        %v5589 = vmax.f32 %v5557, 0.0
        %v5590 = vmax.f32 %v5558, 0.0
        %v5591 = vmax.f32 %v5559, 0.0
        %v5592 = vmax.f32 %v5560, 0.0
        %v5593 = vmax.f32 %v5561, 0.0
        %v5594 = vmax.f32 %v5562, 0.0
        %v5595 = vpack.c.bf16 %v5564, %v5563
        %v5596 = vpack.c.bf16 %v5566, %v5565
        %v5597 = vpack.c.bf16 %v5568, %v5567
        %v5598 = vpack.c.bf16 %v5570, %v5569
        %v5599 = vpack.c.bf16 %v5572, %v5571
        %v5600 = vpack.c.bf16 %v5574, %v5573
        %v5601 = vpack.c.bf16 %v5576, %v5575
        %v5602 = vpack.c.bf16 %v5578, %v5577
        %v5603 = vpack.c.bf16 %v5580, %v5579
        %v5604 = vpack.c.bf16 %v5582, %v5581
        %v5605 = vpack.c.bf16 %v5584, %v5583
        %v5606 = vpack.c.bf16 %v5586, %v5585
        %v5607 = vpack.c.bf16 %v5588, %v5587
        %v5608 = vpack.c.bf16 %v5590, %v5589
        %v5609 = vpack.c.bf16 %v5592, %v5591
        %v5610 = vpack.c.bf16 %v5594, %v5593
        %v5627 = vunpack.c.l.b16 %v5595
        %v5628 = vunpack.c.h.b16 %v5595
        %v5629 = vunpack.c.l.b16 %v5596
        %v5630 = vunpack.c.h.b16 %v5596
        %v5631 = vunpack.c.l.b16 %v5597
        %v5632 = vunpack.c.h.b16 %v5597
        %v5633 = vunpack.c.l.b16 %v5598
        %v5634 = vunpack.c.h.b16 %v5598
        %v5635 = vunpack.c.l.b16 %v5599
        %v5636 = vunpack.c.h.b16 %v5599
        %v5637 = vunpack.c.l.b16 %v5600
        %v5638 = vunpack.c.h.b16 %v5600
        %v5639 = vunpack.c.l.b16 %v5601
        %v5640 = vunpack.c.h.b16 %v5601
        %v5641 = vunpack.c.l.b16 %v5602
        %v5642 = vunpack.c.h.b16 %v5602
        %v5643 = vunpack.c.l.b16 %v5603
        %v5644 = vunpack.c.h.b16 %v5603
        %v5645 = vunpack.c.l.b16 %v5604
        %v5646 = vunpack.c.h.b16 %v5604
        %v5647 = vunpack.c.l.b16 %v5605
        %v5648 = vunpack.c.h.b16 %v5605
        %v5649 = vunpack.c.l.b16 %v5606
        %v5650 = vunpack.c.h.b16 %v5606
        %v5651 = vunpack.c.l.b16 %v5607
        %v5652 = vunpack.c.h.b16 %v5607
        %v5653 = vunpack.c.l.b16 %v5608
        %v5654 = vunpack.c.h.b16 %v5608
        %v5655 = vunpack.c.l.b16 %v5609
        %v5656 = vunpack.c.h.b16 %v5609
        %v5657 = vunpack.c.l.b16 %v5610
        %v5658 = vunpack.c.h.b16 %v5610
        %v5659 = vpack.c.b16 %v5627, %v5627
        %v5660 = vpack.c.b16 %v5628, %v5628
        %v5661 = vpack.c.b16 %v5629, %v5629
        %v5662 = vpack.c.b16 %v5630, %v5630
        %v5663 = vpack.c.b16 %v5631, %v5631
        %v5664 = vpack.c.b16 %v5632, %v5632
        %v5665 = vpack.c.b16 %v5633, %v5633
        %v5666 = vpack.c.b16 %v5634, %v5634
        %v5667 = vpack.c.b16 %v5635, %v5635
        %v5668 = vpack.c.b16 %v5636, %v5636
        %v5669 = vpack.c.b16 %v5637, %v5637
        %v5670 = vpack.c.b16 %v5638, %v5638
        %v5671 = vpack.c.b16 %v5639, %v5639
        %v5672 = vpack.c.b16 %v5640, %v5640
        %v5673 = vpack.c.b16 %v5641, %v5641
        %v5674 = vpack.c.b16 %v5642, %v5642
        %v5675 = vpack.c.b16 %v5643, %v5643
        %v5676 = vpack.c.b16 %v5644, %v5644
        %v5677 = vpack.c.b16 %v5645, %v5645
        %v5678 = vpack.c.b16 %v5646, %v5646
        %v5679 = vpack.c.b16 %v5647, %v5647
        %v5680 = vpack.c.b16 %v5648, %v5648
        %v5681 = vpack.c.b16 %v5649, %v5649
        %v5682 = vpack.c.b16 %v5650, %v5650
        %v5683 = vpack.c.b16 %v5651, %v5651
        %v5684 = vpack.c.b16 %v5652, %v5652
        %v5685 = vpack.c.b16 %v5653, %v5653
        %v5686 = vpack.c.b16 %v5654, %v5654
        %v5687 = vpack.c.b16 %v5655, %v5655
        %v5688 = vpack.c.b16 %v5656, %v5656
        %v5689 = vpack.c.b16 %v5657, %v5657
        %v5690 = vpack.c.b16 %v5658, %v5658
        %v5692 = vshrl.u32 %v5659, 16
        %v5694 = vrot.slane %v5692, 7
        %v5695 = vshll.u32 %v5659, 16
        %v5697 = vor.u32 %v5694, %v5695
        %v5698 = vrot.slane %v5694, 4
        %v5700 = vshrl.u32 %v5660, 16
        %v5702 = vrot.slane %v5700, 7
        %v5703 = vshll.u32 %v5660, 16
        %v5705 = vor.u32 %v5702, %v5703
        %v5706 = vsel %vm675, %v5698, %v5705
        %v5707 = vrot.slane %v5702, 4
        %v5709 = vshrl.u32 %v5661, 16
        %v5711 = vrot.slane %v5709, 7
        %v5712 = vshll.u32 %v5661, 16
        %v5714 = vor.u32 %v5711, %v5712
        %v5715 = vrot.slane %v5711, 4
        %v5717 = vshrl.u32 %v5662, 16
        %v5719 = vrot.slane %v5717, 7
        %v5720 = vshll.u32 %v5662, 16
        %v5722 = vor.u32 %v5719, %v5720
        %v5723 = vsel %vm675, %v5715, %v5722
        %v5724 = vrot.slane %v5719, 4
        %v5726 = vshrl.u32 %v5663, 16
        %v5728 = vrot.slane %v5726, 7
        %v5729 = vshll.u32 %v5663, 16
        %v5731 = vor.u32 %v5728, %v5729
        %v5732 = vrot.slane %v5728, 4
        %v5734 = vshrl.u32 %v5664, 16
        %v5736 = vrot.slane %v5734, 7
        %v5737 = vshll.u32 %v5664, 16
        %v5739 = vor.u32 %v5736, %v5737
        %v5740 = vsel %vm675, %v5732, %v5739
        %v5741 = vrot.slane %v5736, 4
        %v5743 = vshrl.u32 %v5665, 16
        %v5745 = vrot.slane %v5743, 7
        %v5746 = vshll.u32 %v5665, 16
        %v5748 = vor.u32 %v5745, %v5746
        %v5749 = vrot.slane %v5745, 4
        %v5751 = vshrl.u32 %v5666, 16
        %v5753 = vrot.slane %v5751, 7
        %v5754 = vshll.u32 %v5666, 16
        %v5756 = vor.u32 %v5753, %v5754
        %v5757 = vsel %vm675, %v5749, %v5756
        %v5758 = vrot.slane %v5753, 4
        %v5760 = vshrl.u32 %v5667, 16
        %v5762 = vrot.slane %v5760, 7
        %v5763 = vshll.u32 %v5667, 16
        %v5765 = vor.u32 %v5762, %v5763
        %v5766 = vrot.slane %v5762, 4
        %v5768 = vshrl.u32 %v5668, 16
        %v5770 = vrot.slane %v5768, 7
        %v5771 = vshll.u32 %v5668, 16
        %v5773 = vor.u32 %v5770, %v5771
        %v5774 = vsel %vm675, %v5766, %v5773
        %v5775 = vrot.slane %v5770, 4
        %v5777 = vshrl.u32 %v5669, 16
        %v5779 = vrot.slane %v5777, 7
        %v5780 = vshll.u32 %v5669, 16
        %v5782 = vor.u32 %v5779, %v5780
        %v5783 = vrot.slane %v5779, 4
        %v5785 = vshrl.u32 %v5670, 16
        %v5787 = vrot.slane %v5785, 7
        %v5788 = vshll.u32 %v5670, 16
        %v5790 = vor.u32 %v5787, %v5788
        %v5791 = vsel %vm675, %v5783, %v5790
        %v5792 = vrot.slane %v5787, 4
        %v5794 = vshrl.u32 %v5671, 16
        %v5796 = vrot.slane %v5794, 7
        %v5797 = vshll.u32 %v5671, 16
        %v5799 = vor.u32 %v5796, %v5797
        %v5800 = vrot.slane %v5796, 4
        %v5802 = vshrl.u32 %v5672, 16
        %v5804 = vrot.slane %v5802, 7
        %v5805 = vshll.u32 %v5672, 16
        %v5807 = vor.u32 %v5804, %v5805
        %v5808 = vsel %vm675, %v5800, %v5807
        %v5809 = vrot.slane %v5804, 4
        %v5811 = vshrl.u32 %v5673, 16
        %v5813 = vrot.slane %v5811, 7
        %v5814 = vshll.u32 %v5673, 16
        %v5816 = vor.u32 %v5813, %v5814
        %v5817 = vrot.slane %v5813, 4
        %v5819 = vshrl.u32 %v5674, 16
        %v5821 = vrot.slane %v5819, 7
        %v5822 = vshll.u32 %v5674, 16
        %v5824 = vor.u32 %v5821, %v5822
        %v5825 = vsel %vm675, %v5817, %v5824
        %v5826 = vrot.slane %v5821, 4
        %v5828 = vshrl.u32 %v5675, 16
        %v5830 = vrot.slane %v5828, 7
        %v5831 = vshll.u32 %v5675, 16
        %v5833 = vor.u32 %v5830, %v5831
        %v5834 = vrot.slane %v5830, 4
        %v5836 = vshrl.u32 %v5676, 16
        %v5838 = vrot.slane %v5836, 7
        %v5839 = vshll.u32 %v5676, 16
        %v5841 = vor.u32 %v5838, %v5839
        %v5842 = vsel %vm675, %v5834, %v5841
        %v5843 = vrot.slane %v5838, 4
        %v5845 = vshrl.u32 %v5677, 16
        %v5847 = vrot.slane %v5845, 7
        %v5848 = vshll.u32 %v5677, 16
        %v5850 = vor.u32 %v5847, %v5848
        %v5851 = vrot.slane %v5847, 4
        %v5853 = vshrl.u32 %v5678, 16
        %v5855 = vrot.slane %v5853, 7
        %v5856 = vshll.u32 %v5678, 16
        %v5858 = vor.u32 %v5855, %v5856
        %v5859 = vsel %vm675, %v5851, %v5858
        %v5860 = vrot.slane %v5855, 4
        %v5862 = vshrl.u32 %v5679, 16
        %v5864 = vrot.slane %v5862, 7
        %v5865 = vshll.u32 %v5679, 16
        %v5867 = vor.u32 %v5864, %v5865
        %v5868 = vrot.slane %v5864, 4
        %v5870 = vshrl.u32 %v5680, 16
        %v5872 = vrot.slane %v5870, 7
        %v5873 = vshll.u32 %v5680, 16
        %v5875 = vor.u32 %v5872, %v5873
        %v5876 = vsel %vm675, %v5868, %v5875
        %v5877 = vrot.slane %v5872, 4
        %v5879 = vshrl.u32 %v5681, 16
        %v5881 = vrot.slane %v5879, 7
        %v5882 = vshll.u32 %v5681, 16
        %v5884 = vor.u32 %v5881, %v5882
        %v5885 = vrot.slane %v5881, 4
        %v5887 = vshrl.u32 %v5682, 16
        %v5889 = vrot.slane %v5887, 7
        %v5890 = vshll.u32 %v5682, 16
        %v5892 = vor.u32 %v5889, %v5890
        %v5893 = vsel %vm675, %v5885, %v5892
        %v5894 = vrot.slane %v5889, 4
        %v5896 = vshrl.u32 %v5683, 16
        %v5898 = vrot.slane %v5896, 7
        %v5899 = vshll.u32 %v5683, 16
        %v5901 = vor.u32 %v5898, %v5899
        %v5902 = vrot.slane %v5898, 4
        %v5904 = vshrl.u32 %v5684, 16
        %v5906 = vrot.slane %v5904, 7
        %v5907 = vshll.u32 %v5684, 16
        %v5909 = vor.u32 %v5906, %v5907
        %v5910 = vsel %vm675, %v5902, %v5909
        %v5911 = vrot.slane %v5906, 4
        %v5913 = vshrl.u32 %v5685, 16
        %v5915 = vrot.slane %v5913, 7
        %v5916 = vshll.u32 %v5685, 16
        %v5918 = vor.u32 %v5915, %v5916
        %v5919 = vrot.slane %v5915, 4
        %v5921 = vshrl.u32 %v5686, 16
        %v5923 = vrot.slane %v5921, 7
        %v5924 = vshll.u32 %v5686, 16
        %v5926 = vor.u32 %v5923, %v5924
        %v5927 = vsel %vm675, %v5919, %v5926
        %v5928 = vrot.slane %v5923, 4
        %v5930 = vshrl.u32 %v5687, 16
        %v5932 = vrot.slane %v5930, 7
        %v5933 = vshll.u32 %v5687, 16
        %v5935 = vor.u32 %v5932, %v5933
        %v5936 = vrot.slane %v5932, 4
        %v5938 = vshrl.u32 %v5688, 16
        %v5940 = vrot.slane %v5938, 7
        %v5941 = vshll.u32 %v5688, 16
        %v5943 = vor.u32 %v5940, %v5941
        %v5944 = vsel %vm675, %v5936, %v5943
        %v5945 = vrot.slane %v5940, 4
        %v5947 = vshrl.u32 %v5689, 16
        %v5949 = vrot.slane %v5947, 7
        %v5950 = vshll.u32 %v5689, 16
        %v5952 = vor.u32 %v5949, %v5950
        %v5953 = vrot.slane %v5949, 4
        %v5955 = vshrl.u32 %v5690, 16
        %v5957 = vrot.slane %v5955, 7
        %v5958 = vshll.u32 %v5690, 16
        %v5960 = vor.u32 %v5957, %v5958
        %v5961 = vsel %vm675, %v5953, %v5960
        %v5962 = vrot.slane %v5957, 4
        %v6011 = vld [vmem:[%s996] sm:$0xf]
        %v6012 = vsel %vm999, %v5697, %v6011
        %6013 = vst [vmem:[%s996] sm:$0xf] %v6012
        %6014 = vst [vmem:[%s996 + $0x4] sm:$0xf] %v5706
        %v6015 = vld [vmem:[%s996 + $0x8] sm:$0x1]
        %v6016 = vsel %vm1005, %v5707, %v6015
        %6017 = vst [vmem:[%s996 + $0x8] sm:$0x1] %v6016
        %v6018 = vld [vmem:[%s996 + $0xc] sm:$0xf]
        %v6019 = vsel %vm999, %v5714, %v6018
        %6020 = vst [vmem:[%s996 + $0xc] sm:$0xf] %v6019
        %6021 = vst [vmem:[%s996 + $0x10] sm:$0xf] %v5723
        %v6022 = vld [vmem:[%s996 + $0x14] sm:$0x1]
        %v6023 = vsel %vm1005, %v5724, %v6022
        %6024 = vst [vmem:[%s996 + $0x14] sm:$0x1] %v6023
        %v6025 = vld [vmem:[%s996 + $0x18] sm:$0xf]
        %v6026 = vsel %vm999, %v5731, %v6025
        %6027 = vst [vmem:[%s996 + $0x18] sm:$0xf] %v6026
        %6028 = vst [vmem:[%s996 + $0x1c] sm:$0xf] %v5740
        %v6029 = vld [vmem:[%s996 + $0x20] sm:$0x1]
        %v6030 = vsel %vm1005, %v5741, %v6029
        %6031 = vst [vmem:[%s996 + $0x20] sm:$0x1] %v6030
        %v6032 = vld [vmem:[%s996 + $0x24] sm:$0xf]
        %v6033 = vsel %vm999, %v5748, %v6032
        %6034 = vst [vmem:[%s996 + $0x24] sm:$0xf] %v6033
        %6035 = vst [vmem:[%s996 + $0x28] sm:$0xf] %v5757
        %v6036 = vld [vmem:[%s996 + $0x2c] sm:$0x1]
        %v6037 = vsel %vm1005, %v5758, %v6036
        %6038 = vst [vmem:[%s996 + $0x2c] sm:$0x1] %v6037
        %v6039 = vld [vmem:[%s996 + $0x30] sm:$0xf]
        %v6040 = vsel %vm999, %v5765, %v6039
        %6041 = vst [vmem:[%s996 + $0x30] sm:$0xf] %v6040
        %6042 = vst [vmem:[%s996 + $0x34] sm:$0xf] %v5774
        %v6043 = vld [vmem:[%s996 + $0x38] sm:$0x1]
        %v6044 = vsel %vm1005, %v5775, %v6043
        %6045 = vst [vmem:[%s996 + $0x38] sm:$0x1] %v6044
        %v6046 = vld [vmem:[%s996 + $0x3c] sm:$0xf]
        %v6047 = vsel %vm999, %v5782, %v6046
        %6048 = vst [vmem:[%s996 + $0x3c] sm:$0xf] %v6047
        %6049 = vst [vmem:[%s996 + $0x40] sm:$0xf] %v5791
        %v6050 = vld [vmem:[%s996 + $0x44] sm:$0x1]
        %v6051 = vsel %vm1005, %v5792, %v6050
        %6052 = vst [vmem:[%s996 + $0x44] sm:$0x1] %v6051
        %v6053 = vld [vmem:[%s996 + $0x48] sm:$0xf]
        %v6054 = vsel %vm999, %v5799, %v6053
        %6055 = vst [vmem:[%s996 + $0x48] sm:$0xf] %v6054
        %6056 = vst [vmem:[%s996 + $0x4c] sm:$0xf] %v5808
        %v6057 = vld [vmem:[%s996 + $0x50] sm:$0x1]
        %v6058 = vsel %vm1005, %v5809, %v6057
        %6059 = vst [vmem:[%s996 + $0x50] sm:$0x1] %v6058
        %v6060 = vld [vmem:[%s996 + $0x54] sm:$0xf]
        %v6061 = vsel %vm999, %v5816, %v6060
        %6062 = vst [vmem:[%s996 + $0x54] sm:$0xf] %v6061
        %6063 = vst [vmem:[%s996 + $0x58] sm:$0xf] %v5825
        %v6064 = vld [vmem:[%s996 + $0x5c] sm:$0x1]
        %v6065 = vsel %vm1005, %v5826, %v6064
        %6066 = vst [vmem:[%s996 + $0x5c] sm:$0x1] %v6065
        %v6067 = vld [vmem:[%s996 + $0x60] sm:$0xf]
        %v6068 = vsel %vm999, %v5833, %v6067
        %6069 = vst [vmem:[%s996 + $0x60] sm:$0xf] %v6068
        %6070 = vst [vmem:[%s996 + $0x64] sm:$0xf] %v5842
        %v6071 = vld [vmem:[%s996 + $0x68] sm:$0x1]
        %v6072 = vsel %vm1005, %v5843, %v6071
        %6073 = vst [vmem:[%s996 + $0x68] sm:$0x1] %v6072
        %v6074 = vld [vmem:[%s996 + $0x6c] sm:$0xf]
        %v6075 = vsel %vm999, %v5850, %v6074
        %6076 = vst [vmem:[%s996 + $0x6c] sm:$0xf] %v6075
        %6077 = vst [vmem:[%s996 + $0x70] sm:$0xf] %v5859
        %v6078 = vld [vmem:[%s996 + $0x74] sm:$0x1]
        %v6079 = vsel %vm1005, %v5860, %v6078
        %6080 = vst [vmem:[%s996 + $0x74] sm:$0x1] %v6079
        %v6081 = vld [vmem:[%s996 + $0x78] sm:$0xf]
        %v6082 = vsel %vm999, %v5867, %v6081
        %6083 = vst [vmem:[%s996 + $0x78] sm:$0xf] %v6082
        %6084 = vst [vmem:[%s996 + $0x7c] sm:$0xf] %v5876
        %v6085 = vld [vmem:[%s996 + $0x80] sm:$0x1]
        %v6086 = vsel %vm1005, %v5877, %v6085
        %6087 = vst [vmem:[%s996 + $0x80] sm:$0x1] %v6086
        %v6088 = vld [vmem:[%s996 + $0x84] sm:$0xf]
        %v6089 = vsel %vm999, %v5884, %v6088
        %6090 = vst [vmem:[%s996 + $0x84] sm:$0xf] %v6089
        %6091 = vst [vmem:[%s996 + $0x88] sm:$0xf] %v5893
        %v6092 = vld [vmem:[%s996 + $0x8c] sm:$0x1]
        %v6093 = vsel %vm1005, %v5894, %v6092
        %6094 = vst [vmem:[%s996 + $0x8c] sm:$0x1] %v6093
        %v6095 = vld [vmem:[%s996 + $0x90] sm:$0xf]
        %v6096 = vsel %vm999, %v5901, %v6095
        %6097 = vst [vmem:[%s996 + $0x90] sm:$0xf] %v6096
        %6098 = vst [vmem:[%s996 + $0x94] sm:$0xf] %v5910
        %v6099 = vld [vmem:[%s996 + $0x98] sm:$0x1]
        %v6100 = vsel %vm1005, %v5911, %v6099
        %6101 = vst [vmem:[%s996 + $0x98] sm:$0x1] %v6100
        %v6102 = vld [vmem:[%s996 + $0x9c] sm:$0xf]
        %v6103 = vsel %vm999, %v5918, %v6102
        %6104 = vst [vmem:[%s996 + $0x9c] sm:$0xf] %v6103
        %6105 = vst [vmem:[%s996 + $0xa0] sm:$0xf] %v5927
        %v6106 = vld [vmem:[%s996 + $0xa4] sm:$0x1]
        %v6107 = vsel %vm1005, %v5928, %v6106
        %6108 = vst [vmem:[%s996 + $0xa4] sm:$0x1] %v6107
        %v6109 = vld [vmem:[%s996 + $0xa8] sm:$0xf]
        %v6110 = vsel %vm999, %v5935, %v6109
        %6111 = vst [vmem:[%s996 + $0xa8] sm:$0xf] %v6110
        %6112 = vst [vmem:[%s996 + $0xac] sm:$0xf] %v5944
        %v6113 = vld [vmem:[%s996 + $0xb0] sm:$0x1]
        %v6114 = vsel %vm1005, %v5945, %v6113
        %6115 = vst [vmem:[%s996 + $0xb0] sm:$0x1] %v6114
        %v6116 = vld [vmem:[%s996 + $0xb4] sm:$0xf]
        %v6117 = vsel %vm999, %v5952, %v6116
        %6118 = vst [vmem:[%s996 + $0xb4] sm:$0xf] %v6117
        %6119 = vst [vmem:[%s996 + $0xb8] sm:$0xf] %v5961
        %v6120 = vld [vmem:[%s996 + $0xbc] sm:$0x1]
        %v6121 = vsel %vm1005, %v5962, %v6120
        %6122 = vst [vmem:[%s996 + $0xbc] sm:$0x1] %v6121
        %v6123 = vld [vmem:[#allocation2] sm:$0xf]
        %v6124 = vld [vmem:[#allocation2 + $0x4] sm:$0xf]
        %v6125 = vld [vmem:[#allocation2 + $0xc] sm:$0xf]
        %v6126 = vld [vmem:[#allocation2 + $0x10] sm:$0xf]
        %v6127 = vld [vmem:[#allocation2 + $0x18] sm:$0xf]
        %v6128 = vld [vmem:[#allocation2 + $0x1c] sm:$0xf]
        %v6129 = vld [vmem:[#allocation2 + $0x24] sm:$0xf]
        %v6130 = vld [vmem:[#allocation2 + $0x28] sm:$0xf]
        %v6131 = vld [vmem:[#allocation2 + $0x30] sm:$0xf]
        %v6132 = vld [vmem:[#allocation2 + $0x34] sm:$0xf]
        %v6133 = vld [vmem:[#allocation2 + $0x3c] sm:$0xf]
        %v6134 = vld [vmem:[#allocation2 + $0x40] sm:$0xf]
        %v6135 = vld [vmem:[#allocation2 + $0x48] sm:$0xf]
        %v6136 = vld [vmem:[#allocation2 + $0x4c] sm:$0xf]
        %v6137 = vld [vmem:[#allocation2 + $0x54] sm:$0xf]
        %v6138 = vld [vmem:[#allocation2 + $0x58] sm:$0xf]
        %v6139 = vld [vmem:[#allocation2 + $0x60] sm:$0xf]
        %v6140 = vld [vmem:[#allocation2 + $0x64] sm:$0xf]
        %v6141 = vld [vmem:[#allocation2 + $0x6c] sm:$0xf]
        %v6142 = vld [vmem:[#allocation2 + $0x70] sm:$0xf]
        %v6143 = vld [vmem:[#allocation2 + $0x78] sm:$0xf]
        %v6144 = vld [vmem:[#allocation2 + $0x7c] sm:$0xf]
        %v6145 = vld [vmem:[#allocation2 + $0x84] sm:$0xf]
        %v6146 = vld [vmem:[#allocation2 + $0x88] sm:$0xf]
        %v6147 = vld [vmem:[#allocation2 + $0x90] sm:$0xf]
        %v6148 = vld [vmem:[#allocation2 + $0x94] sm:$0xf]
        %v6149 = vld [vmem:[#allocation2 + $0x9c] sm:$0xf]
        %v6150 = vld [vmem:[#allocation2 + $0xa0] sm:$0xf]
        %v6151 = vld [vmem:[#allocation2 + $0xa8] sm:$0xf]
        %v6152 = vld [vmem:[#allocation2 + $0xac] sm:$0xf]
        %v6153 = vld [vmem:[#allocation2 + $0xb4] sm:$0xf]
        %v6154 = vld [vmem:[#allocation2 + $0xb8] sm:$0xf]
        %v6187 = vunpack.c.l.b16 %v6123
        %v6188 = vunpack.c.l.b16 %v6124
        %v6189 = vunpack.c.l.b16 %v6125
        %v6190 = vunpack.c.l.b16 %v6126
        %v6191 = vunpack.c.l.b16 %v6127
        %v6192 = vunpack.c.l.b16 %v6128
        %v6193 = vunpack.c.l.b16 %v6129
        %v6194 = vunpack.c.l.b16 %v6130
        %v6195 = vunpack.c.l.b16 %v6131
        %v6196 = vunpack.c.l.b16 %v6132
        %v6197 = vunpack.c.l.b16 %v6133
        %v6198 = vunpack.c.l.b16 %v6134
        %v6199 = vunpack.c.l.b16 %v6135
        %v6200 = vunpack.c.l.b16 %v6136
        %v6201 = vunpack.c.l.b16 %v6137
        %v6202 = vunpack.c.l.b16 %v6138
        %v6203 = vunpack.c.l.b16 %v6139
        %v6204 = vunpack.c.l.b16 %v6140
        %v6205 = vunpack.c.l.b16 %v6141
        %v6206 = vunpack.c.l.b16 %v6142
        %v6207 = vunpack.c.l.b16 %v6143
        %v6208 = vunpack.c.l.b16 %v6144
        %v6209 = vunpack.c.l.b16 %v6145
        %v6210 = vunpack.c.l.b16 %v6146
        %v6211 = vunpack.c.l.b16 %v6147
        %v6212 = vunpack.c.l.b16 %v6148
        %v6213 = vunpack.c.l.b16 %v6149
        %v6214 = vunpack.c.l.b16 %v6150
        %v6215 = vunpack.c.l.b16 %v6151
        %v6216 = vunpack.c.l.b16 %v6152
        %v6217 = vunpack.c.l.b16 %v6153
        %v6218 = vunpack.c.l.b16 %v6154
        %v6219 = vpack.c.b16 %v6188, %v6187
        %v6220 = vpack.c.b16 %v6190, %v6189
        %v6221 = vpack.c.b16 %v6192, %v6191
        %v6222 = vpack.c.b16 %v6194, %v6193
        %v6223 = vpack.c.b16 %v6196, %v6195
        %v6224 = vpack.c.b16 %v6198, %v6197
        %v6225 = vpack.c.b16 %v6200, %v6199
        %v6226 = vpack.c.b16 %v6202, %v6201
        %v6227 = vpack.c.b16 %v6204, %v6203
        %v6228 = vpack.c.b16 %v6206, %v6205
        %v6229 = vpack.c.b16 %v6208, %v6207
        %v6230 = vpack.c.b16 %v6210, %v6209
        %v6231 = vpack.c.b16 %v6212, %v6211
        %v6232 = vpack.c.b16 %v6214, %v6213
        %v6233 = vpack.c.b16 %v6216, %v6215
        %v6234 = vpack.c.b16 %v6218, %v6217
        %6251 = vst [vmem:[#allocation3] sm:$0xff] %v6219
        %6252 = vst [vmem:[#allocation3 + $0x48] sm:$0xff] %v6220
        %6253 = vst [vmem:[#allocation3 + $0x90] sm:$0xff] %v6221
        %6254 = vst [vmem:[#allocation3 + $0xd8] sm:$0xff] %v6222
        %6255 = vst [vmem:[#allocation3 + $0x120] sm:$0xff] %v6223
        %6256 = vst [vmem:[#allocation3 + $0x168] sm:$0xff] %v6224
        %6257 = vst [vmem:[#allocation3 + $0x1b0] sm:$0xff] %v6225
        %6258 = vst [vmem:[#allocation3 + $0x1f8] sm:$0xff] %v6226
        %6259 = vst [vmem:[#allocation3 + $0x240] sm:$0xff] %v6227
        %6260 = vst [vmem:[#allocation3 + $0x288] sm:$0xff] %v6228
        %6261 = vst [vmem:[#allocation3 + $0x2d0] sm:$0xff] %v6229
        %6262 = vst [vmem:[#allocation3 + $0x318] sm:$0xff] %v6230
        %6263 = vst [vmem:[#allocation3 + $0x360] sm:$0xff] %v6231
        %6264 = vst [vmem:[#allocation3 + $0x3a8] sm:$0xff] %v6232
        %6265 = vst [vmem:[#allocation3 + $0x3f0] sm:$0xff] %v6233
        %6266 = vst [vmem:[#allocation3 + $0x438] sm:$0xff] %v6234
        %v6267 = vld [vmem:[#allocation2] sm:$0xf]
        %v6268 = vld [vmem:[#allocation2 + $0x4] sm:$0xf]
        %v6269 = vld [vmem:[#allocation2 + $0x8] sm:$0x1]
        %v6270 = vld [vmem:[#allocation2 + $0xc] sm:$0xf]
        %v6271 = vld [vmem:[#allocation2 + $0x10] sm:$0xf]
        %v6272 = vld [vmem:[#allocation2 + $0x14] sm:$0x1]
        %v6273 = vld [vmem:[#allocation2 + $0x18] sm:$0xf]
        %v6274 = vld [vmem:[#allocation2 + $0x1c] sm:$0xf]
        %v6275 = vld [vmem:[#allocation2 + $0x20] sm:$0x1]
        %v6276 = vld [vmem:[#allocation2 + $0x24] sm:$0xf]
        %v6277 = vld [vmem:[#allocation2 + $0x28] sm:$0xf]
        %v6278 = vld [vmem:[#allocation2 + $0x2c] sm:$0x1]
        %v6279 = vld [vmem:[#allocation2 + $0x30] sm:$0xf]
        %v6280 = vld [vmem:[#allocation2 + $0x34] sm:$0xf]
        %v6281 = vld [vmem:[#allocation2 + $0x38] sm:$0x1]
        %v6282 = vld [vmem:[#allocation2 + $0x3c] sm:$0xf]
        %v6283 = vld [vmem:[#allocation2 + $0x40] sm:$0xf]
        %v6284 = vld [vmem:[#allocation2 + $0x44] sm:$0x1]
        %v6285 = vld [vmem:[#allocation2 + $0x48] sm:$0xf]
        %v6286 = vld [vmem:[#allocation2 + $0x4c] sm:$0xf]
        %v6287 = vld [vmem:[#allocation2 + $0x50] sm:$0x1]
        %v6288 = vld [vmem:[#allocation2 + $0x54] sm:$0xf]
        %v6289 = vld [vmem:[#allocation2 + $0x58] sm:$0xf]
        %v6290 = vld [vmem:[#allocation2 + $0x5c] sm:$0x1]
        %v6291 = vld [vmem:[#allocation2 + $0x60] sm:$0xf]
        %v6292 = vld [vmem:[#allocation2 + $0x64] sm:$0xf]
        %v6293 = vld [vmem:[#allocation2 + $0x68] sm:$0x1]
        %v6294 = vld [vmem:[#allocation2 + $0x6c] sm:$0xf]
        %v6295 = vld [vmem:[#allocation2 + $0x70] sm:$0xf]
        %v6296 = vld [vmem:[#allocation2 + $0x74] sm:$0x1]
        %v6297 = vld [vmem:[#allocation2 + $0x78] sm:$0xf]
        %v6298 = vld [vmem:[#allocation2 + $0x7c] sm:$0xf]
        %v6299 = vld [vmem:[#allocation2 + $0x80] sm:$0x1]
        %v6300 = vld [vmem:[#allocation2 + $0x84] sm:$0xf]
        %v6301 = vld [vmem:[#allocation2 + $0x88] sm:$0xf]
        %v6302 = vld [vmem:[#allocation2 + $0x8c] sm:$0x1]
        %v6303 = vld [vmem:[#allocation2 + $0x90] sm:$0xf]
        %v6304 = vld [vmem:[#allocation2 + $0x94] sm:$0xf]
        %v6305 = vld [vmem:[#allocation2 + $0x98] sm:$0x1]
        %v6306 = vld [vmem:[#allocation2 + $0x9c] sm:$0xf]
        %v6307 = vld [vmem:[#allocation2 + $0xa0] sm:$0xf]
        %v6308 = vld [vmem:[#allocation2 + $0xa4] sm:$0x1]
        %v6309 = vld [vmem:[#allocation2 + $0xa8] sm:$0xf]
        %v6310 = vld [vmem:[#allocation2 + $0xac] sm:$0xf]
        %v6311 = vld [vmem:[#allocation2 + $0xb0] sm:$0x1]
        %v6312 = vld [vmem:[#allocation2 + $0xb4] sm:$0xf]
        %v6313 = vld [vmem:[#allocation2 + $0xb8] sm:$0xf]
        %v6314 = vld [vmem:[#allocation2 + $0xbc] sm:$0x1]
        %v6316 = vshrl.u32 %v6267, 16
        %v6318 = vrot.slane %v6316, 4
        %v6319 = vshll.u32 %v6267, 16
        %v6321 = vrot.slane %v6319, 5
        %v6322 = vor.u32 %v6318, %v6321
        %v6323 = vrot.slane %v6322, 4
        %v6325 = vshll.u32 %v6268, 16
        %v6327 = vrot.slane %v6325, 5
        %v6328 = vsel %vm1308, %v6323, %v6327
        %v6329 = vshrl.u32 %v6268, 16
        %v6331 = vrot.slane %v6329, 4
        %v6332 = vor.u32 %v6331, %v6327
        %v6333 = vrot.slane %v6332, 4
        %v6335 = vshll.u32 %v6269, 16
        %v6337 = vrot.slane %v6335, 5
        %v6338 = vsel %vm1308, %v6333, %v6337
        %v6340 = vshrl.u32 %v6270, 16
        %v6342 = vrot.slane %v6340, 4
        %v6343 = vshll.u32 %v6270, 16
        %v6345 = vrot.slane %v6343, 5
        %v6346 = vor.u32 %v6342, %v6345
        %v6347 = vrot.slane %v6346, 4
        %v6349 = vshll.u32 %v6271, 16
        %v6351 = vrot.slane %v6349, 5
        %v6352 = vsel %vm1308, %v6347, %v6351
        %v6353 = vshrl.u32 %v6271, 16
        %v6355 = vrot.slane %v6353, 4
        %v6356 = vor.u32 %v6355, %v6351
        %v6357 = vrot.slane %v6356, 4
        %v6359 = vshll.u32 %v6272, 16
        %v6361 = vrot.slane %v6359, 5
        %v6362 = vsel %vm1308, %v6357, %v6361
        %v6364 = vshrl.u32 %v6273, 16
        %v6366 = vrot.slane %v6364, 4
        %v6367 = vshll.u32 %v6273, 16
        %v6369 = vrot.slane %v6367, 5
        %v6370 = vor.u32 %v6366, %v6369
        %v6371 = vrot.slane %v6370, 4
        %v6373 = vshll.u32 %v6274, 16
        %v6375 = vrot.slane %v6373, 5
        %v6376 = vsel %vm1308, %v6371, %v6375
        %v6377 = vshrl.u32 %v6274, 16
        %v6379 = vrot.slane %v6377, 4
        %v6380 = vor.u32 %v6379, %v6375
        %v6381 = vrot.slane %v6380, 4
        %v6383 = vshll.u32 %v6275, 16
        %v6385 = vrot.slane %v6383, 5
        %v6386 = vsel %vm1308, %v6381, %v6385
        %v6388 = vshrl.u32 %v6276, 16
        %v6390 = vrot.slane %v6388, 4
        %v6391 = vshll.u32 %v6276, 16
        %v6393 = vrot.slane %v6391, 5
        %v6394 = vor.u32 %v6390, %v6393
        %v6395 = vrot.slane %v6394, 4
        %v6397 = vshll.u32 %v6277, 16
        %v6399 = vrot.slane %v6397, 5
        %v6400 = vsel %vm1308, %v6395, %v6399
        %v6401 = vshrl.u32 %v6277, 16
        %v6403 = vrot.slane %v6401, 4
        %v6404 = vor.u32 %v6403, %v6399
        %v6405 = vrot.slane %v6404, 4
        %v6407 = vshll.u32 %v6278, 16
        %v6409 = vrot.slane %v6407, 5
        %v6410 = vsel %vm1308, %v6405, %v6409
        %v6412 = vshrl.u32 %v6279, 16
        %v6414 = vrot.slane %v6412, 4
        %v6415 = vshll.u32 %v6279, 16
        %v6417 = vrot.slane %v6415, 5
        %v6418 = vor.u32 %v6414, %v6417
        %v6419 = vrot.slane %v6418, 4
        %v6421 = vshll.u32 %v6280, 16
        %v6423 = vrot.slane %v6421, 5
        %v6424 = vsel %vm1308, %v6419, %v6423
        %v6425 = vshrl.u32 %v6280, 16
        %v6427 = vrot.slane %v6425, 4
        %v6428 = vor.u32 %v6427, %v6423
        %v6429 = vrot.slane %v6428, 4
        %v6431 = vshll.u32 %v6281, 16
        %v6433 = vrot.slane %v6431, 5
        %v6434 = vsel %vm1308, %v6429, %v6433
        %v6436 = vshrl.u32 %v6282, 16
        %v6438 = vrot.slane %v6436, 4
        %v6439 = vshll.u32 %v6282, 16
        %v6441 = vrot.slane %v6439, 5
        %v6442 = vor.u32 %v6438, %v6441
        %v6443 = vrot.slane %v6442, 4
        %v6445 = vshll.u32 %v6283, 16
        %v6447 = vrot.slane %v6445, 5
        %v6448 = vsel %vm1308, %v6443, %v6447
        %v6449 = vshrl.u32 %v6283, 16
        %v6451 = vrot.slane %v6449, 4
        %v6452 = vor.u32 %v6451, %v6447
        %v6453 = vrot.slane %v6452, 4
        %v6455 = vshll.u32 %v6284, 16
        %v6457 = vrot.slane %v6455, 5
        %v6458 = vsel %vm1308, %v6453, %v6457
        %v6460 = vshrl.u32 %v6285, 16
        %v6462 = vrot.slane %v6460, 4
        %v6463 = vshll.u32 %v6285, 16
        %v6465 = vrot.slane %v6463, 5
        %v6466 = vor.u32 %v6462, %v6465
        %v6467 = vrot.slane %v6466, 4
        %v6469 = vshll.u32 %v6286, 16
        %v6471 = vrot.slane %v6469, 5
        %v6472 = vsel %vm1308, %v6467, %v6471
        %v6473 = vshrl.u32 %v6286, 16
        %v6475 = vrot.slane %v6473, 4
        %v6476 = vor.u32 %v6475, %v6471
        %v6477 = vrot.slane %v6476, 4
        %v6479 = vshll.u32 %v6287, 16
        %v6481 = vrot.slane %v6479, 5
        %v6482 = vsel %vm1308, %v6477, %v6481
        %v6484 = vshrl.u32 %v6288, 16
        %v6486 = vrot.slane %v6484, 4
        %v6487 = vshll.u32 %v6288, 16
        %v6489 = vrot.slane %v6487, 5
        %v6490 = vor.u32 %v6486, %v6489
        %v6491 = vrot.slane %v6490, 4
        %v6493 = vshll.u32 %v6289, 16
        %v6495 = vrot.slane %v6493, 5
        %v6496 = vsel %vm1308, %v6491, %v6495
        %v6497 = vshrl.u32 %v6289, 16
        %v6499 = vrot.slane %v6497, 4
        %v6500 = vor.u32 %v6499, %v6495
        %v6501 = vrot.slane %v6500, 4
        %v6503 = vshll.u32 %v6290, 16
        %v6505 = vrot.slane %v6503, 5
        %v6506 = vsel %vm1308, %v6501, %v6505
        %v6508 = vshrl.u32 %v6291, 16
        %v6510 = vrot.slane %v6508, 4
        %v6511 = vshll.u32 %v6291, 16
        %v6513 = vrot.slane %v6511, 5
        %v6514 = vor.u32 %v6510, %v6513
        %v6515 = vrot.slane %v6514, 4
        %v6517 = vshll.u32 %v6292, 16
        %v6519 = vrot.slane %v6517, 5
        %v6520 = vsel %vm1308, %v6515, %v6519
        %v6521 = vshrl.u32 %v6292, 16
        %v6523 = vrot.slane %v6521, 4
        %v6524 = vor.u32 %v6523, %v6519
        %v6525 = vrot.slane %v6524, 4
        %v6527 = vshll.u32 %v6293, 16
        %v6529 = vrot.slane %v6527, 5
        %v6530 = vsel %vm1308, %v6525, %v6529
        %v6532 = vshrl.u32 %v6294, 16
        %v6534 = vrot.slane %v6532, 4
        %v6535 = vshll.u32 %v6294, 16
        %v6537 = vrot.slane %v6535, 5
        %v6538 = vor.u32 %v6534, %v6537
        %v6539 = vrot.slane %v6538, 4
        %v6541 = vshll.u32 %v6295, 16
        %v6543 = vrot.slane %v6541, 5
        %v6544 = vsel %vm1308, %v6539, %v6543
        %v6545 = vshrl.u32 %v6295, 16
        %v6547 = vrot.slane %v6545, 4
        %v6548 = vor.u32 %v6547, %v6543
        %v6549 = vrot.slane %v6548, 4
        %v6551 = vshll.u32 %v6296, 16
        %v6553 = vrot.slane %v6551, 5
        %v6554 = vsel %vm1308, %v6549, %v6553
        %v6556 = vshrl.u32 %v6297, 16
        %v6558 = vrot.slane %v6556, 4
        %v6559 = vshll.u32 %v6297, 16
        %v6561 = vrot.slane %v6559, 5
        %v6562 = vor.u32 %v6558, %v6561
        %v6563 = vrot.slane %v6562, 4
        %v6565 = vshll.u32 %v6298, 16
        %v6567 = vrot.slane %v6565, 5
        %v6568 = vsel %vm1308, %v6563, %v6567
        %v6569 = vshrl.u32 %v6298, 16
        %v6571 = vrot.slane %v6569, 4
        %v6572 = vor.u32 %v6571, %v6567
        %v6573 = vrot.slane %v6572, 4
        %v6575 = vshll.u32 %v6299, 16
        %v6577 = vrot.slane %v6575, 5
        %v6578 = vsel %vm1308, %v6573, %v6577
        %v6580 = vshrl.u32 %v6300, 16
        %v6582 = vrot.slane %v6580, 4
        %v6583 = vshll.u32 %v6300, 16
        %v6585 = vrot.slane %v6583, 5
        %v6586 = vor.u32 %v6582, %v6585
        %v6587 = vrot.slane %v6586, 4
        %v6589 = vshll.u32 %v6301, 16
        %v6591 = vrot.slane %v6589, 5
        %v6592 = vsel %vm1308, %v6587, %v6591
        %v6593 = vshrl.u32 %v6301, 16
        %v6595 = vrot.slane %v6593, 4
        %v6596 = vor.u32 %v6595, %v6591
        %v6597 = vrot.slane %v6596, 4
        %v6599 = vshll.u32 %v6302, 16
        %v6601 = vrot.slane %v6599, 5
        %v6602 = vsel %vm1308, %v6597, %v6601
        %v6604 = vshrl.u32 %v6303, 16
        %v6606 = vrot.slane %v6604, 4
        %v6607 = vshll.u32 %v6303, 16
        %v6609 = vrot.slane %v6607, 5
        %v6610 = vor.u32 %v6606, %v6609
        %v6611 = vrot.slane %v6610, 4
        %v6613 = vshll.u32 %v6304, 16
        %v6615 = vrot.slane %v6613, 5
        %v6616 = vsel %vm1308, %v6611, %v6615
        %v6617 = vshrl.u32 %v6304, 16
        %v6619 = vrot.slane %v6617, 4
        %v6620 = vor.u32 %v6619, %v6615
        %v6621 = vrot.slane %v6620, 4
        %v6623 = vshll.u32 %v6305, 16
        %v6625 = vrot.slane %v6623, 5
        %v6626 = vsel %vm1308, %v6621, %v6625
        %v6628 = vshrl.u32 %v6306, 16
        %v6630 = vrot.slane %v6628, 4
        %v6631 = vshll.u32 %v6306, 16
        %v6633 = vrot.slane %v6631, 5
        %v6634 = vor.u32 %v6630, %v6633
        %v6635 = vrot.slane %v6634, 4
        %v6637 = vshll.u32 %v6307, 16
        %v6639 = vrot.slane %v6637, 5
        %v6640 = vsel %vm1308, %v6635, %v6639
        %v6641 = vshrl.u32 %v6307, 16
        %v6643 = vrot.slane %v6641, 4
        %v6644 = vor.u32 %v6643, %v6639
        %v6645 = vrot.slane %v6644, 4
        %v6647 = vshll.u32 %v6308, 16
        %v6649 = vrot.slane %v6647, 5
        %v6650 = vsel %vm1308, %v6645, %v6649
        %v6652 = vshrl.u32 %v6309, 16
        %v6654 = vrot.slane %v6652, 4
        %v6655 = vshll.u32 %v6309, 16
        %v6657 = vrot.slane %v6655, 5
        %v6658 = vor.u32 %v6654, %v6657
        %v6659 = vrot.slane %v6658, 4
        %v6661 = vshll.u32 %v6310, 16
        %v6663 = vrot.slane %v6661, 5
        %v6664 = vsel %vm1308, %v6659, %v6663
        %v6665 = vshrl.u32 %v6310, 16
        %v6667 = vrot.slane %v6665, 4
        %v6668 = vor.u32 %v6667, %v6663
        %v6669 = vrot.slane %v6668, 4
        %v6671 = vshll.u32 %v6311, 16
        %v6673 = vrot.slane %v6671, 5
        %v6674 = vsel %vm1308, %v6669, %v6673
        %v6676 = vshrl.u32 %v6312, 16
        %v6678 = vrot.slane %v6676, 4
        %v6679 = vshll.u32 %v6312, 16
        %v6681 = vrot.slane %v6679, 5
        %v6682 = vor.u32 %v6678, %v6681
        %v6683 = vrot.slane %v6682, 4
        %v6685 = vshll.u32 %v6313, 16
        %v6687 = vrot.slane %v6685, 5
        %v6688 = vsel %vm1308, %v6683, %v6687
        %v6689 = vshrl.u32 %v6313, 16
        %v6691 = vrot.slane %v6689, 4
        %v6692 = vor.u32 %v6691, %v6687
        %v6693 = vrot.slane %v6692, 4
        %v6695 = vshll.u32 %v6314, 16
        %v6697 = vrot.slane %v6695, 5
        %v6698 = vsel %vm1308, %v6693, %v6697
        %v6699 = vunpack.c.l.b16 %v6328
        %v6700 = vunpack.c.l.b16 %v6338
        %v6701 = vunpack.c.l.b16 %v6352
        %v6702 = vunpack.c.l.b16 %v6362
        %v6703 = vunpack.c.l.b16 %v6376
        %v6704 = vunpack.c.l.b16 %v6386
        %v6705 = vunpack.c.l.b16 %v6400
        %v6706 = vunpack.c.l.b16 %v6410
        %v6707 = vunpack.c.l.b16 %v6424
        %v6708 = vunpack.c.l.b16 %v6434
        %v6709 = vunpack.c.l.b16 %v6448
        %v6710 = vunpack.c.l.b16 %v6458
        %v6711 = vunpack.c.l.b16 %v6472
        %v6712 = vunpack.c.l.b16 %v6482
        %v6713 = vunpack.c.l.b16 %v6496
        %v6714 = vunpack.c.l.b16 %v6506
        %v6715 = vunpack.c.l.b16 %v6520
        %v6716 = vunpack.c.l.b16 %v6530
        %v6717 = vunpack.c.l.b16 %v6544
        %v6718 = vunpack.c.l.b16 %v6554
        %v6719 = vunpack.c.l.b16 %v6568
        %v6720 = vunpack.c.l.b16 %v6578
        %v6721 = vunpack.c.l.b16 %v6592
        %v6722 = vunpack.c.l.b16 %v6602
        %v6723 = vunpack.c.l.b16 %v6616
        %v6724 = vunpack.c.l.b16 %v6626
        %v6725 = vunpack.c.l.b16 %v6640
        %v6726 = vunpack.c.l.b16 %v6650
        %v6727 = vunpack.c.l.b16 %v6664
        %v6728 = vunpack.c.l.b16 %v6674
        %v6729 = vunpack.c.l.b16 %v6688
        %v6730 = vunpack.c.l.b16 %v6698
        %v6731 = vpack.c.b16 %v6700, %v6699
        %v6732 = vpack.c.b16 %v6702, %v6701
        %v6733 = vpack.c.b16 %v6704, %v6703
        %v6734 = vpack.c.b16 %v6706, %v6705
        %v6735 = vpack.c.b16 %v6708, %v6707
        %v6736 = vpack.c.b16 %v6710, %v6709
        %v6737 = vpack.c.b16 %v6712, %v6711
        %v6738 = vpack.c.b16 %v6714, %v6713
        %v6739 = vpack.c.b16 %v6716, %v6715
        %v6740 = vpack.c.b16 %v6718, %v6717
        %v6741 = vpack.c.b16 %v6720, %v6719
        %v6742 = vpack.c.b16 %v6722, %v6721
        %v6743 = vpack.c.b16 %v6724, %v6723
        %v6744 = vpack.c.b16 %v6726, %v6725
        %v6745 = vpack.c.b16 %v6728, %v6727
        %v6746 = vpack.c.b16 %v6730, %v6729
        %6763 = vst [vmem:[#allocation3 + $0x8] sm:$0xff] %v6731
        %6764 = vst [vmem:[#allocation3 + $0x50] sm:$0xff] %v6732
        %6765 = vst [vmem:[#allocation3 + $0x98] sm:$0xff] %v6733
        %6766 = vst [vmem:[#allocation3 + $0xe0] sm:$0xff] %v6734
        %6767 = vst [vmem:[#allocation3 + $0x128] sm:$0xff] %v6735
        %6768 = vst [vmem:[#allocation3 + $0x170] sm:$0xff] %v6736
        %6769 = vst [vmem:[#allocation3 + $0x1b8] sm:$0xff] %v6737
        %6770 = vst [vmem:[#allocation3 + $0x200] sm:$0xff] %v6738
        %6771 = vst [vmem:[#allocation3 + $0x248] sm:$0xff] %v6739
        %6772 = vst [vmem:[#allocation3 + $0x290] sm:$0xff] %v6740
        %6773 = vst [vmem:[#allocation3 + $0x2d8] sm:$0xff] %v6741
        %6774 = vst [vmem:[#allocation3 + $0x320] sm:$0xff] %v6742
        %6775 = vst [vmem:[#allocation3 + $0x368] sm:$0xff] %v6743
        %6776 = vst [vmem:[#allocation3 + $0x3b0] sm:$0xff] %v6744
        %6777 = vst [vmem:[#allocation3 + $0x3f8] sm:$0xff] %v6745
        %6778 = vst [vmem:[#allocation3 + $0x440] sm:$0xff] %v6746
        %v6779 = vld [vmem:[#allocation2] sm:$0xe]
        %v6780 = vld [vmem:[#allocation2 + $0x4] sm:$0xf]
        %v6781 = vld [vmem:[#allocation2 + $0x8] sm:$0x1]
        %v6782 = vld [vmem:[#allocation2 + $0xc] sm:$0xe]
        %v6783 = vld [vmem:[#allocation2 + $0x10] sm:$0xf]
        %v6784 = vld [vmem:[#allocation2 + $0x14] sm:$0x1]
        %v6785 = vld [vmem:[#allocation2 + $0x18] sm:$0xe]
        %v6786 = vld [vmem:[#allocation2 + $0x1c] sm:$0xf]
        %v6787 = vld [vmem:[#allocation2 + $0x20] sm:$0x1]
        %v6788 = vld [vmem:[#allocation2 + $0x24] sm:$0xe]
        %v6789 = vld [vmem:[#allocation2 + $0x28] sm:$0xf]
        %v6790 = vld [vmem:[#allocation2 + $0x2c] sm:$0x1]
        %v6791 = vld [vmem:[#allocation2 + $0x30] sm:$0xe]
        %v6792 = vld [vmem:[#allocation2 + $0x34] sm:$0xf]
        %v6793 = vld [vmem:[#allocation2 + $0x38] sm:$0x1]
        %v6794 = vld [vmem:[#allocation2 + $0x3c] sm:$0xe]
        %v6795 = vld [vmem:[#allocation2 + $0x40] sm:$0xf]
        %v6796 = vld [vmem:[#allocation2 + $0x44] sm:$0x1]
        %v6797 = vld [vmem:[#allocation2 + $0x48] sm:$0xe]
        %v6798 = vld [vmem:[#allocation2 + $0x4c] sm:$0xf]
        %v6799 = vld [vmem:[#allocation2 + $0x50] sm:$0x1]
        %v6800 = vld [vmem:[#allocation2 + $0x54] sm:$0xe]
        %v6801 = vld [vmem:[#allocation2 + $0x58] sm:$0xf]
        %v6802 = vld [vmem:[#allocation2 + $0x5c] sm:$0x1]
        %v6803 = vld [vmem:[#allocation2 + $0x60] sm:$0xe]
        %v6804 = vld [vmem:[#allocation2 + $0x64] sm:$0xf]
        %v6805 = vld [vmem:[#allocation2 + $0x68] sm:$0x1]
        %v6806 = vld [vmem:[#allocation2 + $0x6c] sm:$0xe]
        %v6807 = vld [vmem:[#allocation2 + $0x70] sm:$0xf]
        %v6808 = vld [vmem:[#allocation2 + $0x74] sm:$0x1]
        %v6809 = vld [vmem:[#allocation2 + $0x78] sm:$0xe]
        %v6810 = vld [vmem:[#allocation2 + $0x7c] sm:$0xf]
        %v6811 = vld [vmem:[#allocation2 + $0x80] sm:$0x1]
        %v6812 = vld [vmem:[#allocation2 + $0x84] sm:$0xe]
        %v6813 = vld [vmem:[#allocation2 + $0x88] sm:$0xf]
        %v6814 = vld [vmem:[#allocation2 + $0x8c] sm:$0x1]
        %v6815 = vld [vmem:[#allocation2 + $0x90] sm:$0xe]
        %v6816 = vld [vmem:[#allocation2 + $0x94] sm:$0xf]
        %v6817 = vld [vmem:[#allocation2 + $0x98] sm:$0x1]
        %v6818 = vld [vmem:[#allocation2 + $0x9c] sm:$0xe]
        %v6819 = vld [vmem:[#allocation2 + $0xa0] sm:$0xf]
        %v6820 = vld [vmem:[#allocation2 + $0xa4] sm:$0x1]
        %v6821 = vld [vmem:[#allocation2 + $0xa8] sm:$0xe]
        %v6822 = vld [vmem:[#allocation2 + $0xac] sm:$0xf]
        %v6823 = vld [vmem:[#allocation2 + $0xb0] sm:$0x1]
        %v6824 = vld [vmem:[#allocation2 + $0xb4] sm:$0xe]
        %v6825 = vld [vmem:[#allocation2 + $0xb8] sm:$0xf]
        %v6826 = vld [vmem:[#allocation2 + $0xbc] sm:$0x1]
        %v6875 = vrot.slane %v6779, 5
        %v6876 = vrot.slane %v6875, 4
        %v6877 = vrot.slane %v6780, 5
        %v6878 = vsel %vm1871, %v6876, %v6877
        %v6879 = vrot.slane %v6877, 4
        %v6880 = vrot.slane %v6781, 5
        %v6881 = vsel %vm1871, %v6879, %v6880
        %v6882 = vrot.slane %v6782, 5
        %v6883 = vrot.slane %v6882, 4
        %v6884 = vrot.slane %v6783, 5
        %v6885 = vsel %vm1871, %v6883, %v6884
        %v6886 = vrot.slane %v6884, 4
        %v6887 = vrot.slane %v6784, 5
        %v6888 = vsel %vm1871, %v6886, %v6887
        %v6889 = vrot.slane %v6785, 5
        %v6890 = vrot.slane %v6889, 4
        %v6891 = vrot.slane %v6786, 5
        %v6892 = vsel %vm1871, %v6890, %v6891
        %v6893 = vrot.slane %v6891, 4
        %v6894 = vrot.slane %v6787, 5
        %v6895 = vsel %vm1871, %v6893, %v6894
        %v6896 = vrot.slane %v6788, 5
        %v6897 = vrot.slane %v6896, 4
        %v6898 = vrot.slane %v6789, 5
        %v6899 = vsel %vm1871, %v6897, %v6898
        %v6900 = vrot.slane %v6898, 4
        %v6901 = vrot.slane %v6790, 5
        %v6902 = vsel %vm1871, %v6900, %v6901
        %v6903 = vrot.slane %v6791, 5
        %v6904 = vrot.slane %v6903, 4
        %v6905 = vrot.slane %v6792, 5
        %v6906 = vsel %vm1871, %v6904, %v6905
        %v6907 = vrot.slane %v6905, 4
        %v6908 = vrot.slane %v6793, 5
        %v6909 = vsel %vm1871, %v6907, %v6908
        %v6910 = vrot.slane %v6794, 5
        %v6911 = vrot.slane %v6910, 4
        %v6912 = vrot.slane %v6795, 5
        %v6913 = vsel %vm1871, %v6911, %v6912
        %v6914 = vrot.slane %v6912, 4
        %v6915 = vrot.slane %v6796, 5
        %v6916 = vsel %vm1871, %v6914, %v6915
        %v6917 = vrot.slane %v6797, 5
        %v6918 = vrot.slane %v6917, 4
        %v6919 = vrot.slane %v6798, 5
        %v6920 = vsel %vm1871, %v6918, %v6919
        %v6921 = vrot.slane %v6919, 4
        %v6922 = vrot.slane %v6799, 5
        %v6923 = vsel %vm1871, %v6921, %v6922
        %v6924 = vrot.slane %v6800, 5
        %v6925 = vrot.slane %v6924, 4
        %v6926 = vrot.slane %v6801, 5
        %v6927 = vsel %vm1871, %v6925, %v6926
        %v6928 = vrot.slane %v6926, 4
        %v6929 = vrot.slane %v6802, 5
        %v6930 = vsel %vm1871, %v6928, %v6929
        %v6931 = vrot.slane %v6803, 5
        %v6932 = vrot.slane %v6931, 4
        %v6933 = vrot.slane %v6804, 5
        %v6934 = vsel %vm1871, %v6932, %v6933
        %v6935 = vrot.slane %v6933, 4
        %v6936 = vrot.slane %v6805, 5
        %v6937 = vsel %vm1871, %v6935, %v6936
        %v6938 = vrot.slane %v6806, 5
        %v6939 = vrot.slane %v6938, 4
        %v6940 = vrot.slane %v6807, 5
        %v6941 = vsel %vm1871, %v6939, %v6940
        %v6942 = vrot.slane %v6940, 4
        %v6943 = vrot.slane %v6808, 5
        %v6944 = vsel %vm1871, %v6942, %v6943
        %v6945 = vrot.slane %v6809, 5
        %v6946 = vrot.slane %v6945, 4
        %v6947 = vrot.slane %v6810, 5
        %v6948 = vsel %vm1871, %v6946, %v6947
        %v6949 = vrot.slane %v6947, 4
        %v6950 = vrot.slane %v6811, 5
        %v6951 = vsel %vm1871, %v6949, %v6950
        %v6952 = vrot.slane %v6812, 5
        %v6953 = vrot.slane %v6952, 4
        %v6954 = vrot.slane %v6813, 5
        %v6955 = vsel %vm1871, %v6953, %v6954
        %v6956 = vrot.slane %v6954, 4
        %v6957 = vrot.slane %v6814, 5
        %v6958 = vsel %vm1871, %v6956, %v6957
        %v6959 = vrot.slane %v6815, 5
        %v6960 = vrot.slane %v6959, 4
        %v6961 = vrot.slane %v6816, 5
        %v6962 = vsel %vm1871, %v6960, %v6961
        %v6963 = vrot.slane %v6961, 4
        %v6964 = vrot.slane %v6817, 5
        %v6965 = vsel %vm1871, %v6963, %v6964
        %v6966 = vrot.slane %v6818, 5
        %v6967 = vrot.slane %v6966, 4
        %v6968 = vrot.slane %v6819, 5
        %v6969 = vsel %vm1871, %v6967, %v6968
        %v6970 = vrot.slane %v6968, 4
        %v6971 = vrot.slane %v6820, 5
        %v6972 = vsel %vm1871, %v6970, %v6971
        %v6973 = vrot.slane %v6821, 5
        %v6974 = vrot.slane %v6973, 4
        %v6975 = vrot.slane %v6822, 5
        %v6976 = vsel %vm1871, %v6974, %v6975
        %v6977 = vrot.slane %v6975, 4
        %v6978 = vrot.slane %v6823, 5
        %v6979 = vsel %vm1871, %v6977, %v6978
        %v6980 = vrot.slane %v6824, 5
        %v6981 = vrot.slane %v6980, 4
        %v6982 = vrot.slane %v6825, 5
        %v6983 = vsel %vm1871, %v6981, %v6982
        %v6984 = vrot.slane %v6982, 4
        %v6985 = vrot.slane %v6826, 5
        %v6986 = vsel %vm1871, %v6984, %v6985
        %v6987 = vunpack.c.l.b16 %v6878
        %v6988 = vunpack.c.l.b16 %v6881
        %v6989 = vunpack.c.l.b16 %v6885
        %v6990 = vunpack.c.l.b16 %v6888
        %v6991 = vunpack.c.l.b16 %v6892
        %v6992 = vunpack.c.l.b16 %v6895
        %v6993 = vunpack.c.l.b16 %v6899
        %v6994 = vunpack.c.l.b16 %v6902
        %v6995 = vunpack.c.l.b16 %v6906
        %v6996 = vunpack.c.l.b16 %v6909
        %v6997 = vunpack.c.l.b16 %v6913
        %v6998 = vunpack.c.l.b16 %v6916
        %v6999 = vunpack.c.l.b16 %v6920
        %v7000 = vunpack.c.l.b16 %v6923
        %v7001 = vunpack.c.l.b16 %v6927
        %v7002 = vunpack.c.l.b16 %v6930
        %v7003 = vunpack.c.l.b16 %v6934
        %v7004 = vunpack.c.l.b16 %v6937
        %v7005 = vunpack.c.l.b16 %v6941
        %v7006 = vunpack.c.l.b16 %v6944
        %v7007 = vunpack.c.l.b16 %v6948
        %v7008 = vunpack.c.l.b16 %v6951
        %v7009 = vunpack.c.l.b16 %v6955
        %v7010 = vunpack.c.l.b16 %v6958
        %v7011 = vunpack.c.l.b16 %v6962
        %v7012 = vunpack.c.l.b16 %v6965
        %v7013 = vunpack.c.l.b16 %v6969
        %v7014 = vunpack.c.l.b16 %v6972
        %v7015 = vunpack.c.l.b16 %v6976
        %v7016 = vunpack.c.l.b16 %v6979
        %v7017 = vunpack.c.l.b16 %v6983
        %v7018 = vunpack.c.l.b16 %v6986
        %v7019 = vpack.c.b16 %v6988, %v6987
        %v7020 = vpack.c.b16 %v6990, %v6989
        %v7021 = vpack.c.b16 %v6992, %v6991
        %v7022 = vpack.c.b16 %v6994, %v6993
        %v7023 = vpack.c.b16 %v6996, %v6995
        %v7024 = vpack.c.b16 %v6998, %v6997
        %v7025 = vpack.c.b16 %v7000, %v6999
        %v7026 = vpack.c.b16 %v7002, %v7001
        %v7027 = vpack.c.b16 %v7004, %v7003
        %v7028 = vpack.c.b16 %v7006, %v7005
        %v7029 = vpack.c.b16 %v7008, %v7007
        %v7030 = vpack.c.b16 %v7010, %v7009
        %v7031 = vpack.c.b16 %v7012, %v7011
        %v7032 = vpack.c.b16 %v7014, %v7013
        %v7033 = vpack.c.b16 %v7016, %v7015
        %v7034 = vpack.c.b16 %v7018, %v7017
        %7051 = vst [vmem:[#allocation3 + $0x10] sm:$0xff] %v7019
        %7052 = vst [vmem:[#allocation3 + $0x58] sm:$0xff] %v7020
        %7053 = vst [vmem:[#allocation3 + $0xa0] sm:$0xff] %v7021
        %7054 = vst [vmem:[#allocation3 + $0xe8] sm:$0xff] %v7022
        %7055 = vst [vmem:[#allocation3 + $0x130] sm:$0xff] %v7023
        %7056 = vst [vmem:[#allocation3 + $0x178] sm:$0xff] %v7024
        %7057 = vst [vmem:[#allocation3 + $0x1c0] sm:$0xff] %v7025
        %7058 = vst [vmem:[#allocation3 + $0x208] sm:$0xff] %v7026
        %7059 = vst [vmem:[#allocation3 + $0x250] sm:$0xff] %v7027
        %7060 = vst [vmem:[#allocation3 + $0x298] sm:$0xff] %v7028
        %7061 = vst [vmem:[#allocation3 + $0x2e0] sm:$0xff] %v7029
        %7062 = vst [vmem:[#allocation3 + $0x328] sm:$0xff] %v7030
        %7063 = vst [vmem:[#allocation3 + $0x370] sm:$0xff] %v7031
        %7064 = vst [vmem:[#allocation3 + $0x3b8] sm:$0xff] %v7032
        %7065 = vst [vmem:[#allocation3 + $0x400] sm:$0xff] %v7033
        %7066 = vst [vmem:[#allocation3 + $0x448] sm:$0xff] %v7034
        %v7067 = vld [vmem:[%s996] sm:$0xf]
        %v7068 = vld [vmem:[%s996 + $0x4] sm:$0xf]
        %v7069 = vld [vmem:[%s996 + $0xc] sm:$0xf]
        %v7070 = vld [vmem:[%s996 + $0x10] sm:$0xf]
        %v7071 = vld [vmem:[%s996 + $0x18] sm:$0xf]
        %v7072 = vld [vmem:[%s996 + $0x1c] sm:$0xf]
        %v7073 = vld [vmem:[%s996 + $0x24] sm:$0xf]
        %v7074 = vld [vmem:[%s996 + $0x28] sm:$0xf]
        %v7075 = vld [vmem:[%s996 + $0x30] sm:$0xf]
        %v7076 = vld [vmem:[%s996 + $0x34] sm:$0xf]
        %v7077 = vld [vmem:[%s996 + $0x3c] sm:$0xf]
        %v7078 = vld [vmem:[%s996 + $0x40] sm:$0xf]
        %v7079 = vld [vmem:[%s996 + $0x48] sm:$0xf]
        %v7080 = vld [vmem:[%s996 + $0x4c] sm:$0xf]
        %v7081 = vld [vmem:[%s996 + $0x54] sm:$0xf]
        %v7082 = vld [vmem:[%s996 + $0x58] sm:$0xf]
        %v7083 = vld [vmem:[%s996 + $0x60] sm:$0xf]
        %v7084 = vld [vmem:[%s996 + $0x64] sm:$0xf]
        %v7085 = vld [vmem:[%s996 + $0x6c] sm:$0xf]
        %v7086 = vld [vmem:[%s996 + $0x70] sm:$0xf]
        %v7087 = vld [vmem:[%s996 + $0x78] sm:$0xf]
        %v7088 = vld [vmem:[%s996 + $0x7c] sm:$0xf]
        %v7089 = vld [vmem:[%s996 + $0x84] sm:$0xf]
        %v7090 = vld [vmem:[%s996 + $0x88] sm:$0xf]
        %v7091 = vld [vmem:[%s996 + $0x90] sm:$0xf]
        %v7092 = vld [vmem:[%s996 + $0x94] sm:$0xf]
        %v7093 = vld [vmem:[%s996 + $0x9c] sm:$0xf]
        %v7094 = vld [vmem:[%s996 + $0xa0] sm:$0xf]
        %v7095 = vld [vmem:[%s996 + $0xa8] sm:$0xf]
        %v7096 = vld [vmem:[%s996 + $0xac] sm:$0xf]
        %v7097 = vld [vmem:[%s996 + $0xb4] sm:$0xf]
        %v7098 = vld [vmem:[%s996 + $0xb8] sm:$0xf]
        %v7131 = vunpack.c.l.b16 %v7067
        %v7132 = vunpack.c.l.b16 %v7068
        %v7133 = vunpack.c.l.b16 %v7069
        %v7134 = vunpack.c.l.b16 %v7070
        %v7135 = vunpack.c.l.b16 %v7071
        %v7136 = vunpack.c.l.b16 %v7072
        %v7137 = vunpack.c.l.b16 %v7073
        %v7138 = vunpack.c.l.b16 %v7074
        %v7139 = vunpack.c.l.b16 %v7075
        %v7140 = vunpack.c.l.b16 %v7076
        %v7141 = vunpack.c.l.b16 %v7077
        %v7142 = vunpack.c.l.b16 %v7078
        %v7143 = vunpack.c.l.b16 %v7079
        %v7144 = vunpack.c.l.b16 %v7080
        %v7145 = vunpack.c.l.b16 %v7081
        %v7146 = vunpack.c.l.b16 %v7082
        %v7147 = vunpack.c.l.b16 %v7083
        %v7148 = vunpack.c.l.b16 %v7084
        %v7149 = vunpack.c.l.b16 %v7085
        %v7150 = vunpack.c.l.b16 %v7086
        %v7151 = vunpack.c.l.b16 %v7087
        %v7152 = vunpack.c.l.b16 %v7088
        %v7153 = vunpack.c.l.b16 %v7089
        %v7154 = vunpack.c.l.b16 %v7090
        %v7155 = vunpack.c.l.b16 %v7091
        %v7156 = vunpack.c.l.b16 %v7092
        %v7157 = vunpack.c.l.b16 %v7093
        %v7158 = vunpack.c.l.b16 %v7094
        %v7159 = vunpack.c.l.b16 %v7095
        %v7160 = vunpack.c.l.b16 %v7096
        %v7161 = vunpack.c.l.b16 %v7097
        %v7162 = vunpack.c.l.b16 %v7098
        %v7163 = vpack.c.b16 %v7132, %v7131
        %v7164 = vpack.c.b16 %v7134, %v7133
        %v7165 = vpack.c.b16 %v7136, %v7135
        %v7166 = vpack.c.b16 %v7138, %v7137
        %v7167 = vpack.c.b16 %v7140, %v7139
        %v7168 = vpack.c.b16 %v7142, %v7141
        %v7169 = vpack.c.b16 %v7144, %v7143
        %v7170 = vpack.c.b16 %v7146, %v7145
        %v7171 = vpack.c.b16 %v7148, %v7147
        %v7172 = vpack.c.b16 %v7150, %v7149
        %v7173 = vpack.c.b16 %v7152, %v7151
        %v7174 = vpack.c.b16 %v7154, %v7153
        %v7175 = vpack.c.b16 %v7156, %v7155
        %v7176 = vpack.c.b16 %v7158, %v7157
        %v7177 = vpack.c.b16 %v7160, %v7159
        %v7178 = vpack.c.b16 %v7162, %v7161
        %7195 = vst [vmem:[#allocation3 + $0x18] sm:$0xff] %v7163
        %7196 = vst [vmem:[#allocation3 + $0x60] sm:$0xff] %v7164
        %7197 = vst [vmem:[#allocation3 + $0xa8] sm:$0xff] %v7165
        %7198 = vst [vmem:[#allocation3 + $0xf0] sm:$0xff] %v7166
        %7199 = vst [vmem:[#allocation3 + $0x138] sm:$0xff] %v7167
        %7200 = vst [vmem:[#allocation3 + $0x180] sm:$0xff] %v7168
        %7201 = vst [vmem:[#allocation3 + $0x1c8] sm:$0xff] %v7169
        %7202 = vst [vmem:[#allocation3 + $0x210] sm:$0xff] %v7170
        %7203 = vst [vmem:[#allocation3 + $0x258] sm:$0xff] %v7171
        %7204 = vst [vmem:[#allocation3 + $0x2a0] sm:$0xff] %v7172
        %7205 = vst [vmem:[#allocation3 + $0x2e8] sm:$0xff] %v7173
        %7206 = vst [vmem:[#allocation3 + $0x330] sm:$0xff] %v7174
        %7207 = vst [vmem:[#allocation3 + $0x378] sm:$0xff] %v7175
        %7208 = vst [vmem:[#allocation3 + $0x3c0] sm:$0xff] %v7176
        %7209 = vst [vmem:[#allocation3 + $0x408] sm:$0xff] %v7177
        %7210 = vst [vmem:[#allocation3 + $0x450] sm:$0xff] %v7178
        %v7211 = vld [vmem:[%s996] sm:$0xf]
        %v7212 = vld [vmem:[%s996 + $0x4] sm:$0xf]
        %v7213 = vld [vmem:[%s996 + $0x8] sm:$0x1]
        %v7214 = vld [vmem:[%s996 + $0xc] sm:$0xf]
        %v7215 = vld [vmem:[%s996 + $0x10] sm:$0xf]
        %v7216 = vld [vmem:[%s996 + $0x14] sm:$0x1]
        %v7217 = vld [vmem:[%s996 + $0x18] sm:$0xf]
        %v7218 = vld [vmem:[%s996 + $0x1c] sm:$0xf]
        %v7219 = vld [vmem:[%s996 + $0x20] sm:$0x1]
        %v7220 = vld [vmem:[%s996 + $0x24] sm:$0xf]
        %v7221 = vld [vmem:[%s996 + $0x28] sm:$0xf]
        %v7222 = vld [vmem:[%s996 + $0x2c] sm:$0x1]
        %v7223 = vld [vmem:[%s996 + $0x30] sm:$0xf]
        %v7224 = vld [vmem:[%s996 + $0x34] sm:$0xf]
        %v7225 = vld [vmem:[%s996 + $0x38] sm:$0x1]
        %v7226 = vld [vmem:[%s996 + $0x3c] sm:$0xf]
        %v7227 = vld [vmem:[%s996 + $0x40] sm:$0xf]
        %v7228 = vld [vmem:[%s996 + $0x44] sm:$0x1]
        %v7229 = vld [vmem:[%s996 + $0x48] sm:$0xf]
        %v7230 = vld [vmem:[%s996 + $0x4c] sm:$0xf]
        %v7231 = vld [vmem:[%s996 + $0x50] sm:$0x1]
        %v7232 = vld [vmem:[%s996 + $0x54] sm:$0xf]
        %v7233 = vld [vmem:[%s996 + $0x58] sm:$0xf]
        %v7234 = vld [vmem:[%s996 + $0x5c] sm:$0x1]
        %v7235 = vld [vmem:[%s996 + $0x60] sm:$0xf]
        %v7236 = vld [vmem:[%s996 + $0x64] sm:$0xf]
        %v7237 = vld [vmem:[%s996 + $0x68] sm:$0x1]
        %v7238 = vld [vmem:[%s996 + $0x6c] sm:$0xf]
        %v7239 = vld [vmem:[%s996 + $0x70] sm:$0xf]
        %v7240 = vld [vmem:[%s996 + $0x74] sm:$0x1]
        %v7241 = vld [vmem:[%s996 + $0x78] sm:$0xf]
        %v7242 = vld [vmem:[%s996 + $0x7c] sm:$0xf]
        %v7243 = vld [vmem:[%s996 + $0x80] sm:$0x1]
        %v7244 = vld [vmem:[%s996 + $0x84] sm:$0xf]
        %v7245 = vld [vmem:[%s996 + $0x88] sm:$0xf]
        %v7246 = vld [vmem:[%s996 + $0x8c] sm:$0x1]
        %v7247 = vld [vmem:[%s996 + $0x90] sm:$0xf]
        %v7248 = vld [vmem:[%s996 + $0x94] sm:$0xf]
        %v7249 = vld [vmem:[%s996 + $0x98] sm:$0x1]
        %v7250 = vld [vmem:[%s996 + $0x9c] sm:$0xf]
        %v7251 = vld [vmem:[%s996 + $0xa0] sm:$0xf]
        %v7252 = vld [vmem:[%s996 + $0xa4] sm:$0x1]
        %v7253 = vld [vmem:[%s996 + $0xa8] sm:$0xf]
        %v7254 = vld [vmem:[%s996 + $0xac] sm:$0xf]
        %v7255 = vld [vmem:[%s996 + $0xb0] sm:$0x1]
        %v7256 = vld [vmem:[%s996 + $0xb4] sm:$0xf]
        %v7257 = vld [vmem:[%s996 + $0xb8] sm:$0xf]
        %v7258 = vld [vmem:[%s996 + $0xbc] sm:$0x1]
        %v7260 = vshrl.u32 %v7211, 16
        %v7262 = vrot.slane %v7260, 4
        %v7263 = vshll.u32 %v7211, 16
        %v7265 = vrot.slane %v7263, 5
        %v7266 = vor.u32 %v7262, %v7265
        %v7267 = vrot.slane %v7266, 4
        %v7269 = vshll.u32 %v7212, 16
        %v7271 = vrot.slane %v7269, 5
        %v7272 = vsel %vm1308, %v7267, %v7271
        %v7273 = vshrl.u32 %v7212, 16
        %v7275 = vrot.slane %v7273, 4
        %v7276 = vor.u32 %v7275, %v7271
        %v7277 = vrot.slane %v7276, 4
        %v7279 = vshll.u32 %v7213, 16
        %v7281 = vrot.slane %v7279, 5
        %v7282 = vsel %vm1308, %v7277, %v7281
        %v7284 = vshrl.u32 %v7214, 16
        %v7286 = vrot.slane %v7284, 4
        %v7287 = vshll.u32 %v7214, 16
        %v7289 = vrot.slane %v7287, 5
        %v7290 = vor.u32 %v7286, %v7289
        %v7291 = vrot.slane %v7290, 4
        %v7293 = vshll.u32 %v7215, 16
        %v7295 = vrot.slane %v7293, 5
        %v7296 = vsel %vm1308, %v7291, %v7295
        %v7297 = vshrl.u32 %v7215, 16
        %v7299 = vrot.slane %v7297, 4
        %v7300 = vor.u32 %v7299, %v7295
        %v7301 = vrot.slane %v7300, 4
        %v7303 = vshll.u32 %v7216, 16
        %v7305 = vrot.slane %v7303, 5
        %v7306 = vsel %vm1308, %v7301, %v7305
        %v7308 = vshrl.u32 %v7217, 16
        %v7310 = vrot.slane %v7308, 4
        %v7311 = vshll.u32 %v7217, 16
        %v7313 = vrot.slane %v7311, 5
        %v7314 = vor.u32 %v7310, %v7313
        %v7315 = vrot.slane %v7314, 4
        %v7317 = vshll.u32 %v7218, 16
        %v7319 = vrot.slane %v7317, 5
        %v7320 = vsel %vm1308, %v7315, %v7319
        %v7321 = vshrl.u32 %v7218, 16
        %v7323 = vrot.slane %v7321, 4
        %v7324 = vor.u32 %v7323, %v7319
        %v7325 = vrot.slane %v7324, 4
        %v7327 = vshll.u32 %v7219, 16
        %v7329 = vrot.slane %v7327, 5
        %v7330 = vsel %vm1308, %v7325, %v7329
        %v7332 = vshrl.u32 %v7220, 16
        %v7334 = vrot.slane %v7332, 4
        %v7335 = vshll.u32 %v7220, 16
        %v7337 = vrot.slane %v7335, 5
        %v7338 = vor.u32 %v7334, %v7337
        %v7339 = vrot.slane %v7338, 4
        %v7341 = vshll.u32 %v7221, 16
        %v7343 = vrot.slane %v7341, 5
        %v7344 = vsel %vm1308, %v7339, %v7343
        %v7345 = vshrl.u32 %v7221, 16
        %v7347 = vrot.slane %v7345, 4
        %v7348 = vor.u32 %v7347, %v7343
        %v7349 = vrot.slane %v7348, 4
        %v7351 = vshll.u32 %v7222, 16
        %v7353 = vrot.slane %v7351, 5
        %v7354 = vsel %vm1308, %v7349, %v7353
        %v7356 = vshrl.u32 %v7223, 16
        %v7358 = vrot.slane %v7356, 4
        %v7359 = vshll.u32 %v7223, 16
        %v7361 = vrot.slane %v7359, 5
        %v7362 = vor.u32 %v7358, %v7361
        %v7363 = vrot.slane %v7362, 4
        %v7365 = vshll.u32 %v7224, 16
        %v7367 = vrot.slane %v7365, 5
        %v7368 = vsel %vm1308, %v7363, %v7367
        %v7369 = vshrl.u32 %v7224, 16
        %v7371 = vrot.slane %v7369, 4
        %v7372 = vor.u32 %v7371, %v7367
        %v7373 = vrot.slane %v7372, 4
        %v7375 = vshll.u32 %v7225, 16
        %v7377 = vrot.slane %v7375, 5
        %v7378 = vsel %vm1308, %v7373, %v7377
        %v7380 = vshrl.u32 %v7226, 16
        %v7382 = vrot.slane %v7380, 4
        %v7383 = vshll.u32 %v7226, 16
        %v7385 = vrot.slane %v7383, 5
        %v7386 = vor.u32 %v7382, %v7385
        %v7387 = vrot.slane %v7386, 4
        %v7389 = vshll.u32 %v7227, 16
        %v7391 = vrot.slane %v7389, 5
        %v7392 = vsel %vm1308, %v7387, %v7391
        %v7393 = vshrl.u32 %v7227, 16
        %v7395 = vrot.slane %v7393, 4
        %v7396 = vor.u32 %v7395, %v7391
        %v7397 = vrot.slane %v7396, 4
        %v7399 = vshll.u32 %v7228, 16
        %v7401 = vrot.slane %v7399, 5
        %v7402 = vsel %vm1308, %v7397, %v7401
        %v7404 = vshrl.u32 %v7229, 16
        %v7406 = vrot.slane %v7404, 4
        %v7407 = vshll.u32 %v7229, 16
        %v7409 = vrot.slane %v7407, 5
        %v7410 = vor.u32 %v7406, %v7409
        %v7411 = vrot.slane %v7410, 4
        %v7413 = vshll.u32 %v7230, 16
        %v7415 = vrot.slane %v7413, 5
        %v7416 = vsel %vm1308, %v7411, %v7415
        %v7417 = vshrl.u32 %v7230, 16
        %v7419 = vrot.slane %v7417, 4
        %v7420 = vor.u32 %v7419, %v7415
        %v7421 = vrot.slane %v7420, 4
        %v7423 = vshll.u32 %v7231, 16
        %v7425 = vrot.slane %v7423, 5
        %v7426 = vsel %vm1308, %v7421, %v7425
        %v7428 = vshrl.u32 %v7232, 16
        %v7430 = vrot.slane %v7428, 4
        %v7431 = vshll.u32 %v7232, 16
        %v7433 = vrot.slane %v7431, 5
        %v7434 = vor.u32 %v7430, %v7433
        %v7435 = vrot.slane %v7434, 4
        %v7437 = vshll.u32 %v7233, 16
        %v7439 = vrot.slane %v7437, 5
        %v7440 = vsel %vm1308, %v7435, %v7439
        %v7441 = vshrl.u32 %v7233, 16
        %v7443 = vrot.slane %v7441, 4
        %v7444 = vor.u32 %v7443, %v7439
        %v7445 = vrot.slane %v7444, 4
        %v7447 = vshll.u32 %v7234, 16
        %v7449 = vrot.slane %v7447, 5
        %v7450 = vsel %vm1308, %v7445, %v7449
        %v7452 = vshrl.u32 %v7235, 16
        %v7454 = vrot.slane %v7452, 4
        %v7455 = vshll.u32 %v7235, 16
        %v7457 = vrot.slane %v7455, 5
        %v7458 = vor.u32 %v7454, %v7457
        %v7459 = vrot.slane %v7458, 4
        %v7461 = vshll.u32 %v7236, 16
        %v7463 = vrot.slane %v7461, 5
        %v7464 = vsel %vm1308, %v7459, %v7463
        %v7465 = vshrl.u32 %v7236, 16
        %v7467 = vrot.slane %v7465, 4
        %v7468 = vor.u32 %v7467, %v7463
        %v7469 = vrot.slane %v7468, 4
        %v7471 = vshll.u32 %v7237, 16
        %v7473 = vrot.slane %v7471, 5
        %v7474 = vsel %vm1308, %v7469, %v7473
        %v7476 = vshrl.u32 %v7238, 16
        %v7478 = vrot.slane %v7476, 4
        %v7479 = vshll.u32 %v7238, 16
        %v7481 = vrot.slane %v7479, 5
        %v7482 = vor.u32 %v7478, %v7481
        %v7483 = vrot.slane %v7482, 4
        %v7485 = vshll.u32 %v7239, 16
        %v7487 = vrot.slane %v7485, 5
        %v7488 = vsel %vm1308, %v7483, %v7487
        %v7489 = vshrl.u32 %v7239, 16
        %v7491 = vrot.slane %v7489, 4
        %v7492 = vor.u32 %v7491, %v7487
        %v7493 = vrot.slane %v7492, 4
        %v7495 = vshll.u32 %v7240, 16
        %v7497 = vrot.slane %v7495, 5
        %v7498 = vsel %vm1308, %v7493, %v7497
        %v7500 = vshrl.u32 %v7241, 16
        %v7502 = vrot.slane %v7500, 4
        %v7503 = vshll.u32 %v7241, 16
        %v7505 = vrot.slane %v7503, 5
        %v7506 = vor.u32 %v7502, %v7505
        %v7507 = vrot.slane %v7506, 4
        %v7509 = vshll.u32 %v7242, 16
        %v7511 = vrot.slane %v7509, 5
        %v7512 = vsel %vm1308, %v7507, %v7511
        %v7513 = vshrl.u32 %v7242, 16
        %v7515 = vrot.slane %v7513, 4
        %v7516 = vor.u32 %v7515, %v7511
        %v7517 = vrot.slane %v7516, 4
        %v7519 = vshll.u32 %v7243, 16
        %v7521 = vrot.slane %v7519, 5
        %v7522 = vsel %vm1308, %v7517, %v7521
        %v7524 = vshrl.u32 %v7244, 16
        %v7526 = vrot.slane %v7524, 4
        %v7527 = vshll.u32 %v7244, 16
        %v7529 = vrot.slane %v7527, 5
        %v7530 = vor.u32 %v7526, %v7529
        %v7531 = vrot.slane %v7530, 4
        %v7533 = vshll.u32 %v7245, 16
        %v7535 = vrot.slane %v7533, 5
        %v7536 = vsel %vm1308, %v7531, %v7535
        %v7537 = vshrl.u32 %v7245, 16
        %v7539 = vrot.slane %v7537, 4
        %v7540 = vor.u32 %v7539, %v7535
        %v7541 = vrot.slane %v7540, 4
        %v7543 = vshll.u32 %v7246, 16
        %v7545 = vrot.slane %v7543, 5
        %v7546 = vsel %vm1308, %v7541, %v7545
        %v7548 = vshrl.u32 %v7247, 16
        %v7550 = vrot.slane %v7548, 4
        %v7551 = vshll.u32 %v7247, 16
        %v7553 = vrot.slane %v7551, 5
        %v7554 = vor.u32 %v7550, %v7553
        %v7555 = vrot.slane %v7554, 4
        %v7557 = vshll.u32 %v7248, 16
        %v7559 = vrot.slane %v7557, 5
        %v7560 = vsel %vm1308, %v7555, %v7559
        %v7561 = vshrl.u32 %v7248, 16
        %v7563 = vrot.slane %v7561, 4
        %v7564 = vor.u32 %v7563, %v7559
        %v7565 = vrot.slane %v7564, 4
        %v7567 = vshll.u32 %v7249, 16
        %v7569 = vrot.slane %v7567, 5
        %v7570 = vsel %vm1308, %v7565, %v7569
        %v7572 = vshrl.u32 %v7250, 16
        %v7574 = vrot.slane %v7572, 4
        %v7575 = vshll.u32 %v7250, 16
        %v7577 = vrot.slane %v7575, 5
        %v7578 = vor.u32 %v7574, %v7577
        %v7579 = vrot.slane %v7578, 4
        %v7581 = vshll.u32 %v7251, 16
        %v7583 = vrot.slane %v7581, 5
        %v7584 = vsel %vm1308, %v7579, %v7583
        %v7585 = vshrl.u32 %v7251, 16
        %v7587 = vrot.slane %v7585, 4
        %v7588 = vor.u32 %v7587, %v7583
        %v7589 = vrot.slane %v7588, 4
        %v7591 = vshll.u32 %v7252, 16
        %v7593 = vrot.slane %v7591, 5
        %v7594 = vsel %vm1308, %v7589, %v7593
        %v7596 = vshrl.u32 %v7253, 16
        %v7598 = vrot.slane %v7596, 4
        %v7599 = vshll.u32 %v7253, 16
        %v7601 = vrot.slane %v7599, 5
        %v7602 = vor.u32 %v7598, %v7601
        %v7603 = vrot.slane %v7602, 4
        %v7605 = vshll.u32 %v7254, 16
        %v7607 = vrot.slane %v7605, 5
        %v7608 = vsel %vm1308, %v7603, %v7607
        %v7609 = vshrl.u32 %v7254, 16
        %v7611 = vrot.slane %v7609, 4
        %v7612 = vor.u32 %v7611, %v7607
        %v7613 = vrot.slane %v7612, 4
        %v7615 = vshll.u32 %v7255, 16
        %v7617 = vrot.slane %v7615, 5
        %v7618 = vsel %vm1308, %v7613, %v7617
        %v7620 = vshrl.u32 %v7256, 16
        %v7622 = vrot.slane %v7620, 4
        %v7623 = vshll.u32 %v7256, 16
        %v7625 = vrot.slane %v7623, 5
        %v7626 = vor.u32 %v7622, %v7625
        %v7627 = vrot.slane %v7626, 4
        %v7629 = vshll.u32 %v7257, 16
        %v7631 = vrot.slane %v7629, 5
        %v7632 = vsel %vm1308, %v7627, %v7631
        %v7633 = vshrl.u32 %v7257, 16
        %v7635 = vrot.slane %v7633, 4
        %v7636 = vor.u32 %v7635, %v7631
        %v7637 = vrot.slane %v7636, 4
        %v7639 = vshll.u32 %v7258, 16
        %v7641 = vrot.slane %v7639, 5
        %v7642 = vsel %vm1308, %v7637, %v7641
        %v7643 = vunpack.c.l.b16 %v7272
        %v7644 = vunpack.c.l.b16 %v7282
        %v7645 = vunpack.c.l.b16 %v7296
        %v7646 = vunpack.c.l.b16 %v7306
        %v7647 = vunpack.c.l.b16 %v7320
        %v7648 = vunpack.c.l.b16 %v7330
        %v7649 = vunpack.c.l.b16 %v7344
        %v7650 = vunpack.c.l.b16 %v7354
        %v7651 = vunpack.c.l.b16 %v7368
        %v7652 = vunpack.c.l.b16 %v7378
        %v7653 = vunpack.c.l.b16 %v7392
        %v7654 = vunpack.c.l.b16 %v7402
        %v7655 = vunpack.c.l.b16 %v7416
        %v7656 = vunpack.c.l.b16 %v7426
        %v7657 = vunpack.c.l.b16 %v7440
        %v7658 = vunpack.c.l.b16 %v7450
        %v7659 = vunpack.c.l.b16 %v7464
        %v7660 = vunpack.c.l.b16 %v7474
        %v7661 = vunpack.c.l.b16 %v7488
        %v7662 = vunpack.c.l.b16 %v7498
        %v7663 = vunpack.c.l.b16 %v7512
        %v7664 = vunpack.c.l.b16 %v7522
        %v7665 = vunpack.c.l.b16 %v7536
        %v7666 = vunpack.c.l.b16 %v7546
        %v7667 = vunpack.c.l.b16 %v7560
        %v7668 = vunpack.c.l.b16 %v7570
        %v7669 = vunpack.c.l.b16 %v7584
        %v7670 = vunpack.c.l.b16 %v7594
        %v7671 = vunpack.c.l.b16 %v7608
        %v7672 = vunpack.c.l.b16 %v7618
        %v7673 = vunpack.c.l.b16 %v7632
        %v7674 = vunpack.c.l.b16 %v7642
        %v7675 = vpack.c.b16 %v7644, %v7643
        %v7676 = vpack.c.b16 %v7646, %v7645
        %v7677 = vpack.c.b16 %v7648, %v7647
        %v7678 = vpack.c.b16 %v7650, %v7649
        %v7679 = vpack.c.b16 %v7652, %v7651
        %v7680 = vpack.c.b16 %v7654, %v7653
        %v7681 = vpack.c.b16 %v7656, %v7655
        %v7682 = vpack.c.b16 %v7658, %v7657
        %v7683 = vpack.c.b16 %v7660, %v7659
        %v7684 = vpack.c.b16 %v7662, %v7661
        %v7685 = vpack.c.b16 %v7664, %v7663
        %v7686 = vpack.c.b16 %v7666, %v7665
        %v7687 = vpack.c.b16 %v7668, %v7667
        %v7688 = vpack.c.b16 %v7670, %v7669
        %v7689 = vpack.c.b16 %v7672, %v7671
        %v7690 = vpack.c.b16 %v7674, %v7673
        %7707 = vst [vmem:[#allocation3 + $0x20] sm:$0xff] %v7675
        %7708 = vst [vmem:[#allocation3 + $0x68] sm:$0xff] %v7676
        %7709 = vst [vmem:[#allocation3 + $0xb0] sm:$0xff] %v7677
        %7710 = vst [vmem:[#allocation3 + $0xf8] sm:$0xff] %v7678
        %7711 = vst [vmem:[#allocation3 + $0x140] sm:$0xff] %v7679
        %7712 = vst [vmem:[#allocation3 + $0x188] sm:$0xff] %v7680
        %7713 = vst [vmem:[#allocation3 + $0x1d0] sm:$0xff] %v7681
        %7714 = vst [vmem:[#allocation3 + $0x218] sm:$0xff] %v7682
        %7715 = vst [vmem:[#allocation3 + $0x260] sm:$0xff] %v7683
        %7716 = vst [vmem:[#allocation3 + $0x2a8] sm:$0xff] %v7684
        %7717 = vst [vmem:[#allocation3 + $0x2f0] sm:$0xff] %v7685
        %7718 = vst [vmem:[#allocation3 + $0x338] sm:$0xff] %v7686
        %7719 = vst [vmem:[#allocation3 + $0x380] sm:$0xff] %v7687
        %7720 = vst [vmem:[#allocation3 + $0x3c8] sm:$0xff] %v7688
        %7721 = vst [vmem:[#allocation3 + $0x410] sm:$0xff] %v7689
        %7722 = vst [vmem:[#allocation3 + $0x458] sm:$0xff] %v7690
        %v7723 = vld [vmem:[%s996] sm:$0xe]
        %v7724 = vld [vmem:[%s996 + $0x4] sm:$0xf]
        %v7725 = vld [vmem:[%s996 + $0x8] sm:$0x1]
        %v7726 = vld [vmem:[%s996 + $0xc] sm:$0xe]
        %v7727 = vld [vmem:[%s996 + $0x10] sm:$0xf]
        %v7728 = vld [vmem:[%s996 + $0x14] sm:$0x1]
        %v7729 = vld [vmem:[%s996 + $0x18] sm:$0xe]
        %v7730 = vld [vmem:[%s996 + $0x1c] sm:$0xf]
        %v7731 = vld [vmem:[%s996 + $0x20] sm:$0x1]
        %v7732 = vld [vmem:[%s996 + $0x24] sm:$0xe]
        %v7733 = vld [vmem:[%s996 + $0x28] sm:$0xf]
        %v7734 = vld [vmem:[%s996 + $0x2c] sm:$0x1]
        %v7735 = vld [vmem:[%s996 + $0x30] sm:$0xe]
        %v7736 = vld [vmem:[%s996 + $0x34] sm:$0xf]
        %v7737 = vld [vmem:[%s996 + $0x38] sm:$0x1]
        %v7738 = vld [vmem:[%s996 + $0x3c] sm:$0xe]
        %v7739 = vld [vmem:[%s996 + $0x40] sm:$0xf]
        %v7740 = vld [vmem:[%s996 + $0x44] sm:$0x1]
        %v7741 = vld [vmem:[%s996 + $0x48] sm:$0xe]
        %v7742 = vld [vmem:[%s996 + $0x4c] sm:$0xf]
        %v7743 = vld [vmem:[%s996 + $0x50] sm:$0x1]
        %v7744 = vld [vmem:[%s996 + $0x54] sm:$0xe]
        %v7745 = vld [vmem:[%s996 + $0x58] sm:$0xf]
        %v7746 = vld [vmem:[%s996 + $0x5c] sm:$0x1]
        %v7747 = vld [vmem:[%s996 + $0x60] sm:$0xe]
        %v7748 = vld [vmem:[%s996 + $0x64] sm:$0xf]
        %v7749 = vld [vmem:[%s996 + $0x68] sm:$0x1]
        %v7750 = vld [vmem:[%s996 + $0x6c] sm:$0xe]
        %v7751 = vld [vmem:[%s996 + $0x70] sm:$0xf]
        %v7752 = vld [vmem:[%s996 + $0x74] sm:$0x1]
        %v7753 = vld [vmem:[%s996 + $0x78] sm:$0xe]
        %v7754 = vld [vmem:[%s996 + $0x7c] sm:$0xf]
        %v7755 = vld [vmem:[%s996 + $0x80] sm:$0x1]
        %v7756 = vld [vmem:[%s996 + $0x84] sm:$0xe]
        %v7757 = vld [vmem:[%s996 + $0x88] sm:$0xf]
        %v7758 = vld [vmem:[%s996 + $0x8c] sm:$0x1]
        %v7759 = vld [vmem:[%s996 + $0x90] sm:$0xe]
        %v7760 = vld [vmem:[%s996 + $0x94] sm:$0xf]
        %v7761 = vld [vmem:[%s996 + $0x98] sm:$0x1]
        %v7762 = vld [vmem:[%s996 + $0x9c] sm:$0xe]
        %v7763 = vld [vmem:[%s996 + $0xa0] sm:$0xf]
        %v7764 = vld [vmem:[%s996 + $0xa4] sm:$0x1]
        %v7765 = vld [vmem:[%s996 + $0xa8] sm:$0xe]
        %v7766 = vld [vmem:[%s996 + $0xac] sm:$0xf]
        %v7767 = vld [vmem:[%s996 + $0xb0] sm:$0x1]
        %v7768 = vld [vmem:[%s996 + $0xb4] sm:$0xe]
        %v7769 = vld [vmem:[%s996 + $0xb8] sm:$0xf]
        %v7770 = vld [vmem:[%s996 + $0xbc] sm:$0x1]
        %v7819 = vrot.slane %v7723, 5
        %v7820 = vrot.slane %v7819, 4
        %v7821 = vrot.slane %v7724, 5
        %v7822 = vsel %vm1871, %v7820, %v7821
        %v7823 = vrot.slane %v7821, 4
        %v7824 = vrot.slane %v7725, 5
        %v7825 = vsel %vm1871, %v7823, %v7824
        %v7826 = vrot.slane %v7726, 5
        %v7827 = vrot.slane %v7826, 4
        %v7828 = vrot.slane %v7727, 5
        %v7829 = vsel %vm1871, %v7827, %v7828
        %v7830 = vrot.slane %v7828, 4
        %v7831 = vrot.slane %v7728, 5
        %v7832 = vsel %vm1871, %v7830, %v7831
        %v7833 = vrot.slane %v7729, 5
        %v7834 = vrot.slane %v7833, 4
        %v7835 = vrot.slane %v7730, 5
        %v7836 = vsel %vm1871, %v7834, %v7835
        %v7837 = vrot.slane %v7835, 4
        %v7838 = vrot.slane %v7731, 5
        %v7839 = vsel %vm1871, %v7837, %v7838
        %v7840 = vrot.slane %v7732, 5
        %v7841 = vrot.slane %v7840, 4
        %v7842 = vrot.slane %v7733, 5
        %v7843 = vsel %vm1871, %v7841, %v7842
        %v7844 = vrot.slane %v7842, 4
        %v7845 = vrot.slane %v7734, 5
        %v7846 = vsel %vm1871, %v7844, %v7845
        %v7847 = vrot.slane %v7735, 5
        %v7848 = vrot.slane %v7847, 4
        %v7849 = vrot.slane %v7736, 5
        %v7850 = vsel %vm1871, %v7848, %v7849
        %v7851 = vrot.slane %v7849, 4
        %v7852 = vrot.slane %v7737, 5
        %v7853 = vsel %vm1871, %v7851, %v7852
        %v7854 = vrot.slane %v7738, 5
        %v7855 = vrot.slane %v7854, 4
        %v7856 = vrot.slane %v7739, 5
        %v7857 = vsel %vm1871, %v7855, %v7856
        %v7858 = vrot.slane %v7856, 4
        %v7859 = vrot.slane %v7740, 5
        %v7860 = vsel %vm1871, %v7858, %v7859
        %v7861 = vrot.slane %v7741, 5
        %v7862 = vrot.slane %v7861, 4
        %v7863 = vrot.slane %v7742, 5
        %v7864 = vsel %vm1871, %v7862, %v7863
        %v7865 = vrot.slane %v7863, 4
        %v7866 = vrot.slane %v7743, 5
        %v7867 = vsel %vm1871, %v7865, %v7866
        %v7868 = vrot.slane %v7744, 5
        %v7869 = vrot.slane %v7868, 4
        %v7870 = vrot.slane %v7745, 5
        %v7871 = vsel %vm1871, %v7869, %v7870
        %v7872 = vrot.slane %v7870, 4
        %v7873 = vrot.slane %v7746, 5
        %v7874 = vsel %vm1871, %v7872, %v7873
        %v7875 = vrot.slane %v7747, 5
        %v7876 = vrot.slane %v7875, 4
        %v7877 = vrot.slane %v7748, 5
        %v7878 = vsel %vm1871, %v7876, %v7877
        %v7879 = vrot.slane %v7877, 4
        %v7880 = vrot.slane %v7749, 5
        %v7881 = vsel %vm1871, %v7879, %v7880
        %v7882 = vrot.slane %v7750, 5
        %v7883 = vrot.slane %v7882, 4
        %v7884 = vrot.slane %v7751, 5
        %v7885 = vsel %vm1871, %v7883, %v7884
        %v7886 = vrot.slane %v7884, 4
        %v7887 = vrot.slane %v7752, 5
        %v7888 = vsel %vm1871, %v7886, %v7887
        %v7889 = vrot.slane %v7753, 5
        %v7890 = vrot.slane %v7889, 4
        %v7891 = vrot.slane %v7754, 5
        %v7892 = vsel %vm1871, %v7890, %v7891
        %v7893 = vrot.slane %v7891, 4
        %v7894 = vrot.slane %v7755, 5
        %v7895 = vsel %vm1871, %v7893, %v7894
        %v7896 = vrot.slane %v7756, 5
        %v7897 = vrot.slane %v7896, 4
        %v7898 = vrot.slane %v7757, 5
        %v7899 = vsel %vm1871, %v7897, %v7898
        %v7900 = vrot.slane %v7898, 4
        %v7901 = vrot.slane %v7758, 5
        %v7902 = vsel %vm1871, %v7900, %v7901
        %v7903 = vrot.slane %v7759, 5
        %v7904 = vrot.slane %v7903, 4
        %v7905 = vrot.slane %v7760, 5
        %v7906 = vsel %vm1871, %v7904, %v7905
        %v7907 = vrot.slane %v7905, 4
        %v7908 = vrot.slane %v7761, 5
        %v7909 = vsel %vm1871, %v7907, %v7908
        %v7910 = vrot.slane %v7762, 5
        %v7911 = vrot.slane %v7910, 4
        %v7912 = vrot.slane %v7763, 5
        %v7913 = vsel %vm1871, %v7911, %v7912
        %v7914 = vrot.slane %v7912, 4
        %v7915 = vrot.slane %v7764, 5
        %v7916 = vsel %vm1871, %v7914, %v7915
        %v7917 = vrot.slane %v7765, 5
        %v7918 = vrot.slane %v7917, 4
        %v7919 = vrot.slane %v7766, 5
        %v7920 = vsel %vm1871, %v7918, %v7919
        %v7921 = vrot.slane %v7919, 4
        %v7922 = vrot.slane %v7767, 5
        %v7923 = vsel %vm1871, %v7921, %v7922
        %v7924 = vrot.slane %v7768, 5
        %v7925 = vrot.slane %v7924, 4
        %v7926 = vrot.slane %v7769, 5
        %v7927 = vsel %vm1871, %v7925, %v7926
        %v7928 = vrot.slane %v7926, 4
        %v7929 = vrot.slane %v7770, 5
        %v7930 = vsel %vm1871, %v7928, %v7929
        %v7931 = vunpack.c.l.b16 %v7822
        %v7932 = vunpack.c.l.b16 %v7825
        %v7933 = vunpack.c.l.b16 %v7829
        %v7934 = vunpack.c.l.b16 %v7832
        %v7935 = vunpack.c.l.b16 %v7836
        %v7936 = vunpack.c.l.b16 %v7839
        %v7937 = vunpack.c.l.b16 %v7843
        %v7938 = vunpack.c.l.b16 %v7846
        %v7939 = vunpack.c.l.b16 %v7850
        %v7940 = vunpack.c.l.b16 %v7853
        %v7941 = vunpack.c.l.b16 %v7857
        %v7942 = vunpack.c.l.b16 %v7860
        %v7943 = vunpack.c.l.b16 %v7864
        %v7944 = vunpack.c.l.b16 %v7867
        %v7945 = vunpack.c.l.b16 %v7871
        %v7946 = vunpack.c.l.b16 %v7874
        %v7947 = vunpack.c.l.b16 %v7878
        %v7948 = vunpack.c.l.b16 %v7881
        %v7949 = vunpack.c.l.b16 %v7885
        %v7950 = vunpack.c.l.b16 %v7888
        %v7951 = vunpack.c.l.b16 %v7892
        %v7952 = vunpack.c.l.b16 %v7895
        %v7953 = vunpack.c.l.b16 %v7899
        %v7954 = vunpack.c.l.b16 %v7902
        %v7955 = vunpack.c.l.b16 %v7906
        %v7956 = vunpack.c.l.b16 %v7909
        %v7957 = vunpack.c.l.b16 %v7913
        %v7958 = vunpack.c.l.b16 %v7916
        %v7959 = vunpack.c.l.b16 %v7920
        %v7960 = vunpack.c.l.b16 %v7923
        %v7961 = vunpack.c.l.b16 %v7927
        %v7962 = vunpack.c.l.b16 %v7930
        %v7963 = vpack.c.b16 %v7932, %v7931
        %v7964 = vpack.c.b16 %v7934, %v7933
        %v7965 = vpack.c.b16 %v7936, %v7935
        %v7966 = vpack.c.b16 %v7938, %v7937
        %v7967 = vpack.c.b16 %v7940, %v7939
        %v7968 = vpack.c.b16 %v7942, %v7941
        %v7969 = vpack.c.b16 %v7944, %v7943
        %v7970 = vpack.c.b16 %v7946, %v7945
        %v7971 = vpack.c.b16 %v7948, %v7947
        %v7972 = vpack.c.b16 %v7950, %v7949
        %v7973 = vpack.c.b16 %v7952, %v7951
        %v7974 = vpack.c.b16 %v7954, %v7953
        %v7975 = vpack.c.b16 %v7956, %v7955
        %v7976 = vpack.c.b16 %v7958, %v7957
        %v7977 = vpack.c.b16 %v7960, %v7959
        %v7978 = vpack.c.b16 %v7962, %v7961
        %7995 = vst [vmem:[#allocation3 + $0x28] sm:$0xff] %v7963
        %7996 = vst [vmem:[#allocation3 + $0x70] sm:$0xff] %v7964
        %7997 = vst [vmem:[#allocation3 + $0xb8] sm:$0xff] %v7965
        %7998 = vst [vmem:[#allocation3 + $0x100] sm:$0xff] %v7966
        %7999 = vst [vmem:[#allocation3 + $0x148] sm:$0xff] %v7967
        %8000 = vst [vmem:[#allocation3 + $0x190] sm:$0xff] %v7968
        %8001 = vst [vmem:[#allocation3 + $0x1d8] sm:$0xff] %v7969
        %8002 = vst [vmem:[#allocation3 + $0x220] sm:$0xff] %v7970
        %8003 = vst [vmem:[#allocation3 + $0x268] sm:$0xff] %v7971
        %8004 = vst [vmem:[#allocation3 + $0x2b0] sm:$0xff] %v7972
        %8005 = vst [vmem:[#allocation3 + $0x2f8] sm:$0xff] %v7973
        %8006 = vst [vmem:[#allocation3 + $0x340] sm:$0xff] %v7974
        %8007 = vst [vmem:[#allocation3 + $0x388] sm:$0xff] %v7975
        %8008 = vst [vmem:[#allocation3 + $0x3d0] sm:$0xff] %v7976
        %8009 = vst [vmem:[#allocation3 + $0x418] sm:$0xff] %v7977
        %8010 = vst [vmem:[#allocation3 + $0x460] sm:$0xff] %v7978
        %v8011 = vld [vmem:[%s3008] sm:$0xf]
        %v8012 = vld [vmem:[%s3008 + $0x4] sm:$0xf]
        %v8013 = vld [vmem:[%s3008 + $0xc] sm:$0xf]
        %v8014 = vld [vmem:[%s3008 + $0x10] sm:$0xf]
        %v8015 = vld [vmem:[%s3008 + $0x18] sm:$0xf]
        %v8016 = vld [vmem:[%s3008 + $0x1c] sm:$0xf]
        %v8017 = vld [vmem:[%s3008 + $0x24] sm:$0xf]
        %v8018 = vld [vmem:[%s3008 + $0x28] sm:$0xf]
        %v8019 = vld [vmem:[%s3008 + $0x30] sm:$0xf]
        %v8020 = vld [vmem:[%s3008 + $0x34] sm:$0xf]
        %v8021 = vld [vmem:[%s3008 + $0x3c] sm:$0xf]
        %v8022 = vld [vmem:[%s3008 + $0x40] sm:$0xf]
        %v8023 = vld [vmem:[%s3008 + $0x48] sm:$0xf]
        %v8024 = vld [vmem:[%s3008 + $0x4c] sm:$0xf]
        %v8025 = vld [vmem:[%s3008 + $0x54] sm:$0xf]
        %v8026 = vld [vmem:[%s3008 + $0x58] sm:$0xf]
        %v8027 = vld [vmem:[%s3008 + $0x60] sm:$0xf]
        %v8028 = vld [vmem:[%s3008 + $0x64] sm:$0xf]
        %v8029 = vld [vmem:[%s3008 + $0x6c] sm:$0xf]
        %v8030 = vld [vmem:[%s3008 + $0x70] sm:$0xf]
        %v8031 = vld [vmem:[%s3008 + $0x78] sm:$0xf]
        %v8032 = vld [vmem:[%s3008 + $0x7c] sm:$0xf]
        %v8033 = vld [vmem:[%s3008 + $0x84] sm:$0xf]
        %v8034 = vld [vmem:[%s3008 + $0x88] sm:$0xf]
        %v8035 = vld [vmem:[%s3008 + $0x90] sm:$0xf]
        %v8036 = vld [vmem:[%s3008 + $0x94] sm:$0xf]
        %v8037 = vld [vmem:[%s3008 + $0x9c] sm:$0xf]
        %v8038 = vld [vmem:[%s3008 + $0xa0] sm:$0xf]
        %v8039 = vld [vmem:[%s3008 + $0xa8] sm:$0xf]
        %v8040 = vld [vmem:[%s3008 + $0xac] sm:$0xf]
        %v8041 = vld [vmem:[%s3008 + $0xb4] sm:$0xf]
        %v8042 = vld [vmem:[%s3008 + $0xb8] sm:$0xf]
        %v8075 = vunpack.c.l.b16 %v8011
        %v8076 = vunpack.c.l.b16 %v8012
        %v8077 = vunpack.c.l.b16 %v8013
        %v8078 = vunpack.c.l.b16 %v8014
        %v8079 = vunpack.c.l.b16 %v8015
        %v8080 = vunpack.c.l.b16 %v8016
        %v8081 = vunpack.c.l.b16 %v8017
        %v8082 = vunpack.c.l.b16 %v8018
        %v8083 = vunpack.c.l.b16 %v8019
        %v8084 = vunpack.c.l.b16 %v8020
        %v8085 = vunpack.c.l.b16 %v8021
        %v8086 = vunpack.c.l.b16 %v8022
        %v8087 = vunpack.c.l.b16 %v8023
        %v8088 = vunpack.c.l.b16 %v8024
        %v8089 = vunpack.c.l.b16 %v8025
        %v8090 = vunpack.c.l.b16 %v8026
        %v8091 = vunpack.c.l.b16 %v8027
        %v8092 = vunpack.c.l.b16 %v8028
        %v8093 = vunpack.c.l.b16 %v8029
        %v8094 = vunpack.c.l.b16 %v8030
        %v8095 = vunpack.c.l.b16 %v8031
        %v8096 = vunpack.c.l.b16 %v8032
        %v8097 = vunpack.c.l.b16 %v8033
        %v8098 = vunpack.c.l.b16 %v8034
        %v8099 = vunpack.c.l.b16 %v8035
        %v8100 = vunpack.c.l.b16 %v8036
        %v8101 = vunpack.c.l.b16 %v8037
        %v8102 = vunpack.c.l.b16 %v8038
        %v8103 = vunpack.c.l.b16 %v8039
        %v8104 = vunpack.c.l.b16 %v8040
        %v8105 = vunpack.c.l.b16 %v8041
        %v8106 = vunpack.c.l.b16 %v8042
        %v8107 = vpack.c.b16 %v8076, %v8075
        %v8108 = vpack.c.b16 %v8078, %v8077
        %v8109 = vpack.c.b16 %v8080, %v8079
        %v8110 = vpack.c.b16 %v8082, %v8081
        %v8111 = vpack.c.b16 %v8084, %v8083
        %v8112 = vpack.c.b16 %v8086, %v8085
        %v8113 = vpack.c.b16 %v8088, %v8087
        %v8114 = vpack.c.b16 %v8090, %v8089
        %v8115 = vpack.c.b16 %v8092, %v8091
        %v8116 = vpack.c.b16 %v8094, %v8093
        %v8117 = vpack.c.b16 %v8096, %v8095
        %v8118 = vpack.c.b16 %v8098, %v8097
        %v8119 = vpack.c.b16 %v8100, %v8099
        %v8120 = vpack.c.b16 %v8102, %v8101
        %v8121 = vpack.c.b16 %v8104, %v8103
        %v8122 = vpack.c.b16 %v8106, %v8105
        %8139 = vst [vmem:[#allocation3 + $0x30] sm:$0xff] %v8107
        %8140 = vst [vmem:[#allocation3 + $0x78] sm:$0xff] %v8108
        %8141 = vst [vmem:[#allocation3 + $0xc0] sm:$0xff] %v8109
        %8142 = vst [vmem:[#allocation3 + $0x108] sm:$0xff] %v8110
        %8143 = vst [vmem:[#allocation3 + $0x150] sm:$0xff] %v8111
        %8144 = vst [vmem:[#allocation3 + $0x198] sm:$0xff] %v8112
        %8145 = vst [vmem:[#allocation3 + $0x1e0] sm:$0xff] %v8113
        %8146 = vst [vmem:[#allocation3 + $0x228] sm:$0xff] %v8114
        %8147 = vst [vmem:[#allocation3 + $0x270] sm:$0xff] %v8115
        %8148 = vst [vmem:[#allocation3 + $0x2b8] sm:$0xff] %v8116
        %8149 = vst [vmem:[#allocation3 + $0x300] sm:$0xff] %v8117
        %8150 = vst [vmem:[#allocation3 + $0x348] sm:$0xff] %v8118
        %8151 = vst [vmem:[#allocation3 + $0x390] sm:$0xff] %v8119
        %8152 = vst [vmem:[#allocation3 + $0x3d8] sm:$0xff] %v8120
        %8153 = vst [vmem:[#allocation3 + $0x420] sm:$0xff] %v8121
        %8154 = vst [vmem:[#allocation3 + $0x468] sm:$0xff] %v8122
        %v8155 = vld [vmem:[%s3008] sm:$0xf]
        %v8156 = vld [vmem:[%s3008 + $0x4] sm:$0xf]
        %v8157 = vld [vmem:[%s3008 + $0x8] sm:$0x1]
        %v8158 = vld [vmem:[%s3008 + $0xc] sm:$0xf]
        %v8159 = vld [vmem:[%s3008 + $0x10] sm:$0xf]
        %v8160 = vld [vmem:[%s3008 + $0x14] sm:$0x1]
        %v8161 = vld [vmem:[%s3008 + $0x18] sm:$0xf]
        %v8162 = vld [vmem:[%s3008 + $0x1c] sm:$0xf]
        %v8163 = vld [vmem:[%s3008 + $0x20] sm:$0x1]
        %v8164 = vld [vmem:[%s3008 + $0x24] sm:$0xf]
        %v8165 = vld [vmem:[%s3008 + $0x28] sm:$0xf]
        %v8166 = vld [vmem:[%s3008 + $0x2c] sm:$0x1]
        %v8167 = vld [vmem:[%s3008 + $0x30] sm:$0xf]
        %v8168 = vld [vmem:[%s3008 + $0x34] sm:$0xf]
        %v8169 = vld [vmem:[%s3008 + $0x38] sm:$0x1]
        %v8170 = vld [vmem:[%s3008 + $0x3c] sm:$0xf]
        %v8171 = vld [vmem:[%s3008 + $0x40] sm:$0xf]
        %v8172 = vld [vmem:[%s3008 + $0x44] sm:$0x1]
        %v8173 = vld [vmem:[%s3008 + $0x48] sm:$0xf]
        %v8174 = vld [vmem:[%s3008 + $0x4c] sm:$0xf]
        %v8175 = vld [vmem:[%s3008 + $0x50] sm:$0x1]
        %v8176 = vld [vmem:[%s3008 + $0x54] sm:$0xf]
        %v8177 = vld [vmem:[%s3008 + $0x58] sm:$0xf]
        %v8178 = vld [vmem:[%s3008 + $0x5c] sm:$0x1]
        %v8179 = vld [vmem:[%s3008 + $0x60] sm:$0xf]
        %v8180 = vld [vmem:[%s3008 + $0x64] sm:$0xf]
        %v8181 = vld [vmem:[%s3008 + $0x68] sm:$0x1]
        %v8182 = vld [vmem:[%s3008 + $0x6c] sm:$0xf]
        %v8183 = vld [vmem:[%s3008 + $0x70] sm:$0xf]
        %v8184 = vld [vmem:[%s3008 + $0x74] sm:$0x1]
        %v8185 = vld [vmem:[%s3008 + $0x78] sm:$0xf]
        %v8186 = vld [vmem:[%s3008 + $0x7c] sm:$0xf]
        %v8187 = vld [vmem:[%s3008 + $0x80] sm:$0x1]
        %v8188 = vld [vmem:[%s3008 + $0x84] sm:$0xf]
        %v8189 = vld [vmem:[%s3008 + $0x88] sm:$0xf]
        %v8190 = vld [vmem:[%s3008 + $0x8c] sm:$0x1]
        %v8191 = vld [vmem:[%s3008 + $0x90] sm:$0xf]
        %v8192 = vld [vmem:[%s3008 + $0x94] sm:$0xf]
        %v8193 = vld [vmem:[%s3008 + $0x98] sm:$0x1]
        %v8194 = vld [vmem:[%s3008 + $0x9c] sm:$0xf]
        %v8195 = vld [vmem:[%s3008 + $0xa0] sm:$0xf]
        %v8196 = vld [vmem:[%s3008 + $0xa4] sm:$0x1]
        %v8197 = vld [vmem:[%s3008 + $0xa8] sm:$0xf]
        %v8198 = vld [vmem:[%s3008 + $0xac] sm:$0xf]
        %v8199 = vld [vmem:[%s3008 + $0xb0] sm:$0x1]
        %v8200 = vld [vmem:[%s3008 + $0xb4] sm:$0xf]
        %v8201 = vld [vmem:[%s3008 + $0xb8] sm:$0xf]
        %v8202 = vld [vmem:[%s3008 + $0xbc] sm:$0x1]
        %v8204 = vshrl.u32 %v8155, 16
        %v8206 = vrot.slane %v8204, 4
        %v8207 = vshll.u32 %v8155, 16
        %v8209 = vrot.slane %v8207, 5
        %v8210 = vor.u32 %v8206, %v8209
        %v8211 = vrot.slane %v8210, 4
        %v8213 = vshll.u32 %v8156, 16
        %v8215 = vrot.slane %v8213, 5
        %v8216 = vsel %vm1308, %v8211, %v8215
        %v8217 = vshrl.u32 %v8156, 16
        %v8219 = vrot.slane %v8217, 4
        %v8220 = vor.u32 %v8219, %v8215
        %v8221 = vrot.slane %v8220, 4
        %v8223 = vshll.u32 %v8157, 16
        %v8225 = vrot.slane %v8223, 5
        %v8226 = vsel %vm1308, %v8221, %v8225
        %v8228 = vshrl.u32 %v8158, 16
        %v8230 = vrot.slane %v8228, 4
        %v8231 = vshll.u32 %v8158, 16
        %v8233 = vrot.slane %v8231, 5
        %v8234 = vor.u32 %v8230, %v8233
        %v8235 = vrot.slane %v8234, 4
        %v8237 = vshll.u32 %v8159, 16
        %v8239 = vrot.slane %v8237, 5
        %v8240 = vsel %vm1308, %v8235, %v8239
        %v8241 = vshrl.u32 %v8159, 16
        %v8243 = vrot.slane %v8241, 4
        %v8244 = vor.u32 %v8243, %v8239
        %v8245 = vrot.slane %v8244, 4
        %v8247 = vshll.u32 %v8160, 16
        %v8249 = vrot.slane %v8247, 5
        %v8250 = vsel %vm1308, %v8245, %v8249
        %v8252 = vshrl.u32 %v8161, 16
        %v8254 = vrot.slane %v8252, 4
        %v8255 = vshll.u32 %v8161, 16
        %v8257 = vrot.slane %v8255, 5
        %v8258 = vor.u32 %v8254, %v8257
        %v8259 = vrot.slane %v8258, 4
        %v8261 = vshll.u32 %v8162, 16
        %v8263 = vrot.slane %v8261, 5
        %v8264 = vsel %vm1308, %v8259, %v8263
        %v8265 = vshrl.u32 %v8162, 16
        %v8267 = vrot.slane %v8265, 4
        %v8268 = vor.u32 %v8267, %v8263
        %v8269 = vrot.slane %v8268, 4
        %v8271 = vshll.u32 %v8163, 16
        %v8273 = vrot.slane %v8271, 5
        %v8274 = vsel %vm1308, %v8269, %v8273
        %v8276 = vshrl.u32 %v8164, 16
        %v8278 = vrot.slane %v8276, 4
        %v8279 = vshll.u32 %v8164, 16
        %v8281 = vrot.slane %v8279, 5
        %v8282 = vor.u32 %v8278, %v8281
        %v8283 = vrot.slane %v8282, 4
        %v8285 = vshll.u32 %v8165, 16
        %v8287 = vrot.slane %v8285, 5
        %v8288 = vsel %vm1308, %v8283, %v8287
        %v8289 = vshrl.u32 %v8165, 16
        %v8291 = vrot.slane %v8289, 4
        %v8292 = vor.u32 %v8291, %v8287
        %v8293 = vrot.slane %v8292, 4
        %v8295 = vshll.u32 %v8166, 16
        %v8297 = vrot.slane %v8295, 5
        %v8298 = vsel %vm1308, %v8293, %v8297
        %v8300 = vshrl.u32 %v8167, 16
        %v8302 = vrot.slane %v8300, 4
        %v8303 = vshll.u32 %v8167, 16
        %v8305 = vrot.slane %v8303, 5
        %v8306 = vor.u32 %v8302, %v8305
        %v8307 = vrot.slane %v8306, 4
        %v8309 = vshll.u32 %v8168, 16
        %v8311 = vrot.slane %v8309, 5
        %v8312 = vsel %vm1308, %v8307, %v8311
        %v8313 = vshrl.u32 %v8168, 16
        %v8315 = vrot.slane %v8313, 4
        %v8316 = vor.u32 %v8315, %v8311
        %v8317 = vrot.slane %v8316, 4
        %v8319 = vshll.u32 %v8169, 16
        %v8321 = vrot.slane %v8319, 5
        %v8322 = vsel %vm1308, %v8317, %v8321
        %v8324 = vshrl.u32 %v8170, 16
        %v8326 = vrot.slane %v8324, 4
        %v8327 = vshll.u32 %v8170, 16
        %v8329 = vrot.slane %v8327, 5
        %v8330 = vor.u32 %v8326, %v8329
        %v8331 = vrot.slane %v8330, 4
        %v8333 = vshll.u32 %v8171, 16
        %v8335 = vrot.slane %v8333, 5
        %v8336 = vsel %vm1308, %v8331, %v8335
        %v8337 = vshrl.u32 %v8171, 16
        %v8339 = vrot.slane %v8337, 4
        %v8340 = vor.u32 %v8339, %v8335
        %v8341 = vrot.slane %v8340, 4
        %v8343 = vshll.u32 %v8172, 16
        %v8345 = vrot.slane %v8343, 5
        %v8346 = vsel %vm1308, %v8341, %v8345
        %v8348 = vshrl.u32 %v8173, 16
        %v8350 = vrot.slane %v8348, 4
        %v8351 = vshll.u32 %v8173, 16
        %v8353 = vrot.slane %v8351, 5
        %v8354 = vor.u32 %v8350, %v8353
        %v8355 = vrot.slane %v8354, 4
        %v8357 = vshll.u32 %v8174, 16
        %v8359 = vrot.slane %v8357, 5
        %v8360 = vsel %vm1308, %v8355, %v8359
        %v8361 = vshrl.u32 %v8174, 16
        %v8363 = vrot.slane %v8361, 4
        %v8364 = vor.u32 %v8363, %v8359
        %v8365 = vrot.slane %v8364, 4
        %v8367 = vshll.u32 %v8175, 16
        %v8369 = vrot.slane %v8367, 5
        %v8370 = vsel %vm1308, %v8365, %v8369
        %v8372 = vshrl.u32 %v8176, 16
        %v8374 = vrot.slane %v8372, 4
        %v8375 = vshll.u32 %v8176, 16
        %v8377 = vrot.slane %v8375, 5
        %v8378 = vor.u32 %v8374, %v8377
        %v8379 = vrot.slane %v8378, 4
        %v8381 = vshll.u32 %v8177, 16
        %v8383 = vrot.slane %v8381, 5
        %v8384 = vsel %vm1308, %v8379, %v8383
        %v8385 = vshrl.u32 %v8177, 16
        %v8387 = vrot.slane %v8385, 4
        %v8388 = vor.u32 %v8387, %v8383
        %v8389 = vrot.slane %v8388, 4
        %v8391 = vshll.u32 %v8178, 16
        %v8393 = vrot.slane %v8391, 5
        %v8394 = vsel %vm1308, %v8389, %v8393
        %v8396 = vshrl.u32 %v8179, 16
        %v8398 = vrot.slane %v8396, 4
        %v8399 = vshll.u32 %v8179, 16
        %v8401 = vrot.slane %v8399, 5
        %v8402 = vor.u32 %v8398, %v8401
        %v8403 = vrot.slane %v8402, 4
        %v8405 = vshll.u32 %v8180, 16
        %v8407 = vrot.slane %v8405, 5
        %v8408 = vsel %vm1308, %v8403, %v8407
        %v8409 = vshrl.u32 %v8180, 16
        %v8411 = vrot.slane %v8409, 4
        %v8412 = vor.u32 %v8411, %v8407
        %v8413 = vrot.slane %v8412, 4
        %v8415 = vshll.u32 %v8181, 16
        %v8417 = vrot.slane %v8415, 5
        %v8418 = vsel %vm1308, %v8413, %v8417
        %v8420 = vshrl.u32 %v8182, 16
        %v8422 = vrot.slane %v8420, 4
        %v8423 = vshll.u32 %v8182, 16
        %v8425 = vrot.slane %v8423, 5
        %v8426 = vor.u32 %v8422, %v8425
        %v8427 = vrot.slane %v8426, 4
        %v8429 = vshll.u32 %v8183, 16
        %v8431 = vrot.slane %v8429, 5
        %v8432 = vsel %vm1308, %v8427, %v8431
        %v8433 = vshrl.u32 %v8183, 16
        %v8435 = vrot.slane %v8433, 4
        %v8436 = vor.u32 %v8435, %v8431
        %v8437 = vrot.slane %v8436, 4
        %v8439 = vshll.u32 %v8184, 16
        %v8441 = vrot.slane %v8439, 5
        %v8442 = vsel %vm1308, %v8437, %v8441
        %v8444 = vshrl.u32 %v8185, 16
        %v8446 = vrot.slane %v8444, 4
        %v8447 = vshll.u32 %v8185, 16
        %v8449 = vrot.slane %v8447, 5
        %v8450 = vor.u32 %v8446, %v8449
        %v8451 = vrot.slane %v8450, 4
        %v8453 = vshll.u32 %v8186, 16
        %v8455 = vrot.slane %v8453, 5
        %v8456 = vsel %vm1308, %v8451, %v8455
        %v8457 = vshrl.u32 %v8186, 16
        %v8459 = vrot.slane %v8457, 4
        %v8460 = vor.u32 %v8459, %v8455
        %v8461 = vrot.slane %v8460, 4
        %v8463 = vshll.u32 %v8187, 16
        %v8465 = vrot.slane %v8463, 5
        %v8466 = vsel %vm1308, %v8461, %v8465
        %v8468 = vshrl.u32 %v8188, 16
        %v8470 = vrot.slane %v8468, 4
        %v8471 = vshll.u32 %v8188, 16
        %v8473 = vrot.slane %v8471, 5
        %v8474 = vor.u32 %v8470, %v8473
        %v8475 = vrot.slane %v8474, 4
        %v8477 = vshll.u32 %v8189, 16
        %v8479 = vrot.slane %v8477, 5
        %v8480 = vsel %vm1308, %v8475, %v8479
        %v8481 = vshrl.u32 %v8189, 16
        %v8483 = vrot.slane %v8481, 4
        %v8484 = vor.u32 %v8483, %v8479
        %v8485 = vrot.slane %v8484, 4
        %v8487 = vshll.u32 %v8190, 16
        %v8489 = vrot.slane %v8487, 5
        %v8490 = vsel %vm1308, %v8485, %v8489
        %v8492 = vshrl.u32 %v8191, 16
        %v8494 = vrot.slane %v8492, 4
        %v8495 = vshll.u32 %v8191, 16
        %v8497 = vrot.slane %v8495, 5
        %v8498 = vor.u32 %v8494, %v8497
        %v8499 = vrot.slane %v8498, 4
        %v8501 = vshll.u32 %v8192, 16
        %v8503 = vrot.slane %v8501, 5
        %v8504 = vsel %vm1308, %v8499, %v8503
        %v8505 = vshrl.u32 %v8192, 16
        %v8507 = vrot.slane %v8505, 4
        %v8508 = vor.u32 %v8507, %v8503
        %v8509 = vrot.slane %v8508, 4
        %v8511 = vshll.u32 %v8193, 16
        %v8513 = vrot.slane %v8511, 5
        %v8514 = vsel %vm1308, %v8509, %v8513
        %v8516 = vshrl.u32 %v8194, 16
        %v8518 = vrot.slane %v8516, 4
        %v8519 = vshll.u32 %v8194, 16
        %v8521 = vrot.slane %v8519, 5
        %v8522 = vor.u32 %v8518, %v8521
        %v8523 = vrot.slane %v8522, 4
        %v8525 = vshll.u32 %v8195, 16
        %v8527 = vrot.slane %v8525, 5
        %v8528 = vsel %vm1308, %v8523, %v8527
        %v8529 = vshrl.u32 %v8195, 16
        %v8531 = vrot.slane %v8529, 4
        %v8532 = vor.u32 %v8531, %v8527
        %v8533 = vrot.slane %v8532, 4
        %v8535 = vshll.u32 %v8196, 16
        %v8537 = vrot.slane %v8535, 5
        %v8538 = vsel %vm1308, %v8533, %v8537
        %v8540 = vshrl.u32 %v8197, 16
        %v8542 = vrot.slane %v8540, 4
        %v8543 = vshll.u32 %v8197, 16
        %v8545 = vrot.slane %v8543, 5
        %v8546 = vor.u32 %v8542, %v8545
        %v8547 = vrot.slane %v8546, 4
        %v8549 = vshll.u32 %v8198, 16
        %v8551 = vrot.slane %v8549, 5
        %v8552 = vsel %vm1308, %v8547, %v8551
        %v8553 = vshrl.u32 %v8198, 16
        %v8555 = vrot.slane %v8553, 4
        %v8556 = vor.u32 %v8555, %v8551
        %v8557 = vrot.slane %v8556, 4
        %v8559 = vshll.u32 %v8199, 16
        %v8561 = vrot.slane %v8559, 5
        %v8562 = vsel %vm1308, %v8557, %v8561
        %v8564 = vshrl.u32 %v8200, 16
        %v8566 = vrot.slane %v8564, 4
        %v8567 = vshll.u32 %v8200, 16
        %v8569 = vrot.slane %v8567, 5
        %v8570 = vor.u32 %v8566, %v8569
        %v8571 = vrot.slane %v8570, 4
        %v8573 = vshll.u32 %v8201, 16
        %v8575 = vrot.slane %v8573, 5
        %v8576 = vsel %vm1308, %v8571, %v8575
        %v8577 = vshrl.u32 %v8201, 16
        %v8579 = vrot.slane %v8577, 4
        %v8580 = vor.u32 %v8579, %v8575
        %v8581 = vrot.slane %v8580, 4
        %v8583 = vshll.u32 %v8202, 16
        %v8585 = vrot.slane %v8583, 5
        %v8586 = vsel %vm1308, %v8581, %v8585
        %v8587 = vunpack.c.l.b16 %v8216
        %v8588 = vunpack.c.l.b16 %v8226
        %v8589 = vunpack.c.l.b16 %v8240
        %v8590 = vunpack.c.l.b16 %v8250
        %v8591 = vunpack.c.l.b16 %v8264
        %v8592 = vunpack.c.l.b16 %v8274
        %v8593 = vunpack.c.l.b16 %v8288
        %v8594 = vunpack.c.l.b16 %v8298
        %v8595 = vunpack.c.l.b16 %v8312
        %v8596 = vunpack.c.l.b16 %v8322
        %v8597 = vunpack.c.l.b16 %v8336
        %v8598 = vunpack.c.l.b16 %v8346
        %v8599 = vunpack.c.l.b16 %v8360
        %v8600 = vunpack.c.l.b16 %v8370
        %v8601 = vunpack.c.l.b16 %v8384
        %v8602 = vunpack.c.l.b16 %v8394
        %v8603 = vunpack.c.l.b16 %v8408
        %v8604 = vunpack.c.l.b16 %v8418
        %v8605 = vunpack.c.l.b16 %v8432
        %v8606 = vunpack.c.l.b16 %v8442
        %v8607 = vunpack.c.l.b16 %v8456
        %v8608 = vunpack.c.l.b16 %v8466
        %v8609 = vunpack.c.l.b16 %v8480
        %v8610 = vunpack.c.l.b16 %v8490
        %v8611 = vunpack.c.l.b16 %v8504
        %v8612 = vunpack.c.l.b16 %v8514
        %v8613 = vunpack.c.l.b16 %v8528
        %v8614 = vunpack.c.l.b16 %v8538
        %v8615 = vunpack.c.l.b16 %v8552
        %v8616 = vunpack.c.l.b16 %v8562
        %v8617 = vunpack.c.l.b16 %v8576
        %v8618 = vunpack.c.l.b16 %v8586
        %v8619 = vpack.c.b16 %v8588, %v8587
        %v8620 = vpack.c.b16 %v8590, %v8589
        %v8621 = vpack.c.b16 %v8592, %v8591
        %v8622 = vpack.c.b16 %v8594, %v8593
        %v8623 = vpack.c.b16 %v8596, %v8595
        %v8624 = vpack.c.b16 %v8598, %v8597
        %v8625 = vpack.c.b16 %v8600, %v8599
        %v8626 = vpack.c.b16 %v8602, %v8601
        %v8627 = vpack.c.b16 %v8604, %v8603
        %v8628 = vpack.c.b16 %v8606, %v8605
        %v8629 = vpack.c.b16 %v8608, %v8607
        %v8630 = vpack.c.b16 %v8610, %v8609
        %v8631 = vpack.c.b16 %v8612, %v8611
        %v8632 = vpack.c.b16 %v8614, %v8613
        %v8633 = vpack.c.b16 %v8616, %v8615
        %v8634 = vpack.c.b16 %v8618, %v8617
        %8651 = vst [vmem:[#allocation3 + $0x38] sm:$0xff] %v8619
        %8652 = vst [vmem:[#allocation3 + $0x80] sm:$0xff] %v8620
        %8653 = vst [vmem:[#allocation3 + $0xc8] sm:$0xff] %v8621
        %8654 = vst [vmem:[#allocation3 + $0x110] sm:$0xff] %v8622
        %8655 = vst [vmem:[#allocation3 + $0x158] sm:$0xff] %v8623
        %8656 = vst [vmem:[#allocation3 + $0x1a0] sm:$0xff] %v8624
        %8657 = vst [vmem:[#allocation3 + $0x1e8] sm:$0xff] %v8625
        %8658 = vst [vmem:[#allocation3 + $0x230] sm:$0xff] %v8626
        %8659 = vst [vmem:[#allocation3 + $0x278] sm:$0xff] %v8627
        %8660 = vst [vmem:[#allocation3 + $0x2c0] sm:$0xff] %v8628
        %8661 = vst [vmem:[#allocation3 + $0x308] sm:$0xff] %v8629
        %8662 = vst [vmem:[#allocation3 + $0x350] sm:$0xff] %v8630
        %8663 = vst [vmem:[#allocation3 + $0x398] sm:$0xff] %v8631
        %8664 = vst [vmem:[#allocation3 + $0x3e0] sm:$0xff] %v8632
        %8665 = vst [vmem:[#allocation3 + $0x428] sm:$0xff] %v8633
        %8666 = vst [vmem:[#allocation3 + $0x470] sm:$0xff] %v8634
        %v8667 = vld [vmem:[%s3008] sm:$0xe]
        %v8668 = vld [vmem:[%s3008 + $0x4] sm:$0xf]
        %v8669 = vld [vmem:[%s3008 + $0x8] sm:$0x1]
        %v8670 = vld [vmem:[%s3008 + $0xc] sm:$0xe]
        %v8671 = vld [vmem:[%s3008 + $0x10] sm:$0xf]
        %v8672 = vld [vmem:[%s3008 + $0x14] sm:$0x1]
        %v8673 = vld [vmem:[%s3008 + $0x18] sm:$0xe]
        %v8674 = vld [vmem:[%s3008 + $0x1c] sm:$0xf]
        %v8675 = vld [vmem:[%s3008 + $0x20] sm:$0x1]
        %v8676 = vld [vmem:[%s3008 + $0x24] sm:$0xe]
        %v8677 = vld [vmem:[%s3008 + $0x28] sm:$0xf]
        %v8678 = vld [vmem:[%s3008 + $0x2c] sm:$0x1]
        %v8679 = vld [vmem:[%s3008 + $0x30] sm:$0xe]
        %v8680 = vld [vmem:[%s3008 + $0x34] sm:$0xf]
        %v8681 = vld [vmem:[%s3008 + $0x38] sm:$0x1]
        %v8682 = vld [vmem:[%s3008 + $0x3c] sm:$0xe]
        %v8683 = vld [vmem:[%s3008 + $0x40] sm:$0xf]
        %v8684 = vld [vmem:[%s3008 + $0x44] sm:$0x1]
        %v8685 = vld [vmem:[%s3008 + $0x48] sm:$0xe]
        %v8686 = vld [vmem:[%s3008 + $0x4c] sm:$0xf]
        %v8687 = vld [vmem:[%s3008 + $0x50] sm:$0x1]
        %v8688 = vld [vmem:[%s3008 + $0x54] sm:$0xe]
        %v8689 = vld [vmem:[%s3008 + $0x58] sm:$0xf]
        %v8690 = vld [vmem:[%s3008 + $0x5c] sm:$0x1]
        %v8691 = vld [vmem:[%s3008 + $0x60] sm:$0xe]
        %v8692 = vld [vmem:[%s3008 + $0x64] sm:$0xf]
        %v8693 = vld [vmem:[%s3008 + $0x68] sm:$0x1]
        %v8694 = vld [vmem:[%s3008 + $0x6c] sm:$0xe]
        %v8695 = vld [vmem:[%s3008 + $0x70] sm:$0xf]
        %v8696 = vld [vmem:[%s3008 + $0x74] sm:$0x1]
        %v8697 = vld [vmem:[%s3008 + $0x78] sm:$0xe]
        %v8698 = vld [vmem:[%s3008 + $0x7c] sm:$0xf]
        %v8699 = vld [vmem:[%s3008 + $0x80] sm:$0x1]
        %v8700 = vld [vmem:[%s3008 + $0x84] sm:$0xe]
        %v8701 = vld [vmem:[%s3008 + $0x88] sm:$0xf]
        %v8702 = vld [vmem:[%s3008 + $0x8c] sm:$0x1]
        %v8703 = vld [vmem:[%s3008 + $0x90] sm:$0xe]
        %v8704 = vld [vmem:[%s3008 + $0x94] sm:$0xf]
        %v8705 = vld [vmem:[%s3008 + $0x98] sm:$0x1]
        %v8706 = vld [vmem:[%s3008 + $0x9c] sm:$0xe]
        %v8707 = vld [vmem:[%s3008 + $0xa0] sm:$0xf]
        %v8708 = vld [vmem:[%s3008 + $0xa4] sm:$0x1]
        %v8709 = vld [vmem:[%s3008 + $0xa8] sm:$0xe]
        %v8710 = vld [vmem:[%s3008 + $0xac] sm:$0xf]
        %v8711 = vld [vmem:[%s3008 + $0xb0] sm:$0x1]
        %v8712 = vld [vmem:[%s3008 + $0xb4] sm:$0xe]
        %v8713 = vld [vmem:[%s3008 + $0xb8] sm:$0xf]
        %v8714 = vld [vmem:[%s3008 + $0xbc] sm:$0x1]
        %v8763 = vrot.slane %v8667, 5
        %v8764 = vrot.slane %v8763, 4
        %v8765 = vrot.slane %v8668, 5
        %v8766 = vsel %vm1871, %v8764, %v8765
        %v8767 = vrot.slane %v8765, 4
        %v8768 = vrot.slane %v8669, 5
        %v8769 = vsel %vm1871, %v8767, %v8768
        %v8770 = vrot.slane %v8670, 5
        %v8771 = vrot.slane %v8770, 4
        %v8772 = vrot.slane %v8671, 5
        %v8773 = vsel %vm1871, %v8771, %v8772
        %v8774 = vrot.slane %v8772, 4
        %v8775 = vrot.slane %v8672, 5
        %v8776 = vsel %vm1871, %v8774, %v8775
        %v8777 = vrot.slane %v8673, 5
        %v8778 = vrot.slane %v8777, 4
        %v8779 = vrot.slane %v8674, 5
        %v8780 = vsel %vm1871, %v8778, %v8779
        %v8781 = vrot.slane %v8779, 4
        %v8782 = vrot.slane %v8675, 5
        %v8783 = vsel %vm1871, %v8781, %v8782
        %v8784 = vrot.slane %v8676, 5
        %v8785 = vrot.slane %v8784, 4
        %v8786 = vrot.slane %v8677, 5
        %v8787 = vsel %vm1871, %v8785, %v8786
        %v8788 = vrot.slane %v8786, 4
        %v8789 = vrot.slane %v8678, 5
        %v8790 = vsel %vm1871, %v8788, %v8789
        %v8791 = vrot.slane %v8679, 5
        %v8792 = vrot.slane %v8791, 4
        %v8793 = vrot.slane %v8680, 5
        %v8794 = vsel %vm1871, %v8792, %v8793
        %v8795 = vrot.slane %v8793, 4
        %v8796 = vrot.slane %v8681, 5
        %v8797 = vsel %vm1871, %v8795, %v8796
        %v8798 = vrot.slane %v8682, 5
        %v8799 = vrot.slane %v8798, 4
        %v8800 = vrot.slane %v8683, 5
        %v8801 = vsel %vm1871, %v8799, %v8800
        %v8802 = vrot.slane %v8800, 4
        %v8803 = vrot.slane %v8684, 5
        %v8804 = vsel %vm1871, %v8802, %v8803
        %v8805 = vrot.slane %v8685, 5
        %v8806 = vrot.slane %v8805, 4
        %v8807 = vrot.slane %v8686, 5
        %v8808 = vsel %vm1871, %v8806, %v8807
        %v8809 = vrot.slane %v8807, 4
        %v8810 = vrot.slane %v8687, 5
        %v8811 = vsel %vm1871, %v8809, %v8810
        %v8812 = vrot.slane %v8688, 5
        %v8813 = vrot.slane %v8812, 4
        %v8814 = vrot.slane %v8689, 5
        %v8815 = vsel %vm1871, %v8813, %v8814
        %v8816 = vrot.slane %v8814, 4
        %v8817 = vrot.slane %v8690, 5
        %v8818 = vsel %vm1871, %v8816, %v8817
        %v8819 = vrot.slane %v8691, 5
        %v8820 = vrot.slane %v8819, 4
        %v8821 = vrot.slane %v8692, 5
        %v8822 = vsel %vm1871, %v8820, %v8821
        %v8823 = vrot.slane %v8821, 4
        %v8824 = vrot.slane %v8693, 5
        %v8825 = vsel %vm1871, %v8823, %v8824
        %v8826 = vrot.slane %v8694, 5
        %v8827 = vrot.slane %v8826, 4
        %v8828 = vrot.slane %v8695, 5
        %v8829 = vsel %vm1871, %v8827, %v8828
        %v8830 = vrot.slane %v8828, 4
        %v8831 = vrot.slane %v8696, 5
        %v8832 = vsel %vm1871, %v8830, %v8831
        %v8833 = vrot.slane %v8697, 5
        %v8834 = vrot.slane %v8833, 4
        %v8835 = vrot.slane %v8698, 5
        %v8836 = vsel %vm1871, %v8834, %v8835
        %v8837 = vrot.slane %v8835, 4
        %v8838 = vrot.slane %v8699, 5
        %v8839 = vsel %vm1871, %v8837, %v8838
        %v8840 = vrot.slane %v8700, 5
        %v8841 = vrot.slane %v8840, 4
        %v8842 = vrot.slane %v8701, 5
        %v8843 = vsel %vm1871, %v8841, %v8842
        %v8844 = vrot.slane %v8842, 4
        %v8845 = vrot.slane %v8702, 5
        %v8846 = vsel %vm1871, %v8844, %v8845
        %v8847 = vrot.slane %v8703, 5
        %v8848 = vrot.slane %v8847, 4
        %v8849 = vrot.slane %v8704, 5
        %v8850 = vsel %vm1871, %v8848, %v8849
        %v8851 = vrot.slane %v8849, 4
        %v8852 = vrot.slane %v8705, 5
        %v8853 = vsel %vm1871, %v8851, %v8852
        %v8854 = vrot.slane %v8706, 5
        %v8855 = vrot.slane %v8854, 4
        %v8856 = vrot.slane %v8707, 5
        %v8857 = vsel %vm1871, %v8855, %v8856
        %v8858 = vrot.slane %v8856, 4
        %v8859 = vrot.slane %v8708, 5
        %v8860 = vsel %vm1871, %v8858, %v8859
        %v8861 = vrot.slane %v8709, 5
        %v8862 = vrot.slane %v8861, 4
        %v8863 = vrot.slane %v8710, 5
        %v8864 = vsel %vm1871, %v8862, %v8863
        %v8865 = vrot.slane %v8863, 4
        %v8866 = vrot.slane %v8711, 5
        %v8867 = vsel %vm1871, %v8865, %v8866
        %v8868 = vrot.slane %v8712, 5
        %v8869 = vrot.slane %v8868, 4
        %v8870 = vrot.slane %v8713, 5
        %v8871 = vsel %vm1871, %v8869, %v8870
        %v8872 = vrot.slane %v8870, 4
        %v8873 = vrot.slane %v8714, 5
        %v8874 = vsel %vm1871, %v8872, %v8873
        %v8875 = vunpack.c.l.b16 %v8766
        %v8876 = vunpack.c.l.b16 %v8769
        %v8877 = vunpack.c.l.b16 %v8773
        %v8878 = vunpack.c.l.b16 %v8776
        %v8879 = vunpack.c.l.b16 %v8780
        %v8880 = vunpack.c.l.b16 %v8783
        %v8881 = vunpack.c.l.b16 %v8787
        %v8882 = vunpack.c.l.b16 %v8790
        %v8883 = vunpack.c.l.b16 %v8794
        %v8884 = vunpack.c.l.b16 %v8797
        %v8885 = vunpack.c.l.b16 %v8801
        %v8886 = vunpack.c.l.b16 %v8804
        %v8887 = vunpack.c.l.b16 %v8808
        %v8888 = vunpack.c.l.b16 %v8811
        %v8889 = vunpack.c.l.b16 %v8815
        %v8890 = vunpack.c.l.b16 %v8818
        %v8891 = vunpack.c.l.b16 %v8822
        %v8892 = vunpack.c.l.b16 %v8825
        %v8893 = vunpack.c.l.b16 %v8829
        %v8894 = vunpack.c.l.b16 %v8832
        %v8895 = vunpack.c.l.b16 %v8836
        %v8896 = vunpack.c.l.b16 %v8839
        %v8897 = vunpack.c.l.b16 %v8843
        %v8898 = vunpack.c.l.b16 %v8846
        %v8899 = vunpack.c.l.b16 %v8850
        %v8900 = vunpack.c.l.b16 %v8853
        %v8901 = vunpack.c.l.b16 %v8857
        %v8902 = vunpack.c.l.b16 %v8860
        %v8903 = vunpack.c.l.b16 %v8864
        %v8904 = vunpack.c.l.b16 %v8867
        %v8905 = vunpack.c.l.b16 %v8871
        %v8906 = vunpack.c.l.b16 %v8874
        %v8907 = vpack.c.b16 %v8876, %v8875
        %v8908 = vpack.c.b16 %v8878, %v8877
        %v8909 = vpack.c.b16 %v8880, %v8879
        %v8910 = vpack.c.b16 %v8882, %v8881
        %v8911 = vpack.c.b16 %v8884, %v8883
        %v8912 = vpack.c.b16 %v8886, %v8885
        %v8913 = vpack.c.b16 %v8888, %v8887
        %v8914 = vpack.c.b16 %v8890, %v8889
        %v8915 = vpack.c.b16 %v8892, %v8891
        %v8916 = vpack.c.b16 %v8894, %v8893
        %v8917 = vpack.c.b16 %v8896, %v8895
        %v8918 = vpack.c.b16 %v8898, %v8897
        %v8919 = vpack.c.b16 %v8900, %v8899
        %v8920 = vpack.c.b16 %v8902, %v8901
        %v8921 = vpack.c.b16 %v8904, %v8903
        %v8922 = vpack.c.b16 %v8906, %v8905
        %8939 = vst [vmem:[#allocation3 + $0x40] sm:$0xff] %v8907
        %8940 = vst [vmem:[#allocation3 + $0x88] sm:$0xff] %v8908
        %8941 = vst [vmem:[#allocation3 + $0xd0] sm:$0xff] %v8909
        %8942 = vst [vmem:[#allocation3 + $0x118] sm:$0xff] %v8910
        %8943 = vst [vmem:[#allocation3 + $0x160] sm:$0xff] %v8911
        %8944 = vst [vmem:[#allocation3 + $0x1a8] sm:$0xff] %v8912
        %8945 = vst [vmem:[#allocation3 + $0x1f0] sm:$0xff] %v8913
        %8946 = vst [vmem:[#allocation3 + $0x238] sm:$0xff] %v8914
        %8947 = vst [vmem:[#allocation3 + $0x280] sm:$0xff] %v8915
        %8948 = vst [vmem:[#allocation3 + $0x2c8] sm:$0xff] %v8916
        %8949 = vst [vmem:[#allocation3 + $0x310] sm:$0xff] %v8917
        %8950 = vst [vmem:[#allocation3 + $0x358] sm:$0xff] %v8918
        %8951 = vst [vmem:[#allocation3 + $0x3a0] sm:$0xff] %v8919
        %8952 = vst [vmem:[#allocation3 + $0x3e8] sm:$0xff] %v8920
        %8953 = vst [vmem:[#allocation3 + $0x430] sm:$0xff] %v8921
        %8954 = vst [vmem:[#allocation3 + $0x478] sm:$0xff] %v8922
        %v8955 = vld [vmem:[#allocation3] sm:$0xff]
        %v8956 = vld [vmem:[#allocation3 + $0x8] sm:$0xff]
        %v8957 = vld [vmem:[#allocation3 + $0x10] sm:$0xff]
        %v8958 = vld [vmem:[#allocation3 + $0x18] sm:$0xff]
        %v8959 = vld [vmem:[#allocation3 + $0x20] sm:$0xff]
        %v8960 = vld [vmem:[#allocation3 + $0x28] sm:$0xff]
        %v8961 = vld [vmem:[#allocation3 + $0x30] sm:$0xff]
        %v8962 = vld [vmem:[#allocation3 + $0x38] sm:$0xff]
        %v8963 = vld [vmem:[#allocation3 + $0x40] sm:$0xff]
        %v8964 = vld [vmem:[#allocation3 + $0x48] sm:$0xff]
        %v8965 = vld [vmem:[#allocation3 + $0x50] sm:$0xff]
        %v8966 = vld [vmem:[#allocation3 + $0x58] sm:$0xff]
        %v8967 = vld [vmem:[#allocation3 + $0x60] sm:$0xff]
        %v8968 = vld [vmem:[#allocation3 + $0x68] sm:$0xff]
        %v8969 = vld [vmem:[#allocation3 + $0x70] sm:$0xff]
        %v8970 = vld [vmem:[#allocation3 + $0x78] sm:$0xff]
        %v8971 = vld [vmem:[#allocation3 + $0x80] sm:$0xff]
        %v8972 = vld [vmem:[#allocation3 + $0x88] sm:$0xff]
        %v8973 = vld [vmem:[#allocation3 + $0x90] sm:$0xff]
        %v8974 = vld [vmem:[#allocation3 + $0x98] sm:$0xff]
        %v8975 = vld [vmem:[#allocation3 + $0xa0] sm:$0xff]
        %v8976 = vld [vmem:[#allocation3 + $0xa8] sm:$0xff]
        %v8977 = vld [vmem:[#allocation3 + $0xb0] sm:$0xff]
        %v8978 = vld [vmem:[#allocation3 + $0xb8] sm:$0xff]
        %v8979 = vld [vmem:[#allocation3 + $0xc0] sm:$0xff]
        %v8980 = vld [vmem:[#allocation3 + $0xc8] sm:$0xff]
        %v8981 = vld [vmem:[#allocation3 + $0xd0] sm:$0xff]
        %v8982 = vld [vmem:[#allocation3 + $0xd8] sm:$0xff]
        %v8983 = vld [vmem:[#allocation3 + $0xe0] sm:$0xff]
        %v8984 = vld [vmem:[#allocation3 + $0xe8] sm:$0xff]
        %v8985 = vld [vmem:[#allocation3 + $0xf0] sm:$0xff]
        %v8986 = vld [vmem:[#allocation3 + $0xf8] sm:$0xff]
        %v8987 = vld [vmem:[#allocation3 + $0x100] sm:$0xff]
        %v8988 = vld [vmem:[#allocation3 + $0x108] sm:$0xff]
        %v8989 = vld [vmem:[#allocation3 + $0x110] sm:$0xff]
        %v8990 = vld [vmem:[#allocation3 + $0x118] sm:$0xff]
        %v8991 = vld [vmem:[#allocation3 + $0x120] sm:$0xff]
        %v8992 = vld [vmem:[#allocation3 + $0x128] sm:$0xff]
        %v8993 = vld [vmem:[#allocation3 + $0x130] sm:$0xff]
        %v8994 = vld [vmem:[#allocation3 + $0x138] sm:$0xff]
        %v8995 = vld [vmem:[#allocation3 + $0x140] sm:$0xff]
        %v8996 = vld [vmem:[#allocation3 + $0x148] sm:$0xff]
        %v8997 = vld [vmem:[#allocation3 + $0x150] sm:$0xff]
        %v8998 = vld [vmem:[#allocation3 + $0x158] sm:$0xff]
        %v8999 = vld [vmem:[#allocation3 + $0x160] sm:$0xff]
        %v9000 = vld [vmem:[#allocation3 + $0x168] sm:$0xff]
        %v9001 = vld [vmem:[#allocation3 + $0x170] sm:$0xff]
        %v9002 = vld [vmem:[#allocation3 + $0x178] sm:$0xff]
        %v9003 = vld [vmem:[#allocation3 + $0x180] sm:$0xff]
        %v9004 = vld [vmem:[#allocation3 + $0x188] sm:$0xff]
        %v9005 = vld [vmem:[#allocation3 + $0x190] sm:$0xff]
        %v9006 = vld [vmem:[#allocation3 + $0x198] sm:$0xff]
        %v9007 = vld [vmem:[#allocation3 + $0x1a0] sm:$0xff]
        %v9008 = vld [vmem:[#allocation3 + $0x1a8] sm:$0xff]
        %v9009 = vld [vmem:[#allocation3 + $0x1b0] sm:$0xff]
        %v9010 = vld [vmem:[#allocation3 + $0x1b8] sm:$0xff]
        %v9011 = vld [vmem:[#allocation3 + $0x1c0] sm:$0xff]
        %v9012 = vld [vmem:[#allocation3 + $0x1c8] sm:$0xff]
        %v9013 = vld [vmem:[#allocation3 + $0x1d0] sm:$0xff]
        %v9014 = vld [vmem:[#allocation3 + $0x1d8] sm:$0xff]
        %v9015 = vld [vmem:[#allocation3 + $0x1e0] sm:$0xff]
        %v9016 = vld [vmem:[#allocation3 + $0x1e8] sm:$0xff]
        %v9017 = vld [vmem:[#allocation3 + $0x1f0] sm:$0xff]
        %v9018 = vld [vmem:[#allocation3 + $0x1f8] sm:$0xff]
        %v9019 = vld [vmem:[#allocation3 + $0x200] sm:$0xff]
        %v9020 = vld [vmem:[#allocation3 + $0x208] sm:$0xff]
        %v9021 = vld [vmem:[#allocation3 + $0x210] sm:$0xff]
        %v9022 = vld [vmem:[#allocation3 + $0x218] sm:$0xff]
        %v9023 = vld [vmem:[#allocation3 + $0x220] sm:$0xff]
        %v9024 = vld [vmem:[#allocation3 + $0x228] sm:$0xff]
        %v9025 = vld [vmem:[#allocation3 + $0x230] sm:$0xff]
        %v9026 = vld [vmem:[#allocation3 + $0x238] sm:$0xff]
        %v9027 = vld [vmem:[#allocation3 + $0x240] sm:$0xff]
        %v9028 = vld [vmem:[#allocation3 + $0x248] sm:$0xff]
        %v9029 = vld [vmem:[#allocation3 + $0x250] sm:$0xff]
        %v9030 = vld [vmem:[#allocation3 + $0x258] sm:$0xff]
        %v9031 = vld [vmem:[#allocation3 + $0x260] sm:$0xff]
        %v9032 = vld [vmem:[#allocation3 + $0x268] sm:$0xff]
        %v9033 = vld [vmem:[#allocation3 + $0x270] sm:$0xff]
        %v9034 = vld [vmem:[#allocation3 + $0x278] sm:$0xff]
        %v9035 = vld [vmem:[#allocation3 + $0x280] sm:$0xff]
        %v9036 = vld [vmem:[#allocation3 + $0x288] sm:$0xff]
        %v9037 = vld [vmem:[#allocation3 + $0x290] sm:$0xff]
        %v9038 = vld [vmem:[#allocation3 + $0x298] sm:$0xff]
        %v9039 = vld [vmem:[#allocation3 + $0x2a0] sm:$0xff]
        %v9040 = vld [vmem:[#allocation3 + $0x2a8] sm:$0xff]
        %v9041 = vld [vmem:[#allocation3 + $0x2b0] sm:$0xff]
        %v9042 = vld [vmem:[#allocation3 + $0x2b8] sm:$0xff]
        %v9043 = vld [vmem:[#allocation3 + $0x2c0] sm:$0xff]
        %v9044 = vld [vmem:[#allocation3 + $0x2c8] sm:$0xff]
        %v9045 = vld [vmem:[#allocation3 + $0x2d0] sm:$0xff]
        %v9046 = vld [vmem:[#allocation3 + $0x2d8] sm:$0xff]
        %v9047 = vld [vmem:[#allocation3 + $0x2e0] sm:$0xff]
        %v9048 = vld [vmem:[#allocation3 + $0x2e8] sm:$0xff]
        %v9049 = vld [vmem:[#allocation3 + $0x2f0] sm:$0xff]
        %v9050 = vld [vmem:[#allocation3 + $0x2f8] sm:$0xff]
        %v9051 = vld [vmem:[#allocation3 + $0x300] sm:$0xff]
        %v9052 = vld [vmem:[#allocation3 + $0x308] sm:$0xff]
        %v9053 = vld [vmem:[#allocation3 + $0x310] sm:$0xff]
        %v9054 = vld [vmem:[#allocation3 + $0x318] sm:$0xff]
        %v9055 = vld [vmem:[#allocation3 + $0x320] sm:$0xff]
        %v9056 = vld [vmem:[#allocation3 + $0x328] sm:$0xff]
        %v9057 = vld [vmem:[#allocation3 + $0x330] sm:$0xff]
        %v9058 = vld [vmem:[#allocation3 + $0x338] sm:$0xff]
        %v9059 = vld [vmem:[#allocation3 + $0x340] sm:$0xff]
        %v9060 = vld [vmem:[#allocation3 + $0x348] sm:$0xff]
        %v9061 = vld [vmem:[#allocation3 + $0x350] sm:$0xff]
        %v9062 = vld [vmem:[#allocation3 + $0x358] sm:$0xff]
        %v9063 = vld [vmem:[#allocation3 + $0x360] sm:$0xff]
        %v9064 = vld [vmem:[#allocation3 + $0x368] sm:$0xff]
        %v9065 = vld [vmem:[#allocation3 + $0x370] sm:$0xff]
        %v9066 = vld [vmem:[#allocation3 + $0x378] sm:$0xff]
        %v9067 = vld [vmem:[#allocation3 + $0x380] sm:$0xff]
        %v9068 = vld [vmem:[#allocation3 + $0x388] sm:$0xff]
        %v9069 = vld [vmem:[#allocation3 + $0x390] sm:$0xff]
        %v9070 = vld [vmem:[#allocation3 + $0x398] sm:$0xff]
        %v9071 = vld [vmem:[#allocation3 + $0x3a0] sm:$0xff]
        %v9072 = vld [vmem:[#allocation3 + $0x3a8] sm:$0xff]
        %v9073 = vld [vmem:[#allocation3 + $0x3b0] sm:$0xff]
        %v9074 = vld [vmem:[#allocation3 + $0x3b8] sm:$0xff]
        %v9075 = vld [vmem:[#allocation3 + $0x3c0] sm:$0xff]
        %v9076 = vld [vmem:[#allocation3 + $0x3c8] sm:$0xff]
        %v9077 = vld [vmem:[#allocation3 + $0x3d0] sm:$0xff]
        %v9078 = vld [vmem:[#allocation3 + $0x3d8] sm:$0xff]
        %v9079 = vld [vmem:[#allocation3 + $0x3e0] sm:$0xff]
        %v9080 = vld [vmem:[#allocation3 + $0x3e8] sm:$0xff]
        %v9081 = vld [vmem:[#allocation3 + $0x3f0] sm:$0xff]
        %v9082 = vld [vmem:[#allocation3 + $0x3f8] sm:$0xff]
        %v9083 = vld [vmem:[#allocation3 + $0x400] sm:$0xff]
        %v9084 = vld [vmem:[#allocation3 + $0x408] sm:$0xff]
        %v9085 = vld [vmem:[#allocation3 + $0x410] sm:$0xff]
        %v9086 = vld [vmem:[#allocation3 + $0x418] sm:$0xff]
        %v9087 = vld [vmem:[#allocation3 + $0x420] sm:$0xff]
        %v9088 = vld [vmem:[#allocation3 + $0x428] sm:$0xff]
        %v9089 = vld [vmem:[#allocation3 + $0x430] sm:$0xff]
        %v9090 = vld [vmem:[#allocation3 + $0x438] sm:$0xff]
        %v9091 = vld [vmem:[#allocation3 + $0x440] sm:$0xff]
        %v9092 = vld [vmem:[#allocation3 + $0x448] sm:$0xff]
        %v9093 = vld [vmem:[#allocation3 + $0x450] sm:$0xff]
        %v9094 = vld [vmem:[#allocation3 + $0x458] sm:$0xff]
        %v9095 = vld [vmem:[#allocation3 + $0x460] sm:$0xff]
        %v9096 = vld [vmem:[#allocation3 + $0x468] sm:$0xff]
        %v9097 = vld [vmem:[#allocation3 + $0x470] sm:$0xff]
        %v9098 = vld [vmem:[#allocation3 + $0x478] sm:$0xff]
        %v9099 = vld [vmem:[#allocation9] sm:$0xf]
        %v9100 = vld [vmem:[#allocation9 + $0x4] sm:$0xf]
        %v9101 = vld [vmem:[#allocation9 + $0x8] sm:$0xf]
        %v9102 = vld [vmem:[#allocation9 + $0xc] sm:$0xf]
        %v9103 = vld [vmem:[#allocation9 + $0x10] sm:$0xf]
        %v9104 = vld [vmem:[#allocation9 + $0x14] sm:$0xf]
        %v9105 = vld [vmem:[#allocation9 + $0x18] sm:$0xf]
        %v9106 = vld [vmem:[#allocation9 + $0x1c] sm:$0xf]
        %v9107 = vld [vmem:[#allocation9 + $0x20] sm:$0xf]
        %v9108 = vld [vmem:[#allocation9 + $0x24] sm:$0xf]
        %v9109 = vld [vmem:[#allocation9 + $0x28] sm:$0xf]
        %v9110 = vld [vmem:[#allocation9 + $0x2c] sm:$0xf]
        %v9111 = vld [vmem:[#allocation9 + $0x30] sm:$0xf]
        %v9112 = vld [vmem:[#allocation9 + $0x34] sm:$0xf]
        %v9113 = vld [vmem:[#allocation9 + $0x38] sm:$0xf]
        %v9114 = vld [vmem:[#allocation9 + $0x3c] sm:$0xf]
        %v9115 = vld [vmem:[#allocation9 + $0x40] sm:$0xf]
        %v9116 = vld [vmem:[#allocation9 + $0x44] sm:$0xf]
        %v9117 = vld [vmem:[#allocation9 + $0x48] sm:$0xf]
        %v9118 = vld [vmem:[#allocation9 + $0x4c] sm:$0xf]
        %v9119 = vld [vmem:[#allocation9 + $0x50] sm:$0xf]
        %v9120 = vld [vmem:[#allocation9 + $0x54] sm:$0xf]
        %v9121 = vld [vmem:[#allocation9 + $0x58] sm:$0xf]
        %v9122 = vld [vmem:[#allocation9 + $0x5c] sm:$0xf]
        %v9123 = vld [vmem:[#allocation9 + $0x60] sm:$0xf]
        %v9124 = vld [vmem:[#allocation9 + $0x64] sm:$0xf]
        %v9125 = vld [vmem:[#allocation9 + $0x68] sm:$0xf]
        %v9126 = vld [vmem:[#allocation9 + $0x6c] sm:$0xf]
        %v9127 = vld [vmem:[#allocation9 + $0x70] sm:$0xf]
        %v9128 = vld [vmem:[#allocation9 + $0x74] sm:$0xf]
        %v9129 = vld [vmem:[#allocation9 + $0x78] sm:$0xf]
        %v9130 = vld [vmem:[#allocation9 + $0x7c] sm:$0xf]
        %v9131 = vld [vmem:[#allocation9 + $0x80] sm:$0xf]
        %v9132 = vld [vmem:[#allocation9 + $0x84] sm:$0xf]
        %v9133 = vld [vmem:[#allocation9 + $0x88] sm:$0xf]
        %v9134 = vld [vmem:[#allocation9 + $0x8c] sm:$0xf]
        %v9135 = vld [vmem:[#allocation9 + $0x90] sm:$0xf]
        %v9136 = vld [vmem:[#allocation9 + $0x94] sm:$0xf]
        %v9137 = vld [vmem:[#allocation9 + $0x98] sm:$0xf]
        %v9138 = vld [vmem:[#allocation9 + $0x9c] sm:$0xf]
        %v9139 = vld [vmem:[#allocation9 + $0xa0] sm:$0xf]
        %v9140 = vld [vmem:[#allocation9 + $0xa4] sm:$0xf]
        %v9141 = vld [vmem:[#allocation9 + $0xa8] sm:$0xf]
        %v9142 = vld [vmem:[#allocation9 + $0xac] sm:$0xf]
        %v9143 = vld [vmem:[#allocation9 + $0xb0] sm:$0xf]
        %v9144 = vld [vmem:[#allocation9 + $0xb4] sm:$0xf]
        %v9145 = vld [vmem:[#allocation9 + $0xb8] sm:$0xf]
        %v9146 = vld [vmem:[#allocation9 + $0xbc] sm:$0xf]
        %v9147 = vld [vmem:[#allocation9 + $0xc0] sm:$0xf]
        %v9148 = vld [vmem:[#allocation9 + $0xc4] sm:$0xf]
        %v9149 = vld [vmem:[#allocation9 + $0xc8] sm:$0xf]
        %v9150 = vld [vmem:[#allocation9 + $0xcc] sm:$0xf]
        %v9151 = vld [vmem:[#allocation9 + $0xd0] sm:$0xf]
        %v9152 = vld [vmem:[#allocation9 + $0xd4] sm:$0xf]
        %v9153 = vld [vmem:[#allocation9 + $0xd8] sm:$0xf]
        %v9154 = vld [vmem:[#allocation9 + $0xdc] sm:$0xf]
        %v9155 = vld [vmem:[#allocation9 + $0xe0] sm:$0xf]
        %v9156 = vld [vmem:[#allocation9 + $0xe4] sm:$0xf]
        %v9157 = vld [vmem:[#allocation9 + $0xe8] sm:$0xf]
        %v9158 = vld [vmem:[#allocation9 + $0xec] sm:$0xf]
        %v9159 = vld [vmem:[#allocation9 + $0xf0] sm:$0xf]
        %v9160 = vld [vmem:[#allocation9 + $0xf4] sm:$0xf]
        %v9161 = vld [vmem:[#allocation9 + $0xf8] sm:$0xf]
        %v9162 = vld [vmem:[#allocation9 + $0xfc] sm:$0xf]
        %v9163 = vld [vmem:[#allocation9 + $0x100] sm:$0xf]
        %v9164 = vld [vmem:[#allocation9 + $0x104] sm:$0xf]
        %v9165 = vld [vmem:[#allocation9 + $0x108] sm:$0xf]
        %v9166 = vld [vmem:[#allocation9 + $0x10c] sm:$0xf]
        %v9167 = vld [vmem:[#allocation9 + $0x110] sm:$0xf]
        %v9168 = vld [vmem:[#allocation9 + $0x114] sm:$0xf]
        %v9169 = vld [vmem:[#allocation9 + $0x118] sm:$0xf]
        %v9170 = vld [vmem:[#allocation9 + $0x11c] sm:$0xf]
        %v9171 = vld [vmem:[#allocation9 + $0x120] sm:$0xf]
        %v9172 = vld [vmem:[#allocation9 + $0x124] sm:$0xf]
        %v9173 = vld [vmem:[#allocation9 + $0x128] sm:$0xf]
        %v9174 = vld [vmem:[#allocation9 + $0x12c] sm:$0xf]
        %v9175 = vld [vmem:[#allocation9 + $0x130] sm:$0xf]
        %v9176 = vld [vmem:[#allocation9 + $0x134] sm:$0xf]
        %v9177 = vld [vmem:[#allocation9 + $0x138] sm:$0xf]
        %v9178 = vld [vmem:[#allocation9 + $0x13c] sm:$0xf]
        %v9179 = vld [vmem:[#allocation9 + $0x140] sm:$0xf]
        %v9180 = vld [vmem:[#allocation9 + $0x144] sm:$0xf]
        %v9181 = vld [vmem:[#allocation9 + $0x148] sm:$0xf]
        %v9182 = vld [vmem:[#allocation9 + $0x14c] sm:$0xf]
        %v9183 = vld [vmem:[#allocation9 + $0x150] sm:$0xf]
        %v9184 = vld [vmem:[#allocation9 + $0x154] sm:$0xf]
        %v9185 = vld [vmem:[#allocation9 + $0x158] sm:$0xf]
        %v9186 = vld [vmem:[#allocation9 + $0x15c] sm:$0xf]
        %v9187 = vld [vmem:[#allocation9 + $0x160] sm:$0xf]
        %v9188 = vld [vmem:[#allocation9 + $0x164] sm:$0xf]
        %v9189 = vld [vmem:[#allocation9 + $0x168] sm:$0xf]
        %v9190 = vld [vmem:[#allocation9 + $0x16c] sm:$0xf]
        %v9191 = vld [vmem:[#allocation9 + $0x170] sm:$0xf]
        %v9192 = vld [vmem:[#allocation9 + $0x174] sm:$0xf]
        %v9193 = vld [vmem:[#allocation9 + $0x178] sm:$0xf]
        %v9194 = vld [vmem:[#allocation9 + $0x17c] sm:$0xf]
        %v9195 = vld [vmem:[#allocation9 + $0x180] sm:$0xf]
        %v9196 = vld [vmem:[#allocation9 + $0x184] sm:$0xf]
        %v9197 = vld [vmem:[#allocation9 + $0x188] sm:$0xf]
        %v9198 = vld [vmem:[#allocation9 + $0x18c] sm:$0xf]
        %v9199 = vld [vmem:[#allocation9 + $0x190] sm:$0xf]
        %v9200 = vld [vmem:[#allocation9 + $0x194] sm:$0xf]
        %v9201 = vld [vmem:[#allocation9 + $0x198] sm:$0xf]
        %v9202 = vld [vmem:[#allocation9 + $0x19c] sm:$0xf]
        %v9203 = vld [vmem:[#allocation9 + $0x1a0] sm:$0xf]
        %v9204 = vld [vmem:[#allocation9 + $0x1a4] sm:$0xf]
        %v9205 = vld [vmem:[#allocation9 + $0x1a8] sm:$0xf]
        %v9206 = vld [vmem:[#allocation9 + $0x1ac] sm:$0xf]
        %v9207 = vld [vmem:[#allocation9 + $0x1b0] sm:$0xf]
        %v9208 = vld [vmem:[#allocation9 + $0x1b4] sm:$0xf]
        %v9209 = vld [vmem:[#allocation9 + $0x1b8] sm:$0xf]
        %v9210 = vld [vmem:[#allocation9 + $0x1bc] sm:$0xf]
        %v9211 = vld [vmem:[#allocation9 + $0x1c0] sm:$0xf]
        %v9212 = vld [vmem:[#allocation9 + $0x1c4] sm:$0xf]
        %v9213 = vld [vmem:[#allocation9 + $0x1c8] sm:$0xf]
        %v9214 = vld [vmem:[#allocation9 + $0x1cc] sm:$0xf]
        %v9215 = vld [vmem:[#allocation9 + $0x1d0] sm:$0xf]
        %v9216 = vld [vmem:[#allocation9 + $0x1d4] sm:$0xf]
        %v9217 = vld [vmem:[#allocation9 + $0x1d8] sm:$0xf]
        %v9218 = vld [vmem:[#allocation9 + $0x1dc] sm:$0xf]
        %v9219 = vld [vmem:[#allocation9 + $0x1e0] sm:$0xf]
        %v9220 = vld [vmem:[#allocation9 + $0x1e4] sm:$0xf]
        %v9221 = vld [vmem:[#allocation9 + $0x1e8] sm:$0xf]
        %v9222 = vld [vmem:[#allocation9 + $0x1ec] sm:$0xf]
        %v9223 = vld [vmem:[#allocation9 + $0x1f0] sm:$0xf]
        %v9224 = vld [vmem:[#allocation9 + $0x1f4] sm:$0xf]
        %v9225 = vld [vmem:[#allocation9 + $0x1f8] sm:$0xf]
        %v9226 = vld [vmem:[#allocation9 + $0x1fc] sm:$0xf]
        %v9227 = vld [vmem:[#allocation9 + $0x200] sm:$0xf]
        %v9228 = vld [vmem:[#allocation9 + $0x204] sm:$0xf]
        %v9229 = vld [vmem:[#allocation9 + $0x208] sm:$0xf]
        %v9230 = vld [vmem:[#allocation9 + $0x20c] sm:$0xf]
        %v9231 = vld [vmem:[#allocation9 + $0x210] sm:$0xf]
        %v9232 = vld [vmem:[#allocation9 + $0x214] sm:$0xf]
        %v9233 = vld [vmem:[#allocation9 + $0x218] sm:$0xf]
        %v9234 = vld [vmem:[#allocation9 + $0x21c] sm:$0xf]
        %v9235 = vld [vmem:[#allocation9 + $0x220] sm:$0xf]
        %v9236 = vld [vmem:[#allocation9 + $0x224] sm:$0xf]
        %v9237 = vld [vmem:[#allocation9 + $0x228] sm:$0xf]
        %v9238 = vld [vmem:[#allocation9 + $0x22c] sm:$0xf]
        %v9239 = vld [vmem:[#allocation9 + $0x230] sm:$0xf]
        %v9240 = vld [vmem:[#allocation9 + $0x234] sm:$0xf]
        %v9241 = vld [vmem:[#allocation9 + $0x238] sm:$0xf]
        %v9242 = vld [vmem:[#allocation9 + $0x23c] sm:$0xf]
        %v9243 = vld [vmem:[%s8] sm:$0x1]
        %v9245 = vlaneseq
        %v9246 = vshrl.u32 %v9245, 7
        %v9247 = vsub.s32 0, %v9246
        %v9248 = vrot.slane %v9243, %v9247
        %v9394 = vunpack.c.l.b16 %v9099
        %v9395 = vunpack.c.l.b16 %v9100
        %v9396 = vunpack.c.l.b16 %v9101
        %v9397 = vunpack.c.l.b16 %v9102
        %v9398 = vunpack.c.l.b16 %v9103
        %v9399 = vunpack.c.l.b16 %v9104
        %v9400 = vunpack.c.l.b16 %v9105
        %v9401 = vunpack.c.l.b16 %v9106
        %v9402 = vunpack.c.l.b16 %v9107
        %v9403 = vunpack.c.l.b16 %v9108
        %v9404 = vunpack.c.l.b16 %v9109
        %v9405 = vunpack.c.l.b16 %v9110
        %v9406 = vunpack.c.l.b16 %v9111
        %v9407 = vunpack.c.l.b16 %v9112
        %v9408 = vunpack.c.l.b16 %v9113
        %v9409 = vunpack.c.l.b16 %v9114
        %v9410 = vunpack.c.l.b16 %v9115
        %v9411 = vunpack.c.l.b16 %v9116
        %v9412 = vunpack.c.l.b16 %v9117
        %v9413 = vunpack.c.l.b16 %v9118
        %v9414 = vunpack.c.l.b16 %v9119
        %v9415 = vunpack.c.l.b16 %v9120
        %v9416 = vunpack.c.l.b16 %v9121
        %v9417 = vunpack.c.l.b16 %v9122
        %v9418 = vunpack.c.l.b16 %v9123
        %v9419 = vunpack.c.l.b16 %v9124
        %v9420 = vunpack.c.l.b16 %v9125
        %v9421 = vunpack.c.l.b16 %v9126
        %v9422 = vunpack.c.l.b16 %v9127
        %v9423 = vunpack.c.l.b16 %v9128
        %v9424 = vunpack.c.l.b16 %v9129
        %v9425 = vunpack.c.l.b16 %v9130
        %v9426 = vunpack.c.l.b16 %v9131
        %v9427 = vunpack.c.l.b16 %v9132
        %v9428 = vunpack.c.l.b16 %v9133
        %v9429 = vunpack.c.l.b16 %v9134
        %v9430 = vunpack.c.l.b16 %v9135
        %v9431 = vunpack.c.l.b16 %v9136
        %v9432 = vunpack.c.l.b16 %v9137
        %v9433 = vunpack.c.l.b16 %v9138
        %v9434 = vunpack.c.l.b16 %v9139
        %v9435 = vunpack.c.l.b16 %v9140
        %v9436 = vunpack.c.l.b16 %v9141
        %v9437 = vunpack.c.l.b16 %v9142
        %v9438 = vunpack.c.l.b16 %v9143
        %v9439 = vunpack.c.l.b16 %v9144
        %v9440 = vunpack.c.l.b16 %v9145
        %v9441 = vunpack.c.l.b16 %v9146
        %v9442 = vunpack.c.l.b16 %v9147
        %v9443 = vunpack.c.l.b16 %v9148
        %v9444 = vunpack.c.l.b16 %v9149
        %v9445 = vunpack.c.l.b16 %v9150
        %v9446 = vunpack.c.l.b16 %v9151
        %v9447 = vunpack.c.l.b16 %v9152
        %v9448 = vunpack.c.l.b16 %v9153
        %v9449 = vunpack.c.l.b16 %v9154
        %v9450 = vunpack.c.l.b16 %v9155
        %v9451 = vunpack.c.l.b16 %v9156
        %v9452 = vunpack.c.l.b16 %v9157
        %v9453 = vunpack.c.l.b16 %v9158
        %v9454 = vunpack.c.l.b16 %v9159
        %v9455 = vunpack.c.l.b16 %v9160
        %v9456 = vunpack.c.l.b16 %v9161
        %v9457 = vunpack.c.l.b16 %v9162
        %v9458 = vunpack.c.l.b16 %v9163
        %v9459 = vunpack.c.l.b16 %v9164
        %v9460 = vunpack.c.l.b16 %v9165
        %v9461 = vunpack.c.l.b16 %v9166
        %v9462 = vunpack.c.l.b16 %v9167
        %v9463 = vunpack.c.l.b16 %v9168
        %v9464 = vunpack.c.l.b16 %v9169
        %v9465 = vunpack.c.l.b16 %v9170
        %v9466 = vunpack.c.l.b16 %v9171
        %v9467 = vunpack.c.l.b16 %v9172
        %v9468 = vunpack.c.l.b16 %v9173
        %v9469 = vunpack.c.l.b16 %v9174
        %v9470 = vunpack.c.l.b16 %v9175
        %v9471 = vunpack.c.l.b16 %v9176
        %v9472 = vunpack.c.l.b16 %v9177
        %v9473 = vunpack.c.l.b16 %v9178
        %v9474 = vunpack.c.l.b16 %v9179
        %v9475 = vunpack.c.l.b16 %v9180
        %v9476 = vunpack.c.l.b16 %v9181
        %v9477 = vunpack.c.l.b16 %v9182
        %v9478 = vunpack.c.l.b16 %v9183
        %v9479 = vunpack.c.l.b16 %v9184
        %v9480 = vunpack.c.l.b16 %v9185
        %v9481 = vunpack.c.l.b16 %v9186
        %v9482 = vunpack.c.l.b16 %v9187
        %v9483 = vunpack.c.l.b16 %v9188
        %v9484 = vunpack.c.l.b16 %v9189
        %v9485 = vunpack.c.l.b16 %v9190
        %v9486 = vunpack.c.l.b16 %v9191
        %v9487 = vunpack.c.l.b16 %v9192
        %v9488 = vunpack.c.l.b16 %v9193
        %v9489 = vunpack.c.l.b16 %v9194
        %v9490 = vunpack.c.l.b16 %v9195
        %v9491 = vunpack.c.l.b16 %v9196
        %v9492 = vunpack.c.l.b16 %v9197
        %v9493 = vunpack.c.l.b16 %v9198
        %v9494 = vunpack.c.l.b16 %v9199
        %v9495 = vunpack.c.l.b16 %v9200
        %v9496 = vunpack.c.l.b16 %v9201
        %v9497 = vunpack.c.l.b16 %v9202
        %v9498 = vunpack.c.l.b16 %v9203
        %v9499 = vunpack.c.l.b16 %v9204
        %v9500 = vunpack.c.l.b16 %v9205
        %v9501 = vunpack.c.l.b16 %v9206
        %v9502 = vunpack.c.l.b16 %v9207
        %v9503 = vunpack.c.l.b16 %v9208
        %v9504 = vunpack.c.l.b16 %v9209
        %v9505 = vunpack.c.l.b16 %v9210
        %v9506 = vunpack.c.l.b16 %v9211
        %v9507 = vunpack.c.l.b16 %v9212
        %v9508 = vunpack.c.l.b16 %v9213
        %v9509 = vunpack.c.l.b16 %v9214
        %v9510 = vunpack.c.l.b16 %v9215
        %v9511 = vunpack.c.l.b16 %v9216
        %v9512 = vunpack.c.l.b16 %v9217
        %v9513 = vunpack.c.l.b16 %v9218
        %v9514 = vunpack.c.l.b16 %v9219
        %v9515 = vunpack.c.l.b16 %v9220
        %v9516 = vunpack.c.l.b16 %v9221
        %v9517 = vunpack.c.l.b16 %v9222
        %v9518 = vunpack.c.l.b16 %v9223
        %v9519 = vunpack.c.l.b16 %v9224
        %v9520 = vunpack.c.l.b16 %v9225
        %v9521 = vunpack.c.l.b16 %v9226
        %v9522 = vunpack.c.l.b16 %v9227
        %v9523 = vunpack.c.l.b16 %v9228
        %v9524 = vunpack.c.l.b16 %v9229
        %v9525 = vunpack.c.l.b16 %v9230
        %v9526 = vunpack.c.l.b16 %v9231
        %v9527 = vunpack.c.l.b16 %v9232
        %v9528 = vunpack.c.l.b16 %v9233
        %v9529 = vunpack.c.l.b16 %v9234
        %v9530 = vunpack.c.l.b16 %v9235
        %v9531 = vunpack.c.l.b16 %v9236
        %v9532 = vunpack.c.l.b16 %v9237
        %v9533 = vunpack.c.l.b16 %v9238
        %v9534 = vunpack.c.l.b16 %v9239
        %v9535 = vunpack.c.l.b16 %v9240
        %v9536 = vunpack.c.l.b16 %v9241
        %v9537 = vunpack.c.l.b16 %v9242
        %v9538 = vpack.c.b16 %v9395, %v9394
        %v9539 = vpack.c.b16 %v9397, %v9396
        %v9540 = vpack.c.b16 %v9399, %v9398
        %v9541 = vpack.c.b16 %v9401, %v9400
        %v9542 = vpack.c.b16 %v9403, %v9402
        %v9543 = vpack.c.b16 %v9405, %v9404
        %v9544 = vpack.c.b16 %v9407, %v9406
        %v9545 = vpack.c.b16 %v9409, %v9408
        %v9546 = vpack.c.b16 %v9411, %v9410
        %v9547 = vpack.c.b16 %v9413, %v9412
        %v9548 = vpack.c.b16 %v9415, %v9414
        %v9549 = vpack.c.b16 %v9417, %v9416
        %v9550 = vpack.c.b16 %v9419, %v9418
        %v9551 = vpack.c.b16 %v9421, %v9420
        %v9552 = vpack.c.b16 %v9423, %v9422
        %v9553 = vpack.c.b16 %v9425, %v9424
        %v9554 = vpack.c.b16 %v9427, %v9426
        %v9555 = vpack.c.b16 %v9429, %v9428
        %v9556 = vpack.c.b16 %v9431, %v9430
        %v9557 = vpack.c.b16 %v9433, %v9432
        %v9558 = vpack.c.b16 %v9435, %v9434
        %v9559 = vpack.c.b16 %v9437, %v9436
        %v9560 = vpack.c.b16 %v9439, %v9438
        %v9561 = vpack.c.b16 %v9441, %v9440
        %v9562 = vpack.c.b16 %v9443, %v9442
        %v9563 = vpack.c.b16 %v9445, %v9444
        %v9564 = vpack.c.b16 %v9447, %v9446
        %v9565 = vpack.c.b16 %v9449, %v9448
        %v9566 = vpack.c.b16 %v9451, %v9450
        %v9567 = vpack.c.b16 %v9453, %v9452
        %v9568 = vpack.c.b16 %v9455, %v9454
        %v9569 = vpack.c.b16 %v9457, %v9456
        %v9570 = vpack.c.b16 %v9459, %v9458
        %v9571 = vpack.c.b16 %v9461, %v9460
        %v9572 = vpack.c.b16 %v9463, %v9462
        %v9573 = vpack.c.b16 %v9465, %v9464
        %v9574 = vpack.c.b16 %v9467, %v9466
        %v9575 = vpack.c.b16 %v9469, %v9468
        %v9576 = vpack.c.b16 %v9471, %v9470
        %v9577 = vpack.c.b16 %v9473, %v9472
        %v9578 = vpack.c.b16 %v9475, %v9474
        %v9579 = vpack.c.b16 %v9477, %v9476
        %v9580 = vpack.c.b16 %v9479, %v9478
        %v9581 = vpack.c.b16 %v9481, %v9480
        %v9582 = vpack.c.b16 %v9483, %v9482
        %v9583 = vpack.c.b16 %v9485, %v9484
        %v9584 = vpack.c.b16 %v9487, %v9486
        %v9585 = vpack.c.b16 %v9489, %v9488
        %v9586 = vpack.c.b16 %v9491, %v9490
        %v9587 = vpack.c.b16 %v9493, %v9492
        %v9588 = vpack.c.b16 %v9495, %v9494
        %v9589 = vpack.c.b16 %v9497, %v9496
        %v9590 = vpack.c.b16 %v9499, %v9498
        %v9591 = vpack.c.b16 %v9501, %v9500
        %v9592 = vpack.c.b16 %v9503, %v9502
        %v9593 = vpack.c.b16 %v9505, %v9504
        %v9594 = vpack.c.b16 %v9507, %v9506
        %v9595 = vpack.c.b16 %v9509, %v9508
        %v9596 = vpack.c.b16 %v9511, %v9510
        %v9597 = vpack.c.b16 %v9513, %v9512
        %v9598 = vpack.c.b16 %v9515, %v9514
        %v9599 = vpack.c.b16 %v9517, %v9516
        %v9600 = vpack.c.b16 %v9519, %v9518
        %v9601 = vpack.c.b16 %v9521, %v9520
        %v9602 = vpack.c.b16 %v9523, %v9522
        %v9603 = vpack.c.b16 %v9525, %v9524
        %v9604 = vpack.c.b16 %v9527, %v9526
        %v9605 = vpack.c.b16 %v9529, %v9528
        %v9606 = vpack.c.b16 %v9531, %v9530
        %v9607 = vpack.c.b16 %v9533, %v9532
        %v9608 = vpack.c.b16 %v9535, %v9534
        %v9609 = vpack.c.b16 %v9537, %v9536
        %9682 = vmatprep.subr.bf16.mxu0 0
        %9683 = vmatpush1.bf16.msra.mxu0 %v9538
        %9684 = vmatprep.subr.bf16.mxu0 0
        %9685 = vmatpush1.bf16.msra.mxu0 %v9539
        %9686 = vmatprep.subr.bf16.mxu0 0
        %9687 = vmatpush1.bf16.msra.mxu0 %v9540
        %9688 = vmatprep.subr.bf16.mxu0 0
        %9689 = vmatpush1.bf16.msra.mxu0 %v9541
        %9690 = vmatprep.subr.bf16.mxu0 0
        %9691 = vmatpush1.bf16.msra.mxu0 %v9542
        %9692 = vmatprep.subr.bf16.mxu0 0
        %9693 = vmatpush1.bf16.msra.mxu0 %v9543
        %9694 = vmatprep.subr.bf16.mxu0 0
        %9695 = vmatpush1.bf16.msra.mxu0 %v9544
        %9696 = vmatprep.subr.bf16.mxu0 0
        %9697 = vmatpush1.bf16.msra.mxu0 %v9545
        %9698 = vmatprep.subr.bf16.mxu0 0
        %9699 = vmatpush1.bf16.msra.mxu0 %v9546
        %9700 = vmatprep.subr.bf16.mxu0 0
        %9701 = vmatpush1.bf16.msra.mxu0 %v9547
        %9702 = vmatprep.subr.bf16.mxu0 0
        %9703 = vmatpush1.bf16.msra.mxu0 %v9548
        %9704 = vmatprep.subr.bf16.mxu0 0
        %9705 = vmatpush1.bf16.msra.mxu0 %v9549
        %9706 = vmatprep.subr.bf16.mxu0 0
        %9707 = vmatpush1.bf16.msra.mxu0 %v9550
        %9708 = vmatprep.subr.bf16.mxu0 0
        %9709 = vmatpush1.bf16.msra.mxu0 %v9551
        %9710 = vmatprep.subr.bf16.mxu0 0
        %9711 = vmatpush1.bf16.msra.mxu0 %v9552
        %9712 = vmatprep.subr.bf16.mxu0 0
        %9713 = vmatpush1.bf16.msra.mxu0 %v9553
        %9714 = vmatprep.mubr.bf16.mxu0 %v8956
        %9715 = vmatmul.mubr.bf16.gmra.mrb[0].mxu0 %v8955
        %v9716 = vpop.f32.mrb[0].mxu0
        %v9717 = vadd.f32 %v9248, %v9716
        %v9718 = vpop.f32.mrb[0].mxu0
        %v9719 = vpop.f32.mrb[0].mxu0
        %v9720 = vadd.f32 %v9248, %v9719
        %v9721 = vpop.f32.mrb[0].mxu0
        %9722 = vmatprep.mubr.bf16.mxu0 %v8965
        %9723 = vmatmul.mubr.bf16.gmra.mrb[0].mxu0 %v8964
        %v9724 = vpop.f32.mrb[0].mxu0
        %v9725 = vadd.f32 %v9248, %v9724
        %v9726 = vpop.f32.mrb[0].mxu0
        %v9727 = vpop.f32.mrb[0].mxu0
        %v9728 = vadd.f32 %v9248, %v9727
        %v9729 = vpop.f32.mrb[0].mxu0
        %9730 = vmatprep.mubr.bf16.mxu0 %v8974
        %9731 = vmatmul.mubr.bf16.gmra.mrb[0].mxu0 %v8973
        %v9732 = vpop.f32.mrb[0].mxu0
        %v9733 = vadd.f32 %v9248, %v9732
        %v9734 = vpop.f32.mrb[0].mxu0
        %v9735 = vpop.f32.mrb[0].mxu0
        %v9736 = vadd.f32 %v9248, %v9735
        %v9737 = vpop.f32.mrb[0].mxu0
        %9738 = vmatprep.mubr.bf16.mxu0 %v8983
        %9739 = vmatmul.mubr.bf16.gmra.mrb[0].mxu0 %v8982
        %v9740 = vpop.f32.mrb[0].mxu0
        %v9741 = vadd.f32 %v9248, %v9740
        %v9742 = vpop.f32.mrb[0].mxu0
        %v9743 = vpop.f32.mrb[0].mxu0
        %v9744 = vadd.f32 %v9248, %v9743
        %v9745 = vpop.f32.mrb[0].mxu0
        %9746 = vmatprep.mubr.bf16.mxu0 %v8992
        %9747 = vmatmul.mubr.bf16.gmra.mrb[0].mxu0 %v8991
        %v9748 = vpop.f32.mrb[0].mxu0
        %v9749 = vadd.f32 %v9248, %v9748
        %v9750 = vpop.f32.mrb[0].mxu0
        %v9751 = vpop.f32.mrb[0].mxu0
        %v9752 = vadd.f32 %v9248, %v9751
        %v9753 = vpop.f32.mrb[0].mxu0
        %9754 = vmatprep.mubr.bf16.mxu0 %v9001
        %9755 = vmatmul.mubr.bf16.gmra.mrb[0].mxu0 %v9000
        %v9756 = vpop.f32.mrb[0].mxu0
        %v9757 = vadd.f32 %v9248, %v9756
        %v9758 = vpop.f32.mrb[0].mxu0
        %v9759 = vpop.f32.mrb[0].mxu0
        %v9760 = vadd.f32 %v9248, %v9759
        %v9761 = vpop.f32.mrb[0].mxu0
        %9762 = vmatprep.mubr.bf16.mxu0 %v9010
        %9763 = vmatmul.mubr.bf16.gmra.mrb[0].mxu0 %v9009
        %v9764 = vpop.f32.mrb[0].mxu0
        %v9765 = vadd.f32 %v9248, %v9764
        %v9766 = vpop.f32.mrb[0].mxu0
        %v9767 = vpop.f32.mrb[0].mxu0
        %v9768 = vadd.f32 %v9248, %v9767
        %v9769 = vpop.f32.mrb[0].mxu0
        %9770 = vmatprep.mubr.bf16.mxu0 %v9019
        %9771 = vmatmul.mubr.bf16.gmra.mrb[0].mxu0 %v9018
        %v9772 = vpop.f32.mrb[0].mxu0
        %v9773 = vadd.f32 %v9248, %v9772
        %v9774 = vpop.f32.mrb[0].mxu0
        %v9775 = vpop.f32.mrb[0].mxu0
        %v9776 = vadd.f32 %v9248, %v9775
        %v9777 = vpop.f32.mrb[0].mxu0
        %9778 = vmatprep.mubr.bf16.mxu0 %v9028
        %9779 = vmatmul.mubr.bf16.gmra.mrb[0].mxu0 %v9027
        %v9780 = vpop.f32.mrb[0].mxu0
        %v9781 = vadd.f32 %v9248, %v9780
        %v9782 = vpop.f32.mrb[0].mxu0
        %v9783 = vpop.f32.mrb[0].mxu0
        %v9784 = vadd.f32 %v9248, %v9783
        %v9785 = vpop.f32.mrb[0].mxu0
        %9786 = vmatprep.mubr.bf16.mxu0 %v9037
        %9787 = vmatmul.mubr.bf16.gmra.mrb[0].mxu0 %v9036
        %v9788 = vpop.f32.mrb[0].mxu0
        %v9789 = vadd.f32 %v9248, %v9788
        %v9790 = vpop.f32.mrb[0].mxu0
        %v9791 = vpop.f32.mrb[0].mxu0
        %v9792 = vadd.f32 %v9248, %v9791
        %v9793 = vpop.f32.mrb[0].mxu0
        %9794 = vmatprep.mubr.bf16.mxu0 %v9046
        %9795 = vmatmul.mubr.bf16.gmra.mrb[0].mxu0 %v9045
        %v9796 = vpop.f32.mrb[0].mxu0
        %v9797 = vadd.f32 %v9248, %v9796
        %v9798 = vpop.f32.mrb[0].mxu0
        %v9799 = vpop.f32.mrb[0].mxu0
        %v9800 = vadd.f32 %v9248, %v9799
        %v9801 = vpop.f32.mrb[0].mxu0
        %9802 = vmatprep.mubr.bf16.mxu0 %v9055
        %9803 = vmatmul.mubr.bf16.gmra.mrb[0].mxu0 %v9054
        %v9804 = vpop.f32.mrb[0].mxu0
        %v9805 = vadd.f32 %v9248, %v9804
        %v9806 = vpop.f32.mrb[0].mxu0
        %v9807 = vpop.f32.mrb[0].mxu0
        %v9808 = vadd.f32 %v9248, %v9807
        %v9809 = vpop.f32.mrb[0].mxu0
        %9810 = vmatprep.mubr.bf16.mxu0 %v9064
        %9811 = vmatmul.mubr.bf16.gmra.mrb[0].mxu0 %v9063
        %v9812 = vpop.f32.mrb[0].mxu0
        %v9813 = vadd.f32 %v9248, %v9812
        %v9814 = vpop.f32.mrb[0].mxu0
        %v9815 = vpop.f32.mrb[0].mxu0
        %v9816 = vadd.f32 %v9248, %v9815
        %v9817 = vpop.f32.mrb[0].mxu0
        %9818 = vmatprep.mubr.bf16.mxu0 %v9073
        %9819 = vmatmul.mubr.bf16.gmra.mrb[0].mxu0 %v9072
        %v9820 = vpop.f32.mrb[0].mxu0
        %v9821 = vadd.f32 %v9248, %v9820
        %v9822 = vpop.f32.mrb[0].mxu0
        %v9823 = vpop.f32.mrb[0].mxu0
        %v9824 = vadd.f32 %v9248, %v9823
        %v9825 = vpop.f32.mrb[0].mxu0
        %9826 = vmatprep.mubr.bf16.mxu0 %v9082
        %9827 = vmatmul.mubr.bf16.gmra.mrb[0].mxu0 %v9081
        %v9828 = vpop.f32.mrb[0].mxu0
        %v9829 = vadd.f32 %v9248, %v9828
        %v9830 = vpop.f32.mrb[0].mxu0
        %v9831 = vpop.f32.mrb[0].mxu0
        %v9832 = vadd.f32 %v9248, %v9831
        %v9833 = vpop.f32.mrb[0].mxu0
        %9834 = vmatprep.mubr.bf16.mxu0 %v9091
        %9835 = vmatmul.mubr.bf16.gmra.mrb[0].mxu0 %v9090
        %v9836 = vpop.f32.mrb[0].mxu0
        %v9837 = vadd.f32 %v9248, %v9836
        %v9838 = vpop.f32.mrb[0].mxu0
        %v9839 = vpop.f32.mrb[0].mxu0
        %v9840 = vadd.f32 %v9248, %v9839
        %v9841 = vpop.f32.mrb[0].mxu0
        %9842 = vdwg.mxu0
        %9843 = vmatprep.subr.bf16.mxu0 0
        %9844 = vmatpush1.bf16.msra.mxu0 %v9554
        %9845 = vmatprep.subr.bf16.mxu0 0
        %9846 = vmatpush1.bf16.msra.mxu0 %v9555
        %9847 = vmatprep.subr.bf16.mxu0 0
        %9848 = vmatpush1.bf16.msra.mxu0 %v9556
        %9849 = vmatprep.subr.bf16.mxu0 0
        %9850 = vmatpush1.bf16.msra.mxu0 %v9557
        %9851 = vmatprep.subr.bf16.mxu0 0
        %9852 = vmatpush1.bf16.msra.mxu0 %v9558
        %9853 = vmatprep.subr.bf16.mxu0 0
        %9854 = vmatpush1.bf16.msra.mxu0 %v9559
        %9855 = vmatprep.subr.bf16.mxu0 0
        %9856 = vmatpush1.bf16.msra.mxu0 %v9560
        %9857 = vmatprep.subr.bf16.mxu0 0
        %9858 = vmatpush1.bf16.msra.mxu0 %v9561
        %9859 = vmatprep.subr.bf16.mxu0 0
        %9860 = vmatpush1.bf16.msra.mxu0 %v9562
        %9861 = vmatprep.subr.bf16.mxu0 0
        %9862 = vmatpush1.bf16.msra.mxu0 %v9563
        %9863 = vmatprep.subr.bf16.mxu0 0
        %9864 = vmatpush1.bf16.msra.mxu0 %v9564
        %9865 = vmatprep.subr.bf16.mxu0 0
        %9866 = vmatpush1.bf16.msra.mxu0 %v9565
        %9867 = vmatprep.subr.bf16.mxu0 0
        %9868 = vmatpush1.bf16.msra.mxu0 %v9566
        %9869 = vmatprep.subr.bf16.mxu0 0
        %9870 = vmatpush1.bf16.msra.mxu0 %v9567
        %9871 = vmatprep.subr.bf16.mxu0 0
        %9872 = vmatpush1.bf16.msra.mxu0 %v9568
        %9873 = vmatprep.subr.bf16.mxu0 0
        %9874 = vmatpush1.bf16.msra.mxu0 %v9569
        %9875 = vmatprep.mubr.bf16.mxu0 %v8958
        %9876 = vmatmul.mubr.bf16.gmra.mrb[0].mxu0 %v8957
        %v9877 = vpop.f32.mrb[0].mxu0
        %v9878 = vadd.f32 %v9717, %v9877
        %v9879 = vpop.f32.mrb[0].mxu0
        %v9880 = vpop.f32.mrb[0].mxu0
        %v9881 = vadd.f32 %v9720, %v9880
        %v9882 = vpop.f32.mrb[0].mxu0
        %9883 = vmatprep.mubr.bf16.mxu0 %v8967
        %9884 = vmatmul.mubr.bf16.gmra.mrb[0].mxu0 %v8966
        %v9885 = vpop.f32.mrb[0].mxu0
        %v9886 = vadd.f32 %v9725, %v9885
        %v9887 = vpop.f32.mrb[0].mxu0
        %v9888 = vpop.f32.mrb[0].mxu0
        %v9889 = vadd.f32 %v9728, %v9888
        %v9890 = vpop.f32.mrb[0].mxu0
        %9891 = vmatprep.mubr.bf16.mxu0 %v8976
        %9892 = vmatmul.mubr.bf16.gmra.mrb[0].mxu0 %v8975
        %v9893 = vpop.f32.mrb[0].mxu0
        %v9894 = vadd.f32 %v9733, %v9893
        %v9895 = vpop.f32.mrb[0].mxu0
        %v9896 = vpop.f32.mrb[0].mxu0
        %v9897 = vadd.f32 %v9736, %v9896
        %v9898 = vpop.f32.mrb[0].mxu0
        %9899 = vmatprep.mubr.bf16.mxu0 %v8985
        %9900 = vmatmul.mubr.bf16.gmra.mrb[0].mxu0 %v8984
        %v9901 = vpop.f32.mrb[0].mxu0
        %v9902 = vadd.f32 %v9741, %v9901
        %v9903 = vpop.f32.mrb[0].mxu0
        %v9904 = vpop.f32.mrb[0].mxu0
        %v9905 = vadd.f32 %v9744, %v9904
        %v9906 = vpop.f32.mrb[0].mxu0
        %9907 = vmatprep.mubr.bf16.mxu0 %v8994
        %9908 = vmatmul.mubr.bf16.gmra.mrb[0].mxu0 %v8993
        %v9909 = vpop.f32.mrb[0].mxu0
        %v9910 = vadd.f32 %v9749, %v9909
        %v9911 = vpop.f32.mrb[0].mxu0
        %v9912 = vpop.f32.mrb[0].mxu0
        %v9913 = vadd.f32 %v9752, %v9912
        %v9914 = vpop.f32.mrb[0].mxu0
        %9915 = vmatprep.mubr.bf16.mxu0 %v9003
        %9916 = vmatmul.mubr.bf16.gmra.mrb[0].mxu0 %v9002
        %v9917 = vpop.f32.mrb[0].mxu0
        %v9918 = vadd.f32 %v9757, %v9917
        %v9919 = vpop.f32.mrb[0].mxu0
        %v9920 = vpop.f32.mrb[0].mxu0
        %v9921 = vadd.f32 %v9760, %v9920
        %v9922 = vpop.f32.mrb[0].mxu0
        %9923 = vmatprep.mubr.bf16.mxu0 %v9012
        %9924 = vmatmul.mubr.bf16.gmra.mrb[0].mxu0 %v9011
        %v9925 = vpop.f32.mrb[0].mxu0
        %v9926 = vadd.f32 %v9765, %v9925
        %v9927 = vpop.f32.mrb[0].mxu0
        %v9928 = vpop.f32.mrb[0].mxu0
        %v9929 = vadd.f32 %v9768, %v9928
        %v9930 = vpop.f32.mrb[0].mxu0
        %9931 = vmatprep.mubr.bf16.mxu0 %v9021
        %9932 = vmatmul.mubr.bf16.gmra.mrb[0].mxu0 %v9020
        %v9933 = vpop.f32.mrb[0].mxu0
        %v9934 = vadd.f32 %v9773, %v9933
        %v9935 = vpop.f32.mrb[0].mxu0
        %v9936 = vpop.f32.mrb[0].mxu0
        %v9937 = vadd.f32 %v9776, %v9936
        %v9938 = vpop.f32.mrb[0].mxu0
        %9939 = vmatprep.mubr.bf16.mxu0 %v9030
        %9940 = vmatmul.mubr.bf16.gmra.mrb[0].mxu0 %v9029
        %v9941 = vpop.f32.mrb[0].mxu0
        %v9942 = vadd.f32 %v9781, %v9941
        %v9943 = vpop.f32.mrb[0].mxu0
        %v9944 = vpop.f32.mrb[0].mxu0
        %v9945 = vadd.f32 %v9784, %v9944
        %v9946 = vpop.f32.mrb[0].mxu0
        %9947 = vmatprep.mubr.bf16.mxu0 %v9039
        %9948 = vmatmul.mubr.bf16.gmra.mrb[0].mxu0 %v9038
        %v9949 = vpop.f32.mrb[0].mxu0
        %v9950 = vadd.f32 %v9789, %v9949
        %v9951 = vpop.f32.mrb[0].mxu0
        %v9952 = vpop.f32.mrb[0].mxu0
        %v9953 = vadd.f32 %v9792, %v9952
        %v9954 = vpop.f32.mrb[0].mxu0
        %9955 = vmatprep.mubr.bf16.mxu0 %v9048
        %9956 = vmatmul.mubr.bf16.gmra.mrb[0].mxu0 %v9047
        %v9957 = vpop.f32.mrb[0].mxu0
        %v9958 = vadd.f32 %v9797, %v9957
        %v9959 = vpop.f32.mrb[0].mxu0
        %v9960 = vpop.f32.mrb[0].mxu0
        %v9961 = vadd.f32 %v9800, %v9960
        %v9962 = vpop.f32.mrb[0].mxu0
        %9963 = vmatprep.mubr.bf16.mxu0 %v9057
        %9964 = vmatmul.mubr.bf16.gmra.mrb[0].mxu0 %v9056
        %v9965 = vpop.f32.mrb[0].mxu0
        %v9966 = vadd.f32 %v9805, %v9965
        %v9967 = vpop.f32.mrb[0].mxu0
        %v9968 = vpop.f32.mrb[0].mxu0
        %v9969 = vadd.f32 %v9808, %v9968
        %v9970 = vpop.f32.mrb[0].mxu0
        %9971 = vmatprep.mubr.bf16.mxu0 %v9066
        %9972 = vmatmul.mubr.bf16.gmra.mrb[0].mxu0 %v9065
        %v9973 = vpop.f32.mrb[0].mxu0
        %v9974 = vadd.f32 %v9813, %v9973
        %v9975 = vpop.f32.mrb[0].mxu0
        %v9976 = vpop.f32.mrb[0].mxu0
        %v9977 = vadd.f32 %v9816, %v9976
        %v9978 = vpop.f32.mrb[0].mxu0
        %9979 = vmatprep.mubr.bf16.mxu0 %v9075
        %9980 = vmatmul.mubr.bf16.gmra.mrb[0].mxu0 %v9074
        %v9981 = vpop.f32.mrb[0].mxu0
        %v9982 = vadd.f32 %v9821, %v9981
        %v9983 = vpop.f32.mrb[0].mxu0
        %v9984 = vpop.f32.mrb[0].mxu0
        %v9985 = vadd.f32 %v9824, %v9984
        %v9986 = vpop.f32.mrb[0].mxu0
        %9987 = vmatprep.mubr.bf16.mxu0 %v9084
        %9988 = vmatmul.mubr.bf16.gmra.mrb[0].mxu0 %v9083
        %v9989 = vpop.f32.mrb[0].mxu0
        %v9990 = vadd.f32 %v9829, %v9989
        %v9991 = vpop.f32.mrb[0].mxu0
        %v9992 = vpop.f32.mrb[0].mxu0
        %v9993 = vadd.f32 %v9832, %v9992
        %v9994 = vpop.f32.mrb[0].mxu0
        %9995 = vmatprep.mubr.bf16.mxu0 %v9093
        %9996 = vmatmul.mubr.bf16.gmra.mrb[0].mxu0 %v9092
        %v9997 = vpop.f32.mrb[0].mxu0
        %v9998 = vadd.f32 %v9837, %v9997
        %v9999 = vpop.f32.mrb[0].mxu0
        %v10000 = vpop.f32.mrb[0].mxu0
        %v10001 = vadd.f32 %v9840, %v10000
        %v10002 = vpop.f32.mrb[0].mxu0
        %10003 = vdwg.mxu0
        %10004 = vmatprep.subr.bf16.mxu0 0
        %10005 = vmatpush1.bf16.msra.mxu0 %v9570
        %10006 = vmatprep.subr.bf16.mxu0 0
        %10007 = vmatpush1.bf16.msra.mxu0 %v9571
        %10008 = vmatprep.subr.bf16.mxu0 0
        %10009 = vmatpush1.bf16.msra.mxu0 %v9572
        %10010 = vmatprep.subr.bf16.mxu0 0
        %10011 = vmatpush1.bf16.msra.mxu0 %v9573
        %10012 = vmatprep.subr.bf16.mxu0 0
        %10013 = vmatpush1.bf16.msra.mxu0 %v9574
        %10014 = vmatprep.subr.bf16.mxu0 0
        %10015 = vmatpush1.bf16.msra.mxu0 %v9575
        %10016 = vmatprep.subr.bf16.mxu0 0
        %10017 = vmatpush1.bf16.msra.mxu0 %v9576
        %10018 = vmatprep.subr.bf16.mxu0 0
        %10019 = vmatpush1.bf16.msra.mxu0 %v9577
        %10020 = vmatprep.subr.bf16.mxu0 0
        %10021 = vmatpush1.bf16.msra.mxu0 %v9578
        %10022 = vmatprep.subr.bf16.mxu0 0
        %10023 = vmatpush1.bf16.msra.mxu0 %v9579
        %10024 = vmatprep.subr.bf16.mxu0 0
        %10025 = vmatpush1.bf16.msra.mxu0 %v9580
        %10026 = vmatprep.subr.bf16.mxu0 0
        %10027 = vmatpush1.bf16.msra.mxu0 %v9581
        %10028 = vmatprep.subr.bf16.mxu0 0
        %10029 = vmatpush1.bf16.msra.mxu0 %v9582
        %10030 = vmatprep.subr.bf16.mxu0 0
        %10031 = vmatpush1.bf16.msra.mxu0 %v9583
        %10032 = vmatprep.subr.bf16.mxu0 0
        %10033 = vmatpush1.bf16.msra.mxu0 %v9584
        %10034 = vmatprep.subr.bf16.mxu0 0
        %10035 = vmatpush1.bf16.msra.mxu0 %v9585
        %10036 = vmatprep.mubr.bf16.mxu0 %v8960
        %10037 = vmatmul.mubr.bf16.gmra.mrb[0].mxu0 %v8959
        %v10038 = vpop.f32.mrb[0].mxu0
        %v10039 = vadd.f32 %v9878, %v10038
        %v10040 = vpop.f32.mrb[0].mxu0
        %v10041 = vpop.f32.mrb[0].mxu0
        %v10042 = vadd.f32 %v9881, %v10041
        %v10043 = vpop.f32.mrb[0].mxu0
        %10044 = vmatprep.mubr.bf16.mxu0 %v8969
        %10045 = vmatmul.mubr.bf16.gmra.mrb[0].mxu0 %v8968
        %v10046 = vpop.f32.mrb[0].mxu0
        %v10047 = vadd.f32 %v9886, %v10046
        %v10048 = vpop.f32.mrb[0].mxu0
        %v10049 = vpop.f32.mrb[0].mxu0
        %v10050 = vadd.f32 %v9889, %v10049
        %v10051 = vpop.f32.mrb[0].mxu0
        %10052 = vmatprep.mubr.bf16.mxu0 %v8978
        %10053 = vmatmul.mubr.bf16.gmra.mrb[0].mxu0 %v8977
        %v10054 = vpop.f32.mrb[0].mxu0
        %v10055 = vadd.f32 %v9894, %v10054
        %v10056 = vpop.f32.mrb[0].mxu0
        %v10057 = vpop.f32.mrb[0].mxu0
        %v10058 = vadd.f32 %v9897, %v10057
        %v10059 = vpop.f32.mrb[0].mxu0
        %10060 = vmatprep.mubr.bf16.mxu0 %v8987
        %10061 = vmatmul.mubr.bf16.gmra.mrb[0].mxu0 %v8986
        %v10062 = vpop.f32.mrb[0].mxu0
        %v10063 = vadd.f32 %v9902, %v10062
        %v10064 = vpop.f32.mrb[0].mxu0
        %v10065 = vpop.f32.mrb[0].mxu0
        %v10066 = vadd.f32 %v9905, %v10065
        %v10067 = vpop.f32.mrb[0].mxu0
        %10068 = vmatprep.mubr.bf16.mxu0 %v8996
        %10069 = vmatmul.mubr.bf16.gmra.mrb[0].mxu0 %v8995
        %v10070 = vpop.f32.mrb[0].mxu0
        %v10071 = vadd.f32 %v9910, %v10070
        %v10072 = vpop.f32.mrb[0].mxu0
        %v10073 = vpop.f32.mrb[0].mxu0
        %v10074 = vadd.f32 %v9913, %v10073
        %v10075 = vpop.f32.mrb[0].mxu0
        %10076 = vmatprep.mubr.bf16.mxu0 %v9005
        %10077 = vmatmul.mubr.bf16.gmra.mrb[0].mxu0 %v9004
        %v10078 = vpop.f32.mrb[0].mxu0
        %v10079 = vadd.f32 %v9918, %v10078
        %v10080 = vpop.f32.mrb[0].mxu0
        %v10081 = vpop.f32.mrb[0].mxu0
        %v10082 = vadd.f32 %v9921, %v10081
        %v10083 = vpop.f32.mrb[0].mxu0
        %10084 = vmatprep.mubr.bf16.mxu0 %v9014
        %10085 = vmatmul.mubr.bf16.gmra.mrb[0].mxu0 %v9013
        %v10086 = vpop.f32.mrb[0].mxu0
        %v10087 = vadd.f32 %v9926, %v10086
        %v10088 = vpop.f32.mrb[0].mxu0
        %v10089 = vpop.f32.mrb[0].mxu0
        %v10090 = vadd.f32 %v9929, %v10089
        %v10091 = vpop.f32.mrb[0].mxu0
        %10092 = vmatprep.mubr.bf16.mxu0 %v9023
        %10093 = vmatmul.mubr.bf16.gmra.mrb[0].mxu0 %v9022
        %v10094 = vpop.f32.mrb[0].mxu0
        %v10095 = vadd.f32 %v9934, %v10094
        %v10096 = vpop.f32.mrb[0].mxu0
        %v10097 = vpop.f32.mrb[0].mxu0
        %v10098 = vadd.f32 %v9937, %v10097
        %v10099 = vpop.f32.mrb[0].mxu0
        %10100 = vmatprep.mubr.bf16.mxu0 %v9032
        %10101 = vmatmul.mubr.bf16.gmra.mrb[0].mxu0 %v9031
        %v10102 = vpop.f32.mrb[0].mxu0
        %v10103 = vadd.f32 %v9942, %v10102
        %v10104 = vpop.f32.mrb[0].mxu0
        %v10105 = vpop.f32.mrb[0].mxu0
        %v10106 = vadd.f32 %v9945, %v10105
        %v10107 = vpop.f32.mrb[0].mxu0
        %10108 = vmatprep.mubr.bf16.mxu0 %v9041
        %10109 = vmatmul.mubr.bf16.gmra.mrb[0].mxu0 %v9040
        %v10110 = vpop.f32.mrb[0].mxu0
        %v10111 = vadd.f32 %v9950, %v10110
        %v10112 = vpop.f32.mrb[0].mxu0
        %v10113 = vpop.f32.mrb[0].mxu0
        %v10114 = vadd.f32 %v9953, %v10113
        %v10115 = vpop.f32.mrb[0].mxu0
        %10116 = vmatprep.mubr.bf16.mxu0 %v9050
        %10117 = vmatmul.mubr.bf16.gmra.mrb[0].mxu0 %v9049
        %v10118 = vpop.f32.mrb[0].mxu0
        %v10119 = vadd.f32 %v9958, %v10118
        %v10120 = vpop.f32.mrb[0].mxu0
        %v10121 = vpop.f32.mrb[0].mxu0
        %v10122 = vadd.f32 %v9961, %v10121
        %v10123 = vpop.f32.mrb[0].mxu0
        %10124 = vmatprep.mubr.bf16.mxu0 %v9059
        %10125 = vmatmul.mubr.bf16.gmra.mrb[0].mxu0 %v9058
        %v10126 = vpop.f32.mrb[0].mxu0
        %v10127 = vadd.f32 %v9966, %v10126
        %v10128 = vpop.f32.mrb[0].mxu0
        %v10129 = vpop.f32.mrb[0].mxu0
        %v10130 = vadd.f32 %v9969, %v10129
        %v10131 = vpop.f32.mrb[0].mxu0
        %10132 = vmatprep.mubr.bf16.mxu0 %v9068
        %10133 = vmatmul.mubr.bf16.gmra.mrb[0].mxu0 %v9067
        %v10134 = vpop.f32.mrb[0].mxu0
        %v10135 = vadd.f32 %v9974, %v10134
        %v10136 = vpop.f32.mrb[0].mxu0
        %v10137 = vpop.f32.mrb[0].mxu0
        %v10138 = vadd.f32 %v9977, %v10137
        %v10139 = vpop.f32.mrb[0].mxu0
        %10140 = vmatprep.mubr.bf16.mxu0 %v9077
        %10141 = vmatmul.mubr.bf16.gmra.mrb[0].mxu0 %v9076
        %v10142 = vpop.f32.mrb[0].mxu0
        %v10143 = vadd.f32 %v9982, %v10142
        %v10144 = vpop.f32.mrb[0].mxu0
        %v10145 = vpop.f32.mrb[0].mxu0
        %v10146 = vadd.f32 %v9985, %v10145
        %v10147 = vpop.f32.mrb[0].mxu0
        %10148 = vmatprep.mubr.bf16.mxu0 %v9086
        %10149 = vmatmul.mubr.bf16.gmra.mrb[0].mxu0 %v9085
        %v10150 = vpop.f32.mrb[0].mxu0
        %v10151 = vadd.f32 %v9990, %v10150
        %v10152 = vpop.f32.mrb[0].mxu0
        %v10153 = vpop.f32.mrb[0].mxu0
        %v10154 = vadd.f32 %v9993, %v10153
        %v10155 = vpop.f32.mrb[0].mxu0
        %10156 = vmatprep.mubr.bf16.mxu0 %v9095
        %10157 = vmatmul.mubr.bf16.gmra.mrb[0].mxu0 %v9094
        %v10158 = vpop.f32.mrb[0].mxu0
        %v10159 = vadd.f32 %v9998, %v10158
        %v10160 = vpop.f32.mrb[0].mxu0
        %v10161 = vpop.f32.mrb[0].mxu0
        %v10162 = vadd.f32 %v10001, %v10161
        %v10163 = vpop.f32.mrb[0].mxu0
        %10164 = vdwg.mxu0
        %10165 = vmatprep.subr.bf16.mxu0 0
        %10166 = vmatpush1.bf16.msra.mxu0 %v9586
        %10167 = vmatprep.subr.bf16.mxu0 0
        %10168 = vmatpush1.bf16.msra.mxu0 %v9587
        %10169 = vmatprep.subr.bf16.mxu0 0
        %10170 = vmatpush1.bf16.msra.mxu0 %v9588
        %10171 = vmatprep.subr.bf16.mxu0 0
        %10172 = vmatpush1.bf16.msra.mxu0 %v9589
        %10173 = vmatprep.subr.bf16.mxu0 0
        %10174 = vmatpush1.bf16.msra.mxu0 %v9590
        %10175 = vmatprep.subr.bf16.mxu0 0
        %10176 = vmatpush1.bf16.msra.mxu0 %v9591
        %10177 = vmatprep.subr.bf16.mxu0 0
        %10178 = vmatpush1.bf16.msra.mxu0 %v9592
        %10179 = vmatprep.subr.bf16.mxu0 0
        %10180 = vmatpush1.bf16.msra.mxu0 %v9593
        %10181 = vmatprep.subr.bf16.mxu0 0
        %10182 = vmatpush1.bf16.msra.mxu0 %v9594
        %10183 = vmatprep.subr.bf16.mxu0 0
        %10184 = vmatpush1.bf16.msra.mxu0 %v9595
        %10185 = vmatprep.subr.bf16.mxu0 0
        %10186 = vmatpush1.bf16.msra.mxu0 %v9596
        %10187 = vmatprep.subr.bf16.mxu0 0
        %10188 = vmatpush1.bf16.msra.mxu0 %v9597
        %10189 = vmatprep.subr.bf16.mxu0 0
        %10190 = vmatpush1.bf16.msra.mxu0 %v9598
        %10191 = vmatprep.subr.bf16.mxu0 0
        %10192 = vmatpush1.bf16.msra.mxu0 %v9599
        %10193 = vmatprep.subr.bf16.mxu0 0
        %10194 = vmatpush1.bf16.msra.mxu0 %v9600
        %10195 = vmatprep.subr.bf16.mxu0 0
        %10196 = vmatpush1.bf16.msra.mxu0 %v9601
        %10197 = vmatprep.mubr.bf16.mxu0 %v8962
        %10198 = vmatmul.mubr.bf16.gmra.mrb[0].mxu0 %v8961
        %v10199 = vpop.f32.mrb[0].mxu0
        %v10200 = vadd.f32 %v10039, %v10199
        %v10201 = vpop.f32.mrb[0].mxu0
        %v10202 = vpop.f32.mrb[0].mxu0
        %v10203 = vadd.f32 %v10042, %v10202
        %v10204 = vpop.f32.mrb[0].mxu0
        %10205 = vmatprep.mubr.bf16.mxu0 %v8971
        %10206 = vmatmul.mubr.bf16.gmra.mrb[0].mxu0 %v8970
        %v10207 = vpop.f32.mrb[0].mxu0
        %v10208 = vadd.f32 %v10047, %v10207
        %v10209 = vpop.f32.mrb[0].mxu0
        %v10210 = vpop.f32.mrb[0].mxu0
        %v10211 = vadd.f32 %v10050, %v10210
        %v10212 = vpop.f32.mrb[0].mxu0
        %10213 = vmatprep.mubr.bf16.mxu0 %v8980
        %10214 = vmatmul.mubr.bf16.gmra.mrb[0].mxu0 %v8979
        %v10215 = vpop.f32.mrb[0].mxu0
        %v10216 = vadd.f32 %v10055, %v10215
        %v10217 = vpop.f32.mrb[0].mxu0
        %v10218 = vpop.f32.mrb[0].mxu0
        %v10219 = vadd.f32 %v10058, %v10218
        %v10220 = vpop.f32.mrb[0].mxu0
        %10221 = vmatprep.mubr.bf16.mxu0 %v8989
        %10222 = vmatmul.mubr.bf16.gmra.mrb[0].mxu0 %v8988
        %v10223 = vpop.f32.mrb[0].mxu0
        %v10224 = vadd.f32 %v10063, %v10223
        %v10225 = vpop.f32.mrb[0].mxu0
        %v10226 = vpop.f32.mrb[0].mxu0
        %v10227 = vadd.f32 %v10066, %v10226
        %v10228 = vpop.f32.mrb[0].mxu0
        %10229 = vmatprep.mubr.bf16.mxu0 %v8998
        %10230 = vmatmul.mubr.bf16.gmra.mrb[0].mxu0 %v8997
        %v10231 = vpop.f32.mrb[0].mxu0
        %v10232 = vadd.f32 %v10071, %v10231
        %v10233 = vpop.f32.mrb[0].mxu0
        %v10234 = vpop.f32.mrb[0].mxu0
        %v10235 = vadd.f32 %v10074, %v10234
        %v10236 = vpop.f32.mrb[0].mxu0
        %10237 = vmatprep.mubr.bf16.mxu0 %v9007
        %10238 = vmatmul.mubr.bf16.gmra.mrb[0].mxu0 %v9006
        %v10239 = vpop.f32.mrb[0].mxu0
        %v10240 = vadd.f32 %v10079, %v10239
        %v10241 = vpop.f32.mrb[0].mxu0
        %v10242 = vpop.f32.mrb[0].mxu0
        %v10243 = vadd.f32 %v10082, %v10242
        %v10244 = vpop.f32.mrb[0].mxu0
        %10245 = vmatprep.mubr.bf16.mxu0 %v9016
        %10246 = vmatmul.mubr.bf16.gmra.mrb[0].mxu0 %v9015
        %v10247 = vpop.f32.mrb[0].mxu0
        %v10248 = vadd.f32 %v10087, %v10247
        %v10249 = vpop.f32.mrb[0].mxu0
        %v10250 = vpop.f32.mrb[0].mxu0
        %v10251 = vadd.f32 %v10090, %v10250
        %v10252 = vpop.f32.mrb[0].mxu0
        %10253 = vmatprep.mubr.bf16.mxu0 %v9025
        %10254 = vmatmul.mubr.bf16.gmra.mrb[0].mxu0 %v9024
        %v10255 = vpop.f32.mrb[0].mxu0
        %v10256 = vadd.f32 %v10095, %v10255
        %v10257 = vpop.f32.mrb[0].mxu0
        %v10258 = vpop.f32.mrb[0].mxu0
        %v10259 = vadd.f32 %v10098, %v10258
        %v10260 = vpop.f32.mrb[0].mxu0
        %10261 = vmatprep.mubr.bf16.mxu0 %v9034
        %10262 = vmatmul.mubr.bf16.gmra.mrb[0].mxu0 %v9033
        %v10263 = vpop.f32.mrb[0].mxu0
        %v10264 = vadd.f32 %v10103, %v10263
        %v10265 = vpop.f32.mrb[0].mxu0
        %v10266 = vpop.f32.mrb[0].mxu0
        %v10267 = vadd.f32 %v10106, %v10266
        %v10268 = vpop.f32.mrb[0].mxu0
        %10269 = vmatprep.mubr.bf16.mxu0 %v9043
        %10270 = vmatmul.mubr.bf16.gmra.mrb[0].mxu0 %v9042
        %v10271 = vpop.f32.mrb[0].mxu0
        %v10272 = vadd.f32 %v10111, %v10271
        %v10273 = vpop.f32.mrb[0].mxu0
        %v10274 = vpop.f32.mrb[0].mxu0
        %v10275 = vadd.f32 %v10114, %v10274
        %v10276 = vpop.f32.mrb[0].mxu0
        %10277 = vmatprep.mubr.bf16.mxu0 %v9052
        %10278 = vmatmul.mubr.bf16.gmra.mrb[0].mxu0 %v9051
        %v10279 = vpop.f32.mrb[0].mxu0
        %v10280 = vadd.f32 %v10119, %v10279
        %v10281 = vpop.f32.mrb[0].mxu0
        %v10282 = vpop.f32.mrb[0].mxu0
        %v10283 = vadd.f32 %v10122, %v10282
        %v10284 = vpop.f32.mrb[0].mxu0
        %10285 = vmatprep.mubr.bf16.mxu0 %v9061
        %10286 = vmatmul.mubr.bf16.gmra.mrb[0].mxu0 %v9060
        %v10287 = vpop.f32.mrb[0].mxu0
        %v10288 = vadd.f32 %v10127, %v10287
        %v10289 = vpop.f32.mrb[0].mxu0
        %v10290 = vpop.f32.mrb[0].mxu0
        %v10291 = vadd.f32 %v10130, %v10290
        %v10292 = vpop.f32.mrb[0].mxu0
        %10293 = vmatprep.mubr.bf16.mxu0 %v9070
        %10294 = vmatmul.mubr.bf16.gmra.mrb[0].mxu0 %v9069
        %v10295 = vpop.f32.mrb[0].mxu0
        %v10296 = vadd.f32 %v10135, %v10295
        %v10297 = vpop.f32.mrb[0].mxu0
        %v10298 = vpop.f32.mrb[0].mxu0
        %v10299 = vadd.f32 %v10138, %v10298
        %v10300 = vpop.f32.mrb[0].mxu0
        %10301 = vmatprep.mubr.bf16.mxu0 %v9079
        %10302 = vmatmul.mubr.bf16.gmra.mrb[0].mxu0 %v9078
        %v10303 = vpop.f32.mrb[0].mxu0
        %v10304 = vadd.f32 %v10143, %v10303
        %v10305 = vpop.f32.mrb[0].mxu0
        %v10306 = vpop.f32.mrb[0].mxu0
        %v10307 = vadd.f32 %v10146, %v10306
        %v10308 = vpop.f32.mrb[0].mxu0
        %10309 = vmatprep.mubr.bf16.mxu0 %v9088
        %10310 = vmatmul.mubr.bf16.gmra.mrb[0].mxu0 %v9087
        %v10311 = vpop.f32.mrb[0].mxu0
        %v10312 = vadd.f32 %v10151, %v10311
        %v10313 = vpop.f32.mrb[0].mxu0
        %v10314 = vpop.f32.mrb[0].mxu0
        %v10315 = vadd.f32 %v10154, %v10314
        %v10316 = vpop.f32.mrb[0].mxu0
        %10317 = vmatprep.mubr.bf16.mxu0 %v9097
        %10318 = vmatmul.mubr.bf16.gmra.mrb[0].mxu0 %v9096
        %v10319 = vpop.f32.mrb[0].mxu0
        %v10320 = vadd.f32 %v10159, %v10319
        %v10321 = vpop.f32.mrb[0].mxu0
        %v10322 = vpop.f32.mrb[0].mxu0
        %v10323 = vadd.f32 %v10162, %v10322
        %v10324 = vpop.f32.mrb[0].mxu0
        %10325 = vdwg.mxu0
        %10326 = vmatprep.subr.bf16.mxu0 0
        %10327 = vmatpush1.bf16.msra.mxu0 %v9602
        %10328 = vmatprep.subr.bf16.mxu0 0
        %10329 = vmatpush1.bf16.msra.mxu0 %v9603
        %10330 = vmatprep.subr.bf16.mxu0 0
        %10331 = vmatpush1.bf16.msra.mxu0 %v9604
        %10332 = vmatprep.subr.bf16.mxu0 0
        %10333 = vmatpush1.bf16.msra.mxu0 %v9605
        %10334 = vmatprep.subr.bf16.mxu0 0
        %10335 = vmatpush1.bf16.msra.mxu0 %v9606
        %10336 = vmatprep.subr.bf16.mxu0 0
        %10337 = vmatpush1.bf16.msra.mxu0 %v9607
        %10338 = vmatprep.subr.bf16.mxu0 0
        %10339 = vmatpush1.bf16.msra.mxu0 %v9608
        %10340 = vmatprep.subr.bf16.mxu0 0
        %10341 = vmatpush1.bf16.msra.mxu0 %v9609
        %10342 = vmatprep.subr.bf16.mxu0 0
        %10343 = vmatpush1.bf16.msra.mxu0 0
        %10344 = vmatprep.subr.bf16.mxu0 0
        %10345 = vmatpush1.bf16.msra.mxu0 0
        %10346 = vmatprep.subr.bf16.mxu0 0
        %10347 = vmatpush1.bf16.msra.mxu0 0
        %10348 = vmatprep.subr.bf16.mxu0 0
        %10349 = vmatpush1.bf16.msra.mxu0 0
        %10350 = vmatprep.subr.bf16.mxu0 0
        %10351 = vmatpush1.bf16.msra.mxu0 0
        %10352 = vmatprep.subr.bf16.mxu0 0
        %10353 = vmatpush1.bf16.msra.mxu0 0
        %10354 = vmatprep.subr.bf16.mxu0 0
        %10355 = vmatpush1.bf16.msra.mxu0 0
        %10356 = vmatprep.subr.bf16.mxu0 0
        %10357 = vmatpush1.bf16.msra.mxu0 0
        %10358 = vmatprep.mubr.bf16.mxu0 0
        %10359 = vmatmul.mubr.bf16.gmra.mrb[0].mxu0 %v8963
        %v10360 = vpop.f32.mrb[0].mxu0
        %v10361 = vadd.f32 %v10200, %v10360
        %v10362 = vpop.f32.mrb[0].mxu0
        %v10363 = vpop.f32.mrb[0].mxu0
        %v10364 = vadd.f32 %v10203, %v10363
        %v10365 = vpop.f32.mrb[0].mxu0
        %10366 = vmatprep.mubr.bf16.mxu0 0
        %10367 = vmatmul.mubr.bf16.gmra.mrb[0].mxu0 %v8972
        %v10368 = vpop.f32.mrb[0].mxu0
        %v10369 = vadd.f32 %v10208, %v10368
        %v10370 = vpop.f32.mrb[0].mxu0
        %v10371 = vpop.f32.mrb[0].mxu0
        %v10372 = vadd.f32 %v10211, %v10371
        %v10373 = vpop.f32.mrb[0].mxu0
        %10374 = vmatprep.mubr.bf16.mxu0 0
        %10375 = vmatmul.mubr.bf16.gmra.mrb[0].mxu0 %v8981
        %v10376 = vpop.f32.mrb[0].mxu0
        %v10377 = vadd.f32 %v10216, %v10376
        %v10378 = vpop.f32.mrb[0].mxu0
        %v10379 = vpop.f32.mrb[0].mxu0
        %v10380 = vadd.f32 %v10219, %v10379
        %v10381 = vpop.f32.mrb[0].mxu0
        %10382 = vmatprep.mubr.bf16.mxu0 0
        %10383 = vmatmul.mubr.bf16.gmra.mrb[0].mxu0 %v8990
        %v10384 = vpop.f32.mrb[0].mxu0
        %v10385 = vadd.f32 %v10224, %v10384
        %v10386 = vpop.f32.mrb[0].mxu0
        %v10387 = vpop.f32.mrb[0].mxu0
        %v10388 = vadd.f32 %v10227, %v10387
        %v10389 = vpop.f32.mrb[0].mxu0
        %10390 = vmatprep.mubr.bf16.mxu0 0
        %10391 = vmatmul.mubr.bf16.gmra.mrb[0].mxu0 %v8999
        %v10392 = vpop.f32.mrb[0].mxu0
        %v10393 = vadd.f32 %v10232, %v10392
        %v10394 = vpop.f32.mrb[0].mxu0
        %v10395 = vpop.f32.mrb[0].mxu0
        %v10396 = vadd.f32 %v10235, %v10395
        %v10397 = vpop.f32.mrb[0].mxu0
        %10398 = vmatprep.mubr.bf16.mxu0 0
        %10399 = vmatmul.mubr.bf16.gmra.mrb[0].mxu0 %v9008
        %v10400 = vpop.f32.mrb[0].mxu0
        %v10401 = vadd.f32 %v10240, %v10400
        %v10402 = vpop.f32.mrb[0].mxu0
        %v10403 = vpop.f32.mrb[0].mxu0
        %v10404 = vadd.f32 %v10243, %v10403
        %v10405 = vpop.f32.mrb[0].mxu0
        %10406 = vmatprep.mubr.bf16.mxu0 0
        %10407 = vmatmul.mubr.bf16.gmra.mrb[0].mxu0 %v9017
        %v10408 = vpop.f32.mrb[0].mxu0
        %v10409 = vadd.f32 %v10248, %v10408
        %v10410 = vpop.f32.mrb[0].mxu0
        %v10411 = vpop.f32.mrb[0].mxu0
        %v10412 = vadd.f32 %v10251, %v10411
        %v10413 = vpop.f32.mrb[0].mxu0
        %10414 = vmatprep.mubr.bf16.mxu0 0
        %10415 = vmatmul.mubr.bf16.gmra.mrb[0].mxu0 %v9026
        %v10416 = vpop.f32.mrb[0].mxu0
        %v10417 = vadd.f32 %v10256, %v10416
        %v10418 = vpop.f32.mrb[0].mxu0
        %v10419 = vpop.f32.mrb[0].mxu0
        %v10420 = vadd.f32 %v10259, %v10419
        %v10421 = vpop.f32.mrb[0].mxu0
        %10422 = vmatprep.mubr.bf16.mxu0 0
        %10423 = vmatmul.mubr.bf16.gmra.mrb[0].mxu0 %v9035
        %v10424 = vpop.f32.mrb[0].mxu0
        %v10425 = vadd.f32 %v10264, %v10424
        %v10426 = vpop.f32.mrb[0].mxu0
        %v10427 = vpop.f32.mrb[0].mxu0
        %v10428 = vadd.f32 %v10267, %v10427
        %v10429 = vpop.f32.mrb[0].mxu0
        %10430 = vmatprep.mubr.bf16.mxu0 0
        %10431 = vmatmul.mubr.bf16.gmra.mrb[0].mxu0 %v9044
        %v10432 = vpop.f32.mrb[0].mxu0
        %v10433 = vadd.f32 %v10272, %v10432
        %v10434 = vpop.f32.mrb[0].mxu0
        %v10435 = vpop.f32.mrb[0].mxu0
        %v10436 = vadd.f32 %v10275, %v10435
        %v10437 = vpop.f32.mrb[0].mxu0
        %10438 = vmatprep.mubr.bf16.mxu0 0
        %10439 = vmatmul.mubr.bf16.gmra.mrb[0].mxu0 %v9053
        %v10440 = vpop.f32.mrb[0].mxu0
        %v10441 = vadd.f32 %v10280, %v10440
        %v10442 = vpop.f32.mrb[0].mxu0
        %v10443 = vpop.f32.mrb[0].mxu0
        %v10444 = vadd.f32 %v10283, %v10443
        %v10445 = vpop.f32.mrb[0].mxu0
        %10446 = vmatprep.mubr.bf16.mxu0 0
        %10447 = vmatmul.mubr.bf16.gmra.mrb[0].mxu0 %v9062
        %v10448 = vpop.f32.mrb[0].mxu0
        %v10449 = vadd.f32 %v10288, %v10448
        %v10450 = vpop.f32.mrb[0].mxu0
        %v10451 = vpop.f32.mrb[0].mxu0
        %v10452 = vadd.f32 %v10291, %v10451
        %v10453 = vpop.f32.mrb[0].mxu0
        %10454 = vmatprep.mubr.bf16.mxu0 0
        %10455 = vmatmul.mubr.bf16.gmra.mrb[0].mxu0 %v9071
        %v10456 = vpop.f32.mrb[0].mxu0
        %v10457 = vadd.f32 %v10296, %v10456
        %v10458 = vpop.f32.mrb[0].mxu0
        %v10459 = vpop.f32.mrb[0].mxu0
        %v10460 = vadd.f32 %v10299, %v10459
        %v10461 = vpop.f32.mrb[0].mxu0
        %10462 = vmatprep.mubr.bf16.mxu0 0
        %10463 = vmatmul.mubr.bf16.gmra.mrb[0].mxu0 %v9080
        %v10464 = vpop.f32.mrb[0].mxu0
        %v10465 = vadd.f32 %v10304, %v10464
        %v10466 = vpop.f32.mrb[0].mxu0
        %v10467 = vpop.f32.mrb[0].mxu0
        %v10468 = vadd.f32 %v10307, %v10467
        %v10469 = vpop.f32.mrb[0].mxu0
        %10470 = vmatprep.mubr.bf16.mxu0 0
        %10471 = vmatmul.mubr.bf16.gmra.mrb[0].mxu0 %v9089
        %v10472 = vpop.f32.mrb[0].mxu0
        %v10473 = vadd.f32 %v10312, %v10472
        %v10474 = vpop.f32.mrb[0].mxu0
        %v10475 = vpop.f32.mrb[0].mxu0
        %v10476 = vadd.f32 %v10315, %v10475
        %v10477 = vpop.f32.mrb[0].mxu0
        %10478 = vmatprep.mubr.bf16.mxu0 0
        %10479 = vmatmul.mubr.bf16.gmra.mrb[0].mxu0 %v9098
        %v10480 = vpop.f32.mrb[0].mxu0
        %v10481 = vadd.f32 %v10320, %v10480
        %v10482 = vpop.f32.mrb[0].mxu0
        %v10483 = vpop.f32.mrb[0].mxu0
        %v10484 = vadd.f32 %v10323, %v10483
        %v10485 = vpop.f32.mrb[0].mxu0
        %10486 = vdwg.mxu0
        %v10487 = vadd.f32 %v10361, %v381
        %v10488 = vadd.f32 %v10364, %v382
        %v10489 = vadd.f32 %v10369, %v383
        %v10490 = vadd.f32 %v10372, %v384
        %v10491 = vadd.f32 %v10377, %v385
        %v10492 = vadd.f32 %v10380, %v386
        %v10493 = vadd.f32 %v10385, %v387
        %v10494 = vadd.f32 %v10388, %v388
        %v10495 = vadd.f32 %v10393, %v389
        %v10496 = vadd.f32 %v10396, %v390
        %v10497 = vadd.f32 %v10401, %v391
        %v10498 = vadd.f32 %v10404, %v392
        %v10499 = vadd.f32 %v10409, %v393
        %v10500 = vadd.f32 %v10412, %v394
        %v10501 = vadd.f32 %v10417, %v395
        %v10502 = vadd.f32 %v10420, %v396
        %v10503 = vadd.f32 %v10425, %v397
        %v10504 = vadd.f32 %v10428, %v398
        %v10505 = vadd.f32 %v10433, %v399
        %v10506 = vadd.f32 %v10436, %v400
        %v10507 = vadd.f32 %v10441, %v401
        %v10508 = vadd.f32 %v10444, %v402
        %v10509 = vadd.f32 %v10449, %v403
        %v10510 = vadd.f32 %v10452, %v404
        %v10511 = vadd.f32 %v10457, %v405
        %v10512 = vadd.f32 %v10460, %v406
        %v10513 = vadd.f32 %v10465, %v407
        %v10514 = vadd.f32 %v10468, %v408
        %v10515 = vadd.f32 %v10473, %v409
        %v10516 = vadd.f32 %v10476, %v410
        %v10517 = vadd.f32 %v10481, %v411
        %v10518 = vadd.f32 %v10484, %v412
        %10519 = vst [vmem:[%s379] sm:$0xff] %v10487
        %10520 = vst [vmem:[%s379 + $0x8] sm:$0xff] %v10488
        %10521 = vst [vmem:[%s379 + $0x10] sm:$0xff] %v10489
        %10522 = vst [vmem:[%s379 + $0x18] sm:$0xff] %v10490
        %10523 = vst [vmem:[%s379 + $0x20] sm:$0xff] %v10491
        %10524 = vst [vmem:[%s379 + $0x28] sm:$0xff] %v10492
        %10525 = vst [vmem:[%s379 + $0x30] sm:$0xff] %v10493
        %10526 = vst [vmem:[%s379 + $0x38] sm:$0xff] %v10494
        %10527 = vst [vmem:[%s379 + $0x40] sm:$0xff] %v10495
        %10528 = vst [vmem:[%s379 + $0x48] sm:$0xff] %v10496
        %10529 = vst [vmem:[%s379 + $0x50] sm:$0xff] %v10497
        %10530 = vst [vmem:[%s379 + $0x58] sm:$0xff] %v10498
        %10531 = vst [vmem:[%s379 + $0x60] sm:$0xff] %v10499
        %10532 = vst [vmem:[%s379 + $0x68] sm:$0xff] %v10500
        %10533 = vst [vmem:[%s379 + $0x70] sm:$0xff] %v10501
        %10534 = vst [vmem:[%s379 + $0x78] sm:$0xff] %v10502
        %10535 = vst [vmem:[%s379 + $0x80] sm:$0xff] %v10503
        %10536 = vst [vmem:[%s379 + $0x88] sm:$0xff] %v10504
        %10537 = vst [vmem:[%s379 + $0x90] sm:$0xff] %v10505
        %10538 = vst [vmem:[%s379 + $0x98] sm:$0xff] %v10506
        %10539 = vst [vmem:[%s379 + $0xa0] sm:$0xff] %v10507
        %10540 = vst [vmem:[%s379 + $0xa8] sm:$0xff] %v10508
        %10541 = vst [vmem:[%s379 + $0xb0] sm:$0xff] %v10509
        %10542 = vst [vmem:[%s379 + $0xb8] sm:$0xff] %v10510
        %10543 = vst [vmem:[%s379 + $0xc0] sm:$0xff] %v10511
        %10544 = vst [vmem:[%s379 + $0xc8] sm:$0xff] %v10512
        %10545 = vst [vmem:[%s379 + $0xd0] sm:$0xff] %v10513
        %10546 = vst [vmem:[%s379 + $0xd8] sm:$0xff] %v10514
        %10547 = vst [vmem:[%s379 + $0xe0] sm:$0xff] %v10515
        %10548 = vst [vmem:[%s379 + $0xe8] sm:$0xff] %v10516
        %10549 = vst [vmem:[%s379 + $0xf0] sm:$0xff] %v10517
        %10550 = vst [vmem:[%s379 + $0xf8] sm:$0xff] %v10518
        %s10551 = sand.u32 %s229, 1
        %s10552 = scalar_lea.sflag [#allocation6], %s10551
        %s10553 = sand.u32 %s229, 1
        %s10554 = smul.addr %s10553, 256
        %s10555 = scalar_lea.vmem [#allocation10], %s10554
        // Predicated region
        $region69: #{tpu_custom_call.1} parent=55 // pred_check
          %p10556 = pneg %p239
        $region70: #{tpu_custom_call.1} parent=55 // pred_check_branch
          %10558 = sbr.rel (%p10556) target = $region72
        $region71: #{tpu_custom_call.1} parent=55 // pred_region
          %s10560 = ssub.s32 4096, 4096
          %10561 = vsyncadd %s10552, %s10560
          %s10562 = smul.addr %s27, 32
          %s10563 = smul.addr %s10562, 128
          %s10564 = scalar_lea.hbm %s9, %s10563
          %s10565 = sshll.u32 %s10555, 4
          %s10566 = int_to_ptr.vmem [resolvable:$true] %s10565
          %10571 = dma.vmem_to_hbm [thread:$0]  %s10566, 4096, %s10564, %s10552, 128, 128, 8
        $region72: #{tpu_custom_call.1} parent=55 // pred_fallthru
          _
      $region56: #{tpu_custom_call.1} parent=5 // pred_fallthru
        _
      %p10572 = scmp.le.s32.totalorder 2, %s22
      // Predicated region
      $region73: #{tpu_custom_call.1} parent=5 // pred_check
        %p10573 = pneg %p10572
      $region74: #{tpu_custom_call.1} parent=5 // pred_check_branch
        %10575 = sbr.rel (%p10573) target = $region76
      $region75: #{tpu_custom_call.1} parent=5 // pred_region
        %s10576 = ssub.s32 %s22, 2
        // Predicated region
        $region77: #{tpu_custom_call.1} parent=75 // pred_check
          %p10577 = pneg %p245
        $region78: #{tpu_custom_call.1} parent=75 // pred_check_branch
          %10579 = sbr.rel (%p10577) target = $region80
        $region79: #{tpu_custom_call.1} parent=75 // pred_region
          %s10580 = sand.u32 %s230, 1
          %s10581 = scalar_lea.sflag [#allocation6], %s10580
          %s10582 = sand.u32 %s230, 1
          %s10583 = smul.addr %s10582, 256
          %s10584 = scalar_lea.vmem [#allocation10], %s10583
          %10585 = dma.done %s10581, 4096
        $region80: #{tpu_custom_call.1} parent=75 // pred_fallthru
          _
      $region76: #{tpu_custom_call.1} parent=5 // pred_fallthru
        _
    $region6: #{tpu_custom_call.1} parent=1 // loop_footer
      %s26 = sadd.s32 1, %s22
    $region7: #{tpu_custom_call.1} parent=1 // loop_footer_branch
      %21 = sbr.rel target = $region3
    $region8: #{tpu_custom_call.1} parent=1 // loop_exit
      _
    %10586 = vsyncpa [#allocation5], 1
    %s10587 = scalar_lea.sflag [#allocation5], 1
    %10588 = vsyncpa %s10587, 1
    %10589 = vsyncpa [#allocation8], 1
    %10590 = vsyncpa [#allocation6], 1
    %s10591 = scalar_lea.sflag [#allocation6], 1
    %10592 = vsyncpa %s10591, 1

</llo_original>
